<compile_context>
chip_gen: v7x
topology: tpu7x:2x2x1
jax: 0.10.0
libtpu: 0.0.40
codegen_flags: <defaults>
</compile_context>

<pallas_src>
import functools

import jax
import jax.numpy as jnp
from jax.experimental import pallas as pl
from jax.experimental.pallas import tpu as pltpu

_LANES = 128


# ----------------------------------------------------------------------------
# Pallas kernels
# ----------------------------------------------------------------------------
def _conv_taps_kernel(x_ref, w_ref, b_ref, o_ref, *, wh, ww, Ho, Wo, act):
    """Stride-1 conv as an in-kernel tap gather + MXU matmul.

    x_ref: (1, Hi, Wi, C)   bf16  one batch element (grid axis = batch)
    w_ref: (wh*ww, C, 128)  bf16  per-tap weight matrices (zero-padded lanes)
    b_ref: (1, 128)         f32
    o_ref: (Ho*Wo, 128)     f32   lane-dense output
    """
    C = x_ref.shape[-1]
    M, Np = o_ref.shape
    x = x_ref[...]
    acc = jnp.zeros((M, Np), jnp.float32)
    for dh in range(wh):
        for dw in range(ww):
            xt = x[0, dh:dh + Ho, dw:dw + Wo, :].reshape(M, C)
            acc = acc + jnp.dot(xt, w_ref[dh * ww + dw],
                                preferred_element_type=jnp.float32)
    acc = acc + b_ref[...]
    if act == "relu":
        acc = jnp.maximum(acc, 0.0)
    elif act == "sigmoid":
        acc = jax.nn.sigmoid(acc)
    o_ref[...] = acc.astype(o_ref.dtype)


def _conv_taps(x, wt, bt, *, win, Ho, Wo, act):
    """x: (B, Hi, Wi, C) bf16; wt: (T, C, 128) bf16; bt: (1, 128) f32."""
    B, Hi, Wi, C = x.shape
    T, _, Np = wt.shape
    kern = functools.partial(_conv_taps_kernel, wh=win[0], ww=win[1],
                             Ho=Ho, Wo=Wo, act=act)
    return pl.pallas_call(
        kern,
        out_shape=jax.ShapeDtypeStruct((B * Ho * Wo, Np), jnp.float32),
        grid=(B,),
        in_specs=[
            pl.BlockSpec((1, Hi, Wi, C), lambda b: (b, 0, 0, 0)),
            pl.BlockSpec((T, C, Np), lambda b: (0, 0, 0)),
            pl.BlockSpec((1, Np), lambda b: (0, 0)),
        ],
        out_specs=pl.BlockSpec((Ho * Wo, Np), lambda b: (b, 0)),
        compiler_params=pltpu.CompilerParams(
            dimension_semantics=("parallel",)),
    )(x, wt, bt)


def _fc_fused_kernel(hf_ref, wml_ref, bml_ref, eps_ref, wd_ref, bd_ref,
                     mu_ref, lv_ref, d_ref, *, latent):
    """[fc_mu | fc_logvar] matmul + reparameterize + decoder fc + relu."""
    ml = jnp.dot(hf_ref[...], wml_ref[...],
                 preferred_element_type=jnp.float32) + bml_ref[...]
    mu = ml[:, :latent]
    lv = ml[:, latent:2 * latent]
    z = mu + eps_ref[...] * jnp.exp(0.5 * lv)
    d = jnp.dot(z.astype(wd_ref.dtype), wd_ref[...],
                preferred_element_type=jnp.float32) + bd_ref[...]
    mu_ref[...] = mu
    lv_ref[...] = lv
    d_ref[...] = jnp.maximum(d, 0.0)


# ----------------------------------------------------------------------------
# Layer glue (NHWC feature maps, PyTorch weight layouts)
# ----------------------------------------------------------------------------
def conv4x4_s2(x, w, b, act):
    """Conv2d(k=4, s=2, p=1) on NHWC x; w: (Cout, Cin, 4, 4) PyTorch layout."""
    B, H, W, Ci = x.shape
    Co = w.shape[0]
    xp = jnp.pad(x, ((0, 0), (1, 1), (1, 1), (0, 0)))
    Hh, Wh = (H + 2) // 2, (W + 2) // 2
    # space-to-depth (factor 2): stride-2 4x4 conv -> stride-1 2x2 taps on 4*Ci
    xs = xp.reshape(B, Hh, 2, Wh, 2, Ci).transpose(0, 1, 3, 2, 4, 5)
    xs = xs.reshape(B, Hh, Wh, 4 * Ci)
    # weight -> (tap = dh*2+dw, channel = (ph*2+pw)*Ci + ci, co), pad to 128 lanes
    w6 = w.reshape(Co, Ci, 2, 2, 2, 2)                   # (co, ci, dh, ph, dw, pw)
    wt = w6.transpose(2, 4, 3, 5, 1, 0).reshape(4, 4 * Ci, Co)
    wt = jnp.pad(wt, ((0, 0), (0, 0), (0, _LANES - Co)))
    bt = jnp.pad(b, (0, _LANES - Co)).reshape(1, _LANES).astype(jnp.float32)
    Ho, Wo = Hh - 1, Wh - 1
    out = _conv_taps(xs.astype(jnp.bfloat16), wt.astype(jnp.bfloat16), bt,
                     win=(2, 2), Ho=Ho, Wo=Wo, act=act)
    return out.reshape(B, Ho, Wo, _LANES)[..., :Co]


# sub-pixel parity r -> [(tap offset index into padded input, kernel index), ...]
_DECONV_TAPS = {0: ((1, 1), (0, 3)), 1: ((2, 0), (1, 2))}


def deconv4x4_s2(x, w, b, act):
    """ConvTranspose2d(k=4, s=2, p=1) on NHWC x; w: (Cin, Cout, 4, 4)."""
    B, H, W, Ci = x.shape
    Co = w.shape[1]
    xp = jnp.pad(x, ((0, 0), (1, 1), (1, 1), (0, 0)))
    # sub-pixel decomposition: stride-1 3x3 taps -> (r, c, co) output channels
    wt = jnp.zeros((9, Ci, 4 * Co), w.dtype)
    for r in (0, 1):
        for c in (0, 1):
            n0 = (r * 2 + c) * Co
            for dhi, kh in _DECONV_TAPS[r]:
                for dwi, kw in _DECONV_TAPS[c]:
                    wt = wt.at[dhi * 3 + dwi, :, n0:n0 + Co].set(w[:, :, kh, kw])
    wt = jnp.pad(wt, ((0, 0), (0, 0), (0, _LANES - 4 * Co)))
    bt = jnp.pad(jnp.tile(b, 4), (0, _LANES - 4 * Co)).reshape(1, _LANES)
    bt = bt.astype(jnp.float32)
    out = _conv_taps(xp.astype(jnp.bfloat16), wt.astype(jnp.bfloat16), bt,
                     win=(3, 3), Ho=H, Wo=W, act=act)
    out = out.reshape(B, H, W, _LANES)[..., :4 * Co].reshape(B, H, W, 2, 2, Co)
    # pixel shuffle: (b, a_h, r, a_w, c, co) -> (b, 2H, 2W, co)
    return out.transpose(0, 1, 3, 2, 4, 5).reshape(B, 2 * H, 2 * W, Co)


def _chw_to_hwc_cols(w2d, C, H, W):
    """Permute the trailing (C*H*W) axis of w2d from (c,h,w) to (h,w,c) order."""
    lead = w2d.shape[0]
    return w2d.reshape(lead, C, H, W).transpose(0, 2, 3, 1).reshape(lead, C * H * W)


def fc_stage(params, hf, eps, latent):
    """Fused fc_mu / fc_logvar / reparameterize / decoder fc (+relu)."""
    B = hf.shape[0]
    w_mu = _chw_to_hwc_cols(params["fc_mu_w"], 32, 8, 8)
    w_lv = _chw_to_hwc_cols(params["fc_logvar_w"], 32, 8, 8)
    w_ml = jnp.concatenate([w_mu, w_lv], axis=0).T             # (2048, 2L)
    b_ml = jnp.concatenate([params["fc_mu_b"],
                            params["fc_logvar_b"]]).reshape(1, -1)
    w_d = _chw_to_hwc_cols(params["dec_fc_w"].T, 32, 8, 8)     # (L, 2048) hwc cols
    b_d = params["dec_fc_b"].reshape(32, 8, 8).transpose(1, 2, 0).reshape(1, -1)
    mu, lv, d = pl.pallas_call(
        functools.partial(_fc_fused_kernel, latent=latent),
        out_shape=(
            jax.ShapeDtypeStruct((B, latent), jnp.float32),
            jax.ShapeDtypeStruct((B, latent), jnp.float32),
            jax.ShapeDtypeStruct((B, w_d.shape[1]), jnp.float32),
        ),
    )(hf.astype(jnp.bfloat16), w_ml.astype(jnp.bfloat16),
      b_ml.astype(jnp.float32), eps.astype(jnp.float32),
      w_d.astype(jnp.bfloat16), b_d.astype(jnp.float32))
    return mu, lv, d


# ----------------------------------------------------------------------------
# CVAE parameters + forward
# ----------------------------------------------------------------------------
def init_params(key, in_channels=3, latent_dim=16):
    ks = jax.random.split(key, 8)
    s = 0.05
    return {
        "enc_conv1_w": jax.random.normal(ks[0], (16, in_channels, 4, 4), jnp.float32) * s,
        "enc_conv1_b": jnp.zeros((16,), jnp.float32),
        "enc_conv2_w": jax.random.normal(ks[1], (32, 16, 4, 4), jnp.float32) * s,
        "enc_conv2_b": jnp.zeros((32,), jnp.float32),
        "fc_mu_w": jax.random.normal(ks[2], (latent_dim, 32 * 8 * 8), jnp.float32) * s,
        "fc_mu_b": jnp.zeros((latent_dim,), jnp.float32),
        "fc_logvar_w": jax.random.normal(ks[3], (latent_dim, 32 * 8 * 8), jnp.float32) * s,
        "fc_logvar_b": jnp.zeros((latent_dim,), jnp.float32),
        "dec_fc_w": jax.random.normal(ks[4], (32 * 8 * 8, latent_dim), jnp.float32) * s,
        "dec_fc_b": jnp.zeros((32 * 8 * 8,), jnp.float32),
        "dec_deconv1_w": jax.random.normal(ks[5], (32, 16, 4, 4), jnp.float32) * s,
        "dec_deconv1_b": jnp.zeros((16,), jnp.float32),
        "dec_deconv2_w": jax.random.normal(ks[6], (16, in_channels, 4, 4), jnp.float32) * s,
        "dec_deconv2_b": jnp.zeros((in_channels,), jnp.float32),
    }


@jax.jit
def cvae_forward(params, x_nchw, eps):
    B = x_nchw.shape[0]
    latent = eps.shape[1]
    x = jnp.transpose(x_nchw, (0, 2, 3, 1))                       # NHWC internally
    h = conv4x4_s2(x, params["enc_conv1_w"], params["enc_conv1_b"], "relu")
    h = conv4x4_s2(h, params["enc_conv2_w"], params["enc_conv2_b"], "relu")
    hf = h.reshape(B, -1)                                         # (h, w, c) order
    mu, logvar, d = fc_stage(params, hf, eps, latent)
    d = d.reshape(B, 8, 8, 32)
    d = deconv4x4_s2(d, params["dec_deconv1_w"], params["dec_deconv1_b"], "relu")
    r = deconv4x4_s2(d, params["dec_deconv2_w"], params["dec_deconv2_b"], "sigmoid")
    return jnp.transpose(r, (0, 3, 1, 2)), mu, logvar


# ----------------------------------------------------------------------------
# Pure-JAX reference (same math as the PyTorch module) used for validation
# ----------------------------------------------------------------------------
def cvae_reference(params, x, eps):
    dn = ("NCHW", "OIHW", "NCHW")

    def conv(x, w, b, stride, pad):
        y = jax.lax.conv_general_dilated(
            x, w, (stride, stride), [(pad, pad), (pad, pad)], dimension_numbers=dn)
        return y + b.reshape(1, -1, 1, 1)

    def deconv(x, w, b, stride, pad):
        k = w.shape[-1]
        wc = jnp.flip(w, (2, 3)).transpose(1, 0, 2, 3)
        y = jax.lax.conv_general_dilated(
            x, wc, (1, 1), [(k - 1 - pad,) * 2] * 2,
            lhs_dilation=(stride, stride), dimension_numbers=dn)
        return y + b.reshape(1, -1, 1, 1)

    h = jax.nn.relu(conv(x, params["enc_conv1_w"], params["enc_conv1_b"], 2, 1))
    h = jax.nn.relu(conv(h, params["enc_conv2_w"], params["enc_conv2_b"], 2, 1))
    hf = h.reshape(x.shape[0], -1)
    mu = hf @ params["fc_mu_w"].T + params["fc_mu_b"]
    logvar = hf @ params["fc_logvar_w"].T + params["fc_logvar_b"]
    z = mu + eps * jnp.exp(0.5 * logvar)
    d = jax.nn.relu(z @ params["dec_fc_w"].T + params["dec_fc_b"])
    d = d.reshape(x.shape[0], 32, 8, 8)
    d = jax.nn.relu(deconv(d, params["dec_deconv1_w"], params["dec_deconv1_b"], 2, 1))
    r = jax.nn.sigmoid(deconv(d, params["dec_deconv2_w"], params["dec_deconv2_b"], 2, 1))
    return r, mu, logvar


if __name__ == "__main__":
    key = jax.random.PRNGKey(0)
    k_param, k_x, k_eps = jax.random.split(key, 3)

    B, C, H, W = 2, 3, 32, 32
    latent_dim = 16
    x = jax.random.normal(k_x, (B, C, H, W), jnp.float32)
    # TODO(synk): torch.randn_like(std) -> eps is supplied as a deterministic input.
    eps = jax.random.normal(k_eps, (B, latent_dim), jnp.float32)
    params = init_params(k_param, in_channels=C, latent_dim=latent_dim)

    recon, mu, logvar = cvae_forward(params, x, eps)
    jax.block_until_ready((recon, mu, logvar))

    assert recon.shape == (B, C, H, W)
    assert mu.shape == (B, latent_dim) and logvar.shape == (B, latent_dim)
    assert bool(jnp.all(jnp.isfinite(recon)))
    assert bool(jnp.all((recon >= 0.0) & (recon <= 1.0)))   # sigmoid output range

    # Numerics vs. a pure-JAX reference of the PyTorch module (bf16 MXU inputs
    # with f32 accumulation -> loose-ish tolerances).
    r_ref, mu_ref, lv_ref = cvae_reference(params, x, eps)
    assert bool(jnp.allclose(mu, mu_ref, rtol=5e-2, atol=3e-2))
    assert bool(jnp.allclose(logvar, lv_ref, rtol=5e-2, atol=3e-2))
    assert bool(jnp.allclose(recon, r_ref, rtol=5e-2, atol=3e-2))
    print("KERNEL_OK")
</pallas_src>

<mosaic_0001>
module attributes {stable_mosaic.version = 11 : i64} {
  func.func @_conv_taps_kernel(%arg0: i32, %arg1: memref<1x17x17x12xbf16, #tpu.memory_space<vmem>>, %arg2: memref<4x12x128xbf16, #tpu.memory_space<vmem>>, %arg3: memref<1x128xf32, #tpu.memory_space<vmem>>, %arg4: memref<256x128xf32, #tpu.memory_space<vmem>>) attributes {dimension_semantics = [#tpu.dimension_semantics<parallel>], iteration_bounds = array<i64: 2>, scalar_prefetch = 0 : i64, scratch_operands = 0 : i64, tpu.core_type = #tpu.core_type<tc>, window_params = [{transform_indices = @transform_0, window_bounds = array<i64: 1, 17, 17, 12>}, {pipeline_mode = #tpu.pipeline_mode<synchronous>, transform_indices = @transform_1, window_bounds = array<i64: 4, 12, 128>}, {pipeline_mode = #tpu.pipeline_mode<synchronous>, transform_indices = @transform_2, window_bounds = array<i64: 1, 128>}, {transform_indices = @transform_3, window_bounds = array<i64: 256, 128>}]} {
    %c0 = arith.constant 0 : index
    %c0_0 = arith.constant 0 : index
    %c0_1 = arith.constant 0 : index
    %c0_2 = arith.constant 0 : index
    %0 = vector.load %arg1[%c0, %c0_0, %c0_1, %c0_2] : memref<1x17x17x12xbf16, #tpu.memory_space<vmem>>, vector<1x17x17x12xbf16>
    %cst = arith.constant 0.000000e+00 : f32
    %1 = vector.broadcast %cst : f32 to vector<256x128xf32>
    %2 = vector.extract_strided_slice %0 {offsets = [0, 0, 0, 0], sizes = [1, 16, 16, 12], strides = [1, 1, 1, 1]} : vector<1x17x17x12xbf16> to vector<1x16x16x12xbf16>
    %3 = vector.shape_cast %2 : vector<1x16x16x12xbf16> to vector<16x16x12xbf16>
    %4 = vector.shape_cast %3 : vector<16x16x12xbf16> to vector<256x12xbf16>
    %c0_3 = arith.constant 0 : index
    %c0_4 = arith.constant 0 : index
    %c0_5 = arith.constant 0 : index
    %5 = vector.load %arg2[%c0_3, %c0_4, %c0_5] : memref<4x12x128xbf16, #tpu.memory_space<vmem>>, vector<1x12x128xbf16>
    %6 = vector.shape_cast %5 : vector<1x12x128xbf16> to vector<12x128xbf16>
    %cst_6 = arith.constant dense<0.000000e+00> : vector<256x128xf32>
    %7 = tpu.matmul %4, %6, %cst_6 {dimension_numbers = #tpu.dot_dimension_numbers<[1], [0], [0], [1], [0, 0, 1, 1], [], []>} : vector<256x12xbf16>, vector<12x128xbf16>, vector<256x128xf32> -> vector<256x128xf32>
    %8 = arith.addf %1, %7 : vector<256x128xf32>
    %9 = vector.extract_strided_slice %0 {offsets = [0, 0, 1, 0], sizes = [1, 16, 16, 12], strides = [1, 1, 1, 1]} : vector<1x17x17x12xbf16> to vector<1x16x16x12xbf16>
    %10 = vector.shape_cast %9 : vector<1x16x16x12xbf16> to vector<16x16x12xbf16>
    %11 = vector.shape_cast %10 : vector<16x16x12xbf16> to vector<256x12xbf16>
    %c1 = arith.constant 1 : index
    %c0_7 = arith.constant 0 : index
    %c0_8 = arith.constant 0 : index
    %12 = vector.load %arg2[%c1, %c0_7, %c0_8] : memref<4x12x128xbf16, #tpu.memory_space<vmem>>, vector<1x12x128xbf16>
    %13 = vector.shape_cast %12 : vector<1x12x128xbf16> to vector<12x128xbf16>
    %cst_9 = arith.constant dense<0.000000e+00> : vector<256x128xf32>
    %14 = tpu.matmul %11, %13, %cst_9 {dimension_numbers = #tpu.dot_dimension_numbers<[1], [0], [0], [1], [0, 0, 1, 1], [], []>} : vector<256x12xbf16>, vector<12x128xbf16>, vector<256x128xf32> -> vector<256x128xf32>
    %15 = arith.addf %8, %14 : vector<256x128xf32>
    %16 = vector.extract_strided_slice %0 {offsets = [0, 1, 0, 0], sizes = [1, 16, 16, 12], strides = [1, 1, 1, 1]} : vector<1x17x17x12xbf16> to vector<1x16x16x12xbf16>
    %17 = vector.shape_cast %16 : vector<1x16x16x12xbf16> to vector<16x16x12xbf16>
    %18 = vector.shape_cast %17 : vector<16x16x12xbf16> to vector<256x12xbf16>
    %c2 = arith.constant 2 : index
    %c0_10 = arith.constant 0 : index
    %c0_11 = arith.constant 0 : index
    %19 = vector.load %arg2[%c2, %c0_10, %c0_11] : memref<4x12x128xbf16, #tpu.memory_space<vmem>>, vector<1x12x128xbf16>
    %20 = vector.shape_cast %19 : vector<1x12x128xbf16> to vector<12x128xbf16>
    %cst_12 = arith.constant dense<0.000000e+00> : vector<256x128xf32>
    %21 = tpu.matmul %18, %20, %cst_12 {dimension_numbers = #tpu.dot_dimension_numbers<[1], [0], [0], [1], [0, 0, 1, 1], [], []>} : vector<256x12xbf16>, vector<12x128xbf16>, vector<256x128xf32> -> vector<256x128xf32>
    %22 = arith.addf %15, %21 : vector<256x128xf32>
    %23 = vector.extract_strided_slice %0 {offsets = [0, 1, 1, 0], sizes = [1, 16, 16, 12], strides = [1, 1, 1, 1]} : vector<1x17x17x12xbf16> to vector<1x16x16x12xbf16>
    %24 = vector.shape_cast %23 : vector<1x16x16x12xbf16> to vector<16x16x12xbf16>
    %25 = vector.shape_cast %24 : vector<16x16x12xbf16> to vector<256x12xbf16>
    %c3 = arith.constant 3 : index
    %c0_13 = arith.constant 0 : index
    %c0_14 = arith.constant 0 : index
    %26 = vector.load %arg2[%c3, %c0_13, %c0_14] : memref<4x12x128xbf16, #tpu.memory_space<vmem>>, vector<1x12x128xbf16>
    %27 = vector.shape_cast %26 : vector<1x12x128xbf16> to vector<12x128xbf16>
    %cst_15 = arith.constant dense<0.000000e+00> : vector<256x128xf32>
    %28 = tpu.matmul %25, %27, %cst_15 {dimension_numbers = #tpu.dot_dimension_numbers<[1], [0], [0], [1], [0, 0, 1, 1], [], []>} : vector<256x12xbf16>, vector<12x128xbf16>, vector<256x128xf32> -> vector<256x128xf32>
    %29 = arith.addf %22, %28 : vector<256x128xf32>
    %c0_16 = arith.constant 0 : index
    %c0_17 = arith.constant 0 : index
    %30 = vector.load %arg3[%c0_16, %c0_17] : memref<1x128xf32, #tpu.memory_space<vmem>>, vector<1x128xf32>
    %31 = vector.broadcast %30 : vector<1x128xf32> to vector<256x128xf32>
    %32 = arith.addf %29, %31 : vector<256x128xf32>
    %cst_18 = arith.constant 0.000000e+00 : f32
    %33 = vector.broadcast %cst_18 : f32 to vector<256x128xf32>
    %34 = arith.maximumf %32, %33 : vector<256x128xf32>
    %c0_19 = arith.constant 0 : index
    %c0_20 = arith.constant 0 : index
    %35 = vector.load %arg4[%c0_19, %c0_20] : memref<256x128xf32, #tpu.memory_space<vmem>>, vector<256x128xf32>
    tpu.vector_store %arg4[%c0_19, %c0_20], %34 {strides = array<i32>} : memref<256x128xf32, #tpu.memory_space<vmem>>, vector<256x128xf32>,
    return
  }
  func.func @transform_0(%arg0: i32) -> (i32, i32, i32, i32) {
    %c0_i32 = arith.constant 0 : i32
    %c0_i32_0 = arith.constant 0 : i32
    %c0_i32_1 = arith.constant 0 : i32
    %c0_i32_2 = arith.constant 0 : i32
    return %arg0, %c0_i32, %c0_i32_0, %c0_i32_1 : i32, i32, i32, i32
  }
  func.func @transform_1(%arg0: i32) -> (i32, i32, i32) {
    %c0_i32 = arith.constant 0 : i32
    %c0_i32_0 = arith.constant 0 : i32
    %c0_i32_1 = arith.constant 0 : i32
    %c0_i32_2 = arith.constant 0 : i32
    return %c0_i32, %c0_i32_0, %c0_i32_1 : i32, i32, i32
  }
  func.func @transform_2(%arg0: i32) -> (i32, i32) {
    %c0_i32 = arith.constant 0 : i32
    %c0_i32_0 = arith.constant 0 : i32
    %c0_i32_1 = arith.constant 0 : i32
    return %c0_i32, %c0_i32_0 : i32, i32
  }
  func.func @transform_3(%arg0: i32) -> (i32, i32) {
    %c0_i32 = arith.constant 0 : i32
    %c0_i32_0 = arith.constant 0 : i32
    return %arg0, %c0_i32 : i32, i32
  }
}

module attributes {stable_mosaic.version = 11 : i64} {
  func.func @_conv_taps_kernel(%arg0: i32, %arg1: memref<1x9x9x64xbf16, #tpu.memory_space<vmem>>, %arg2: memref<4x64x128xbf16, #tpu.memory_space<vmem>>, %arg3: memref<1x128xf32, #tpu.memory_space<vmem>>, %arg4: memref<64x128xf32, #tpu.memory_space<vmem>>) attributes {dimension_semantics = [#tpu.dimension_semantics<parallel>], iteration_bounds = array<i64: 2>, scalar_prefetch = 0 : i64, scratch_operands = 0 : i64, tpu.core_type = #tpu.core_type<tc>, window_params = [{transform_indices = @transform_0, window_bounds = array<i64: 1, 9, 9, 64>}, {pipeline_mode = #tpu.pipeline_mode<synchronous>, transform_indices = @transform_1, window_bounds = array<i64: 4, 64, 128>}, {pipeline_mode = #tpu.pipeline_mode<synchronous>, transform_indices = @transform_2, window_bounds = array<i64: 1, 128>}, {transform_indices = @transform_3, window_bounds = array<i64: 64, 128>}]} {
    %c0 = arith.constant 0 : index
    %c0_0 = arith.constant 0 : index
    %c0_1 = arith.constant 0 : index
    %c0_2 = arith.constant 0 : index
    %0 = vector.load %arg1[%c0, %c0_0, %c0_1, %c0_2] : memref<1x9x9x64xbf16, #tpu.memory_space<vmem>>, vector<1x9x9x64xbf16>
    %cst = arith.constant 0.000000e+00 : f32
    %1 = vector.broadcast %cst : f32 to vector<64x128xf32>
    %2 = vector.extract_strided_slice %0 {offsets = [0, 0, 0, 0], sizes = [1, 8, 8, 64], strides = [1, 1, 1, 1]} : vector<1x9x9x64xbf16> to vector<1x8x8x64xbf16>
    %3 = vector.shape_cast %2 : vector<1x8x8x64xbf16> to vector<8x8x64xbf16>
    %4 = vector.shape_cast %3 : vector<8x8x64xbf16> to vector<64x64xbf16>
    %c0_3 = arith.constant 0 : index
    %c0_4 = arith.constant 0 : index
    %c0_5 = arith.constant 0 : index
    %5 = vector.load %arg2[%c0_3, %c0_4, %c0_5] : memref<4x64x128xbf16, #tpu.memory_space<vmem>>, vector<1x64x128xbf16>
    %6 = vector.shape_cast %5 : vector<1x64x128xbf16> to vector<64x128xbf16>
    %cst_6 = arith.constant dense<0.000000e+00> : vector<64x128xf32>
    %7 = tpu.matmul %4, %6, %cst_6 {dimension_numbers = #tpu.dot_dimension_numbers<[1], [0], [0], [1], [0, 0, 1, 1], [], []>} : vector<64x64xbf16>, vector<64x128xbf16>, vector<64x128xf32> -> vector<64x128xf32>
    %8 = arith.addf %1, %7 : vector<64x128xf32>
    %9 = vector.extract_strided_slice %0 {offsets = [0, 0, 1, 0], sizes = [1, 8, 8, 64], strides = [1, 1, 1, 1]} : vector<1x9x9x64xbf16> to vector<1x8x8x64xbf16>
    %10 = vector.shape_cast %9 : vector<1x8x8x64xbf16> to vector<8x8x64xbf16>
    %11 = vector.shape_cast %10 : vector<8x8x64xbf16> to vector<64x64xbf16>
    %c1 = arith.constant 1 : index
    %c0_7 = arith.constant 0 : index
    %c0_8 = arith.constant 0 : index
    %12 = vector.load %arg2[%c1, %c0_7, %c0_8] : memref<4x64x128xbf16, #tpu.memory_space<vmem>>, vector<1x64x128xbf16>
    %13 = vector.shape_cast %12 : vector<1x64x128xbf16> to vector<64x128xbf16>
    %cst_9 = arith.constant dense<0.000000e+00> : vector<64x128xf32>
    %14 = tpu.matmul %11, %13, %cst_9 {dimension_numbers = #tpu.dot_dimension_numbers<[1], [0], [0], [1], [0, 0, 1, 1], [], []>} : vector<64x64xbf16>, vector<64x128xbf16>, vector<64x128xf32> -> vector<64x128xf32>
    %15 = arith.addf %8, %14 : vector<64x128xf32>
    %16 = vector.extract_strided_slice %0 {offsets = [0, 1, 0, 0], sizes = [1, 8, 8, 64], strides = [1, 1, 1, 1]} : vector<1x9x9x64xbf16> to vector<1x8x8x64xbf16>
    %17 = vector.shape_cast %16 : vector<1x8x8x64xbf16> to vector<8x8x64xbf16>
    %18 = vector.shape_cast %17 : vector<8x8x64xbf16> to vector<64x64xbf16>
    %c2 = arith.constant 2 : index
    %c0_10 = arith.constant 0 : index
    %c0_11 = arith.constant 0 : index
    %19 = vector.load %arg2[%c2, %c0_10, %c0_11] : memref<4x64x128xbf16, #tpu.memory_space<vmem>>, vector<1x64x128xbf16>
    %20 = vector.shape_cast %19 : vector<1x64x128xbf16> to vector<64x128xbf16>
    %cst_12 = arith.constant dense<0.000000e+00> : vector<64x128xf32>
    %21 = tpu.matmul %18, %20, %cst_12 {dimension_numbers = #tpu.dot_dimension_numbers<[1], [0], [0], [1], [0, 0, 1, 1], [], []>} : vector<64x64xbf16>, vector<64x128xbf16>, vector<64x128xf32> -> vector<64x128xf32>
    %22 = arith.addf %15, %21 : vector<64x128xf32>
    %23 = vector.extract_strided_slice %0 {offsets = [0, 1, 1, 0], sizes = [1, 8, 8, 64], strides = [1, 1, 1, 1]} : vector<1x9x9x64xbf16> to vector<1x8x8x64xbf16>
    %24 = vector.shape_cast %23 : vector<1x8x8x64xbf16> to vector<8x8x64xbf16>
    %25 = vector.shape_cast %24 : vector<8x8x64xbf16> to vector<64x64xbf16>
    %c3 = arith.constant 3 : index
    %c0_13 = arith.constant 0 : index
    %c0_14 = arith.constant 0 : index
    %26 = vector.load %arg2[%c3, %c0_13, %c0_14] : memref<4x64x128xbf16, #tpu.memory_space<vmem>>, vector<1x64x128xbf16>
    %27 = vector.shape_cast %26 : vector<1x64x128xbf16> to vector<64x128xbf16>
    %cst_15 = arith.constant dense<0.000000e+00> : vector<64x128xf32>
    %28 = tpu.matmul %25, %27, %cst_15 {dimension_numbers = #tpu.dot_dimension_numbers<[1], [0], [0], [1], [0, 0, 1, 1], [], []>} : vector<64x64xbf16>, vector<64x128xbf16>, vector<64x128xf32> -> vector<64x128xf32>
    %29 = arith.addf %22, %28 : vector<64x128xf32>
    %c0_16 = arith.constant 0 : index
    %c0_17 = arith.constant 0 : index
    %30 = vector.load %arg3[%c0_16, %c0_17] : memref<1x128xf32, #tpu.memory_space<vmem>>, vector<1x128xf32>
    %31 = vector.broadcast %30 : vector<1x128xf32> to vector<64x128xf32>
    %32 = arith.addf %29, %31 : vector<64x128xf32>
    %cst_18 = arith.constant 0.000000e+00 : f32
    %33 = vector.broadcast %cst_18 : f32 to vector<64x128xf32>
    %34 = arith.maximumf %32, %33 : vector<64x128xf32>
    %c0_19 = arith.constant 0 : index
    %c0_20 = arith.constant 0 : index
    %35 = vector.load %arg4[%c0_19, %c0_20] : memref<64x128xf32, #tpu.memory_space<vmem>>, vector<64x128xf32>
    tpu.vector_store %arg4[%c0_19, %c0_20], %34 {strides = array<i32>} : memref<64x128xf32, #tpu.memory_space<vmem>>, vector<64x128xf32>,
    return
  }
  func.func @transform_0(%arg0: i32) -> (i32, i32, i32, i32) {
    %c0_i32 = arith.constant 0 : i32
    %c0_i32_0 = arith.constant 0 : i32
    %c0_i32_1 = arith.constant 0 : i32
    %c0_i32_2 = arith.constant 0 : i32
    return %arg0, %c0_i32, %c0_i32_0, %c0_i32_1 : i32, i32, i32, i32
  }
  func.func @transform_1(%arg0: i32) -> (i32, i32, i32) {
    %c0_i32 = arith.constant 0 : i32
    %c0_i32_0 = arith.constant 0 : i32
    %c0_i32_1 = arith.constant 0 : i32
    %c0_i32_2 = arith.constant 0 : i32
    return %c0_i32, %c0_i32_0, %c0_i32_1 : i32, i32, i32
  }
  func.func @transform_2(%arg0: i32) -> (i32, i32) {
    %c0_i32 = arith.constant 0 : i32
    %c0_i32_0 = arith.constant 0 : i32
    %c0_i32_1 = arith.constant 0 : i32
    return %c0_i32, %c0_i32_0 : i32, i32
  }
  func.func @transform_3(%arg0: i32) -> (i32, i32) {
    %c0_i32 = arith.constant 0 : i32
    %c0_i32_0 = arith.constant 0 : i32
    return %arg0, %c0_i32 : i32, i32
  }
}

module attributes {stable_mosaic.version = 11 : i64} {
  func.func @_fc_fused_kernel(%arg0: memref<2x2048xbf16, #tpu.memory_space<vmem>>, %arg1: memref<2048x32xbf16, #tpu.memory_space<vmem>>, %arg2: memref<1x32xf32, #tpu.memory_space<vmem>>, %arg3: memref<2x16xf32, #tpu.memory_space<vmem>>, %arg4: memref<16x2048xbf16, #tpu.memory_space<vmem>>, %arg5: memref<1x2048xf32, #tpu.memory_space<vmem>>, %arg6: memref<2x16xf32, #tpu.memory_space<vmem>>, %arg7: memref<2x16xf32, #tpu.memory_space<vmem>>, %arg8: memref<2x2048xf32, #tpu.memory_space<vmem>>) attributes {dimension_semantics = [], scalar_prefetch = 0 : i64, scratch_operands = 0 : i64, tpu.core_type = #tpu.core_type<tc>} {
    %c0 = arith.constant 0 : index
    %c0_0 = arith.constant 0 : index
    %0 = vector.load %arg0[%c0, %c0_0] : memref<2x2048xbf16, #tpu.memory_space<vmem>>, vector<2x2048xbf16>
    %c0_1 = arith.constant 0 : index
    %c0_2 = arith.constant 0 : index
    %1 = vector.load %arg1[%c0_1, %c0_2] : memref<2048x32xbf16, #tpu.memory_space<vmem>>, vector<2048x32xbf16>
    %cst = arith.constant dense<0.000000e+00> : vector<2x32xf32>
    %2 = tpu.matmul %0, %1, %cst {dimension_numbers = #tpu.dot_dimension_numbers<[1], [0], [0], [1], [0, 0, 1, 1], [], []>} : vector<2x2048xbf16>, vector<2048x32xbf16>, vector<2x32xf32> -> vector<2x32xf32>
    %c0_3 = arith.constant 0 : index
    %c0_4 = arith.constant 0 : index
    %3 = vector.load %arg2[%c0_3, %c0_4] : memref<1x32xf32, #tpu.memory_space<vmem>>, vector<1x32xf32>
    %4 = vector.broadcast %3 : vector<1x32xf32> to vector<2x32xf32>
    %5 = arith.addf %2, %4 : vector<2x32xf32>
    %6 = vector.extract_strided_slice %5 {offsets = [0, 0], sizes = [2, 16], strides = [1, 1]} : vector<2x32xf32> to vector<2x16xf32>
    %7 = vector.extract_strided_slice %5 {offsets = [0, 16], sizes = [2, 16], strides = [1, 1]} : vector<2x32xf32> to vector<2x16xf32>
    %c0_5 = arith.constant 0 : index
    %c0_6 = arith.constant 0 : index
    %8 = vector.load %arg3[%c0_5, %c0_6] : memref<2x16xf32, #tpu.memory_space<vmem>>, vector<2x16xf32>
    %cst_7 = arith.constant 5.000000e-01 : f32
    %9 = vector.broadcast %cst_7 : f32 to vector<2x16xf32>
    %10 = arith.mulf %9, %7 : vector<2x16xf32>
    %11 = math.exp %10 : vector<2x16xf32>
    %12 = arith.mulf %8, %11 : vector<2x16xf32>
    %13 = arith.addf %6, %12 : vector<2x16xf32>
    %14 = arith.truncf %13 : vector<2x16xf32> to vector<2x16xbf16>
    %c0_8 = arith.constant 0 : index
    %c0_9 = arith.constant 0 : index
    %15 = vector.load %arg4[%c0_8, %c0_9] : memref<16x2048xbf16, #tpu.memory_space<vmem>>, vector<16x2048xbf16>
    %cst_10 = arith.constant dense<0.000000e+00> : vector<2x2048xf32>
    %16 = tpu.matmul %14, %15, %cst_10 {dimension_numbers = #tpu.dot_dimension_numbers<[1], [0], [0], [1], [0, 0, 1, 1], [], []>} : vector<2x16xbf16>, vector<16x2048xbf16>, vector<2x2048xf32> -> vector<2x2048xf32>
    %c0_11 = arith.constant 0 : index
    %c0_12 = arith.constant 0 : index
    %17 = vector.load %arg5[%c0_11, %c0_12] : memref<1x2048xf32, #tpu.memory_space<vmem>>, vector<1x2048xf32>
    %18 = vector.broadcast %17 : vector<1x2048xf32> to vector<2x2048xf32>
    %19 = arith.addf %16, %18 : vector<2x2048xf32>
    %c0_13 = arith.constant 0 : index
    %c0_14 = arith.constant 0 : index
    %20 = vector.load %arg6[%c0_13, %c0_14] : memref<2x16xf32, #tpu.memory_space<vmem>>, vector<2x16xf32>
    tpu.vector_store %arg6[%c0_13, %c0_14], %6 {strides = array<i32>} : memref<2x16xf32, #tpu.memory_space<vmem>>, vector<2x16xf32>,
    %c0_15 = arith.constant 0 : index
    %c0_16 = arith.constant 0 : index
    %21 = vector.load %arg7[%c0_15, %c0_16] : memref<2x16xf32, #tpu.memory_space<vmem>>, vector<2x16xf32>
    tpu.vector_store %arg7[%c0_15, %c0_16], %7 {strides = array<i32>} : memref<2x16xf32, #tpu.memory_space<vmem>>, vector<2x16xf32>,
    %cst_17 = arith.constant 0.000000e+00 : f32
    %22 = vector.broadcast %cst_17 : f32 to vector<2x2048xf32>
    %23 = arith.maximumf %19, %22 : vector<2x2048xf32>
    %c0_18 = arith.constant 0 : index
    %c0_19 = arith.constant 0 : index
    %24 = vector.load %arg8[%c0_18, %c0_19] : memref<2x2048xf32, #tpu.memory_space<vmem>>, vector<2x2048xf32>
    tpu.vector_store %arg8[%c0_18, %c0_19], %23 {strides = array<i32>} : memref<2x2048xf32, #tpu.memory_space<vmem>>, vector<2x2048xf32>,
    return
  }
}

module attributes {stable_mosaic.version = 11 : i64} {
  func.func @_conv_taps_kernel(%arg0: i32, %arg1: memref<1x10x10x32xbf16, #tpu.memory_space<vmem>>, %arg2: memref<9x32x128xbf16, #tpu.memory_space<vmem>>, %arg3: memref<1x128xf32, #tpu.memory_space<vmem>>, %arg4: memref<64x128xf32, #tpu.memory_space<vmem>>) attributes {dimension_semantics = [#tpu.dimension_semantics<parallel>], iteration_bounds = array<i64: 2>, scalar_prefetch = 0 : i64, scratch_operands = 0 : i64, tpu.core_type = #tpu.core_type<tc>, window_params = [{transform_indices = @transform_0, window_bounds = array<i64: 1, 10, 10, 32>}, {pipeline_mode = #tpu.pipeline_mode<synchronous>, transform_indices = @transform_1, window_bounds = array<i64: 9, 32, 128>}, {pipeline_mode = #tpu.pipeline_mode<synchronous>, transform_indices = @transform_2, window_bounds = array<i64: 1, 128>}, {transform_indices = @transform_3, window_bounds = array<i64: 64, 128>}]} {
    %c0 = arith.constant 0 : index
    %c0_0 = arith.constant 0 : index
    %c0_1 = arith.constant 0 : index
    %c0_2 = arith.constant 0 : index
    %0 = vector.load %arg1[%c0, %c0_0, %c0_1, %c0_2] : memref<1x10x10x32xbf16, #tpu.memory_space<vmem>>, vector<1x10x10x32xbf16>
    %cst = arith.constant 0.000000e+00 : f32
    %1 = vector.broadcast %cst : f32 to vector<64x128xf32>
    %2 = vector.extract_strided_slice %0 {offsets = [0, 0, 0, 0], sizes = [1, 8, 8, 32], strides = [1, 1, 1, 1]} : vector<1x10x10x32xbf16> to vector<1x8x8x32xbf16>
    %3 = vector.shape_cast %2 : vector<1x8x8x32xbf16> to vector<8x8x32xbf16>
    %4 = vector.shape_cast %3 : vector<8x8x32xbf16> to vector<64x32xbf16>
    %c0_3 = arith.constant 0 : index
    %c0_4 = arith.constant 0 : index
    %c0_5 = arith.constant 0 : index
    %5 = vector.load %arg2[%c0_3, %c0_4, %c0_5] : memref<9x32x128xbf16, #tpu.memory_space<vmem>>, vector<1x32x128xbf16>
    %6 = vector.shape_cast %5 : vector<1x32x128xbf16> to vector<32x128xbf16>
    %cst_6 = arith.constant dense<0.000000e+00> : vector<64x128xf32>
    %7 = tpu.matmul %4, %6, %cst_6 {dimension_numbers = #tpu.dot_dimension_numbers<[1], [0], [0], [1], [0, 0, 1, 1], [], []>} : vector<64x32xbf16>, vector<32x128xbf16>, vector<64x128xf32> -> vector<64x128xf32>
    %8 = arith.addf %1, %7 : vector<64x128xf32>
    %9 = vector.extract_strided_slice %0 {offsets = [0, 0, 1, 0], sizes = [1, 8, 8, 32], strides = [1, 1, 1, 1]} : vector<1x10x10x32xbf16> to vector<1x8x8x32xbf16>
    %10 = vector.shape_cast %9 : vector<1x8x8x32xbf16> to vector<8x8x32xbf16>
    %11 = vector.shape_cast %10 : vector<8x8x32xbf16> to vector<64x32xbf16>
    %c1 = arith.constant 1 : index
    %c0_7 = arith.constant 0 : index
    %c0_8 = arith.constant 0 : index
    %12 = vector.load %arg2[%c1, %c0_7, %c0_8] : memref<9x32x128xbf16, #tpu.memory_space<vmem>>, vector<1x32x128xbf16>
    %13 = vector.shape_cast %12 : vector<1x32x128xbf16> to vector<32x128xbf16>
    %cst_9 = arith.constant dense<0.000000e+00> : vector<64x128xf32>
    %14 = tpu.matmul %11, %13, %cst_9 {dimension_numbers = #tpu.dot_dimension_numbers<[1], [0], [0], [1], [0, 0, 1, 1], [], []>} : vector<64x32xbf16>, vector<32x128xbf16>, vector<64x128xf32> -> vector<64x128xf32>
    %15 = arith.addf %8, %14 : vector<64x128xf32>
    %16 = vector.extract_strided_slice %0 {offsets = [0, 0, 2, 0], sizes = [1, 8, 8, 32], strides = [1, 1, 1, 1]} : vector<1x10x10x32xbf16> to vector<1x8x8x32xbf16>
    %17 = vector.shape_cast %16 : vector<1x8x8x32xbf16> to vector<8x8x32xbf16>
    %18 = vector.shape_cast %17 : vector<8x8x32xbf16> to vector<64x32xbf16>
    %c2 = arith.constant 2 : index
    %c0_10 = arith.constant 0 : index
    %c0_11 = arith.constant 0 : index
    %19 = vector.load %arg2[%c2, %c0_10, %c0_11] : memref<9x32x128xbf16, #tpu.memory_space<vmem>>, vector<1x32x128xbf16>
    %20 = vector.shape_cast %19 : vector<1x32x128xbf16> to vector<32x128xbf16>
    %cst_12 = arith.constant dense<0.000000e+00> : vector<64x128xf32>
    %21 = tpu.matmul %18, %20, %cst_12 {dimension_numbers = #tpu.dot_dimension_numbers<[1], [0], [0], [1], [0, 0, 1, 1], [], []>} : vector<64x32xbf16>, vector<32x128xbf16>, vector<64x128xf32> -> vector<64x128xf32>
    %22 = arith.addf %15, %21 : vector<64x128xf32>
    %23 = vector.extract_strided_slice %0 {offsets = [0, 1, 0, 0], sizes = [1, 8, 8, 32], strides = [1, 1, 1, 1]} : vector<1x10x10x32xbf16> to vector<1x8x8x32xbf16>
    %24 = vector.shape_cast %23 : vector<1x8x8x32xbf16> to vector<8x8x32xbf16>
    %25 = vector.shape_cast %24 : vector<8x8x32xbf16> to vector<64x32xbf16>
    %c3 = arith.constant 3 : index
    %c0_13 = arith.constant 0 : index
    %c0_14 = arith.constant 0 : index
    %26 = vector.load %arg2[%c3, %c0_13, %c0_14] : memref<9x32x128xbf16, #tpu.memory_space<vmem>>, vector<1x32x128xbf16>
    %27 = vector.shape_cast %26 : vector<1x32x128xbf16> to vector<32x128xbf16>
    %cst_15 = arith.constant dense<0.000000e+00> : vector<64x128xf32>
    %28 = tpu.matmul %25, %27, %cst_15 {dimension_numbers = #tpu.dot_dimension_numbers<[1], [0], [0], [1], [0, 0, 1, 1], [], []>} : vector<64x32xbf16>, vector<32x128xbf16>, vector<64x128xf32> -> vector<64x128xf32>
    %29 = arith.addf %22, %28 : vector<64x128xf32>
    %30 = vector.extract_strided_slice %0 {offsets = [0, 1, 1, 0], sizes = [1, 8, 8, 32], strides = [1, 1, 1, 1]} : vector<1x10x10x32xbf16> to vector<1x8x8x32xbf16>
    %31 = vector.shape_cast %30 : vector<1x8x8x32xbf16> to vector<8x8x32xbf16>
    %32 = vector.shape_cast %31 : vector<8x8x32xbf16> to vector<64x32xbf16>
    %c4 = arith.constant 4 : index
    %c0_16 = arith.constant 0 : index
    %c0_17 = arith.constant 0 : index
    %33 = vector.load %arg2[%c4, %c0_16, %c0_17] : memref<9x32x128xbf16, #tpu.memory_space<vmem>>, vector<1x32x128xbf16>
    %34 = vector.shape_cast %33 : vector<1x32x128xbf16> to vector<32x128xbf16>
    %cst_18 = arith.constant dense<0.000000e+00> : vector<64x128xf32>
    %35 = tpu.matmul %32, %34, %cst_18 {dimension_numbers = #tpu.dot_dimension_numbers<[1], [0], [0], [1], [0, 0, 1, 1], [], []>} : vector<64x32xbf16>, vector<32x128xbf16>, vector<64x128xf32> -> vector<64x128xf32>
    %36 = arith.addf %29, %35 : vector<64x128xf32>
    %37 = vector.extract_strided_slice %0 {offsets = [0, 1, 2, 0], sizes = [1, 8, 8, 32], strides = [1, 1, 1, 1]} : vector<1x10x10x32xbf16> to vector<1x8x8x32xbf16>
    %38 = vector.shape_cast %37 : vector<1x8x8x32xbf16> to vector<8x8x32xbf16>
    %39 = vector.shape_cast %38 : vector<8x8x32xbf16> to vector<64x32xbf16>
    %c5 = arith.constant 5 : index
    %c0_19 = arith.constant 0 : index
    %c0_20 = arith.constant 0 : index
    %40 = vector.load %arg2[%c5, %c0_19, %c0_20] : memref<9x32x128xbf16, #tpu.memory_space<vmem>>, vector<1x32x128xbf16>
    %41 = vector.shape_cast %40 : vector<1x32x128xbf16> to vector<32x128xbf16>
    %cst_21 = arith.constant dense<0.000000e+00> : vector<64x128xf32>
    %42 = tpu.matmul %39, %41, %cst_21 {dimension_numbers = #tpu.dot_dimension_numbers<[1], [0], [0], [1], [0, 0, 1, 1], [], []>} : vector<64x32xbf16>, vector<32x128xbf16>, vector<64x128xf32> -> vector<64x128xf32>
    %43 = arith.addf %36, %42 : vector<64x128xf32>
    %44 = vector.extract_strided_slice %0 {offsets = [0, 2, 0, 0], sizes = [1, 8, 8, 32], strides = [1, 1, 1, 1]} : vector<1x10x10x32xbf16> to vector<1x8x8x32xbf16>
    %45 = vector.shape_cast %44 : vector<1x8x8x32xbf16> to vector<8x8x32xbf16>
    %46 = vector.shape_cast %45 : vector<8x8x32xbf16> to vector<64x32xbf16>
    %c6 = arith.constant 6 : index
    %c0_22 = arith.constant 0 : index
    %c0_23 = arith.constant 0 : index
    %47 = vector.load %arg2[%c6, %c0_22, %c0_23] : memref<9x32x128xbf16, #tpu.memory_space<vmem>>, vector<1x32x128xbf16>
    %48 = vector.shape_cast %47 : vector<1x32x128xbf16> to vector<32x128xbf16>
    %cst_24 = arith.constant dense<0.000000e+00> : vector<64x128xf32>
    %49 = tpu.matmul %46, %48, %cst_24 {dimension_numbers = #tpu.dot_dimension_numbers<[1], [0], [0], [1], [0, 0, 1, 1], [], []>} : vector<64x32xbf16>, vector<32x128xbf16>, vector<64x128xf32> -> vector<64x128xf32>
    %50 = arith.addf %43, %49 : vector<64x128xf32>
    %51 = vector.extract_strided_slice %0 {offsets = [0, 2, 1, 0], sizes = [1, 8, 8, 32], strides = [1, 1, 1, 1]} : vector<1x10x10x32xbf16> to vector<1x8x8x32xbf16>
    %52 = vector.shape_cast %51 : vector<1x8x8x32xbf16> to vector<8x8x32xbf16>
    %53 = vector.shape_cast %52 : vector<8x8x32xbf16> to vector<64x32xbf16>
    %c7 = arith.constant 7 : index
    %c0_25 = arith.constant 0 : index
    %c0_26 = arith.constant 0 : index
    %54 = vector.load %arg2[%c7, %c0_25, %c0_26] : memref<9x32x128xbf16, #tpu.memory_space<vmem>>, vector<1x32x128xbf16>
    %55 = vector.shape_cast %54 : vector<1x32x128xbf16> to vector<32x128xbf16>
    %cst_27 = arith.constant dense<0.000000e+00> : vector<64x128xf32>
    %56 = tpu.matmul %53, %55, %cst_27 {dimension_numbers = #tpu.dot_dimension_numbers<[1], [0], [0], [1], [0, 0, 1, 1], [], []>} : vector<64x32xbf16>, vector<32x128xbf16>, vector<64x128xf32> -> vector<64x128xf32>
    %57 = arith.addf %50, %56 : vector<64x128xf32>
    %58 = vector.extract_strided_slice %0 {offsets = [0, 2, 2, 0], sizes = [1, 8, 8, 32], strides = [1, 1, 1, 1]} : vector<1x10x10x32xbf16> to vector<1x8x8x32xbf16>
    %59 = vector.shape_cast %58 : vector<1x8x8x32xbf16> to vector<8x8x32xbf16>
    %60 = vector.shape_cast %59 : vector<8x8x32xbf16> to vector<64x32xbf16>
    %c8 = arith.constant 8 : index
    %c0_28 = arith.constant 0 : index
    %c0_29 = arith.constant 0 : index
    %61 = vector.load %arg2[%c8, %c0_28, %c0_29] : memref<9x32x128xbf16, #tpu.memory_space<vmem>>, vector<1x32x128xbf16>
    %62 = vector.shape_cast %61 : vector<1x32x128xbf16> to vector<32x128xbf16>
    %cst_30 = arith.constant dense<0.000000e+00> : vector<64x128xf32>
    %63 = tpu.matmul %60, %62, %cst_30 {dimension_numbers = #tpu.dot_dimension_numbers<[1], [0], [0], [1], [0, 0, 1, 1], [], []>} : vector<64x32xbf16>, vector<32x128xbf16>, vector<64x128xf32> -> vector<64x128xf32>
    %64 = arith.addf %57, %63 : vector<64x128xf32>
    %c0_31 = arith.constant 0 : index
    %c0_32 = arith.constant 0 : index
    %65 = vector.load %arg3[%c0_31, %c0_32] : memref<1x128xf32, #tpu.memory_space<vmem>>, vector<1x128xf32>
    %66 = vector.broadcast %65 : vector<1x128xf32> to vector<64x128xf32>
    %67 = arith.addf %64, %66 : vector<64x128xf32>
    %cst_33 = arith.constant 0.000000e+00 : f32
    %68 = vector.broadcast %cst_33 : f32 to vector<64x128xf32>
    %69 = arith.maximumf %67, %68 : vector<64x128xf32>
    %c0_34 = arith.constant 0 : index
    %c0_35 = arith.constant 0 : index
    %70 = vector.load %arg4[%c0_34, %c0_35] : memref<64x128xf32, #tpu.memory_space<vmem>>, vector<64x128xf32>
    tpu.vector_store %arg4[%c0_34, %c0_35], %69 {strides = array<i32>} : memref<64x128xf32, #tpu.memory_space<vmem>>, vector<64x128xf32>,
    return
  }
  func.func @transform_0(%arg0: i32) -> (i32, i32, i32, i32) {
    %c0_i32 = arith.constant 0 : i32
    %c0_i32_0 = arith.constant 0 : i32
    %c0_i32_1 = arith.constant 0 : i32
    %c0_i32_2 = arith.constant 0 : i32
    return %arg0, %c0_i32, %c0_i32_0, %c0_i32_1 : i32, i32, i32, i32
  }
  func.func @transform_1(%arg0: i32) -> (i32, i32, i32) {
    %c0_i32 = arith.constant 0 : i32
    %c0_i32_0 = arith.constant 0 : i32
    %c0_i32_1 = arith.constant 0 : i32
    %c0_i32_2 = arith.constant 0 : i32
    return %c0_i32, %c0_i32_0, %c0_i32_1 : i32, i32, i32
  }
  func.func @transform_2(%arg0: i32) -> (i32, i32) {
    %c0_i32 = arith.constant 0 : i32
    %c0_i32_0 = arith.constant 0 : i32
    %c0_i32_1 = arith.constant 0 : i32
    return %c0_i32, %c0_i32_0 : i32, i32
  }
  func.func @transform_3(%arg0: i32) -> (i32, i32) {
    %c0_i32 = arith.constant 0 : i32
    %c0_i32_0 = arith.constant 0 : i32
    return %arg0, %c0_i32 : i32, i32
  }
}

module attributes {stable_mosaic.version = 11 : i64} {
  func.func @_conv_taps_kernel(%arg0: i32, %arg1: memref<1x18x18x16xbf16, #tpu.memory_space<vmem>>, %arg2: memref<9x16x128xbf16, #tpu.memory_space<vmem>>, %arg3: memref<1x128xf32, #tpu.memory_space<vmem>>, %arg4: memref<256x128xf32, #tpu.memory_space<vmem>>) attributes {dimension_semantics = [#tpu.dimension_semantics<parallel>], iteration_bounds = array<i64: 2>, scalar_prefetch = 0 : i64, scratch_operands = 0 : i64, tpu.core_type = #tpu.core_type<tc>, window_params = [{transform_indices = @transform_0, window_bounds = array<i64: 1, 18, 18, 16>}, {pipeline_mode = #tpu.pipeline_mode<synchronous>, transform_indices = @transform_1, window_bounds = array<i64: 9, 16, 128>}, {pipeline_mode = #tpu.pipeline_mode<synchronous>, transform_indices = @transform_2, window_bounds = array<i64: 1, 128>}, {transform_indices = @transform_3, window_bounds = array<i64: 256, 128>}]} {
    %c0 = arith.constant 0 : index
    %c0_0 = arith.constant 0 : index
    %c0_1 = arith.constant 0 : index
    %c0_2 = arith.constant 0 : index
    %0 = vector.load %arg1[%c0, %c0_0, %c0_1, %c0_2] : memref<1x18x18x16xbf16, #tpu.memory_space<vmem>>, vector<1x18x18x16xbf16>
    %cst = arith.constant 0.000000e+00 : f32
    %1 = vector.broadcast %cst : f32 to vector<256x128xf32>
    %2 = vector.extract_strided_slice %0 {offsets = [0, 0, 0, 0], sizes = [1, 16, 16, 16], strides = [1, 1, 1, 1]} : vector<1x18x18x16xbf16> to vector<1x16x16x16xbf16>
    %3 = vector.shape_cast %2 : vector<1x16x16x16xbf16> to vector<16x16x16xbf16>
    %4 = vector.shape_cast %3 : vector<16x16x16xbf16> to vector<256x16xbf16>
    %c0_3 = arith.constant 0 : index
    %c0_4 = arith.constant 0 : index
    %c0_5 = arith.constant 0 : index
    %5 = vector.load %arg2[%c0_3, %c0_4, %c0_5] : memref<9x16x128xbf16, #tpu.memory_space<vmem>>, vector<1x16x128xbf16>
    %6 = vector.shape_cast %5 : vector<1x16x128xbf16> to vector<16x128xbf16>
    %cst_6 = arith.constant dense<0.000000e+00> : vector<256x128xf32>
    %7 = tpu.matmul %4, %6, %cst_6 {dimension_numbers = #tpu.dot_dimension_numbers<[1], [0], [0], [1], [0, 0, 1, 1], [], []>} : vector<256x16xbf16>, vector<16x128xbf16>, vector<256x128xf32> -> vector<256x128xf32>
    %8 = arith.addf %1, %7 : vector<256x128xf32>
    %9 = vector.extract_strided_slice %0 {offsets = [0, 0, 1, 0], sizes = [1, 16, 16, 16], strides = [1, 1, 1, 1]} : vector<1x18x18x16xbf16> to vector<1x16x16x16xbf16>
    %10 = vector.shape_cast %9 : vector<1x16x16x16xbf16> to vector<16x16x16xbf16>
    %11 = vector.shape_cast %10 : vector<16x16x16xbf16> to vector<256x16xbf16>
    %c1 = arith.constant 1 : index
    %c0_7 = arith.constant 0 : index
    %c0_8 = arith.constant 0 : index
    %12 = vector.load %arg2[%c1, %c0_7, %c0_8] : memref<9x16x128xbf16, #tpu.memory_space<vmem>>, vector<1x16x128xbf16>
    %13 = vector.shape_cast %12 : vector<1x16x128xbf16> to vector<16x128xbf16>
    %cst_9 = arith.constant dense<0.000000e+00> : vector<256x128xf32>
    %14 = tpu.matmul %11, %13, %cst_9 {dimension_numbers = #tpu.dot_dimension_numbers<[1], [0], [0], [1], [0, 0, 1, 1], [], []>} : vector<256x16xbf16>, vector<16x128xbf16>, vector<256x128xf32> -> vector<256x128xf32>
    %15 = arith.addf %8, %14 : vector<256x128xf32>
    %16 = vector.extract_strided_slice %0 {offsets = [0, 0, 2, 0], sizes = [1, 16, 16, 16], strides = [1, 1, 1, 1]} : vector<1x18x18x16xbf16> to vector<1x16x16x16xbf16>
    %17 = vector.shape_cast %16 : vector<1x16x16x16xbf16> to vector<16x16x16xbf16>
    %18 = vector.shape_cast %17 : vector<16x16x16xbf16> to vector<256x16xbf16>
    %c2 = arith.constant 2 : index
    %c0_10 = arith.constant 0 : index
    %c0_11 = arith.constant 0 : index
    %19 = vector.load %arg2[%c2, %c0_10, %c0_11] : memref<9x16x128xbf16, #tpu.memory_space<vmem>>, vector<1x16x128xbf16>
    %20 = vector.shape_cast %19 : vector<1x16x128xbf16> to vector<16x128xbf16>
    %cst_12 = arith.constant dense<0.000000e+00> : vector<256x128xf32>
    %21 = tpu.matmul %18, %20, %cst_12 {dimension_numbers = #tpu.dot_dimension_numbers<[1], [0], [0], [1], [0, 0, 1, 1], [], []>} : vector<256x16xbf16>, vector<16x128xbf16>, vector<256x128xf32> -> vector<256x128xf32>
    %22 = arith.addf %15, %21 : vector<256x128xf32>
    %23 = vector.extract_strided_slice %0 {offsets = [0, 1, 0, 0], sizes = [1, 16, 16, 16], strides = [1, 1, 1, 1]} : vector<1x18x18x16xbf16> to vector<1x16x16x16xbf16>
    %24 = vector.shape_cast %23 : vector<1x16x16x16xbf16> to vector<16x16x16xbf16>
    %25 = vector.shape_cast %24 : vector<16x16x16xbf16> to vector<256x16xbf16>
    %c3 = arith.constant 3 : index
    %c0_13 = arith.constant 0 : index
    %c0_14 = arith.constant 0 : index
    %26 = vector.load %arg2[%c3, %c0_13, %c0_14] : memref<9x16x128xbf16, #tpu.memory_space<vmem>>, vector<1x16x128xbf16>
    %27 = vector.shape_cast %26 : vector<1x16x128xbf16> to vector<16x128xbf16>
    %cst_15 = arith.constant dense<0.000000e+00> : vector<256x128xf32>
    %28 = tpu.matmul %25, %27, %cst_15 {dimension_numbers = #tpu.dot_dimension_numbers<[1], [0], [0], [1], [0, 0, 1, 1], [], []>} : vector<256x16xbf16>, vector<16x128xbf16>, vector<256x128xf32> -> vector<256x128xf32>
    %29 = arith.addf %22, %28 : vector<256x128xf32>
    %30 = vector.extract_strided_slice %0 {offsets = [0, 1, 1, 0], sizes = [1, 16, 16, 16], strides = [1, 1, 1, 1]} : vector<1x18x18x16xbf16> to vector<1x16x16x16xbf16>
    %31 = vector.shape_cast %30 : vector<1x16x16x16xbf16> to vector<16x16x16xbf16>
    %32 = vector.shape_cast %31 : vector<16x16x16xbf16> to vector<256x16xbf16>
    %c4 = arith.constant 4 : index
    %c0_16 = arith.constant 0 : index
    %c0_17 = arith.constant 0 : index
    %33 = vector.load %arg2[%c4, %c0_16, %c0_17] : memref<9x16x128xbf16, #tpu.memory_space<vmem>>, vector<1x16x128xbf16>
    %34 = vector.shape_cast %33 : vector<1x16x128xbf16> to vector<16x128xbf16>
    %cst_18 = arith.constant dense<0.000000e+00> : vector<256x128xf32>
    %35 = tpu.matmul %32, %34, %cst_18 {dimension_numbers = #tpu.dot_dimension_numbers<[1], [0], [0], [1], [0, 0, 1, 1], [], []>} : vector<256x16xbf16>, vector<16x128xbf16>, vector<256x128xf32> -> vector<256x128xf32>
    %36 = arith.addf %29, %35 : vector<256x128xf32>
    %37 = vector.extract_strided_slice %0 {offsets = [0, 1, 2, 0], sizes = [1, 16, 16, 16], strides = [1, 1, 1, 1]} : vector<1x18x18x16xbf16> to vector<1x16x16x16xbf16>
    %38 = vector.shape_cast %37 : vector<1x16x16x16xbf16> to vector<16x16x16xbf16>
    %39 = vector.shape_cast %38 : vector<16x16x16xbf16> to vector<256x16xbf16>
    %c5 = arith.constant 5 : index
    %c0_19 = arith.constant 0 : index
    %c0_20 = arith.constant 0 : index
    %40 = vector.load %arg2[%c5, %c0_19, %c0_20] : memref<9x16x128xbf16, #tpu.memory_space<vmem>>, vector<1x16x128xbf16>
    %41 = vector.shape_cast %40 : vector<1x16x128xbf16> to vector<16x128xbf16>
    %cst_21 = arith.constant dense<0.000000e+00> : vector<256x128xf32>
    %42 = tpu.matmul %39, %41, %cst_21 {dimension_numbers = #tpu.dot_dimension_numbers<[1], [0], [0], [1], [0, 0, 1, 1], [], []>} : vector<256x16xbf16>, vector<16x128xbf16>, vector<256x128xf32> -> vector<256x128xf32>
    %43 = arith.addf %36, %42 : vector<256x128xf32>
    %44 = vector.extract_strided_slice %0 {offsets = [0, 2, 0, 0], sizes = [1, 16, 16, 16], strides = [1, 1, 1, 1]} : vector<1x18x18x16xbf16> to vector<1x16x16x16xbf16>
    %45 = vector.shape_cast %44 : vector<1x16x16x16xbf16> to vector<16x16x16xbf16>
    %46 = vector.shape_cast %45 : vector<16x16x16xbf16> to vector<256x16xbf16>
    %c6 = arith.constant 6 : index
    %c0_22 = arith.constant 0 : index
    %c0_23 = arith.constant 0 : index
    %47 = vector.load %arg2[%c6, %c0_22, %c0_23] : memref<9x16x128xbf16, #tpu.memory_space<vmem>>, vector<1x16x128xbf16>
    %48 = vector.shape_cast %47 : vector<1x16x128xbf16> to vector<16x128xbf16>
    %cst_24 = arith.constant dense<0.000000e+00> : vector<256x128xf32>
    %49 = tpu.matmul %46, %48, %cst_24 {dimension_numbers = #tpu.dot_dimension_numbers<[1], [0], [0], [1], [0, 0, 1, 1], [], []>} : vector<256x16xbf16>, vector<16x128xbf16>, vector<256x128xf32> -> vector<256x128xf32>
    %50 = arith.addf %43, %49 : vector<256x128xf32>
    %51 = vector.extract_strided_slice %0 {offsets = [0, 2, 1, 0], sizes = [1, 16, 16, 16], strides = [1, 1, 1, 1]} : vector<1x18x18x16xbf16> to vector<1x16x16x16xbf16>
    %52 = vector.shape_cast %51 : vector<1x16x16x16xbf16> to vector<16x16x16xbf16>
    %53 = vector.shape_cast %52 : vector<16x16x16xbf16> to vector<256x16xbf16>
    %c7 = arith.constant 7 : index
    %c0_25 = arith.constant 0 : index
    %c0_26 = arith.constant 0 : index
    %54 = vector.load %arg2[%c7, %c0_25, %c0_26] : memref<9x16x128xbf16, #tpu.memory_space<vmem>>, vector<1x16x128xbf16>
    %55 = vector.shape_cast %54 : vector<1x16x128xbf16> to vector<16x128xbf16>
    %cst_27 = arith.constant dense<0.000000e+00> : vector<256x128xf32>
    %56 = tpu.matmul %53, %55, %cst_27 {dimension_numbers = #tpu.dot_dimension_numbers<[1], [0], [0], [1], [0, 0, 1, 1], [], []>} : vector<256x16xbf16>, vector<16x128xbf16>, vector<256x128xf32> -> vector<256x128xf32>
    %57 = arith.addf %50, %56 : vector<256x128xf32>
    %58 = vector.extract_strided_slice %0 {offsets = [0, 2, 2, 0], sizes = [1, 16, 16, 16], strides = [1, 1, 1, 1]} : vector<1x18x18x16xbf16> to vector<1x16x16x16xbf16>
    %59 = vector.shape_cast %58 : vector<1x16x16x16xbf16> to vector<16x16x16xbf16>
    %60 = vector.shape_cast %59 : vector<16x16x16xbf16> to vector<256x16xbf16>
    %c8 = arith.constant 8 : index
    %c0_28 = arith.constant 0 : index
    %c0_29 = arith.constant 0 : index
    %61 = vector.load %arg2[%c8, %c0_28, %c0_29] : memref<9x16x128xbf16, #tpu.memory_space<vmem>>, vector<1x16x128xbf16>
    %62 = vector.shape_cast %61 : vector<1x16x128xbf16> to vector<16x128xbf16>
    %cst_30 = arith.constant dense<0.000000e+00> : vector<256x128xf32>
    %63 = tpu.matmul %60, %62, %cst_30 {dimension_numbers = #tpu.dot_dimension_numbers<[1], [0], [0], [1], [0, 0, 1, 1], [], []>} : vector<256x16xbf16>, vector<16x128xbf16>, vector<256x128xf32> -> vector<256x128xf32>
    %64 = arith.addf %57, %63 : vector<256x128xf32>
    %c0_31 = arith.constant 0 : index
    %c0_32 = arith.constant 0 : index
    %65 = vector.load %arg3[%c0_31, %c0_32] : memref<1x128xf32, #tpu.memory_space<vmem>>, vector<1x128xf32>
    %66 = vector.broadcast %65 : vector<1x128xf32> to vector<256x128xf32>
    %67 = arith.addf %64, %66 : vector<256x128xf32>
    %68 = arith.negf %67 : vector<256x128xf32>
    %69 = math.exp %68 : vector<256x128xf32>
    %cst_33 = arith.constant 1.000000e+00 : f32
    %70 = vector.broadcast %cst_33 : f32 to vector<256x128xf32>
    %71 = arith.addf %70, %69 : vector<256x128xf32>
    %72 = arith.divf %70, %71 : vector<256x128xf32>
    %c0_34 = arith.constant 0 : index
    %c0_35 = arith.constant 0 : index
    %73 = vector.load %arg4[%c0_34, %c0_35] : memref<256x128xf32, #tpu.memory_space<vmem>>, vector<256x128xf32>
    tpu.vector_store %arg4[%c0_34, %c0_35], %72 {strides = array<i32>} : memref<256x128xf32, #tpu.memory_space<vmem>>, vector<256x128xf32>,
    return
  }
  func.func @transform_0(%arg0: i32) -> (i32, i32, i32, i32) {
    %c0_i32 = arith.constant 0 : i32
    %c0_i32_0 = arith.constant 0 : i32
    %c0_i32_1 = arith.constant 0 : i32
    %c0_i32_2 = arith.constant 0 : i32
    return %arg0, %c0_i32, %c0_i32_0, %c0_i32_1 : i32, i32, i32, i32
  }
  func.func @transform_1(%arg0: i32) -> (i32, i32, i32) {
    %c0_i32 = arith.constant 0 : i32
    %c0_i32_0 = arith.constant 0 : i32
    %c0_i32_1 = arith.constant 0 : i32
    %c0_i32_2 = arith.constant 0 : i32
    return %c0_i32, %c0_i32_0, %c0_i32_1 : i32, i32, i32
  }
  func.func @transform_2(%arg0: i32) -> (i32, i32) {
    %c0_i32 = arith.constant 0 : i32
    %c0_i32_0 = arith.constant 0 : i32
    %c0_i32_1 = arith.constant 0 : i32
    return %c0_i32, %c0_i32_0 : i32, i32
  }
  func.func @transform_3(%arg0: i32) -> (i32, i32) {
    %c0_i32 = arith.constant 0 : i32
    %c0_i32_0 = arith.constant 0 : i32
    return %arg0, %c0_i32 : i32, i32
  }
}

</mosaic_0001>

<llo_original>
// kernel: cvae_forward.5
$region0: #{cvae_forward.5}
  #allocation0 [shape = 'u32[]', space=smem, size = 0x4, offset = 0x4, fixed_abs, tag = 'smem constant byte address 0x4 - core index']
  #allocation1 [shape = 'u32[144,128]{1,0:T(1,128)}', space=vmem, size = 0x12000, scoped, tag = 'internal scratch']
  %s0 = inlined_call_operand.vmem [shape: bf16[2,17,17,12], index: 0, kind: input, shape index: {}]
  %s1 = inlined_call_operand.vmem [shape: bf16[4,12,128], index: 1, kind: input, shape index: {}]
  %s2 = inlined_call_operand.vmem [shape: f32[1,128], index: 2, kind: input, shape index: {}]
  %s3 = inlined_call_operand.vmem [shape: f32[512,128], index: 3, kind: output, shape index: {}]
  %s4 = sld [smem:[#allocation0]]
  $region45: #{cvae_forward.5} parent=0
    _
  %s6 = ssub.s32 1, %s4
  %s7 = scalar_select 0, %s6, %s4
  loop: start=0, step=1, limit=4
  $region2: #{cvae_forward.5} parent=0 // loop_pre_header
    _
  $region3: #{cvae_forward.5} parent=0 // loop_header
    %s9 = sphi 0, %s13
    %p10 = scmp.ge.s32.totalorder %s9, 4
    %s19 = sphi 0, %s21
    %s22 = sphi 0, %s19
    %s23 = sphi 0, %s22
    %s39 = sphi 0, %s23
    %s43 = sphi 0, %s43
    %s45 = sphi 0, %s43
    %s46 = sphi 0, %s45
    %s60 = sphi 0, %s46
    %s64 = sphi 0, %s64
    %s66 = sphi 0, %s64
    %s67 = sphi 0, %s66
    %s81 = sphi 0, %s67
    %s87 = sphi 0, %s89
    %s90 = sphi 0, %s87
    %s91 = sphi 0, %s90
    %s107 = sphi 0, %s91
  $region4: #{cvae_forward.5} parent=0 // loop_header_branch
    %12 = sbr.rel (%p10) target = $region8
  $region5: #{cvae_forward.5} parent=0 // loop_body
    %s14 = ssub.s32 %s9, 1
    %s15 = ssub.s32 %s9, 2
    %s16 = sadd.s32 %s9, 1
    %s17 = ssub.s32 %s9, %s16
    %p18 = scmp.eq.s32.totalorder %s17, 0
    %s20 = sadd.s32 %s19, 1
    %s21 = scalar_select %p18, %s19, %s20
    %p24 = pneg %p18
    %p25 = scmp.eq.s32.totalorder %s9, 1
    %p26 = por %p24, %p25
    %p27 = scmp.ne.s32.totalorder %s19, %s22
    %p28 = scmp.eq.s32.totalorder %s9, 0
    %p29 = por %p27, %p28
    %p30 = scmp.ne.s32.totalorder %s19, %s22
    %p31 = scmp.eq.s32.totalorder %s14, 1
    %p32 = por %p30, %p31
    %p33 = scmp.ne.s32.totalorder %s22, %s23
    %p34 = scmp.eq.s32.totalorder %s14, 0
    %p35 = por %p33, %p34
    %p36 = scmp.ne.s32.totalorder %s22, %s23
    %p37 = scmp.eq.s32.totalorder %s15, 1
    %p38 = por %p36, %p37
    %p40 = scmp.ne.s32.totalorder %s23, %s39
    %p41 = scmp.eq.s32.totalorder %s15, 0
    %p42 = por %p40, %p41
    %s44 = sadd.s32 %s43, 1
    %p47 = scmp.eq.s32.totalorder %s9, 1
    %p48 = scmp.ne.s32.totalorder %s43, %s45
    %p49 = scmp.eq.s32.totalorder %s9, 0
    %p50 = por %p48, %p49
    %p51 = scmp.ne.s32.totalorder %s43, %s45
    %p52 = scmp.eq.s32.totalorder %s14, 1
    %p53 = por %p51, %p52
    %p54 = scmp.ne.s32.totalorder %s45, %s46
    %p55 = scmp.eq.s32.totalorder %s14, 0
    %p56 = por %p54, %p55
    %p57 = scmp.ne.s32.totalorder %s45, %s46
    %p58 = scmp.eq.s32.totalorder %s15, 1
    %p59 = por %p57, %p58
    %p61 = scmp.ne.s32.totalorder %s46, %s60
    %p62 = scmp.eq.s32.totalorder %s15, 0
    %p63 = por %p61, %p62
    %s65 = sadd.s32 %s64, 1
    %p68 = scmp.eq.s32.totalorder %s9, 1
    %p69 = scmp.ne.s32.totalorder %s64, %s66
    %p70 = scmp.eq.s32.totalorder %s9, 0
    %p71 = por %p69, %p70
    %p72 = scmp.ne.s32.totalorder %s64, %s66
    %p73 = scmp.eq.s32.totalorder %s14, 1
    %p74 = por %p72, %p73
    %p75 = scmp.ne.s32.totalorder %s66, %s67
    %p76 = scmp.eq.s32.totalorder %s14, 0
    %p77 = por %p75, %p76
    %p78 = scmp.ne.s32.totalorder %s66, %s67
    %p79 = scmp.eq.s32.totalorder %s15, 1
    %p80 = por %p78, %p79
    %p82 = scmp.ne.s32.totalorder %s67, %s81
    %p83 = scmp.eq.s32.totalorder %s15, 0
    %p84 = por %p82, %p83
    %s85 = ssub.s32 %s9, %s16
    %p86 = scmp.eq.s32.totalorder %s85, 0
    %s88 = sadd.s32 %s87, 1
    %s89 = scalar_select %p86, %s87, %s88
    %p92 = pneg %p86
    %p93 = scmp.eq.s32.totalorder %s9, 1
    %p94 = por %p92, %p93
    %p95 = scmp.ne.s32.totalorder %s87, %s90
    %p96 = scmp.eq.s32.totalorder %s9, 0
    %p97 = por %p95, %p96
    %p98 = scmp.ne.s32.totalorder %s87, %s90
    %p99 = scmp.eq.s32.totalorder %s14, 1
    %p100 = por %p98, %p99
    %p101 = scmp.ne.s32.totalorder %s90, %s91
    %p102 = scmp.eq.s32.totalorder %s14, 0
    %p103 = por %p101, %p102
    %p104 = scmp.ne.s32.totalorder %s90, %s91
    %p105 = scmp.eq.s32.totalorder %s15, 1
    %p106 = por %p104, %p105
    %p108 = scmp.ne.s32.totalorder %s91, %s107
    %p109 = scmp.eq.s32.totalorder %s15, 0
    %p110 = por %p108, %p109
    %p111 = scmp.le.s32.totalorder 1, %s9
    %p112 = scmp.lt.s32.totalorder %s9, 3
    %p113 = pnand %p111, %p112
    %p114 = pneg %p113
    // Predicated region
    $region9: #{cvae_forward.5} parent=5 // pred_check
      _
    $region10: #{cvae_forward.5} parent=5 // pred_check_branch
      %116 = sbr.rel (%p113) target = $region12
    $region11: #{cvae_forward.5} parent=5 // pred_region
      %s117 = ssub.s32 %s9, 1
      // Predicated region
      $region13: #{cvae_forward.5} parent=11 // pred_check
        %p118 = pneg %p56
      $region14: #{cvae_forward.5} parent=11 // pred_check_branch
        %120 = sbr.rel (%p118) target = $region16
      $region15: #{cvae_forward.5} parent=11 // pred_region
        _
      $region16: #{cvae_forward.5} parent=11 // pred_fallthru
        _
      // Predicated region
      $region17: #{cvae_forward.5} parent=11 // pred_check
        %p121 = pneg %p77
      $region18: #{cvae_forward.5} parent=11 // pred_check_branch
        %123 = sbr.rel (%p121) target = $region20
      $region19: #{cvae_forward.5} parent=11 // pred_region
        _
      $region20: #{cvae_forward.5} parent=11 // pred_fallthru
        _
    $region12: #{cvae_forward.5} parent=5 // pred_fallthru
      _
    %p124 = scmp.lt.s32.totalorder %s9, 2
    // Predicated region
    $region21: #{cvae_forward.5} parent=5 // pred_check
      %p125 = pneg %p124
    $region22: #{cvae_forward.5} parent=5 // pred_check_branch
      %127 = sbr.rel (%p125) target = $region24
    $region23: #{cvae_forward.5} parent=5 // pred_region
      // Predicated region
      $region25: #{cvae_forward.5} parent=23 // pred_check
        %p128 = pneg %p29
      $region26: #{cvae_forward.5} parent=23 // pred_check_branch
        %130 = sbr.rel (%p128) target = $region28
      $region27: #{cvae_forward.5} parent=23 // pred_region
        %p131 = scmp.lt.s32.totalorder %s9, 1
        %s132 = scalar_select %p131, %s9, 1
        %s133 = smul.addr %s132, 51
        %s134 = smul.addr %s133, 4
        %s135 = scalar_lea.vmem %s0, %s134
      $region28: #{cvae_forward.5} parent=23 // pred_fallthru
        _
    $region24: #{cvae_forward.5} parent=5 // pred_fallthru
      _
    %p136 = scmp.le.s32.totalorder 1, %s9
    %p137 = scmp.lt.s32.totalorder %s9, 3
    %p138 = pnand %p136, %p137
    %p139 = pneg %p138
    // Predicated region
    $region29: #{cvae_forward.5} parent=5 // pred_check
      _
    $region30: #{cvae_forward.5} parent=5 // pred_check_branch
      %141 = sbr.rel (%p138) target = $region32
    $region31: #{cvae_forward.5} parent=5 // pred_region
      %s142 = ssub.s32 %s9, 1
      %p143 = scmp.lt.s32.totalorder %s14, 1
      %s144 = scalar_select %p143, %s14, 1
      %s145 = smul.addr %s144, 51
      %s146 = smul.addr %s145, 4
      %s147 = scalar_lea.vmem %s0, %s146
      %p148 = pneg %p35
      %p149 = pneg %p32
      %p150 = pneg %p56
      %p151 = pneg %p53
      %p152 = pneg %p77
      %p153 = pneg %p74
      %p154 = pneg %p103
      %p155 = pneg %p100
      %s156 = smul.u32 32, %s14
      %p157 = scmp.lt.s32.totalorder %s156, 63
      %s158 = scalar_select %p157, %s156, 63
      %s159 = smul.addr %s158, 8
      %s160 = scalar_lea.vmem %s3, %s159
      %p161 = scmp.lt.s32.totalorder %s14, 1
      %s162 = scalar_select %p161, %s14, 1
      %s163 = smul.addr %s162, 51
      %s164 = smul.addr %s163, 4
      %s165 = scalar_lea.vmem %s0, %s164
      %s166 = smul.u32 32, %s14
      %p167 = scmp.lt.s32.totalorder %s166, 63
      %s168 = scalar_select %p167, %s166, 63
      %s169 = smul.addr %s168, 8
      %s170 = scalar_lea.vmem %s3, %s169
      %s171 = smul.u32 32, %s14
      %v173 = vld [vmem:[%s165] sm:$0xf]
      %v174 = vld [vmem:[%s165 + $0x4] sm:$0xf]
      %v175 = vld [vmem:[%s165 + $0x8] sm:$0x1]
      %v176 = vld [vmem:[%s165 + $0xc] sm:$0xf]
      %v177 = vld [vmem:[%s165 + $0x10] sm:$0xf]
      %v178 = vld [vmem:[%s165 + $0x14] sm:$0x1]
      %v179 = vld [vmem:[%s165 + $0x18] sm:$0xf]
      %v180 = vld [vmem:[%s165 + $0x1c] sm:$0xf]
      %v181 = vld [vmem:[%s165 + $0x20] sm:$0x1]
      %v182 = vld [vmem:[%s165 + $0x24] sm:$0xf]
      %v183 = vld [vmem:[%s165 + $0x28] sm:$0xf]
      %v184 = vld [vmem:[%s165 + $0x2c] sm:$0x1]
      %v185 = vld [vmem:[%s165 + $0x30] sm:$0xf]
      %v186 = vld [vmem:[%s165 + $0x34] sm:$0xf]
      %v187 = vld [vmem:[%s165 + $0x38] sm:$0x1]
      %v188 = vld [vmem:[%s165 + $0x3c] sm:$0xf]
      %v189 = vld [vmem:[%s165 + $0x40] sm:$0xf]
      %v190 = vld [vmem:[%s165 + $0x44] sm:$0x1]
      %v191 = vld [vmem:[%s165 + $0x48] sm:$0xf]
      %v192 = vld [vmem:[%s165 + $0x4c] sm:$0xf]
      %v193 = vld [vmem:[%s165 + $0x50] sm:$0x1]
      %v194 = vld [vmem:[%s165 + $0x54] sm:$0xf]
      %v195 = vld [vmem:[%s165 + $0x58] sm:$0xf]
      %v196 = vld [vmem:[%s165 + $0x5c] sm:$0x1]
      %v197 = vld [vmem:[%s165 + $0x60] sm:$0xf]
      %v198 = vld [vmem:[%s165 + $0x64] sm:$0xf]
      %v199 = vld [vmem:[%s165 + $0x68] sm:$0x1]
      %v200 = vld [vmem:[%s165 + $0x6c] sm:$0xf]
      %v201 = vld [vmem:[%s165 + $0x70] sm:$0xf]
      %v202 = vld [vmem:[%s165 + $0x74] sm:$0x1]
      %v203 = vld [vmem:[%s165 + $0x78] sm:$0xf]
      %v204 = vld [vmem:[%s165 + $0x7c] sm:$0xf]
      %v205 = vld [vmem:[%s165 + $0x80] sm:$0x1]
      %v206 = vld [vmem:[%s165 + $0x84] sm:$0xf]
      %v207 = vld [vmem:[%s165 + $0x88] sm:$0xf]
      %v208 = vld [vmem:[%s165 + $0x8c] sm:$0x1]
      %v209 = vld [vmem:[%s165 + $0x90] sm:$0xf]
      %v210 = vld [vmem:[%s165 + $0x94] sm:$0xf]
      %v211 = vld [vmem:[%s165 + $0x98] sm:$0x1]
      %v212 = vld [vmem:[%s165 + $0x9c] sm:$0xf]
      %v213 = vld [vmem:[%s165 + $0xa0] sm:$0xf]
      %v214 = vld [vmem:[%s165 + $0xa4] sm:$0x1]
      %v215 = vld [vmem:[%s165 + $0xa8] sm:$0xf]
      %v216 = vld [vmem:[%s165 + $0xac] sm:$0xf]
      %v217 = vld [vmem:[%s165 + $0xb0] sm:$0x1]
      %v218 = vld [vmem:[%s165 + $0xb4] sm:$0xf]
      %v219 = vld [vmem:[%s165 + $0xb8] sm:$0xf]
      %v220 = vld [vmem:[%s165 + $0xbc] sm:$0x1]
      %v221 = vld [vmem:[%s165 + $0xc0] sm:$0xf]
      %v222 = vld [vmem:[%s165 + $0xc4] sm:$0xf]
      %v223 = vld [vmem:[%s165 + $0xc8] sm:$0x1]
      %v224 = vld [vmem:[%s1] sm:$0xf]
      %v225 = vld [vmem:[%s1 + $0x4] sm:$0x3]
      %vm226 = vsmask.f32 3328
      %vm227 = vsmask.f32 7440
      %vm228 = vmor %vm226, %vm227
      %v230 = vshrl.u32 %v173, 16
      %v232 = vrot.slane %v230, 4
      %v233 = vshll.u32 %v173, 16
      %v235 = vrot.slane %v233, 5
      %v236 = vor.u32 %v232, %v235
      %v237 = vrot.slane %v236, 4
      %v239 = vshll.u32 %v174, 16
      %v241 = vrot.slane %v239, 5
      %v242 = vsel %vm228, %v237, %v241
      %v243 = vshrl.u32 %v174, 16
      %v245 = vrot.slane %v243, 4
      %v246 = vor.u32 %v245, %v241
      %v247 = vrot.slane %v246, 4
      %v249 = vshll.u32 %v175, 16
      %v251 = vrot.slane %v249, 5
      %v252 = vsel %vm228, %v247, %v251
      %v254 = vshrl.u32 %v176, 16
      %v256 = vrot.slane %v254, 4
      %v257 = vshll.u32 %v176, 16
      %v259 = vrot.slane %v257, 5
      %v260 = vor.u32 %v256, %v259
      %v261 = vrot.slane %v260, 4
      %v263 = vshll.u32 %v177, 16
      %v265 = vrot.slane %v263, 5
      %v266 = vsel %vm228, %v261, %v265
      %v267 = vshrl.u32 %v177, 16
      %v269 = vrot.slane %v267, 4
      %v270 = vor.u32 %v269, %v265
      %v271 = vrot.slane %v270, 4
      %v273 = vshll.u32 %v178, 16
      %v275 = vrot.slane %v273, 5
      %v276 = vsel %vm228, %v271, %v275
      %v278 = vshrl.u32 %v179, 16
      %v280 = vrot.slane %v278, 4
      %v281 = vshll.u32 %v179, 16
      %v283 = vrot.slane %v281, 5
      %v284 = vor.u32 %v280, %v283
      %v285 = vrot.slane %v284, 4
      %v287 = vshll.u32 %v180, 16
      %v289 = vrot.slane %v287, 5
      %v290 = vsel %vm228, %v285, %v289
      %v291 = vshrl.u32 %v180, 16
      %v293 = vrot.slane %v291, 4
      %v294 = vor.u32 %v293, %v289
      %v295 = vrot.slane %v294, 4
      %v297 = vshll.u32 %v181, 16
      %v299 = vrot.slane %v297, 5
      %v300 = vsel %vm228, %v295, %v299
      %v302 = vshrl.u32 %v182, 16
      %v304 = vrot.slane %v302, 4
      %v305 = vshll.u32 %v182, 16
      %v307 = vrot.slane %v305, 5
      %v308 = vor.u32 %v304, %v307
      %v309 = vrot.slane %v308, 4
      %v311 = vshll.u32 %v183, 16
      %v313 = vrot.slane %v311, 5
      %v314 = vsel %vm228, %v309, %v313
      %v315 = vshrl.u32 %v183, 16
      %v317 = vrot.slane %v315, 4
      %v318 = vor.u32 %v317, %v313
      %v319 = vrot.slane %v318, 4
      %v321 = vshll.u32 %v184, 16
      %v323 = vrot.slane %v321, 5
      %v324 = vsel %vm228, %v319, %v323
      %v326 = vshrl.u32 %v185, 16
      %v328 = vrot.slane %v326, 4
      %v329 = vshll.u32 %v185, 16
      %v331 = vrot.slane %v329, 5
      %v332 = vor.u32 %v328, %v331
      %v333 = vrot.slane %v332, 4
      %v335 = vshll.u32 %v186, 16
      %v337 = vrot.slane %v335, 5
      %v338 = vsel %vm228, %v333, %v337
      %v339 = vshrl.u32 %v186, 16
      %v341 = vrot.slane %v339, 4
      %v342 = vor.u32 %v341, %v337
      %v343 = vrot.slane %v342, 4
      %v345 = vshll.u32 %v187, 16
      %v347 = vrot.slane %v345, 5
      %v348 = vsel %vm228, %v343, %v347
      %v350 = vshrl.u32 %v188, 16
      %v352 = vrot.slane %v350, 4
      %v353 = vshll.u32 %v188, 16
      %v355 = vrot.slane %v353, 5
      %v356 = vor.u32 %v352, %v355
      %v357 = vrot.slane %v356, 4
      %v359 = vshll.u32 %v189, 16
      %v361 = vrot.slane %v359, 5
      %v362 = vsel %vm228, %v357, %v361
      %v363 = vshrl.u32 %v189, 16
      %v365 = vrot.slane %v363, 4
      %v366 = vor.u32 %v365, %v361
      %v367 = vrot.slane %v366, 4
      %v369 = vshll.u32 %v190, 16
      %v371 = vrot.slane %v369, 5
      %v372 = vsel %vm228, %v367, %v371
      %v374 = vshrl.u32 %v191, 16
      %v376 = vrot.slane %v374, 4
      %v377 = vshll.u32 %v191, 16
      %v379 = vrot.slane %v377, 5
      %v380 = vor.u32 %v376, %v379
      %v381 = vrot.slane %v380, 4
      %v383 = vshll.u32 %v192, 16
      %v385 = vrot.slane %v383, 5
      %v386 = vsel %vm228, %v381, %v385
      %v387 = vshrl.u32 %v192, 16
      %v389 = vrot.slane %v387, 4
      %v390 = vor.u32 %v389, %v385
      %v391 = vrot.slane %v390, 4
      %v393 = vshll.u32 %v193, 16
      %v395 = vrot.slane %v393, 5
      %v396 = vsel %vm228, %v391, %v395
      %v398 = vshrl.u32 %v194, 16
      %v400 = vrot.slane %v398, 4
      %v401 = vshll.u32 %v194, 16
      %v403 = vrot.slane %v401, 5
      %v404 = vor.u32 %v400, %v403
      %v405 = vrot.slane %v404, 4
      %v407 = vshll.u32 %v195, 16
      %v409 = vrot.slane %v407, 5
      %v410 = vsel %vm228, %v405, %v409
      %v411 = vshrl.u32 %v195, 16
      %v413 = vrot.slane %v411, 4
      %v414 = vor.u32 %v413, %v409
      %v415 = vrot.slane %v414, 4
      %v417 = vshll.u32 %v196, 16
      %v419 = vrot.slane %v417, 5
      %v420 = vsel %vm228, %v415, %v419
      %v422 = vshrl.u32 %v197, 16
      %v424 = vrot.slane %v422, 4
      %v425 = vshll.u32 %v197, 16
      %v427 = vrot.slane %v425, 5
      %v428 = vor.u32 %v424, %v427
      %v429 = vrot.slane %v428, 4
      %v431 = vshll.u32 %v198, 16
      %v433 = vrot.slane %v431, 5
      %v434 = vsel %vm228, %v429, %v433
      %v435 = vshrl.u32 %v198, 16
      %v437 = vrot.slane %v435, 4
      %v438 = vor.u32 %v437, %v433
      %v439 = vrot.slane %v438, 4
      %v441 = vshll.u32 %v199, 16
      %v443 = vrot.slane %v441, 5
      %v444 = vsel %vm228, %v439, %v443
      %v446 = vshrl.u32 %v200, 16
      %v448 = vrot.slane %v446, 4
      %v449 = vshll.u32 %v200, 16
      %v451 = vrot.slane %v449, 5
      %v452 = vor.u32 %v448, %v451
      %v453 = vrot.slane %v452, 4
      %v455 = vshll.u32 %v201, 16
      %v457 = vrot.slane %v455, 5
      %v458 = vsel %vm228, %v453, %v457
      %v459 = vshrl.u32 %v201, 16
      %v461 = vrot.slane %v459, 4
      %v462 = vor.u32 %v461, %v457
      %v463 = vrot.slane %v462, 4
      %v465 = vshll.u32 %v202, 16
      %v467 = vrot.slane %v465, 5
      %v468 = vsel %vm228, %v463, %v467
      %v470 = vshrl.u32 %v203, 16
      %v472 = vrot.slane %v470, 4
      %v473 = vshll.u32 %v203, 16
      %v475 = vrot.slane %v473, 5
      %v476 = vor.u32 %v472, %v475
      %v477 = vrot.slane %v476, 4
      %v479 = vshll.u32 %v204, 16
      %v481 = vrot.slane %v479, 5
      %v482 = vsel %vm228, %v477, %v481
      %v483 = vshrl.u32 %v204, 16
      %v485 = vrot.slane %v483, 4
      %v486 = vor.u32 %v485, %v481
      %v487 = vrot.slane %v486, 4
      %v489 = vshll.u32 %v205, 16
      %v491 = vrot.slane %v489, 5
      %v492 = vsel %vm228, %v487, %v491
      %v494 = vshrl.u32 %v206, 16
      %v496 = vrot.slane %v494, 4
      %v497 = vshll.u32 %v206, 16
      %v499 = vrot.slane %v497, 5
      %v500 = vor.u32 %v496, %v499
      %v501 = vrot.slane %v500, 4
      %v503 = vshll.u32 %v207, 16
      %v505 = vrot.slane %v503, 5
      %v506 = vsel %vm228, %v501, %v505
      %v507 = vshrl.u32 %v207, 16
      %v509 = vrot.slane %v507, 4
      %v510 = vor.u32 %v509, %v505
      %v511 = vrot.slane %v510, 4
      %v513 = vshll.u32 %v208, 16
      %v515 = vrot.slane %v513, 5
      %v516 = vsel %vm228, %v511, %v515
      %v518 = vshrl.u32 %v209, 16
      %v520 = vrot.slane %v518, 4
      %v521 = vshll.u32 %v209, 16
      %v523 = vrot.slane %v521, 5
      %v524 = vor.u32 %v520, %v523
      %v525 = vrot.slane %v524, 4
      %v527 = vshll.u32 %v210, 16
      %v529 = vrot.slane %v527, 5
      %v530 = vsel %vm228, %v525, %v529
      %v531 = vshrl.u32 %v210, 16
      %v533 = vrot.slane %v531, 4
      %v534 = vor.u32 %v533, %v529
      %v535 = vrot.slane %v534, 4
      %v537 = vshll.u32 %v211, 16
      %v539 = vrot.slane %v537, 5
      %v540 = vsel %vm228, %v535, %v539
      %v542 = vshrl.u32 %v212, 16
      %v544 = vrot.slane %v542, 4
      %v545 = vshll.u32 %v212, 16
      %v547 = vrot.slane %v545, 5
      %v548 = vor.u32 %v544, %v547
      %v549 = vrot.slane %v548, 4
      %v551 = vshll.u32 %v213, 16
      %v553 = vrot.slane %v551, 5
      %v554 = vsel %vm228, %v549, %v553
      %v555 = vshrl.u32 %v213, 16
      %v557 = vrot.slane %v555, 4
      %v558 = vor.u32 %v557, %v553
      %v559 = vrot.slane %v558, 4
      %v561 = vshll.u32 %v214, 16
      %v563 = vrot.slane %v561, 5
      %v564 = vsel %vm228, %v559, %v563
      %v566 = vshrl.u32 %v215, 16
      %v568 = vrot.slane %v566, 4
      %v569 = vshll.u32 %v215, 16
      %v571 = vrot.slane %v569, 5
      %v572 = vor.u32 %v568, %v571
      %v573 = vrot.slane %v572, 4
      %v575 = vshll.u32 %v216, 16
      %v577 = vrot.slane %v575, 5
      %v578 = vsel %vm228, %v573, %v577
      %v579 = vshrl.u32 %v216, 16
      %v581 = vrot.slane %v579, 4
      %v582 = vor.u32 %v581, %v577
      %v583 = vrot.slane %v582, 4
      %v585 = vshll.u32 %v217, 16
      %v587 = vrot.slane %v585, 5
      %v588 = vsel %vm228, %v583, %v587
      %v590 = vshrl.u32 %v218, 16
      %v592 = vrot.slane %v590, 4
      %v593 = vshll.u32 %v218, 16
      %v595 = vrot.slane %v593, 5
      %v596 = vor.u32 %v592, %v595
      %v597 = vrot.slane %v596, 4
      %v599 = vshll.u32 %v219, 16
      %v601 = vrot.slane %v599, 5
      %v602 = vsel %vm228, %v597, %v601
      %v603 = vshrl.u32 %v219, 16
      %v605 = vrot.slane %v603, 4
      %v606 = vor.u32 %v605, %v601
      %v607 = vrot.slane %v606, 4
      %v609 = vshll.u32 %v220, 16
      %v611 = vrot.slane %v609, 5
      %v612 = vsel %vm228, %v607, %v611
      %s613 = scalar_lea.vmem %s1, 8
      %v614 = vld [vmem:[%s613] sm:$0xf]
      %v615 = vld [vmem:[%s613 + $0x4] sm:$0x3]
      %v616 = vunpack.c.l.b16 %v242
      %v617 = vunpack.c.l.b16 %v252
      %v618 = vunpack.c.l.b16 %v266
      %v619 = vunpack.c.l.b16 %v276
      %v620 = vunpack.c.l.b16 %v290
      %v621 = vunpack.c.l.b16 %v300
      %v622 = vunpack.c.l.b16 %v314
      %v623 = vunpack.c.l.b16 %v324
      %v624 = vunpack.c.l.b16 %v338
      %v625 = vunpack.c.l.b16 %v348
      %v626 = vunpack.c.l.b16 %v362
      %v627 = vunpack.c.l.b16 %v372
      %v628 = vunpack.c.l.b16 %v386
      %v629 = vunpack.c.l.b16 %v396
      %v630 = vunpack.c.l.b16 %v410
      %v631 = vunpack.c.l.b16 %v420
      %v632 = vunpack.c.l.b16 %v434
      %v633 = vunpack.c.l.b16 %v444
      %v634 = vunpack.c.l.b16 %v458
      %v635 = vunpack.c.l.b16 %v468
      %v636 = vunpack.c.l.b16 %v482
      %v637 = vunpack.c.l.b16 %v492
      %v638 = vunpack.c.l.b16 %v506
      %v639 = vunpack.c.l.b16 %v516
      %v640 = vunpack.c.l.b16 %v530
      %v641 = vunpack.c.l.b16 %v540
      %v642 = vunpack.c.l.b16 %v554
      %v643 = vunpack.c.l.b16 %v564
      %v644 = vunpack.c.l.b16 %v578
      %v645 = vunpack.c.l.b16 %v588
      %v646 = vunpack.c.l.b16 %v602
      %v647 = vunpack.c.l.b16 %v612
      %v648 = vpack.c.b16 %v617, %v616
      %v649 = vpack.c.b16 %v619, %v618
      %v650 = vpack.c.b16 %v621, %v620
      %v651 = vpack.c.b16 %v623, %v622
      %v652 = vpack.c.b16 %v625, %v624
      %v653 = vpack.c.b16 %v627, %v626
      %v654 = vpack.c.b16 %v629, %v628
      %v655 = vpack.c.b16 %v631, %v630
      %v656 = vpack.c.b16 %v633, %v632
      %v657 = vpack.c.b16 %v635, %v634
      %v658 = vpack.c.b16 %v637, %v636
      %v659 = vpack.c.b16 %v639, %v638
      %v660 = vpack.c.b16 %v641, %v640
      %v661 = vpack.c.b16 %v643, %v642
      %v662 = vpack.c.b16 %v645, %v644
      %v663 = vpack.c.b16 %v647, %v646
      %v666 = vunpack.c.l.b16 %v614
      %v667 = vunpack.c.l.b16 %v615
      %v668 = vpack.c.b16 %v667, %v666
      %vm669 = vcmask 97280
      %v671 = vsel %vm669, %v648, 0
      %v674 = vsel %vm669, %v649, 0
      %v677 = vsel %vm669, %v650, 0
      %v680 = vsel %vm669, %v651, 0
      %v683 = vsel %vm669, %v652, 0
      %v686 = vsel %vm669, %v653, 0
      %v689 = vsel %vm669, %v654, 0
      %v692 = vsel %vm669, %v655, 0
      %v695 = vsel %vm669, %v656, 0
      %v698 = vsel %vm669, %v657, 0
      %v701 = vsel %vm669, %v658, 0
      %v704 = vsel %vm669, %v659, 0
      %v707 = vsel %vm669, %v660, 0
      %v710 = vsel %vm669, %v661, 0
      %v713 = vsel %vm669, %v662, 0
      %v716 = vsel %vm669, %v663, 0
      %vm718 = vcmask 1045504
      %v720 = vsel %vm718, %v668, 0
      %722 = vmatprep.subr.bf16.mxu0 0
      %723 = vmatpush1.bf16.msra.mxu0 %v720
      %724 = vmatprep.subr.bf16.mxu0 0
      %725 = vmatpush1.bf16.msra.mxu0 0
      %726 = vmatprep.subr.bf16.mxu0 0
      %727 = vmatpush1.bf16.msra.mxu0 0
      %728 = vmatprep.subr.bf16.mxu0 0
      %729 = vmatpush1.bf16.msra.mxu0 0
      %730 = vmatprep.subr.bf16.mxu0 0
      %731 = vmatpush1.bf16.msra.mxu0 0
      %732 = vmatprep.subr.bf16.mxu0 0
      %733 = vmatpush1.bf16.msra.mxu0 0
      %734 = vmatprep.subr.bf16.mxu0 0
      %735 = vmatpush1.bf16.msra.mxu0 0
      %736 = vmatprep.subr.bf16.mxu0 0
      %737 = vmatpush1.bf16.msra.mxu0 0
      %738 = vmatprep.subr.bf16.mxu0 0
      %739 = vmatpush1.bf16.msra.mxu0 0
      %740 = vmatprep.subr.bf16.mxu0 0
      %741 = vmatpush1.bf16.msra.mxu0 0
      %742 = vmatprep.subr.bf16.mxu0 0
      %743 = vmatpush1.bf16.msra.mxu0 0
      %744 = vmatprep.subr.bf16.mxu0 0
      %745 = vmatpush1.bf16.msra.mxu0 0
      %746 = vmatprep.subr.bf16.mxu0 0
      %747 = vmatpush1.bf16.msra.mxu0 0
      %748 = vmatprep.subr.bf16.mxu0 0
      %749 = vmatpush1.bf16.msra.mxu0 0
      %750 = vmatprep.subr.bf16.mxu0 0
      %751 = vmatpush1.bf16.msra.mxu0 0
      %752 = vmatprep.subr.bf16.mxu0 0
      %753 = vmatpush1.bf16.msra.mxu0 0
      %754 = vmatprep.mubr.bf16.mxu0 0
      %755 = vmatmul.mubr.bf16.gmra.mrb[0].mxu0 %v671
      %v756 = vpop.f32.mrb[0].mxu0
      %v757 = vadd.f32 0.0, %v756
      %v758 = vpop.f32.mrb[0].mxu0
      %v759 = vpop.f32.mrb[0].mxu0
      %v760 = vadd.f32 0.0, %v759
      %v761 = vpop.f32.mrb[0].mxu0
      %762 = vmatprep.mubr.bf16.mxu0 0
      %763 = vmatmul.mubr.bf16.gmra.mrb[0].mxu0 %v674
      %v764 = vpop.f32.mrb[0].mxu0
      %v765 = vadd.f32 0.0, %v764
      %v766 = vpop.f32.mrb[0].mxu0
      %v767 = vpop.f32.mrb[0].mxu0
      %v768 = vadd.f32 0.0, %v767
      %v769 = vpop.f32.mrb[0].mxu0
      %770 = vmatprep.mubr.bf16.mxu0 0
      %771 = vmatmul.mubr.bf16.gmra.mrb[0].mxu0 %v677
      %v772 = vpop.f32.mrb[0].mxu0
      %v773 = vadd.f32 0.0, %v772
      %v774 = vpop.f32.mrb[0].mxu0
      %v775 = vpop.f32.mrb[0].mxu0
      %v776 = vadd.f32 0.0, %v775
      %v777 = vpop.f32.mrb[0].mxu0
      %778 = vmatprep.mubr.bf16.mxu0 0
      %779 = vmatmul.mubr.bf16.gmra.mrb[0].mxu0 %v680
      %v780 = vpop.f32.mrb[0].mxu0
      %v781 = vadd.f32 0.0, %v780
      %v782 = vpop.f32.mrb[0].mxu0
      %v783 = vpop.f32.mrb[0].mxu0
      %v784 = vadd.f32 0.0, %v783
      %v785 = vpop.f32.mrb[0].mxu0
      %786 = vmatprep.mubr.bf16.mxu0 0
      %787 = vmatmul.mubr.bf16.gmra.mrb[0].mxu0 %v683
      %v788 = vpop.f32.mrb[0].mxu0
      %v789 = vadd.f32 0.0, %v788
      %v790 = vpop.f32.mrb[0].mxu0
      %v791 = vpop.f32.mrb[0].mxu0
      %v792 = vadd.f32 0.0, %v791
      %v793 = vpop.f32.mrb[0].mxu0
      %794 = vmatprep.mubr.bf16.mxu0 0
      %795 = vmatmul.mubr.bf16.gmra.mrb[0].mxu0 %v686
      %v796 = vpop.f32.mrb[0].mxu0
      %v797 = vadd.f32 0.0, %v796
      %v798 = vpop.f32.mrb[0].mxu0
      %v799 = vpop.f32.mrb[0].mxu0
      %v800 = vadd.f32 0.0, %v799
      %v801 = vpop.f32.mrb[0].mxu0
      %802 = vmatprep.mubr.bf16.mxu0 0
      %803 = vmatmul.mubr.bf16.gmra.mrb[0].mxu0 %v689
      %v804 = vpop.f32.mrb[0].mxu0
      %v805 = vadd.f32 0.0, %v804
      %v806 = vpop.f32.mrb[0].mxu0
      %v807 = vpop.f32.mrb[0].mxu0
      %v808 = vadd.f32 0.0, %v807
      %v809 = vpop.f32.mrb[0].mxu0
      %810 = vmatprep.mubr.bf16.mxu0 0
      %811 = vmatmul.mubr.bf16.gmra.mrb[0].mxu0 %v692
      %v812 = vpop.f32.mrb[0].mxu0
      %v813 = vadd.f32 0.0, %v812
      %v814 = vpop.f32.mrb[0].mxu0
      %v815 = vpop.f32.mrb[0].mxu0
      %v816 = vadd.f32 0.0, %v815
      %v817 = vpop.f32.mrb[0].mxu0
      %818 = vmatprep.mubr.bf16.mxu0 0
      %819 = vmatmul.mubr.bf16.gmra.mrb[0].mxu0 %v695
      %v820 = vpop.f32.mrb[0].mxu0
      %v821 = vadd.f32 0.0, %v820
      %v822 = vpop.f32.mrb[0].mxu0
      %v823 = vpop.f32.mrb[0].mxu0
      %v824 = vadd.f32 0.0, %v823
      %v825 = vpop.f32.mrb[0].mxu0
      %826 = vmatprep.mubr.bf16.mxu0 0
      %827 = vmatmul.mubr.bf16.gmra.mrb[0].mxu0 %v698
      %v828 = vpop.f32.mrb[0].mxu0
      %v829 = vadd.f32 0.0, %v828
      %v830 = vpop.f32.mrb[0].mxu0
      %v831 = vpop.f32.mrb[0].mxu0
      %v832 = vadd.f32 0.0, %v831
      %v833 = vpop.f32.mrb[0].mxu0
      %834 = vmatprep.mubr.bf16.mxu0 0
      %835 = vmatmul.mubr.bf16.gmra.mrb[0].mxu0 %v701
      %v836 = vpop.f32.mrb[0].mxu0
      %v837 = vadd.f32 0.0, %v836
      %v838 = vpop.f32.mrb[0].mxu0
      %v839 = vpop.f32.mrb[0].mxu0
      %v840 = vadd.f32 0.0, %v839
      %v841 = vpop.f32.mrb[0].mxu0
      %842 = vmatprep.mubr.bf16.mxu0 0
      %843 = vmatmul.mubr.bf16.gmra.mrb[0].mxu0 %v704
      %v844 = vpop.f32.mrb[0].mxu0
      %v845 = vadd.f32 0.0, %v844
      %v846 = vpop.f32.mrb[0].mxu0
      %v847 = vpop.f32.mrb[0].mxu0
      %v848 = vadd.f32 0.0, %v847
      %v849 = vpop.f32.mrb[0].mxu0
      %850 = vmatprep.mubr.bf16.mxu0 0
      %851 = vmatmul.mubr.bf16.gmra.mrb[0].mxu0 %v707
      %v852 = vpop.f32.mrb[0].mxu0
      %v853 = vadd.f32 0.0, %v852
      %v854 = vpop.f32.mrb[0].mxu0
      %v855 = vpop.f32.mrb[0].mxu0
      %v856 = vadd.f32 0.0, %v855
      %v857 = vpop.f32.mrb[0].mxu0
      %858 = vmatprep.mubr.bf16.mxu0 0
      %859 = vmatmul.mubr.bf16.gmra.mrb[0].mxu0 %v710
      %v860 = vpop.f32.mrb[0].mxu0
      %v861 = vadd.f32 0.0, %v860
      %v862 = vpop.f32.mrb[0].mxu0
      %v863 = vpop.f32.mrb[0].mxu0
      %v864 = vadd.f32 0.0, %v863
      %v865 = vpop.f32.mrb[0].mxu0
      %866 = vmatprep.mubr.bf16.mxu0 0
      %867 = vmatmul.mubr.bf16.gmra.mrb[0].mxu0 %v713
      %v868 = vpop.f32.mrb[0].mxu0
      %v869 = vadd.f32 0.0, %v868
      %v870 = vpop.f32.mrb[0].mxu0
      %v871 = vpop.f32.mrb[0].mxu0
      %v872 = vadd.f32 0.0, %v871
      %v873 = vpop.f32.mrb[0].mxu0
      %874 = vmatprep.mubr.bf16.mxu0 0
      %875 = vmatmul.mubr.bf16.gmra.mrb[0].mxu0 %v716
      %v876 = vpop.f32.mrb[0].mxu0
      %v877 = vadd.f32 0.0, %v876
      %v878 = vpop.f32.mrb[0].mxu0
      %v879 = vpop.f32.mrb[0].mxu0
      %v880 = vadd.f32 0.0, %v879
      %v881 = vpop.f32.mrb[0].mxu0
      %882 = vdwg.mxu0
      %v915 = vunpack.c.l.b16 %v173
      %v916 = vunpack.c.l.b16 %v174
      %v917 = vunpack.c.l.b16 %v176
      %v918 = vunpack.c.l.b16 %v177
      %v919 = vunpack.c.l.b16 %v179
      %v920 = vunpack.c.l.b16 %v180
      %v921 = vunpack.c.l.b16 %v182
      %v922 = vunpack.c.l.b16 %v183
      %v923 = vunpack.c.l.b16 %v185
      %v924 = vunpack.c.l.b16 %v186
      %v925 = vunpack.c.l.b16 %v188
      %v926 = vunpack.c.l.b16 %v189
      %v927 = vunpack.c.l.b16 %v191
      %v928 = vunpack.c.l.b16 %v192
      %v929 = vunpack.c.l.b16 %v194
      %v930 = vunpack.c.l.b16 %v195
      %v931 = vunpack.c.l.b16 %v197
      %v932 = vunpack.c.l.b16 %v198
      %v933 = vunpack.c.l.b16 %v200
      %v934 = vunpack.c.l.b16 %v201
      %v935 = vunpack.c.l.b16 %v203
      %v936 = vunpack.c.l.b16 %v204
      %v937 = vunpack.c.l.b16 %v206
      %v938 = vunpack.c.l.b16 %v207
      %v939 = vunpack.c.l.b16 %v209
      %v940 = vunpack.c.l.b16 %v210
      %v941 = vunpack.c.l.b16 %v212
      %v942 = vunpack.c.l.b16 %v213
      %v943 = vunpack.c.l.b16 %v215
      %v944 = vunpack.c.l.b16 %v216
      %v945 = vunpack.c.l.b16 %v218
      %v946 = vunpack.c.l.b16 %v219
      %v947 = vpack.c.b16 %v916, %v915
      %v948 = vpack.c.b16 %v918, %v917
      %v949 = vpack.c.b16 %v920, %v919
      %v950 = vpack.c.b16 %v922, %v921
      %v951 = vpack.c.b16 %v924, %v923
      %v952 = vpack.c.b16 %v926, %v925
      %v953 = vpack.c.b16 %v928, %v927
      %v954 = vpack.c.b16 %v930, %v929
      %v955 = vpack.c.b16 %v932, %v931
      %v956 = vpack.c.b16 %v934, %v933
      %v957 = vpack.c.b16 %v936, %v935
      %v958 = vpack.c.b16 %v938, %v937
      %v959 = vpack.c.b16 %v940, %v939
      %v960 = vpack.c.b16 %v942, %v941
      %v961 = vpack.c.b16 %v944, %v943
      %v962 = vpack.c.b16 %v946, %v945
      %v965 = vunpack.c.l.b16 %v224
      %v966 = vunpack.c.l.b16 %v225
      %v967 = vpack.c.b16 %v966, %v965
      %v969 = vsel %vm669, %v947, 0
      %v972 = vsel %vm669, %v948, 0
      %v975 = vsel %vm669, %v949, 0
      %v978 = vsel %vm669, %v950, 0
      %v981 = vsel %vm669, %v951, 0
      %v984 = vsel %vm669, %v952, 0
      %v987 = vsel %vm669, %v953, 0
      %v990 = vsel %vm669, %v954, 0
      %v993 = vsel %vm669, %v955, 0
      %v996 = vsel %vm669, %v956, 0
      %v999 = vsel %vm669, %v957, 0
      %v1002 = vsel %vm669, %v958, 0
      %v1005 = vsel %vm669, %v959, 0
      %v1008 = vsel %vm669, %v960, 0
      %v1011 = vsel %vm669, %v961, 0
      %v1014 = vsel %vm669, %v962, 0
      %v1017 = vsel %vm718, %v967, 0
      %1019 = vmatprep.subr.bf16.mxu0 0
      %1020 = vmatpush1.bf16.msra.mxu0 %v1017
      %1021 = vmatprep.subr.bf16.mxu0 0
      %1022 = vmatpush1.bf16.msra.mxu0 0
      %1023 = vmatprep.subr.bf16.mxu0 0
      %1024 = vmatpush1.bf16.msra.mxu0 0
      %1025 = vmatprep.subr.bf16.mxu0 0
      %1026 = vmatpush1.bf16.msra.mxu0 0
      %1027 = vmatprep.subr.bf16.mxu0 0
      %1028 = vmatpush1.bf16.msra.mxu0 0
      %1029 = vmatprep.subr.bf16.mxu0 0
      %1030 = vmatpush1.bf16.msra.mxu0 0
      %1031 = vmatprep.subr.bf16.mxu0 0
      %1032 = vmatpush1.bf16.msra.mxu0 0
      %1033 = vmatprep.subr.bf16.mxu0 0
      %1034 = vmatpush1.bf16.msra.mxu0 0
      %1035 = vmatprep.subr.bf16.mxu0 0
      %1036 = vmatpush1.bf16.msra.mxu0 0
      %1037 = vmatprep.subr.bf16.mxu0 0
      %1038 = vmatpush1.bf16.msra.mxu0 0
      %1039 = vmatprep.subr.bf16.mxu0 0
      %1040 = vmatpush1.bf16.msra.mxu0 0
      %1041 = vmatprep.subr.bf16.mxu0 0
      %1042 = vmatpush1.bf16.msra.mxu0 0
      %1043 = vmatprep.subr.bf16.mxu0 0
      %1044 = vmatpush1.bf16.msra.mxu0 0
      %1045 = vmatprep.subr.bf16.mxu0 0
      %1046 = vmatpush1.bf16.msra.mxu0 0
      %1047 = vmatprep.subr.bf16.mxu0 0
      %1048 = vmatpush1.bf16.msra.mxu0 0
      %1049 = vmatprep.subr.bf16.mxu0 0
      %1050 = vmatpush1.bf16.msra.mxu0 0
      %1051 = vmatprep.mubr.bf16.mxu0 0
      %1052 = vmatmul.mubr.bf16.gmra.mrb[0].mxu0 %v969
      %v1053 = vpop.f32.mrb[0].mxu0
      %v1054 = vadd.f32 %v757, %v1053
      %v1055 = vpop.f32.mrb[0].mxu0
      %v1056 = vpop.f32.mrb[0].mxu0
      %v1057 = vadd.f32 %v760, %v1056
      %v1058 = vpop.f32.mrb[0].mxu0
      %1059 = vmatprep.mubr.bf16.mxu0 0
      %1060 = vmatmul.mubr.bf16.gmra.mrb[0].mxu0 %v972
      %v1061 = vpop.f32.mrb[0].mxu0
      %v1062 = vadd.f32 %v765, %v1061
      %v1063 = vpop.f32.mrb[0].mxu0
      %v1064 = vpop.f32.mrb[0].mxu0
      %v1065 = vadd.f32 %v768, %v1064
      %v1066 = vpop.f32.mrb[0].mxu0
      %1067 = vmatprep.mubr.bf16.mxu0 0
      %1068 = vmatmul.mubr.bf16.gmra.mrb[0].mxu0 %v975
      %v1069 = vpop.f32.mrb[0].mxu0
      %v1070 = vadd.f32 %v773, %v1069
      %v1071 = vpop.f32.mrb[0].mxu0
      %v1072 = vpop.f32.mrb[0].mxu0
      %v1073 = vadd.f32 %v776, %v1072
      %v1074 = vpop.f32.mrb[0].mxu0
      %1075 = vmatprep.mubr.bf16.mxu0 0
      %1076 = vmatmul.mubr.bf16.gmra.mrb[0].mxu0 %v978
      %v1077 = vpop.f32.mrb[0].mxu0
      %v1078 = vadd.f32 %v781, %v1077
      %v1079 = vpop.f32.mrb[0].mxu0
      %v1080 = vpop.f32.mrb[0].mxu0
      %v1081 = vadd.f32 %v784, %v1080
      %v1082 = vpop.f32.mrb[0].mxu0
      %1083 = vmatprep.mubr.bf16.mxu0 0
      %1084 = vmatmul.mubr.bf16.gmra.mrb[0].mxu0 %v981
      %v1085 = vpop.f32.mrb[0].mxu0
      %v1086 = vadd.f32 %v789, %v1085
      %v1087 = vpop.f32.mrb[0].mxu0
      %v1088 = vpop.f32.mrb[0].mxu0
      %v1089 = vadd.f32 %v792, %v1088
      %v1090 = vpop.f32.mrb[0].mxu0
      %1091 = vmatprep.mubr.bf16.mxu0 0
      %1092 = vmatmul.mubr.bf16.gmra.mrb[0].mxu0 %v984
      %v1093 = vpop.f32.mrb[0].mxu0
      %v1094 = vadd.f32 %v797, %v1093
      %v1095 = vpop.f32.mrb[0].mxu0
      %v1096 = vpop.f32.mrb[0].mxu0
      %v1097 = vadd.f32 %v800, %v1096
      %v1098 = vpop.f32.mrb[0].mxu0
      %1099 = vmatprep.mubr.bf16.mxu0 0
      %1100 = vmatmul.mubr.bf16.gmra.mrb[0].mxu0 %v987
      %v1101 = vpop.f32.mrb[0].mxu0
      %v1102 = vadd.f32 %v805, %v1101
      %v1103 = vpop.f32.mrb[0].mxu0
      %v1104 = vpop.f32.mrb[0].mxu0
      %v1105 = vadd.f32 %v808, %v1104
      %v1106 = vpop.f32.mrb[0].mxu0
      %1107 = vmatprep.mubr.bf16.mxu0 0
      %1108 = vmatmul.mubr.bf16.gmra.mrb[0].mxu0 %v990
      %v1109 = vpop.f32.mrb[0].mxu0
      %v1110 = vadd.f32 %v813, %v1109
      %v1111 = vpop.f32.mrb[0].mxu0
      %v1112 = vpop.f32.mrb[0].mxu0
      %v1113 = vadd.f32 %v816, %v1112
      %v1114 = vpop.f32.mrb[0].mxu0
      %1115 = vmatprep.mubr.bf16.mxu0 0
      %1116 = vmatmul.mubr.bf16.gmra.mrb[0].mxu0 %v993
      %v1117 = vpop.f32.mrb[0].mxu0
      %v1118 = vadd.f32 %v821, %v1117
      %v1119 = vpop.f32.mrb[0].mxu0
      %v1120 = vpop.f32.mrb[0].mxu0
      %v1121 = vadd.f32 %v824, %v1120
      %v1122 = vpop.f32.mrb[0].mxu0
      %1123 = vmatprep.mubr.bf16.mxu0 0
      %1124 = vmatmul.mubr.bf16.gmra.mrb[0].mxu0 %v996
      %v1125 = vpop.f32.mrb[0].mxu0
      %v1126 = vadd.f32 %v829, %v1125
      %v1127 = vpop.f32.mrb[0].mxu0
      %v1128 = vpop.f32.mrb[0].mxu0
      %v1129 = vadd.f32 %v832, %v1128
      %v1130 = vpop.f32.mrb[0].mxu0
      %1131 = vmatprep.mubr.bf16.mxu0 0
      %1132 = vmatmul.mubr.bf16.gmra.mrb[0].mxu0 %v999
      %v1133 = vpop.f32.mrb[0].mxu0
      %v1134 = vadd.f32 %v837, %v1133
      %v1135 = vpop.f32.mrb[0].mxu0
      %v1136 = vpop.f32.mrb[0].mxu0
      %v1137 = vadd.f32 %v840, %v1136
      %v1138 = vpop.f32.mrb[0].mxu0
      %1139 = vmatprep.mubr.bf16.mxu0 0
      %1140 = vmatmul.mubr.bf16.gmra.mrb[0].mxu0 %v1002
      %v1141 = vpop.f32.mrb[0].mxu0
      %v1142 = vadd.f32 %v845, %v1141
      %v1143 = vpop.f32.mrb[0].mxu0
      %v1144 = vpop.f32.mrb[0].mxu0
      %v1145 = vadd.f32 %v848, %v1144
      %v1146 = vpop.f32.mrb[0].mxu0
      %1147 = vmatprep.mubr.bf16.mxu0 0
      %1148 = vmatmul.mubr.bf16.gmra.mrb[0].mxu0 %v1005
      %v1149 = vpop.f32.mrb[0].mxu0
      %v1150 = vadd.f32 %v853, %v1149
      %v1151 = vpop.f32.mrb[0].mxu0
      %v1152 = vpop.f32.mrb[0].mxu0
      %v1153 = vadd.f32 %v856, %v1152
      %v1154 = vpop.f32.mrb[0].mxu0
      %1155 = vmatprep.mubr.bf16.mxu0 0
      %1156 = vmatmul.mubr.bf16.gmra.mrb[0].mxu0 %v1008
      %v1157 = vpop.f32.mrb[0].mxu0
      %v1158 = vadd.f32 %v861, %v1157
      %v1159 = vpop.f32.mrb[0].mxu0
      %v1160 = vpop.f32.mrb[0].mxu0
      %v1161 = vadd.f32 %v864, %v1160
      %v1162 = vpop.f32.mrb[0].mxu0
      %1163 = vmatprep.mubr.bf16.mxu0 0
      %1164 = vmatmul.mubr.bf16.gmra.mrb[0].mxu0 %v1011
      %v1165 = vpop.f32.mrb[0].mxu0
      %v1166 = vadd.f32 %v869, %v1165
      %v1167 = vpop.f32.mrb[0].mxu0
      %v1168 = vpop.f32.mrb[0].mxu0
      %v1169 = vadd.f32 %v872, %v1168
      %v1170 = vpop.f32.mrb[0].mxu0
      %1171 = vmatprep.mubr.bf16.mxu0 0
      %1172 = vmatmul.mubr.bf16.gmra.mrb[0].mxu0 %v1014
      %v1173 = vpop.f32.mrb[0].mxu0
      %v1174 = vadd.f32 %v877, %v1173
      %v1175 = vpop.f32.mrb[0].mxu0
      %v1176 = vpop.f32.mrb[0].mxu0
      %v1177 = vadd.f32 %v880, %v1176
      %v1178 = vpop.f32.mrb[0].mxu0
      %1179 = vdwg.mxu0
      %s1180 = scalar_lea.vmem %s1, 16
      %v1181 = vld [vmem:[%s1180] sm:$0xf]
      %v1182 = vld [vmem:[%s1180 + $0x4] sm:$0x3]
      %v1185 = vunpack.c.l.b16 %v221
      %v1186 = vunpack.c.l.b16 %v222
      %v1187 = vpack.c.b16 %v1186, %v1185
      %v1190 = vunpack.c.l.b16 %v1181
      %v1191 = vunpack.c.l.b16 %v1182
      %v1192 = vpack.c.b16 %v1191, %v1190
      %v1194 = vsel %vm669, %v1187, 0
      %v1197 = vsel %vm718, %v1192, 0
      %1199 = vmatprep.subr.bf16.mxu0 0
      %1200 = vmatpush1.bf16.msra.mxu0 %v1197
      %1201 = vmatprep.subr.bf16.mxu0 0
      %1202 = vmatpush1.bf16.msra.mxu0 0
      %1203 = vmatprep.subr.bf16.mxu0 0
      %1204 = vmatpush1.bf16.msra.mxu0 0
      %1205 = vmatprep.subr.bf16.mxu0 0
      %1206 = vmatpush1.bf16.msra.mxu0 0
      %1207 = vmatprep.subr.bf16.mxu0 0
      %1208 = vmatpush1.bf16.msra.mxu0 0
      %1209 = vmatprep.subr.bf16.mxu0 0
      %1210 = vmatpush1.bf16.msra.mxu0 0
      %1211 = vmatprep.subr.bf16.mxu0 0
      %1212 = vmatpush1.bf16.msra.mxu0 0
      %1213 = vmatprep.subr.bf16.mxu0 0
      %1214 = vmatpush1.bf16.msra.mxu0 0
      %1215 = vmatprep.subr.bf16.mxu0 0
      %1216 = vmatpush1.bf16.msra.mxu0 0
      %1217 = vmatprep.subr.bf16.mxu0 0
      %1218 = vmatpush1.bf16.msra.mxu0 0
      %1219 = vmatprep.subr.bf16.mxu0 0
      %1220 = vmatpush1.bf16.msra.mxu0 0
      %1221 = vmatprep.subr.bf16.mxu0 0
      %1222 = vmatpush1.bf16.msra.mxu0 0
      %1223 = vmatprep.subr.bf16.mxu0 0
      %1224 = vmatpush1.bf16.msra.mxu0 0
      %1225 = vmatprep.subr.bf16.mxu0 0
      %1226 = vmatpush1.bf16.msra.mxu0 0
      %1227 = vmatprep.subr.bf16.mxu0 0
      %1228 = vmatpush1.bf16.msra.mxu0 0
      %1229 = vmatprep.subr.bf16.mxu0 0
      %1230 = vmatpush1.bf16.msra.mxu0 0
      %1231 = vmatprep.mubr.bf16.mxu0 0
      %1232 = vmatmul.mubr.bf16.gmra.mrb[0].mxu0 %v972
      %v1233 = vpop.f32.mrb[0].mxu0
      %v1234 = vadd.f32 0.0, %v1233
      %v1235 = vpop.f32.mrb[0].mxu0
      %v1236 = vpop.f32.mrb[0].mxu0
      %v1237 = vadd.f32 0.0, %v1236
      %v1238 = vpop.f32.mrb[0].mxu0
      %1239 = vmatprep.mubr.bf16.mxu0 0
      %1240 = vmatmul.mubr.bf16.gmra.mrb[0].mxu0 %v975
      %v1241 = vpop.f32.mrb[0].mxu0
      %v1242 = vadd.f32 0.0, %v1241
      %v1243 = vpop.f32.mrb[0].mxu0
      %v1244 = vpop.f32.mrb[0].mxu0
      %v1245 = vadd.f32 0.0, %v1244
      %v1246 = vpop.f32.mrb[0].mxu0
      %1247 = vmatprep.mubr.bf16.mxu0 0
      %1248 = vmatmul.mubr.bf16.gmra.mrb[0].mxu0 %v978
      %v1249 = vpop.f32.mrb[0].mxu0
      %v1250 = vadd.f32 0.0, %v1249
      %v1251 = vpop.f32.mrb[0].mxu0
      %v1252 = vpop.f32.mrb[0].mxu0
      %v1253 = vadd.f32 0.0, %v1252
      %v1254 = vpop.f32.mrb[0].mxu0
      %1255 = vmatprep.mubr.bf16.mxu0 0
      %1256 = vmatmul.mubr.bf16.gmra.mrb[0].mxu0 %v981
      %v1257 = vpop.f32.mrb[0].mxu0
      %v1258 = vadd.f32 0.0, %v1257
      %v1259 = vpop.f32.mrb[0].mxu0
      %v1260 = vpop.f32.mrb[0].mxu0
      %v1261 = vadd.f32 0.0, %v1260
      %v1262 = vpop.f32.mrb[0].mxu0
      %1263 = vmatprep.mubr.bf16.mxu0 0
      %1264 = vmatmul.mubr.bf16.gmra.mrb[0].mxu0 %v984
      %v1265 = vpop.f32.mrb[0].mxu0
      %v1266 = vadd.f32 0.0, %v1265
      %v1267 = vpop.f32.mrb[0].mxu0
      %v1268 = vpop.f32.mrb[0].mxu0
      %v1269 = vadd.f32 0.0, %v1268
      %v1270 = vpop.f32.mrb[0].mxu0
      %1271 = vmatprep.mubr.bf16.mxu0 0
      %1272 = vmatmul.mubr.bf16.gmra.mrb[0].mxu0 %v987
      %v1273 = vpop.f32.mrb[0].mxu0
      %v1274 = vadd.f32 0.0, %v1273
      %v1275 = vpop.f32.mrb[0].mxu0
      %v1276 = vpop.f32.mrb[0].mxu0
      %v1277 = vadd.f32 0.0, %v1276
      %v1278 = vpop.f32.mrb[0].mxu0
      %1279 = vmatprep.mubr.bf16.mxu0 0
      %1280 = vmatmul.mubr.bf16.gmra.mrb[0].mxu0 %v990
      %v1281 = vpop.f32.mrb[0].mxu0
      %v1282 = vadd.f32 0.0, %v1281
      %v1283 = vpop.f32.mrb[0].mxu0
      %v1284 = vpop.f32.mrb[0].mxu0
      %v1285 = vadd.f32 0.0, %v1284
      %v1286 = vpop.f32.mrb[0].mxu0
      %1287 = vmatprep.mubr.bf16.mxu0 0
      %1288 = vmatmul.mubr.bf16.gmra.mrb[0].mxu0 %v993
      %v1289 = vpop.f32.mrb[0].mxu0
      %v1290 = vadd.f32 0.0, %v1289
      %v1291 = vpop.f32.mrb[0].mxu0
      %v1292 = vpop.f32.mrb[0].mxu0
      %v1293 = vadd.f32 0.0, %v1292
      %v1294 = vpop.f32.mrb[0].mxu0
      %1295 = vmatprep.mubr.bf16.mxu0 0
      %1296 = vmatmul.mubr.bf16.gmra.mrb[0].mxu0 %v996
      %v1297 = vpop.f32.mrb[0].mxu0
      %v1298 = vadd.f32 0.0, %v1297
      %v1299 = vpop.f32.mrb[0].mxu0
      %v1300 = vpop.f32.mrb[0].mxu0
      %v1301 = vadd.f32 0.0, %v1300
      %v1302 = vpop.f32.mrb[0].mxu0
      %1303 = vmatprep.mubr.bf16.mxu0 0
      %1304 = vmatmul.mubr.bf16.gmra.mrb[0].mxu0 %v999
      %v1305 = vpop.f32.mrb[0].mxu0
      %v1306 = vadd.f32 0.0, %v1305
      %v1307 = vpop.f32.mrb[0].mxu0
      %v1308 = vpop.f32.mrb[0].mxu0
      %v1309 = vadd.f32 0.0, %v1308
      %v1310 = vpop.f32.mrb[0].mxu0
      %1311 = vmatprep.mubr.bf16.mxu0 0
      %1312 = vmatmul.mubr.bf16.gmra.mrb[0].mxu0 %v1002
      %v1313 = vpop.f32.mrb[0].mxu0
      %v1314 = vadd.f32 0.0, %v1313
      %v1315 = vpop.f32.mrb[0].mxu0
      %v1316 = vpop.f32.mrb[0].mxu0
      %v1317 = vadd.f32 0.0, %v1316
      %v1318 = vpop.f32.mrb[0].mxu0
      %1319 = vmatprep.mubr.bf16.mxu0 0
      %1320 = vmatmul.mubr.bf16.gmra.mrb[0].mxu0 %v1005
      %v1321 = vpop.f32.mrb[0].mxu0
      %v1322 = vadd.f32 0.0, %v1321
      %v1323 = vpop.f32.mrb[0].mxu0
      %v1324 = vpop.f32.mrb[0].mxu0
      %v1325 = vadd.f32 0.0, %v1324
      %v1326 = vpop.f32.mrb[0].mxu0
      %1327 = vmatprep.mubr.bf16.mxu0 0
      %1328 = vmatmul.mubr.bf16.gmra.mrb[0].mxu0 %v1008
      %v1329 = vpop.f32.mrb[0].mxu0
      %v1330 = vadd.f32 0.0, %v1329
      %v1331 = vpop.f32.mrb[0].mxu0
      %v1332 = vpop.f32.mrb[0].mxu0
      %v1333 = vadd.f32 0.0, %v1332
      %v1334 = vpop.f32.mrb[0].mxu0
      %1335 = vmatprep.mubr.bf16.mxu0 0
      %1336 = vmatmul.mubr.bf16.gmra.mrb[0].mxu0 %v1011
      %v1337 = vpop.f32.mrb[0].mxu0
      %v1338 = vadd.f32 0.0, %v1337
      %v1339 = vpop.f32.mrb[0].mxu0
      %v1340 = vpop.f32.mrb[0].mxu0
      %v1341 = vadd.f32 0.0, %v1340
      %v1342 = vpop.f32.mrb[0].mxu0
      %1343 = vmatprep.mubr.bf16.mxu0 0
      %1344 = vmatmul.mubr.bf16.gmra.mrb[0].mxu0 %v1014
      %v1345 = vpop.f32.mrb[0].mxu0
      %v1346 = vadd.f32 0.0, %v1345
      %v1347 = vpop.f32.mrb[0].mxu0
      %v1348 = vpop.f32.mrb[0].mxu0
      %v1349 = vadd.f32 0.0, %v1348
      %v1350 = vpop.f32.mrb[0].mxu0
      %1351 = vmatprep.mubr.bf16.mxu0 0
      %1352 = vmatmul.mubr.bf16.gmra.mrb[0].mxu0 %v1194
      %v1353 = vpop.f32.mrb[0].mxu0
      %v1354 = vadd.f32 0.0, %v1353
      %v1355 = vpop.f32.mrb[0].mxu0
      %v1356 = vpop.f32.mrb[0].mxu0
      %v1357 = vadd.f32 0.0, %v1356
      %v1358 = vpop.f32.mrb[0].mxu0
      %1359 = vdwg.mxu0
      %v1360 = vadd.f32 %v1054, %v1234
      %v1361 = vadd.f32 %v1057, %v1237
      %v1362 = vadd.f32 %v1062, %v1242
      %v1363 = vadd.f32 %v1065, %v1245
      %v1364 = vadd.f32 %v1070, %v1250
      %v1365 = vadd.f32 %v1073, %v1253
      %v1366 = vadd.f32 %v1078, %v1258
      %v1367 = vadd.f32 %v1081, %v1261
      %v1368 = vadd.f32 %v1086, %v1266
      %v1369 = vadd.f32 %v1089, %v1269
      %v1370 = vadd.f32 %v1094, %v1274
      %v1371 = vadd.f32 %v1097, %v1277
      %v1372 = vadd.f32 %v1102, %v1282
      %v1373 = vadd.f32 %v1105, %v1285
      %v1374 = vadd.f32 %v1110, %v1290
      %v1375 = vadd.f32 %v1113, %v1293
      %v1376 = vadd.f32 %v1118, %v1298
      %v1377 = vadd.f32 %v1121, %v1301
      %v1378 = vadd.f32 %v1126, %v1306
      %v1379 = vadd.f32 %v1129, %v1309
      %v1380 = vadd.f32 %v1134, %v1314
      %v1381 = vadd.f32 %v1137, %v1317
      %v1382 = vadd.f32 %v1142, %v1322
      %v1383 = vadd.f32 %v1145, %v1325
      %v1384 = vadd.f32 %v1150, %v1330
      %v1385 = vadd.f32 %v1153, %v1333
      %v1386 = vadd.f32 %v1158, %v1338
      %v1387 = vadd.f32 %v1161, %v1341
      %v1388 = vadd.f32 %v1166, %v1346
      %v1389 = vadd.f32 %v1169, %v1349
      %v1390 = vadd.f32 %v1174, %v1354
      %v1391 = vadd.f32 %v1177, %v1357
      %v1393 = vshrl.u32 %v221, 16
      %v1395 = vrot.slane %v1393, 4
      %v1396 = vshll.u32 %v221, 16
      %v1398 = vrot.slane %v1396, 5
      %v1399 = vor.u32 %v1395, %v1398
      %v1400 = vrot.slane %v1399, 4
      %v1402 = vshll.u32 %v222, 16
      %v1404 = vrot.slane %v1402, 5
      %v1405 = vsel %vm228, %v1400, %v1404
      %v1406 = vshrl.u32 %v222, 16
      %v1408 = vrot.slane %v1406, 4
      %v1409 = vor.u32 %v1408, %v1404
      %v1410 = vrot.slane %v1409, 4
      %v1412 = vshll.u32 %v223, 16
      %v1414 = vrot.slane %v1412, 5
      %v1415 = vsel %vm228, %v1410, %v1414
      %s1416 = scalar_lea.vmem %s1, 24
      %v1417 = vld [vmem:[%s1416] sm:$0xf]
      %v1418 = vld [vmem:[%s1416 + $0x4] sm:$0x3]
      %v1419 = vunpack.c.l.b16 %v1405
      %v1420 = vunpack.c.l.b16 %v1415
      %v1421 = vpack.c.b16 %v1420, %v1419
      %v1424 = vunpack.c.l.b16 %v1417
      %v1425 = vunpack.c.l.b16 %v1418
      %v1426 = vpack.c.b16 %v1425, %v1424
      %v1428 = vsel %vm669, %v1421, 0
      %v1431 = vsel %vm718, %v1426, 0
      %1433 = vmatprep.subr.bf16.mxu0 0
      %1434 = vmatpush1.bf16.msra.mxu0 %v1431
      %1435 = vmatprep.subr.bf16.mxu0 0
      %1436 = vmatpush1.bf16.msra.mxu0 0
      %1437 = vmatprep.subr.bf16.mxu0 0
      %1438 = vmatpush1.bf16.msra.mxu0 0
      %1439 = vmatprep.subr.bf16.mxu0 0
      %1440 = vmatpush1.bf16.msra.mxu0 0
      %1441 = vmatprep.subr.bf16.mxu0 0
      %1442 = vmatpush1.bf16.msra.mxu0 0
      %1443 = vmatprep.subr.bf16.mxu0 0
      %1444 = vmatpush1.bf16.msra.mxu0 0
      %1445 = vmatprep.subr.bf16.mxu0 0
      %1446 = vmatpush1.bf16.msra.mxu0 0
      %1447 = vmatprep.subr.bf16.mxu0 0
      %1448 = vmatpush1.bf16.msra.mxu0 0
      %1449 = vmatprep.subr.bf16.mxu0 0
      %1450 = vmatpush1.bf16.msra.mxu0 0
      %1451 = vmatprep.subr.bf16.mxu0 0
      %1452 = vmatpush1.bf16.msra.mxu0 0
      %1453 = vmatprep.subr.bf16.mxu0 0
      %1454 = vmatpush1.bf16.msra.mxu0 0
      %1455 = vmatprep.subr.bf16.mxu0 0
      %1456 = vmatpush1.bf16.msra.mxu0 0
      %1457 = vmatprep.subr.bf16.mxu0 0
      %1458 = vmatpush1.bf16.msra.mxu0 0
      %1459 = vmatprep.subr.bf16.mxu0 0
      %1460 = vmatpush1.bf16.msra.mxu0 0
      %1461 = vmatprep.subr.bf16.mxu0 0
      %1462 = vmatpush1.bf16.msra.mxu0 0
      %1463 = vmatprep.subr.bf16.mxu0 0
      %1464 = vmatpush1.bf16.msra.mxu0 0
      %1465 = vmatprep.mubr.bf16.mxu0 0
      %1466 = vmatmul.mubr.bf16.gmra.mrb[0].mxu0 %v674
      %v1467 = vpop.f32.mrb[0].mxu0
      %v1468 = vadd.f32 0.0, %v1467
      %v1469 = vpop.f32.mrb[0].mxu0
      %v1470 = vpop.f32.mrb[0].mxu0
      %v1471 = vadd.f32 0.0, %v1470
      %v1472 = vpop.f32.mrb[0].mxu0
      %1473 = vmatprep.mubr.bf16.mxu0 0
      %1474 = vmatmul.mubr.bf16.gmra.mrb[0].mxu0 %v677
      %v1475 = vpop.f32.mrb[0].mxu0
      %v1476 = vadd.f32 0.0, %v1475
      %v1477 = vpop.f32.mrb[0].mxu0
      %v1478 = vpop.f32.mrb[0].mxu0
      %v1479 = vadd.f32 0.0, %v1478
      %v1480 = vpop.f32.mrb[0].mxu0
      %1481 = vmatprep.mubr.bf16.mxu0 0
      %1482 = vmatmul.mubr.bf16.gmra.mrb[0].mxu0 %v680
      %v1483 = vpop.f32.mrb[0].mxu0
      %v1484 = vadd.f32 0.0, %v1483
      %v1485 = vpop.f32.mrb[0].mxu0
      %v1486 = vpop.f32.mrb[0].mxu0
      %v1487 = vadd.f32 0.0, %v1486
      %v1488 = vpop.f32.mrb[0].mxu0
      %1489 = vmatprep.mubr.bf16.mxu0 0
      %1490 = vmatmul.mubr.bf16.gmra.mrb[0].mxu0 %v683
      %v1491 = vpop.f32.mrb[0].mxu0
      %v1492 = vadd.f32 0.0, %v1491
      %v1493 = vpop.f32.mrb[0].mxu0
      %v1494 = vpop.f32.mrb[0].mxu0
      %v1495 = vadd.f32 0.0, %v1494
      %v1496 = vpop.f32.mrb[0].mxu0
      %1497 = vmatprep.mubr.bf16.mxu0 0
      %1498 = vmatmul.mubr.bf16.gmra.mrb[0].mxu0 %v686
      %v1499 = vpop.f32.mrb[0].mxu0
      %v1500 = vadd.f32 0.0, %v1499
      %v1501 = vpop.f32.mrb[0].mxu0
      %v1502 = vpop.f32.mrb[0].mxu0
      %v1503 = vadd.f32 0.0, %v1502
      %v1504 = vpop.f32.mrb[0].mxu0
      %1505 = vmatprep.mubr.bf16.mxu0 0
      %1506 = vmatmul.mubr.bf16.gmra.mrb[0].mxu0 %v689
      %v1507 = vpop.f32.mrb[0].mxu0
      %v1508 = vadd.f32 0.0, %v1507
      %v1509 = vpop.f32.mrb[0].mxu0
      %v1510 = vpop.f32.mrb[0].mxu0
      %v1511 = vadd.f32 0.0, %v1510
      %v1512 = vpop.f32.mrb[0].mxu0
      %1513 = vmatprep.mubr.bf16.mxu0 0
      %1514 = vmatmul.mubr.bf16.gmra.mrb[0].mxu0 %v692
      %v1515 = vpop.f32.mrb[0].mxu0
      %v1516 = vadd.f32 0.0, %v1515
      %v1517 = vpop.f32.mrb[0].mxu0
      %v1518 = vpop.f32.mrb[0].mxu0
      %v1519 = vadd.f32 0.0, %v1518
      %v1520 = vpop.f32.mrb[0].mxu0
      %1521 = vmatprep.mubr.bf16.mxu0 0
      %1522 = vmatmul.mubr.bf16.gmra.mrb[0].mxu0 %v695
      %v1523 = vpop.f32.mrb[0].mxu0
      %v1524 = vadd.f32 0.0, %v1523
      %v1525 = vpop.f32.mrb[0].mxu0
      %v1526 = vpop.f32.mrb[0].mxu0
      %v1527 = vadd.f32 0.0, %v1526
      %v1528 = vpop.f32.mrb[0].mxu0
      %1529 = vmatprep.mubr.bf16.mxu0 0
      %1530 = vmatmul.mubr.bf16.gmra.mrb[0].mxu0 %v698
      %v1531 = vpop.f32.mrb[0].mxu0
      %v1532 = vadd.f32 0.0, %v1531
      %v1533 = vpop.f32.mrb[0].mxu0
      %v1534 = vpop.f32.mrb[0].mxu0
      %v1535 = vadd.f32 0.0, %v1534
      %v1536 = vpop.f32.mrb[0].mxu0
      %1537 = vmatprep.mubr.bf16.mxu0 0
      %1538 = vmatmul.mubr.bf16.gmra.mrb[0].mxu0 %v701
      %v1539 = vpop.f32.mrb[0].mxu0
      %v1540 = vadd.f32 0.0, %v1539
      %v1541 = vpop.f32.mrb[0].mxu0
      %v1542 = vpop.f32.mrb[0].mxu0
      %v1543 = vadd.f32 0.0, %v1542
      %v1544 = vpop.f32.mrb[0].mxu0
      %1545 = vmatprep.mubr.bf16.mxu0 0
      %1546 = vmatmul.mubr.bf16.gmra.mrb[0].mxu0 %v704
      %v1547 = vpop.f32.mrb[0].mxu0
      %v1548 = vadd.f32 0.0, %v1547
      %v1549 = vpop.f32.mrb[0].mxu0
      %v1550 = vpop.f32.mrb[0].mxu0
      %v1551 = vadd.f32 0.0, %v1550
      %v1552 = vpop.f32.mrb[0].mxu0
      %1553 = vmatprep.mubr.bf16.mxu0 0
      %1554 = vmatmul.mubr.bf16.gmra.mrb[0].mxu0 %v707
      %v1555 = vpop.f32.mrb[0].mxu0
      %v1556 = vadd.f32 0.0, %v1555
      %v1557 = vpop.f32.mrb[0].mxu0
      %v1558 = vpop.f32.mrb[0].mxu0
      %v1559 = vadd.f32 0.0, %v1558
      %v1560 = vpop.f32.mrb[0].mxu0
      %1561 = vmatprep.mubr.bf16.mxu0 0
      %1562 = vmatmul.mubr.bf16.gmra.mrb[0].mxu0 %v710
      %v1563 = vpop.f32.mrb[0].mxu0
      %v1564 = vadd.f32 0.0, %v1563
      %v1565 = vpop.f32.mrb[0].mxu0
      %v1566 = vpop.f32.mrb[0].mxu0
      %v1567 = vadd.f32 0.0, %v1566
      %v1568 = vpop.f32.mrb[0].mxu0
      %1569 = vmatprep.mubr.bf16.mxu0 0
      %1570 = vmatmul.mubr.bf16.gmra.mrb[0].mxu0 %v713
      %v1571 = vpop.f32.mrb[0].mxu0
      %v1572 = vadd.f32 0.0, %v1571
      %v1573 = vpop.f32.mrb[0].mxu0
      %v1574 = vpop.f32.mrb[0].mxu0
      %v1575 = vadd.f32 0.0, %v1574
      %v1576 = vpop.f32.mrb[0].mxu0
      %1577 = vmatprep.mubr.bf16.mxu0 0
      %1578 = vmatmul.mubr.bf16.gmra.mrb[0].mxu0 %v716
      %v1579 = vpop.f32.mrb[0].mxu0
      %v1580 = vadd.f32 0.0, %v1579
      %v1581 = vpop.f32.mrb[0].mxu0
      %v1582 = vpop.f32.mrb[0].mxu0
      %v1583 = vadd.f32 0.0, %v1582
      %v1584 = vpop.f32.mrb[0].mxu0
      %1585 = vmatprep.mubr.bf16.mxu0 0
      %1586 = vmatmul.mubr.bf16.gmra.mrb[0].mxu0 %v1428
      %v1587 = vpop.f32.mrb[0].mxu0
      %v1588 = vadd.f32 0.0, %v1587
      %v1589 = vpop.f32.mrb[0].mxu0
      %v1590 = vpop.f32.mrb[0].mxu0
      %v1591 = vadd.f32 0.0, %v1590
      %v1592 = vpop.f32.mrb[0].mxu0
      %1593 = vdwg.mxu0
      %v1594 = vadd.f32 %v1360, %v1468
      %v1595 = vadd.f32 %v1361, %v1471
      %v1596 = vadd.f32 %v1362, %v1476
      %v1597 = vadd.f32 %v1363, %v1479
      %v1598 = vadd.f32 %v1364, %v1484
      %v1599 = vadd.f32 %v1365, %v1487
      %v1600 = vadd.f32 %v1366, %v1492
      %v1601 = vadd.f32 %v1367, %v1495
      %v1602 = vadd.f32 %v1368, %v1500
      %v1603 = vadd.f32 %v1369, %v1503
      %v1604 = vadd.f32 %v1370, %v1508
      %v1605 = vadd.f32 %v1371, %v1511
      %v1606 = vadd.f32 %v1372, %v1516
      %v1607 = vadd.f32 %v1373, %v1519
      %v1608 = vadd.f32 %v1374, %v1524
      %v1609 = vadd.f32 %v1375, %v1527
      %v1610 = vadd.f32 %v1376, %v1532
      %v1611 = vadd.f32 %v1377, %v1535
      %v1612 = vadd.f32 %v1378, %v1540
      %v1613 = vadd.f32 %v1379, %v1543
      %v1614 = vadd.f32 %v1380, %v1548
      %v1615 = vadd.f32 %v1381, %v1551
      %v1616 = vadd.f32 %v1382, %v1556
      %v1617 = vadd.f32 %v1383, %v1559
      %v1618 = vadd.f32 %v1384, %v1564
      %v1619 = vadd.f32 %v1385, %v1567
      %v1620 = vadd.f32 %v1386, %v1572
      %v1621 = vadd.f32 %v1387, %v1575
      %v1622 = vadd.f32 %v1388, %v1580
      %v1623 = vadd.f32 %v1389, %v1583
      %v1624 = vadd.f32 %v1390, %v1588
      %v1625 = vadd.f32 %v1391, %v1591
      %v1626 = vld [vmem:[%s2] sm:$0x1]
      %v1628 = vlaneseq
      %v1629 = vshrl.u32 %v1628, 7
      %v1630 = vsub.s32 0, %v1629
      %v1631 = vrot.slane %v1626, %v1630
      %v1633 = vadd.f32 %v1594, %v1631
      %v1634 = vadd.f32 %v1595, %v1631
      %v1635 = vadd.f32 %v1596, %v1631
      %v1636 = vadd.f32 %v1597, %v1631
      %v1637 = vadd.f32 %v1598, %v1631
      %v1638 = vadd.f32 %v1599, %v1631
      %v1639 = vadd.f32 %v1600, %v1631
      %v1640 = vadd.f32 %v1601, %v1631
      %v1641 = vadd.f32 %v1602, %v1631
      %v1642 = vadd.f32 %v1603, %v1631
      %v1643 = vadd.f32 %v1604, %v1631
      %v1644 = vadd.f32 %v1605, %v1631
      %v1645 = vadd.f32 %v1606, %v1631
      %v1646 = vadd.f32 %v1607, %v1631
      %v1647 = vadd.f32 %v1608, %v1631
      %v1648 = vadd.f32 %v1609, %v1631
      %v1649 = vadd.f32 %v1610, %v1631
      %v1650 = vadd.f32 %v1611, %v1631
      %v1651 = vadd.f32 %v1612, %v1631
      %v1652 = vadd.f32 %v1613, %v1631
      %v1653 = vadd.f32 %v1614, %v1631
      %v1654 = vadd.f32 %v1615, %v1631
      %v1655 = vadd.f32 %v1616, %v1631
      %v1656 = vadd.f32 %v1617, %v1631
      %v1657 = vadd.f32 %v1618, %v1631
      %v1658 = vadd.f32 %v1619, %v1631
      %v1659 = vadd.f32 %v1620, %v1631
      %v1660 = vadd.f32 %v1621, %v1631
      %v1661 = vadd.f32 %v1622, %v1631
      %v1662 = vadd.f32 %v1623, %v1631
      %v1663 = vadd.f32 %v1624, %v1631
      %v1664 = vadd.f32 %v1625, %v1631
      %v1665 = vmax.f32 %v1633, 0.0
      %v1666 = vmax.f32 %v1634, 0.0
      %v1667 = vmax.f32 %v1635, 0.0
      %v1668 = vmax.f32 %v1636, 0.0
      %v1669 = vmax.f32 %v1637, 0.0
      %v1670 = vmax.f32 %v1638, 0.0
      %v1671 = vmax.f32 %v1639, 0.0
      %v1672 = vmax.f32 %v1640, 0.0
      %v1673 = vmax.f32 %v1641, 0.0
      %v1674 = vmax.f32 %v1642, 0.0
      %v1675 = vmax.f32 %v1643, 0.0
      %v1676 = vmax.f32 %v1644, 0.0
      %v1677 = vmax.f32 %v1645, 0.0
      %v1678 = vmax.f32 %v1646, 0.0
      %v1679 = vmax.f32 %v1647, 0.0
      %v1680 = vmax.f32 %v1648, 0.0
      %v1681 = vmax.f32 %v1649, 0.0
      %v1682 = vmax.f32 %v1650, 0.0
      %v1683 = vmax.f32 %v1651, 0.0
      %v1684 = vmax.f32 %v1652, 0.0
      %v1685 = vmax.f32 %v1653, 0.0
      %v1686 = vmax.f32 %v1654, 0.0
      %v1687 = vmax.f32 %v1655, 0.0
      %v1688 = vmax.f32 %v1656, 0.0
      %v1689 = vmax.f32 %v1657, 0.0
      %v1690 = vmax.f32 %v1658, 0.0
      %v1691 = vmax.f32 %v1659, 0.0
      %v1692 = vmax.f32 %v1660, 0.0
      %v1693 = vmax.f32 %v1661, 0.0
      %v1694 = vmax.f32 %v1662, 0.0
      %v1695 = vmax.f32 %v1663, 0.0
      %v1696 = vmax.f32 %v1664, 0.0
      %1697 = vst [vmem:[%s170] sm:$0xff] %v1665
      %1698 = vst [vmem:[%s170 + $0x8] sm:$0xff] %v1666
      %1699 = vst [vmem:[%s170 + $0x10] sm:$0xff] %v1667
      %1700 = vst [vmem:[%s170 + $0x18] sm:$0xff] %v1668
      %1701 = vst [vmem:[%s170 + $0x20] sm:$0xff] %v1669
      %1702 = vst [vmem:[%s170 + $0x28] sm:$0xff] %v1670
      %1703 = vst [vmem:[%s170 + $0x30] sm:$0xff] %v1671
      %1704 = vst [vmem:[%s170 + $0x38] sm:$0xff] %v1672
      %1705 = vst [vmem:[%s170 + $0x40] sm:$0xff] %v1673
      %1706 = vst [vmem:[%s170 + $0x48] sm:$0xff] %v1674
      %1707 = vst [vmem:[%s170 + $0x50] sm:$0xff] %v1675
      %1708 = vst [vmem:[%s170 + $0x58] sm:$0xff] %v1676
      %1709 = vst [vmem:[%s170 + $0x60] sm:$0xff] %v1677
      %1710 = vst [vmem:[%s170 + $0x68] sm:$0xff] %v1678
      %1711 = vst [vmem:[%s170 + $0x70] sm:$0xff] %v1679
      %1712 = vst [vmem:[%s170 + $0x78] sm:$0xff] %v1680
      %1713 = vst [vmem:[%s170 + $0x80] sm:$0xff] %v1681
      %1714 = vst [vmem:[%s170 + $0x88] sm:$0xff] %v1682
      %1715 = vst [vmem:[%s170 + $0x90] sm:$0xff] %v1683
      %1716 = vst [vmem:[%s170 + $0x98] sm:$0xff] %v1684
      %1717 = vst [vmem:[%s170 + $0xa0] sm:$0xff] %v1685
      %1718 = vst [vmem:[%s170 + $0xa8] sm:$0xff] %v1686
      %1719 = vst [vmem:[%s170 + $0xb0] sm:$0xff] %v1687
      %1720 = vst [vmem:[%s170 + $0xb8] sm:$0xff] %v1688
      %1721 = vst [vmem:[%s170 + $0xc0] sm:$0xff] %v1689
      %1722 = vst [vmem:[%s170 + $0xc8] sm:$0xff] %v1690
      %1723 = vst [vmem:[%s170 + $0xd0] sm:$0xff] %v1691
      %1724 = vst [vmem:[%s170 + $0xd8] sm:$0xff] %v1692
      %1725 = vst [vmem:[%s170 + $0xe0] sm:$0xff] %v1693
      %1726 = vst [vmem:[%s170 + $0xe8] sm:$0xff] %v1694
      %1727 = vst [vmem:[%s170 + $0xf0] sm:$0xff] %v1695
      %1728 = vst [vmem:[%s170 + $0xf8] sm:$0xff] %v1696
      %s1729 = smul.u32 32, %s14
      %p1730 = scmp.lt.s32.totalorder %s1729, 63
      %s1731 = scalar_select %p1730, %s1729, 63
      %s1732 = smul.addr %s1731, 8
      %s1733 = scalar_lea.vmem %s3, %s1732
      // Predicated region
      $region33: #{cvae_forward.5} parent=31 // pred_check
        %p1734 = pneg %p100
      $region34: #{cvae_forward.5} parent=31 // pred_check_branch
        %1736 = sbr.rel (%p1734) target = $region36
      $region35: #{cvae_forward.5} parent=31 // pred_region
        %s1737 = smul.u32 32, %s14
      $region36: #{cvae_forward.5} parent=31 // pred_fallthru
        _
    $region32: #{cvae_forward.5} parent=5 // pred_fallthru
      _
    %p1738 = scmp.le.s32.totalorder 2, %s9
    // Predicated region
    $region37: #{cvae_forward.5} parent=5 // pred_check
      %p1739 = pneg %p1738
    $region38: #{cvae_forward.5} parent=5 // pred_check_branch
      %1741 = sbr.rel (%p1739) target = $region40
    $region39: #{cvae_forward.5} parent=5 // pred_region
      %s1742 = ssub.s32 %s9, 2
      // Predicated region
      $region41: #{cvae_forward.5} parent=39 // pred_check
        %p1743 = pneg %p106
      $region42: #{cvae_forward.5} parent=39 // pred_check_branch
        %1745 = sbr.rel (%p1743) target = $region44
      $region43: #{cvae_forward.5} parent=39 // pred_region
        %s1746 = smul.u32 32, %s15
        %p1747 = scmp.lt.s32.totalorder %s1746, 63
        %s1748 = scalar_select %p1747, %s1746, 63
        %s1749 = smul.addr %s1748, 8
        %s1750 = scalar_lea.vmem %s3, %s1749
      $region44: #{cvae_forward.5} parent=39 // pred_fallthru
        _
    $region40: #{cvae_forward.5} parent=5 // pred_fallthru
      _
  $region6: #{cvae_forward.5} parent=0 // loop_footer
    %s13 = sadd.s32 1, %s9
  $region7: #{cvae_forward.5} parent=0 // loop_footer_branch
    %8 = sbr.rel target = $region3
  $region8: #{cvae_forward.5} parent=0 // loop_exit
    _

// kernel: cvae_forward.6
$region0: #{cvae_forward.6}
  #allocation0 [shape = 'u32[]', space=smem, size = 0x4, offset = 0x4, fixed_abs, tag = 'smem constant byte address 0x4 - core index']
  #allocation1 [shape = 'u32[144,128]{1,0:T(1,128)}', space=vmem, size = 0x12000, scoped, tag = 'internal scratch']
  %s0 = inlined_call_operand.vmem [shape: bf16[2,9,9,64], index: 0, kind: input, shape index: {}]
  %s1 = inlined_call_operand.vmem [shape: bf16[4,64,128], index: 1, kind: input, shape index: {}]
  %s2 = inlined_call_operand.vmem [shape: f32[1,128], index: 2, kind: input, shape index: {}]
  %s3 = inlined_call_operand.vmem [shape: f32[128,128], index: 3, kind: output, shape index: {}]
  %s4 = sld [smem:[#allocation0]]
  $region45: #{cvae_forward.6} parent=0
    _
  %s6 = ssub.s32 1, %s4
  %s7 = scalar_select 0, %s6, %s4
  loop: start=0, step=1, limit=4
  $region2: #{cvae_forward.6} parent=0 // loop_pre_header
    _
  $region3: #{cvae_forward.6} parent=0 // loop_header
    %s9 = sphi 0, %s13
    %p10 = scmp.ge.s32.totalorder %s9, 4
    %s19 = sphi 0, %s21
    %s22 = sphi 0, %s19
    %s23 = sphi 0, %s22
    %s39 = sphi 0, %s23
    %s43 = sphi 0, %s43
    %s45 = sphi 0, %s43
    %s46 = sphi 0, %s45
    %s60 = sphi 0, %s46
    %s64 = sphi 0, %s64
    %s66 = sphi 0, %s64
    %s67 = sphi 0, %s66
    %s81 = sphi 0, %s67
    %s87 = sphi 0, %s89
    %s90 = sphi 0, %s87
    %s91 = sphi 0, %s90
    %s107 = sphi 0, %s91
  $region4: #{cvae_forward.6} parent=0 // loop_header_branch
    %12 = sbr.rel (%p10) target = $region8
  $region5: #{cvae_forward.6} parent=0 // loop_body
    %s14 = ssub.s32 %s9, 1
    %s15 = ssub.s32 %s9, 2
    %s16 = sadd.s32 %s9, 1
    %s17 = ssub.s32 %s9, %s16
    %p18 = scmp.eq.s32.totalorder %s17, 0
    %s20 = sadd.s32 %s19, 1
    %s21 = scalar_select %p18, %s19, %s20
    %p24 = pneg %p18
    %p25 = scmp.eq.s32.totalorder %s9, 1
    %p26 = por %p24, %p25
    %p27 = scmp.ne.s32.totalorder %s19, %s22
    %p28 = scmp.eq.s32.totalorder %s9, 0
    %p29 = por %p27, %p28
    %p30 = scmp.ne.s32.totalorder %s19, %s22
    %p31 = scmp.eq.s32.totalorder %s14, 1
    %p32 = por %p30, %p31
    %p33 = scmp.ne.s32.totalorder %s22, %s23
    %p34 = scmp.eq.s32.totalorder %s14, 0
    %p35 = por %p33, %p34
    %p36 = scmp.ne.s32.totalorder %s22, %s23
    %p37 = scmp.eq.s32.totalorder %s15, 1
    %p38 = por %p36, %p37
    %p40 = scmp.ne.s32.totalorder %s23, %s39
    %p41 = scmp.eq.s32.totalorder %s15, 0
    %p42 = por %p40, %p41
    %s44 = sadd.s32 %s43, 1
    %p47 = scmp.eq.s32.totalorder %s9, 1
    %p48 = scmp.ne.s32.totalorder %s43, %s45
    %p49 = scmp.eq.s32.totalorder %s9, 0
    %p50 = por %p48, %p49
    %p51 = scmp.ne.s32.totalorder %s43, %s45
    %p52 = scmp.eq.s32.totalorder %s14, 1
    %p53 = por %p51, %p52
    %p54 = scmp.ne.s32.totalorder %s45, %s46
    %p55 = scmp.eq.s32.totalorder %s14, 0
    %p56 = por %p54, %p55
    %p57 = scmp.ne.s32.totalorder %s45, %s46
    %p58 = scmp.eq.s32.totalorder %s15, 1
    %p59 = por %p57, %p58
    %p61 = scmp.ne.s32.totalorder %s46, %s60
    %p62 = scmp.eq.s32.totalorder %s15, 0
    %p63 = por %p61, %p62
    %s65 = sadd.s32 %s64, 1
    %p68 = scmp.eq.s32.totalorder %s9, 1
    %p69 = scmp.ne.s32.totalorder %s64, %s66
    %p70 = scmp.eq.s32.totalorder %s9, 0
    %p71 = por %p69, %p70
    %p72 = scmp.ne.s32.totalorder %s64, %s66
    %p73 = scmp.eq.s32.totalorder %s14, 1
    %p74 = por %p72, %p73
    %p75 = scmp.ne.s32.totalorder %s66, %s67
    %p76 = scmp.eq.s32.totalorder %s14, 0
    %p77 = por %p75, %p76
    %p78 = scmp.ne.s32.totalorder %s66, %s67
    %p79 = scmp.eq.s32.totalorder %s15, 1
    %p80 = por %p78, %p79
    %p82 = scmp.ne.s32.totalorder %s67, %s81
    %p83 = scmp.eq.s32.totalorder %s15, 0
    %p84 = por %p82, %p83
    %s85 = ssub.s32 %s9, %s16
    %p86 = scmp.eq.s32.totalorder %s85, 0
    %s88 = sadd.s32 %s87, 1
    %s89 = scalar_select %p86, %s87, %s88
    %p92 = pneg %p86
    %p93 = scmp.eq.s32.totalorder %s9, 1
    %p94 = por %p92, %p93
    %p95 = scmp.ne.s32.totalorder %s87, %s90
    %p96 = scmp.eq.s32.totalorder %s9, 0
    %p97 = por %p95, %p96
    %p98 = scmp.ne.s32.totalorder %s87, %s90
    %p99 = scmp.eq.s32.totalorder %s14, 1
    %p100 = por %p98, %p99
    %p101 = scmp.ne.s32.totalorder %s90, %s91
    %p102 = scmp.eq.s32.totalorder %s14, 0
    %p103 = por %p101, %p102
    %p104 = scmp.ne.s32.totalorder %s90, %s91
    %p105 = scmp.eq.s32.totalorder %s15, 1
    %p106 = por %p104, %p105
    %p108 = scmp.ne.s32.totalorder %s91, %s107
    %p109 = scmp.eq.s32.totalorder %s15, 0
    %p110 = por %p108, %p109
    %p111 = scmp.le.s32.totalorder 1, %s9
    %p112 = scmp.lt.s32.totalorder %s9, 3
    %p113 = pnand %p111, %p112
    %p114 = pneg %p113
    // Predicated region
    $region9: #{cvae_forward.6} parent=5 // pred_check
      _
    $region10: #{cvae_forward.6} parent=5 // pred_check_branch
      %116 = sbr.rel (%p113) target = $region12
    $region11: #{cvae_forward.6} parent=5 // pred_region
      %s117 = ssub.s32 %s9, 1
      // Predicated region
      $region13: #{cvae_forward.6} parent=11 // pred_check
        %p118 = pneg %p56
      $region14: #{cvae_forward.6} parent=11 // pred_check_branch
        %120 = sbr.rel (%p118) target = $region16
      $region15: #{cvae_forward.6} parent=11 // pred_region
        _
      $region16: #{cvae_forward.6} parent=11 // pred_fallthru
        _
      // Predicated region
      $region17: #{cvae_forward.6} parent=11 // pred_check
        %p121 = pneg %p77
      $region18: #{cvae_forward.6} parent=11 // pred_check_branch
        %123 = sbr.rel (%p121) target = $region20
      $region19: #{cvae_forward.6} parent=11 // pred_region
        _
      $region20: #{cvae_forward.6} parent=11 // pred_fallthru
        _
    $region12: #{cvae_forward.6} parent=5 // pred_fallthru
      _
    %p124 = scmp.lt.s32.totalorder %s9, 2
    // Predicated region
    $region21: #{cvae_forward.6} parent=5 // pred_check
      %p125 = pneg %p124
    $region22: #{cvae_forward.6} parent=5 // pred_check_branch
      %127 = sbr.rel (%p125) target = $region24
    $region23: #{cvae_forward.6} parent=5 // pred_region
      // Predicated region
      $region25: #{cvae_forward.6} parent=23 // pred_check
        %p128 = pneg %p29
      $region26: #{cvae_forward.6} parent=23 // pred_check_branch
        %130 = sbr.rel (%p128) target = $region28
      $region27: #{cvae_forward.6} parent=23 // pred_region
        %p131 = scmp.lt.s32.totalorder %s9, 1
        %s132 = scalar_select %p131, %s9, 1
        %s133 = smul.addr %s132, 18
        %s134 = smul.addr %s133, 4
        %s135 = scalar_lea.vmem %s0, %s134
      $region28: #{cvae_forward.6} parent=23 // pred_fallthru
        _
    $region24: #{cvae_forward.6} parent=5 // pred_fallthru
      _
    %p136 = scmp.le.s32.totalorder 1, %s9
    %p137 = scmp.lt.s32.totalorder %s9, 3
    %p138 = pnand %p136, %p137
    %p139 = pneg %p138
    // Predicated region
    $region29: #{cvae_forward.6} parent=5 // pred_check
      _
    $region30: #{cvae_forward.6} parent=5 // pred_check_branch
      %141 = sbr.rel (%p138) target = $region32
    $region31: #{cvae_forward.6} parent=5 // pred_region
      %s142 = ssub.s32 %s9, 1
      %p143 = scmp.lt.s32.totalorder %s14, 1
      %s144 = scalar_select %p143, %s14, 1
      %s145 = smul.addr %s144, 18
      %s146 = smul.addr %s145, 4
      %s147 = scalar_lea.vmem %s0, %s146
      %p148 = pneg %p35
      %p149 = pneg %p32
      %p150 = pneg %p56
      %p151 = pneg %p53
      %p152 = pneg %p77
      %p153 = pneg %p74
      %p154 = pneg %p103
      %p155 = pneg %p100
      %s156 = smul.u32 8, %s14
      %p157 = scmp.lt.s32.totalorder %s156, 15
      %s158 = scalar_select %p157, %s156, 15
      %s159 = smul.addr %s158, 8
      %s160 = scalar_lea.vmem %s3, %s159
      %p161 = scmp.lt.s32.totalorder %s14, 1
      %s162 = scalar_select %p161, %s14, 1
      %s163 = smul.addr %s162, 18
      %s164 = smul.addr %s163, 4
      %s165 = scalar_lea.vmem %s0, %s164
      %s166 = smul.u32 8, %s14
      %p167 = scmp.lt.s32.totalorder %s166, 15
      %s168 = scalar_select %p167, %s166, 15
      %s169 = smul.addr %s168, 8
      %s170 = scalar_lea.vmem %s3, %s169
      %s171 = smul.u32 8, %s14
      %v173 = vld [vmem:[%s165] sm:$0xf]
      %v174 = vld [vmem:[%s165 + $0x4] sm:$0x1]
      %v175 = vld [vmem:[%s165 + $0x8] sm:$0xf]
      %v176 = vld [vmem:[%s165 + $0xc] sm:$0x1]
      %v177 = vld [vmem:[%s165 + $0x10] sm:$0xf]
      %v178 = vld [vmem:[%s165 + $0x14] sm:$0x1]
      %v179 = vld [vmem:[%s165 + $0x18] sm:$0xf]
      %v180 = vld [vmem:[%s165 + $0x1c] sm:$0x1]
      %v181 = vld [vmem:[%s165 + $0x20] sm:$0xf]
      %v182 = vld [vmem:[%s165 + $0x24] sm:$0x1]
      %v183 = vld [vmem:[%s165 + $0x28] sm:$0xf]
      %v184 = vld [vmem:[%s165 + $0x2c] sm:$0x1]
      %v185 = vld [vmem:[%s165 + $0x30] sm:$0xf]
      %v186 = vld [vmem:[%s165 + $0x34] sm:$0x1]
      %v187 = vld [vmem:[%s165 + $0x38] sm:$0xf]
      %v188 = vld [vmem:[%s165 + $0x3c] sm:$0x1]
      %v189 = vld [vmem:[%s165 + $0x40] sm:$0xf]
      %v190 = vld [vmem:[%s165 + $0x44] sm:$0x1]
      %v191 = vld [vmem:[%s1] sm:$0xf]
      %v192 = vld [vmem:[%s1 + $0x4] sm:$0xf]
      %v193 = vld [vmem:[%s1 + $0x8] sm:$0xf]
      %v194 = vld [vmem:[%s1 + $0xc] sm:$0xf]
      %v195 = vld [vmem:[%s1 + $0x10] sm:$0xf]
      %v196 = vld [vmem:[%s1 + $0x14] sm:$0xf]
      %v197 = vld [vmem:[%s1 + $0x18] sm:$0xf]
      %v198 = vld [vmem:[%s1 + $0x1c] sm:$0xf]
      %vm199 = vsmask.f32 3328
      %vm200 = vsmask.f32 7440
      %vm201 = vmor %vm199, %vm200
      %v203 = vshrl.u32 %v173, 16
      %v205 = vrot.slane %v203, 4
      %v206 = vshll.u32 %v173, 16
      %v208 = vrot.slane %v206, 5
      %v209 = vor.u32 %v205, %v208
      %v210 = vrot.slane %v209, 4
      %v212 = vshll.u32 %v174, 16
      %v214 = vrot.slane %v212, 5
      %v215 = vsel %vm201, %v210, %v214
      %v217 = vshrl.u32 %v175, 16
      %v219 = vrot.slane %v217, 4
      %v220 = vshll.u32 %v175, 16
      %v222 = vrot.slane %v220, 5
      %v223 = vor.u32 %v219, %v222
      %v224 = vrot.slane %v223, 4
      %v226 = vshll.u32 %v176, 16
      %v228 = vrot.slane %v226, 5
      %v229 = vsel %vm201, %v224, %v228
      %v231 = vshrl.u32 %v177, 16
      %v233 = vrot.slane %v231, 4
      %v234 = vshll.u32 %v177, 16
      %v236 = vrot.slane %v234, 5
      %v237 = vor.u32 %v233, %v236
      %v238 = vrot.slane %v237, 4
      %v240 = vshll.u32 %v178, 16
      %v242 = vrot.slane %v240, 5
      %v243 = vsel %vm201, %v238, %v242
      %v245 = vshrl.u32 %v179, 16
      %v247 = vrot.slane %v245, 4
      %v248 = vshll.u32 %v179, 16
      %v250 = vrot.slane %v248, 5
      %v251 = vor.u32 %v247, %v250
      %v252 = vrot.slane %v251, 4
      %v254 = vshll.u32 %v180, 16
      %v256 = vrot.slane %v254, 5
      %v257 = vsel %vm201, %v252, %v256
      %v259 = vshrl.u32 %v181, 16
      %v261 = vrot.slane %v259, 4
      %v262 = vshll.u32 %v181, 16
      %v264 = vrot.slane %v262, 5
      %v265 = vor.u32 %v261, %v264
      %v266 = vrot.slane %v265, 4
      %v268 = vshll.u32 %v182, 16
      %v270 = vrot.slane %v268, 5
      %v271 = vsel %vm201, %v266, %v270
      %v273 = vshrl.u32 %v183, 16
      %v275 = vrot.slane %v273, 4
      %v276 = vshll.u32 %v183, 16
      %v278 = vrot.slane %v276, 5
      %v279 = vor.u32 %v275, %v278
      %v280 = vrot.slane %v279, 4
      %v282 = vshll.u32 %v184, 16
      %v284 = vrot.slane %v282, 5
      %v285 = vsel %vm201, %v280, %v284
      %v287 = vshrl.u32 %v185, 16
      %v289 = vrot.slane %v287, 4
      %v290 = vshll.u32 %v185, 16
      %v292 = vrot.slane %v290, 5
      %v293 = vor.u32 %v289, %v292
      %v294 = vrot.slane %v293, 4
      %v296 = vshll.u32 %v186, 16
      %v298 = vrot.slane %v296, 5
      %v299 = vsel %vm201, %v294, %v298
      %v301 = vshrl.u32 %v187, 16
      %v303 = vrot.slane %v301, 4
      %v304 = vshll.u32 %v187, 16
      %v306 = vrot.slane %v304, 5
      %v307 = vor.u32 %v303, %v306
      %v308 = vrot.slane %v307, 4
      %v310 = vshll.u32 %v188, 16
      %v312 = vrot.slane %v310, 5
      %v313 = vsel %vm201, %v308, %v312
      %s314 = scalar_lea.vmem %s1, 32
      %v315 = vld [vmem:[%s314] sm:$0xf]
      %v316 = vld [vmem:[%s314 + $0x4] sm:$0xf]
      %v317 = vld [vmem:[%s314 + $0x8] sm:$0xf]
      %v318 = vld [vmem:[%s314 + $0xc] sm:$0xf]
      %v319 = vld [vmem:[%s314 + $0x10] sm:$0xf]
      %v320 = vld [vmem:[%s314 + $0x14] sm:$0xf]
      %v321 = vld [vmem:[%s314 + $0x18] sm:$0xf]
      %v322 = vld [vmem:[%s314 + $0x1c] sm:$0xf]
      %v323 = vunpack.c.l.b16 %v215
      %v324 = vunpack.c.l.b16 %v229
      %v325 = vunpack.c.l.b16 %v243
      %v326 = vunpack.c.l.b16 %v257
      %v327 = vunpack.c.l.b16 %v271
      %v328 = vunpack.c.l.b16 %v285
      %v329 = vunpack.c.l.b16 %v299
      %v330 = vunpack.c.l.b16 %v313
      %v331 = vpack.c.b16 %v324, %v323
      %v332 = vpack.c.b16 %v326, %v325
      %v333 = vpack.c.b16 %v328, %v327
      %v334 = vpack.c.b16 %v330, %v329
      %v343 = vunpack.c.l.b16 %v315
      %v344 = vunpack.c.l.b16 %v316
      %v345 = vunpack.c.l.b16 %v317
      %v346 = vunpack.c.l.b16 %v318
      %v347 = vunpack.c.l.b16 %v319
      %v348 = vunpack.c.l.b16 %v320
      %v349 = vunpack.c.l.b16 %v321
      %v350 = vunpack.c.l.b16 %v322
      %v351 = vpack.c.b16 %v344, %v343
      %v352 = vpack.c.b16 %v346, %v345
      %v353 = vpack.c.b16 %v348, %v347
      %v354 = vpack.c.b16 %v350, %v349
      %vm359 = vcmask 523264
      %v361 = vsel %vm359, %v331, 0
      %v364 = vsel %vm359, %v332, 0
      %v367 = vsel %vm359, %v333, 0
      %v370 = vsel %vm359, %v334, 0
      %372 = vmatprep.subr.bf16.mxu0 0
      %373 = vmatpush1.bf16.msra.mxu0 %v351
      %374 = vmatprep.subr.bf16.mxu0 0
      %375 = vmatpush1.bf16.msra.mxu0 %v352
      %376 = vmatprep.subr.bf16.mxu0 0
      %377 = vmatpush1.bf16.msra.mxu0 %v353
      %378 = vmatprep.subr.bf16.mxu0 0
      %379 = vmatpush1.bf16.msra.mxu0 %v354
      %380 = vmatprep.subr.bf16.mxu0 0
      %381 = vmatpush1.bf16.msra.mxu0 0
      %382 = vmatprep.subr.bf16.mxu0 0
      %383 = vmatpush1.bf16.msra.mxu0 0
      %384 = vmatprep.subr.bf16.mxu0 0
      %385 = vmatpush1.bf16.msra.mxu0 0
      %386 = vmatprep.subr.bf16.mxu0 0
      %387 = vmatpush1.bf16.msra.mxu0 0
      %388 = vmatprep.subr.bf16.mxu0 0
      %389 = vmatpush1.bf16.msra.mxu0 0
      %390 = vmatprep.subr.bf16.mxu0 0
      %391 = vmatpush1.bf16.msra.mxu0 0
      %392 = vmatprep.subr.bf16.mxu0 0
      %393 = vmatpush1.bf16.msra.mxu0 0
      %394 = vmatprep.subr.bf16.mxu0 0
      %395 = vmatpush1.bf16.msra.mxu0 0
      %396 = vmatprep.subr.bf16.mxu0 0
      %397 = vmatpush1.bf16.msra.mxu0 0
      %398 = vmatprep.subr.bf16.mxu0 0
      %399 = vmatpush1.bf16.msra.mxu0 0
      %400 = vmatprep.subr.bf16.mxu0 0
      %401 = vmatpush1.bf16.msra.mxu0 0
      %402 = vmatprep.subr.bf16.mxu0 0
      %403 = vmatpush1.bf16.msra.mxu0 0
      %404 = vmatprep.mubr.bf16.mxu0 0
      %405 = vmatmul.mubr.bf16.gmra.mrb[0].mxu0 %v361
      %v406 = vpop.f32.mrb[0].mxu0
      %v407 = vadd.f32 0.0, %v406
      %v408 = vpop.f32.mrb[0].mxu0
      %v409 = vpop.f32.mrb[0].mxu0
      %v410 = vadd.f32 0.0, %v409
      %v411 = vpop.f32.mrb[0].mxu0
      %412 = vmatprep.mubr.bf16.mxu0 0
      %413 = vmatmul.mubr.bf16.gmra.mrb[0].mxu0 %v364
      %v414 = vpop.f32.mrb[0].mxu0
      %v415 = vadd.f32 0.0, %v414
      %v416 = vpop.f32.mrb[0].mxu0
      %v417 = vpop.f32.mrb[0].mxu0
      %v418 = vadd.f32 0.0, %v417
      %v419 = vpop.f32.mrb[0].mxu0
      %420 = vmatprep.mubr.bf16.mxu0 0
      %421 = vmatmul.mubr.bf16.gmra.mrb[0].mxu0 %v367
      %v422 = vpop.f32.mrb[0].mxu0
      %v423 = vadd.f32 0.0, %v422
      %v424 = vpop.f32.mrb[0].mxu0
      %v425 = vpop.f32.mrb[0].mxu0
      %v426 = vadd.f32 0.0, %v425
      %v427 = vpop.f32.mrb[0].mxu0
      %428 = vmatprep.mubr.bf16.mxu0 0
      %429 = vmatmul.mubr.bf16.gmra.mrb[0].mxu0 %v370
      %v430 = vpop.f32.mrb[0].mxu0
      %v431 = vadd.f32 0.0, %v430
      %v432 = vpop.f32.mrb[0].mxu0
      %v433 = vpop.f32.mrb[0].mxu0
      %v434 = vadd.f32 0.0, %v433
      %v435 = vpop.f32.mrb[0].mxu0
      %436 = vdwg.mxu0
      %v445 = vunpack.c.l.b16 %v173
      %v446 = vunpack.c.l.b16 %v175
      %v447 = vunpack.c.l.b16 %v177
      %v448 = vunpack.c.l.b16 %v179
      %v449 = vunpack.c.l.b16 %v181
      %v450 = vunpack.c.l.b16 %v183
      %v451 = vunpack.c.l.b16 %v185
      %v452 = vunpack.c.l.b16 %v187
      %v453 = vpack.c.b16 %v446, %v445
      %v454 = vpack.c.b16 %v448, %v447
      %v455 = vpack.c.b16 %v450, %v449
      %v456 = vpack.c.b16 %v452, %v451
      %v465 = vunpack.c.l.b16 %v191
      %v466 = vunpack.c.l.b16 %v192
      %v467 = vunpack.c.l.b16 %v193
      %v468 = vunpack.c.l.b16 %v194
      %v469 = vunpack.c.l.b16 %v195
      %v470 = vunpack.c.l.b16 %v196
      %v471 = vunpack.c.l.b16 %v197
      %v472 = vunpack.c.l.b16 %v198
      %v473 = vpack.c.b16 %v466, %v465
      %v474 = vpack.c.b16 %v468, %v467
      %v475 = vpack.c.b16 %v470, %v469
      %v476 = vpack.c.b16 %v472, %v471
      %v482 = vsel %vm359, %v453, 0
      %v485 = vsel %vm359, %v454, 0
      %v488 = vsel %vm359, %v455, 0
      %v491 = vsel %vm359, %v456, 0
      %493 = vmatprep.subr.bf16.mxu0 0
      %494 = vmatpush1.bf16.msra.mxu0 %v473
      %495 = vmatprep.subr.bf16.mxu0 0
      %496 = vmatpush1.bf16.msra.mxu0 %v474
      %497 = vmatprep.subr.bf16.mxu0 0
      %498 = vmatpush1.bf16.msra.mxu0 %v475
      %499 = vmatprep.subr.bf16.mxu0 0
      %500 = vmatpush1.bf16.msra.mxu0 %v476
      %501 = vmatprep.subr.bf16.mxu0 0
      %502 = vmatpush1.bf16.msra.mxu0 0
      %503 = vmatprep.subr.bf16.mxu0 0
      %504 = vmatpush1.bf16.msra.mxu0 0
      %505 = vmatprep.subr.bf16.mxu0 0
      %506 = vmatpush1.bf16.msra.mxu0 0
      %507 = vmatprep.subr.bf16.mxu0 0
      %508 = vmatpush1.bf16.msra.mxu0 0
      %509 = vmatprep.subr.bf16.mxu0 0
      %510 = vmatpush1.bf16.msra.mxu0 0
      %511 = vmatprep.subr.bf16.mxu0 0
      %512 = vmatpush1.bf16.msra.mxu0 0
      %513 = vmatprep.subr.bf16.mxu0 0
      %514 = vmatpush1.bf16.msra.mxu0 0
      %515 = vmatprep.subr.bf16.mxu0 0
      %516 = vmatpush1.bf16.msra.mxu0 0
      %517 = vmatprep.subr.bf16.mxu0 0
      %518 = vmatpush1.bf16.msra.mxu0 0
      %519 = vmatprep.subr.bf16.mxu0 0
      %520 = vmatpush1.bf16.msra.mxu0 0
      %521 = vmatprep.subr.bf16.mxu0 0
      %522 = vmatpush1.bf16.msra.mxu0 0
      %523 = vmatprep.subr.bf16.mxu0 0
      %524 = vmatpush1.bf16.msra.mxu0 0
      %525 = vmatprep.mubr.bf16.mxu0 0
      %526 = vmatmul.mubr.bf16.gmra.mrb[0].mxu0 %v482
      %v527 = vpop.f32.mrb[0].mxu0
      %v528 = vadd.f32 %v407, %v527
      %v529 = vpop.f32.mrb[0].mxu0
      %v530 = vpop.f32.mrb[0].mxu0
      %v531 = vadd.f32 %v410, %v530
      %v532 = vpop.f32.mrb[0].mxu0
      %533 = vmatprep.mubr.bf16.mxu0 0
      %534 = vmatmul.mubr.bf16.gmra.mrb[0].mxu0 %v485
      %v535 = vpop.f32.mrb[0].mxu0
      %v536 = vadd.f32 %v415, %v535
      %v537 = vpop.f32.mrb[0].mxu0
      %v538 = vpop.f32.mrb[0].mxu0
      %v539 = vadd.f32 %v418, %v538
      %v540 = vpop.f32.mrb[0].mxu0
      %541 = vmatprep.mubr.bf16.mxu0 0
      %542 = vmatmul.mubr.bf16.gmra.mrb[0].mxu0 %v488
      %v543 = vpop.f32.mrb[0].mxu0
      %v544 = vadd.f32 %v423, %v543
      %v545 = vpop.f32.mrb[0].mxu0
      %v546 = vpop.f32.mrb[0].mxu0
      %v547 = vadd.f32 %v426, %v546
      %v548 = vpop.f32.mrb[0].mxu0
      %549 = vmatprep.mubr.bf16.mxu0 0
      %550 = vmatmul.mubr.bf16.gmra.mrb[0].mxu0 %v491
      %v551 = vpop.f32.mrb[0].mxu0
      %v552 = vadd.f32 %v431, %v551
      %v553 = vpop.f32.mrb[0].mxu0
      %v554 = vpop.f32.mrb[0].mxu0
      %v555 = vadd.f32 %v434, %v554
      %v556 = vpop.f32.mrb[0].mxu0
      %557 = vdwg.mxu0
      %s558 = scalar_lea.vmem %s1, 64
      %v559 = vld [vmem:[%s558] sm:$0xf]
      %v560 = vld [vmem:[%s558 + $0x4] sm:$0xf]
      %v561 = vld [vmem:[%s558 + $0x8] sm:$0xf]
      %v562 = vld [vmem:[%s558 + $0xc] sm:$0xf]
      %v563 = vld [vmem:[%s558 + $0x10] sm:$0xf]
      %v564 = vld [vmem:[%s558 + $0x14] sm:$0xf]
      %v565 = vld [vmem:[%s558 + $0x18] sm:$0xf]
      %v566 = vld [vmem:[%s558 + $0x1c] sm:$0xf]
      %v568 = vunpack.c.l.b16 %v189
      %v569 = vpack.c.b16 %v447, %v446
      %v570 = vpack.c.b16 %v449, %v448
      %v571 = vpack.c.b16 %v451, %v450
      %v572 = vpack.c.b16 %v568, %v452
      %v581 = vunpack.c.l.b16 %v559
      %v582 = vunpack.c.l.b16 %v560
      %v583 = vunpack.c.l.b16 %v561
      %v584 = vunpack.c.l.b16 %v562
      %v585 = vunpack.c.l.b16 %v563
      %v586 = vunpack.c.l.b16 %v564
      %v587 = vunpack.c.l.b16 %v565
      %v588 = vunpack.c.l.b16 %v566
      %v589 = vpack.c.b16 %v582, %v581
      %v590 = vpack.c.b16 %v584, %v583
      %v591 = vpack.c.b16 %v586, %v585
      %v592 = vpack.c.b16 %v588, %v587
      %v598 = vsel %vm359, %v569, 0
      %v601 = vsel %vm359, %v570, 0
      %v604 = vsel %vm359, %v571, 0
      %v607 = vsel %vm359, %v572, 0
      %609 = vmatprep.subr.bf16.mxu0 0
      %610 = vmatpush1.bf16.msra.mxu0 %v589
      %611 = vmatprep.subr.bf16.mxu0 0
      %612 = vmatpush1.bf16.msra.mxu0 %v590
      %613 = vmatprep.subr.bf16.mxu0 0
      %614 = vmatpush1.bf16.msra.mxu0 %v591
      %615 = vmatprep.subr.bf16.mxu0 0
      %616 = vmatpush1.bf16.msra.mxu0 %v592
      %617 = vmatprep.subr.bf16.mxu0 0
      %618 = vmatpush1.bf16.msra.mxu0 0
      %619 = vmatprep.subr.bf16.mxu0 0
      %620 = vmatpush1.bf16.msra.mxu0 0
      %621 = vmatprep.subr.bf16.mxu0 0
      %622 = vmatpush1.bf16.msra.mxu0 0
      %623 = vmatprep.subr.bf16.mxu0 0
      %624 = vmatpush1.bf16.msra.mxu0 0
      %625 = vmatprep.subr.bf16.mxu0 0
      %626 = vmatpush1.bf16.msra.mxu0 0
      %627 = vmatprep.subr.bf16.mxu0 0
      %628 = vmatpush1.bf16.msra.mxu0 0
      %629 = vmatprep.subr.bf16.mxu0 0
      %630 = vmatpush1.bf16.msra.mxu0 0
      %631 = vmatprep.subr.bf16.mxu0 0
      %632 = vmatpush1.bf16.msra.mxu0 0
      %633 = vmatprep.subr.bf16.mxu0 0
      %634 = vmatpush1.bf16.msra.mxu0 0
      %635 = vmatprep.subr.bf16.mxu0 0
      %636 = vmatpush1.bf16.msra.mxu0 0
      %637 = vmatprep.subr.bf16.mxu0 0
      %638 = vmatpush1.bf16.msra.mxu0 0
      %639 = vmatprep.subr.bf16.mxu0 0
      %640 = vmatpush1.bf16.msra.mxu0 0
      %641 = vmatprep.mubr.bf16.mxu0 0
      %642 = vmatmul.mubr.bf16.gmra.mrb[0].mxu0 %v598
      %v643 = vpop.f32.mrb[0].mxu0
      %v644 = vadd.f32 0.0, %v643
      %v645 = vpop.f32.mrb[0].mxu0
      %v646 = vpop.f32.mrb[0].mxu0
      %v647 = vadd.f32 0.0, %v646
      %v648 = vpop.f32.mrb[0].mxu0
      %649 = vmatprep.mubr.bf16.mxu0 0
      %650 = vmatmul.mubr.bf16.gmra.mrb[0].mxu0 %v601
      %v651 = vpop.f32.mrb[0].mxu0
      %v652 = vadd.f32 0.0, %v651
      %v653 = vpop.f32.mrb[0].mxu0
      %v654 = vpop.f32.mrb[0].mxu0
      %v655 = vadd.f32 0.0, %v654
      %v656 = vpop.f32.mrb[0].mxu0
      %657 = vmatprep.mubr.bf16.mxu0 0
      %658 = vmatmul.mubr.bf16.gmra.mrb[0].mxu0 %v604
      %v659 = vpop.f32.mrb[0].mxu0
      %v660 = vadd.f32 0.0, %v659
      %v661 = vpop.f32.mrb[0].mxu0
      %v662 = vpop.f32.mrb[0].mxu0
      %v663 = vadd.f32 0.0, %v662
      %v664 = vpop.f32.mrb[0].mxu0
      %665 = vmatprep.mubr.bf16.mxu0 0
      %666 = vmatmul.mubr.bf16.gmra.mrb[0].mxu0 %v607
      %v667 = vpop.f32.mrb[0].mxu0
      %v668 = vadd.f32 0.0, %v667
      %v669 = vpop.f32.mrb[0].mxu0
      %v670 = vpop.f32.mrb[0].mxu0
      %v671 = vadd.f32 0.0, %v670
      %v672 = vpop.f32.mrb[0].mxu0
      %673 = vdwg.mxu0
      %v674 = vadd.f32 %v528, %v644
      %v675 = vadd.f32 %v531, %v647
      %v676 = vadd.f32 %v536, %v652
      %v677 = vadd.f32 %v539, %v655
      %v678 = vadd.f32 %v544, %v660
      %v679 = vadd.f32 %v547, %v663
      %v680 = vadd.f32 %v552, %v668
      %v681 = vadd.f32 %v555, %v671
      %v683 = vshrl.u32 %v189, 16
      %v685 = vrot.slane %v683, 4
      %v686 = vshll.u32 %v189, 16
      %v688 = vrot.slane %v686, 5
      %v689 = vor.u32 %v685, %v688
      %v690 = vrot.slane %v689, 4
      %v692 = vshll.u32 %v190, 16
      %v694 = vrot.slane %v692, 5
      %v695 = vsel %vm201, %v690, %v694
      %s696 = scalar_lea.vmem %s1, 96
      %v697 = vld [vmem:[%s696] sm:$0xf]
      %v698 = vld [vmem:[%s696 + $0x4] sm:$0xf]
      %v699 = vld [vmem:[%s696 + $0x8] sm:$0xf]
      %v700 = vld [vmem:[%s696 + $0xc] sm:$0xf]
      %v701 = vld [vmem:[%s696 + $0x10] sm:$0xf]
      %v702 = vld [vmem:[%s696 + $0x14] sm:$0xf]
      %v703 = vld [vmem:[%s696 + $0x18] sm:$0xf]
      %v704 = vld [vmem:[%s696 + $0x1c] sm:$0xf]
      %v705 = vunpack.c.l.b16 %v695
      %v706 = vpack.c.b16 %v325, %v324
      %v707 = vpack.c.b16 %v327, %v326
      %v708 = vpack.c.b16 %v329, %v328
      %v709 = vpack.c.b16 %v705, %v330
      %v718 = vunpack.c.l.b16 %v697
      %v719 = vunpack.c.l.b16 %v698
      %v720 = vunpack.c.l.b16 %v699
      %v721 = vunpack.c.l.b16 %v700
      %v722 = vunpack.c.l.b16 %v701
      %v723 = vunpack.c.l.b16 %v702
      %v724 = vunpack.c.l.b16 %v703
      %v725 = vunpack.c.l.b16 %v704
      %v726 = vpack.c.b16 %v719, %v718
      %v727 = vpack.c.b16 %v721, %v720
      %v728 = vpack.c.b16 %v723, %v722
      %v729 = vpack.c.b16 %v725, %v724
      %v735 = vsel %vm359, %v706, 0
      %v738 = vsel %vm359, %v707, 0
      %v741 = vsel %vm359, %v708, 0
      %v744 = vsel %vm359, %v709, 0
      %746 = vmatprep.subr.bf16.mxu0 0
      %747 = vmatpush1.bf16.msra.mxu0 %v726
      %748 = vmatprep.subr.bf16.mxu0 0
      %749 = vmatpush1.bf16.msra.mxu0 %v727
      %750 = vmatprep.subr.bf16.mxu0 0
      %751 = vmatpush1.bf16.msra.mxu0 %v728
      %752 = vmatprep.subr.bf16.mxu0 0
      %753 = vmatpush1.bf16.msra.mxu0 %v729
      %754 = vmatprep.subr.bf16.mxu0 0
      %755 = vmatpush1.bf16.msra.mxu0 0
      %756 = vmatprep.subr.bf16.mxu0 0
      %757 = vmatpush1.bf16.msra.mxu0 0
      %758 = vmatprep.subr.bf16.mxu0 0
      %759 = vmatpush1.bf16.msra.mxu0 0
      %760 = vmatprep.subr.bf16.mxu0 0
      %761 = vmatpush1.bf16.msra.mxu0 0
      %762 = vmatprep.subr.bf16.mxu0 0
      %763 = vmatpush1.bf16.msra.mxu0 0
      %764 = vmatprep.subr.bf16.mxu0 0
      %765 = vmatpush1.bf16.msra.mxu0 0
      %766 = vmatprep.subr.bf16.mxu0 0
      %767 = vmatpush1.bf16.msra.mxu0 0
      %768 = vmatprep.subr.bf16.mxu0 0
      %769 = vmatpush1.bf16.msra.mxu0 0
      %770 = vmatprep.subr.bf16.mxu0 0
      %771 = vmatpush1.bf16.msra.mxu0 0
      %772 = vmatprep.subr.bf16.mxu0 0
      %773 = vmatpush1.bf16.msra.mxu0 0
      %774 = vmatprep.subr.bf16.mxu0 0
      %775 = vmatpush1.bf16.msra.mxu0 0
      %776 = vmatprep.subr.bf16.mxu0 0
      %777 = vmatpush1.bf16.msra.mxu0 0
      %778 = vmatprep.mubr.bf16.mxu0 0
      %779 = vmatmul.mubr.bf16.gmra.mrb[0].mxu0 %v735
      %v780 = vpop.f32.mrb[0].mxu0
      %v781 = vadd.f32 0.0, %v780
      %v782 = vpop.f32.mrb[0].mxu0
      %v783 = vpop.f32.mrb[0].mxu0
      %v784 = vadd.f32 0.0, %v783
      %v785 = vpop.f32.mrb[0].mxu0
      %786 = vmatprep.mubr.bf16.mxu0 0
      %787 = vmatmul.mubr.bf16.gmra.mrb[0].mxu0 %v738
      %v788 = vpop.f32.mrb[0].mxu0
      %v789 = vadd.f32 0.0, %v788
      %v790 = vpop.f32.mrb[0].mxu0
      %v791 = vpop.f32.mrb[0].mxu0
      %v792 = vadd.f32 0.0, %v791
      %v793 = vpop.f32.mrb[0].mxu0
      %794 = vmatprep.mubr.bf16.mxu0 0
      %795 = vmatmul.mubr.bf16.gmra.mrb[0].mxu0 %v741
      %v796 = vpop.f32.mrb[0].mxu0
      %v797 = vadd.f32 0.0, %v796
      %v798 = vpop.f32.mrb[0].mxu0
      %v799 = vpop.f32.mrb[0].mxu0
      %v800 = vadd.f32 0.0, %v799
      %v801 = vpop.f32.mrb[0].mxu0
      %802 = vmatprep.mubr.bf16.mxu0 0
      %803 = vmatmul.mubr.bf16.gmra.mrb[0].mxu0 %v744
      %v804 = vpop.f32.mrb[0].mxu0
      %v805 = vadd.f32 0.0, %v804
      %v806 = vpop.f32.mrb[0].mxu0
      %v807 = vpop.f32.mrb[0].mxu0
      %v808 = vadd.f32 0.0, %v807
      %v809 = vpop.f32.mrb[0].mxu0
      %810 = vdwg.mxu0
      %v811 = vadd.f32 %v674, %v781
      %v812 = vadd.f32 %v675, %v784
      %v813 = vadd.f32 %v676, %v789
      %v814 = vadd.f32 %v677, %v792
      %v815 = vadd.f32 %v678, %v797
      %v816 = vadd.f32 %v679, %v800
      %v817 = vadd.f32 %v680, %v805
      %v818 = vadd.f32 %v681, %v808
      %v819 = vld [vmem:[%s2] sm:$0x1]
      %v821 = vlaneseq
      %v822 = vshrl.u32 %v821, 7
      %v823 = vsub.s32 0, %v822
      %v824 = vrot.slane %v819, %v823
      %v826 = vadd.f32 %v811, %v824
      %v827 = vadd.f32 %v812, %v824
      %v828 = vadd.f32 %v813, %v824
      %v829 = vadd.f32 %v814, %v824
      %v830 = vadd.f32 %v815, %v824
      %v831 = vadd.f32 %v816, %v824
      %v832 = vadd.f32 %v817, %v824
      %v833 = vadd.f32 %v818, %v824
      %v834 = vmax.f32 %v826, 0.0
      %v835 = vmax.f32 %v827, 0.0
      %v836 = vmax.f32 %v828, 0.0
      %v837 = vmax.f32 %v829, 0.0
      %v838 = vmax.f32 %v830, 0.0
      %v839 = vmax.f32 %v831, 0.0
      %v840 = vmax.f32 %v832, 0.0
      %v841 = vmax.f32 %v833, 0.0
      %842 = vst [vmem:[%s170] sm:$0xff] %v834
      %843 = vst [vmem:[%s170 + $0x8] sm:$0xff] %v835
      %844 = vst [vmem:[%s170 + $0x10] sm:$0xff] %v836
      %845 = vst [vmem:[%s170 + $0x18] sm:$0xff] %v837
      %846 = vst [vmem:[%s170 + $0x20] sm:$0xff] %v838
      %847 = vst [vmem:[%s170 + $0x28] sm:$0xff] %v839
      %848 = vst [vmem:[%s170 + $0x30] sm:$0xff] %v840
      %849 = vst [vmem:[%s170 + $0x38] sm:$0xff] %v841
      %s850 = smul.u32 8, %s14
      %p851 = scmp.lt.s32.totalorder %s850, 15
      %s852 = scalar_select %p851, %s850, 15
      %s853 = smul.addr %s852, 8
      %s854 = scalar_lea.vmem %s3, %s853
      // Predicated region
      $region33: #{cvae_forward.6} parent=31 // pred_check
        %p855 = pneg %p100
      $region34: #{cvae_forward.6} parent=31 // pred_check_branch
        %857 = sbr.rel (%p855) target = $region36
      $region35: #{cvae_forward.6} parent=31 // pred_region
        %s858 = smul.u32 8, %s14
      $region36: #{cvae_forward.6} parent=31 // pred_fallthru
        _
    $region32: #{cvae_forward.6} parent=5 // pred_fallthru
      _
    %p859 = scmp.le.s32.totalorder 2, %s9
    // Predicated region
    $region37: #{cvae_forward.6} parent=5 // pred_check
      %p860 = pneg %p859
    $region38: #{cvae_forward.6} parent=5 // pred_check_branch
      %862 = sbr.rel (%p860) target = $region40
    $region39: #{cvae_forward.6} parent=5 // pred_region
      %s863 = ssub.s32 %s9, 2
      // Predicated region
      $region41: #{cvae_forward.6} parent=39 // pred_check
        %p864 = pneg %p106
      $region42: #{cvae_forward.6} parent=39 // pred_check_branch
        %866 = sbr.rel (%p864) target = $region44
      $region43: #{cvae_forward.6} parent=39 // pred_region
        %s867 = smul.u32 8, %s15
        %p868 = scmp.lt.s32.totalorder %s867, 15
        %s869 = scalar_select %p868, %s867, 15
        %s870 = smul.addr %s869, 8
        %s871 = scalar_lea.vmem %s3, %s870
      $region44: #{cvae_forward.6} parent=39 // pred_fallthru
        _
    $region40: #{cvae_forward.6} parent=5 // pred_fallthru
      _
  $region6: #{cvae_forward.6} parent=0 // loop_footer
    %s13 = sadd.s32 1, %s9
  $region7: #{cvae_forward.6} parent=0 // loop_footer_branch
    %8 = sbr.rel target = $region3
  $region8: #{cvae_forward.6} parent=0 // loop_exit
    _

// kernel: tile.13
$region0: #{tile.13}
  #allocation0 [shape = 's32[1]{0}', space=sflag, size = 0x4, scoped, tag = 'scoped memory for tile.13']
  %s0 = inlined_call_operand.vmem [shape: f32[16], index: 0, kind: input, shape index: {}]
  %s1 = inlined_call_operand.vmem [shape: f32[4,16], index: 1, kind: output, shape index: {}]
  // Predicated region
  $region2: #{tile.13} parent=0 // pred_check
    _
  $region3: #{tile.13} parent=0 // pred_check_branch
    %3 = sbr.rel (0) target = $region5
  $region4: #{tile.13} parent=0 // pred_region
    _
  $region5: #{tile.13} parent=0 // pred_fallthru
    _
  %v4 = vld [vmem:[%s0] ss:$0 sm:$0xff]
  %5 = vst [vmem:[%s1] sm:$0xf] %v4

// kernel: tile.14
$region0: #{tile.14}
  %s0 = inlined_call_operand.vmem [shape: f32[4,16], index: 0, kind: input, shape index: {}]
  %s1 = inlined_call_operand.vmem [shape: f32[64], index: 1, kind: output, shape index: {}]
  $region1: #{tile.14} parent=0
    #allocation0 [shape = 'u8[4096]{0}', space=vmem, size = 0x1000, scoped, tag = 'scoped mem for output reshape']
    #allocation1 [shape = 'u8[4096]{0}', space=vmem, size = 0x1000, scoped, tag = 'scoped mem for input reshape']
    %s3 = sshllo.u32 0, 4
    %v4 = vld [vmem:[%s0] sm:%s3]
    %5 = vst [vmem:[#allocation1] sm:%s3] %v4
    %v6 = vld [vmem:[#allocation1] sm:$0x1]
    %vm7 = vcmask 130048
    %8 = vst.msk [vmem:[#allocation0] sm:$0x1] %vm7, %v6
    %s9 = scalar_lea.vmem [#allocation1], 3
    %v10 = vld [vmem:[%s9] sm:$0x1]
    %11 = vrot.lane.b32.xlu0 %v10, 48
    %v12 = vpop.permute.xlu0 %11
    %vm13 = vcmask 523648
    %14 = vst.msk [vmem:[#allocation0] sm:$0x1] %vm13, %v12
    %s15 = scalar_lea.vmem [#allocation1], 2
    %v16 = vld [vmem:[%s15] sm:$0x1]
    %17 = vrot.lane.b32.xlu0 %v16, 32
    %v18 = vpop.permute.xlu0 %17
    %vm19 = vcmask 392448
    %20 = vst.msk [vmem:[#allocation0] sm:$0x1] %vm19, %v18
    %s21 = scalar_lea.vmem [#allocation1], 1
    %v22 = vld [vmem:[%s21] sm:$0x1]
    %23 = vrot.lane.b32.xlu0 %v22, 16
    %v24 = vpop.permute.xlu0 %23
    %vm25 = vcmask 261248
    %26 = vst.msk [vmem:[#allocation0] sm:$0x1] %vm25, %v24
    %s28 = sshllo.u32 0, 1
    %v30 = vld [vmem:[#allocation0] sm:%s28]
    %s31 = sshllo.u32 0, 1
    %32 = vst [vmem:[%s1] sm:%s31] %v30

// kernel: cvae_forward.8
$region0: #{cvae_forward.8}
  #allocation0 [shape = 'u32[]', space=smem, size = 0x4, offset = 0x4, fixed_abs, tag = 'smem constant byte address 0x4 - core index']
  #allocation1 [shape = 'u32[144,128]{1,0:T(1,128)}', space=vmem, size = 0x12000, scoped, tag = 'internal scratch']
  %s0 = inlined_call_operand.vmem [shape: bf16[2,10,10,32], index: 0, kind: input, shape index: {}]
  %s1 = inlined_call_operand.vmem [shape: bf16[9,32,128], index: 1, kind: input, shape index: {}]
  %s2 = inlined_call_operand.vmem [shape: f32[1,128], index: 2, kind: input, shape index: {}]
  %s3 = inlined_call_operand.vmem [shape: f32[128,128], index: 3, kind: output, shape index: {}]
  %s4 = sld [smem:[#allocation0]]
  $region45: #{cvae_forward.8} parent=0
    _
  %s6 = ssub.s32 1, %s4
  %s7 = scalar_select 0, %s6, %s4
  loop: start=0, step=1, limit=4
  $region2: #{cvae_forward.8} parent=0 // loop_pre_header
    _
  $region3: #{cvae_forward.8} parent=0 // loop_header
    %s9 = sphi 0, %s13
    %p10 = scmp.ge.s32.totalorder %s9, 4
    %s19 = sphi 0, %s21
    %s22 = sphi 0, %s19
    %s23 = sphi 0, %s22
    %s39 = sphi 0, %s23
    %s43 = sphi 0, %s43
    %s45 = sphi 0, %s43
    %s46 = sphi 0, %s45
    %s60 = sphi 0, %s46
    %s64 = sphi 0, %s64
    %s66 = sphi 0, %s64
    %s67 = sphi 0, %s66
    %s81 = sphi 0, %s67
    %s87 = sphi 0, %s89
    %s90 = sphi 0, %s87
    %s91 = sphi 0, %s90
    %s107 = sphi 0, %s91
  $region4: #{cvae_forward.8} parent=0 // loop_header_branch
    %12 = sbr.rel (%p10) target = $region8
  $region5: #{cvae_forward.8} parent=0 // loop_body
    %s14 = ssub.s32 %s9, 1
    %s15 = ssub.s32 %s9, 2
    %s16 = sadd.s32 %s9, 1
    %s17 = ssub.s32 %s9, %s16
    %p18 = scmp.eq.s32.totalorder %s17, 0
    %s20 = sadd.s32 %s19, 1
    %s21 = scalar_select %p18, %s19, %s20
    %p24 = pneg %p18
    %p25 = scmp.eq.s32.totalorder %s9, 1
    %p26 = por %p24, %p25
    %p27 = scmp.ne.s32.totalorder %s19, %s22
    %p28 = scmp.eq.s32.totalorder %s9, 0
    %p29 = por %p27, %p28
    %p30 = scmp.ne.s32.totalorder %s19, %s22
    %p31 = scmp.eq.s32.totalorder %s14, 1
    %p32 = por %p30, %p31
    %p33 = scmp.ne.s32.totalorder %s22, %s23
    %p34 = scmp.eq.s32.totalorder %s14, 0
    %p35 = por %p33, %p34
    %p36 = scmp.ne.s32.totalorder %s22, %s23
    %p37 = scmp.eq.s32.totalorder %s15, 1
    %p38 = por %p36, %p37
    %p40 = scmp.ne.s32.totalorder %s23, %s39
    %p41 = scmp.eq.s32.totalorder %s15, 0
    %p42 = por %p40, %p41
    %s44 = sadd.s32 %s43, 1
    %p47 = scmp.eq.s32.totalorder %s9, 1
    %p48 = scmp.ne.s32.totalorder %s43, %s45
    %p49 = scmp.eq.s32.totalorder %s9, 0
    %p50 = por %p48, %p49
    %p51 = scmp.ne.s32.totalorder %s43, %s45
    %p52 = scmp.eq.s32.totalorder %s14, 1
    %p53 = por %p51, %p52
    %p54 = scmp.ne.s32.totalorder %s45, %s46
    %p55 = scmp.eq.s32.totalorder %s14, 0
    %p56 = por %p54, %p55
    %p57 = scmp.ne.s32.totalorder %s45, %s46
    %p58 = scmp.eq.s32.totalorder %s15, 1
    %p59 = por %p57, %p58
    %p61 = scmp.ne.s32.totalorder %s46, %s60
    %p62 = scmp.eq.s32.totalorder %s15, 0
    %p63 = por %p61, %p62
    %s65 = sadd.s32 %s64, 1
    %p68 = scmp.eq.s32.totalorder %s9, 1
    %p69 = scmp.ne.s32.totalorder %s64, %s66
    %p70 = scmp.eq.s32.totalorder %s9, 0
    %p71 = por %p69, %p70
    %p72 = scmp.ne.s32.totalorder %s64, %s66
    %p73 = scmp.eq.s32.totalorder %s14, 1
    %p74 = por %p72, %p73
    %p75 = scmp.ne.s32.totalorder %s66, %s67
    %p76 = scmp.eq.s32.totalorder %s14, 0
    %p77 = por %p75, %p76
    %p78 = scmp.ne.s32.totalorder %s66, %s67
    %p79 = scmp.eq.s32.totalorder %s15, 1
    %p80 = por %p78, %p79
    %p82 = scmp.ne.s32.totalorder %s67, %s81
    %p83 = scmp.eq.s32.totalorder %s15, 0
    %p84 = por %p82, %p83
    %s85 = ssub.s32 %s9, %s16
    %p86 = scmp.eq.s32.totalorder %s85, 0
    %s88 = sadd.s32 %s87, 1
    %s89 = scalar_select %p86, %s87, %s88
    %p92 = pneg %p86
    %p93 = scmp.eq.s32.totalorder %s9, 1
    %p94 = por %p92, %p93
    %p95 = scmp.ne.s32.totalorder %s87, %s90
    %p96 = scmp.eq.s32.totalorder %s9, 0
    %p97 = por %p95, %p96
    %p98 = scmp.ne.s32.totalorder %s87, %s90
    %p99 = scmp.eq.s32.totalorder %s14, 1
    %p100 = por %p98, %p99
    %p101 = scmp.ne.s32.totalorder %s90, %s91
    %p102 = scmp.eq.s32.totalorder %s14, 0
    %p103 = por %p101, %p102
    %p104 = scmp.ne.s32.totalorder %s90, %s91
    %p105 = scmp.eq.s32.totalorder %s15, 1
    %p106 = por %p104, %p105
    %p108 = scmp.ne.s32.totalorder %s91, %s107
    %p109 = scmp.eq.s32.totalorder %s15, 0
    %p110 = por %p108, %p109
    %p111 = scmp.le.s32.totalorder 1, %s9
    %p112 = scmp.lt.s32.totalorder %s9, 3
    %p113 = pnand %p111, %p112
    %p114 = pneg %p113
    // Predicated region
    $region9: #{cvae_forward.8} parent=5 // pred_check
      _
    $region10: #{cvae_forward.8} parent=5 // pred_check_branch
      %116 = sbr.rel (%p113) target = $region12
    $region11: #{cvae_forward.8} parent=5 // pred_region
      %s117 = ssub.s32 %s9, 1
      // Predicated region
      $region13: #{cvae_forward.8} parent=11 // pred_check
        %p118 = pneg %p56
      $region14: #{cvae_forward.8} parent=11 // pred_check_branch
        %120 = sbr.rel (%p118) target = $region16
      $region15: #{cvae_forward.8} parent=11 // pred_region
        _
      $region16: #{cvae_forward.8} parent=11 // pred_fallthru
        _
      // Predicated region
      $region17: #{cvae_forward.8} parent=11 // pred_check
        %p121 = pneg %p77
      $region18: #{cvae_forward.8} parent=11 // pred_check_branch
        %123 = sbr.rel (%p121) target = $region20
      $region19: #{cvae_forward.8} parent=11 // pred_region
        _
      $region20: #{cvae_forward.8} parent=11 // pred_fallthru
        _
    $region12: #{cvae_forward.8} parent=5 // pred_fallthru
      _
    %p124 = scmp.lt.s32.totalorder %s9, 2
    // Predicated region
    $region21: #{cvae_forward.8} parent=5 // pred_check
      %p125 = pneg %p124
    $region22: #{cvae_forward.8} parent=5 // pred_check_branch
      %127 = sbr.rel (%p125) target = $region24
    $region23: #{cvae_forward.8} parent=5 // pred_region
      // Predicated region
      $region25: #{cvae_forward.8} parent=23 // pred_check
        %p128 = pneg %p29
      $region26: #{cvae_forward.8} parent=23 // pred_check_branch
        %130 = sbr.rel (%p128) target = $region28
      $region27: #{cvae_forward.8} parent=23 // pred_region
        %p131 = scmp.lt.s32.totalorder %s9, 1
        %s132 = scalar_select %p131, %s9, 1
        %s133 = smul.addr %s132, 20
        %s134 = smul.addr %s133, 4
        %s135 = scalar_lea.vmem %s0, %s134
      $region28: #{cvae_forward.8} parent=23 // pred_fallthru
        _
    $region24: #{cvae_forward.8} parent=5 // pred_fallthru
      _
    %p136 = scmp.le.s32.totalorder 1, %s9
    %p137 = scmp.lt.s32.totalorder %s9, 3
    %p138 = pnand %p136, %p137
    %p139 = pneg %p138
    // Predicated region
    $region29: #{cvae_forward.8} parent=5 // pred_check
      _
    $region30: #{cvae_forward.8} parent=5 // pred_check_branch
      %141 = sbr.rel (%p138) target = $region32
    $region31: #{cvae_forward.8} parent=5 // pred_region
      %s142 = ssub.s32 %s9, 1
      %p143 = scmp.lt.s32.totalorder %s14, 1
      %s144 = scalar_select %p143, %s14, 1
      %s145 = smul.addr %s144, 20
      %s146 = smul.addr %s145, 4
      %s147 = scalar_lea.vmem %s0, %s146
      %p148 = pneg %p35
      %p149 = pneg %p32
      %p150 = pneg %p56
      %p151 = pneg %p53
      %p152 = pneg %p77
      %p153 = pneg %p74
      %p154 = pneg %p103
      %p155 = pneg %p100
      %s156 = smul.u32 8, %s14
      %p157 = scmp.lt.s32.totalorder %s156, 15
      %s158 = scalar_select %p157, %s156, 15
      %s159 = smul.addr %s158, 8
      %s160 = scalar_lea.vmem %s3, %s159
      %p161 = scmp.lt.s32.totalorder %s14, 1
      %s162 = scalar_select %p161, %s14, 1
      %s163 = smul.addr %s162, 20
      %s164 = smul.addr %s163, 4
      %s165 = scalar_lea.vmem %s0, %s164
      %s166 = smul.u32 8, %s14
      %p167 = scmp.lt.s32.totalorder %s166, 15
      %s168 = scalar_select %p167, %s166, 15
      %s169 = smul.addr %s168, 8
      %s170 = scalar_lea.vmem %s3, %s169
      %s171 = smul.u32 8, %s14
      %v173 = vld [vmem:[%s165] sm:$0xf]
      %v174 = vld [vmem:[%s165 + $0x4] sm:$0x1]
      %v175 = vld [vmem:[%s165 + $0x8] sm:$0xf]
      %v176 = vld [vmem:[%s165 + $0xc] sm:$0x1]
      %v177 = vld [vmem:[%s165 + $0x10] sm:$0xf]
      %v178 = vld [vmem:[%s165 + $0x14] sm:$0x1]
      %v179 = vld [vmem:[%s165 + $0x18] sm:$0xf]
      %v180 = vld [vmem:[%s165 + $0x1c] sm:$0x1]
      %v181 = vld [vmem:[%s165 + $0x20] sm:$0xf]
      %v182 = vld [vmem:[%s165 + $0x24] sm:$0x1]
      %v183 = vld [vmem:[%s165 + $0x28] sm:$0xf]
      %v184 = vld [vmem:[%s165 + $0x2c] sm:$0x1]
      %v185 = vld [vmem:[%s165 + $0x30] sm:$0xf]
      %v186 = vld [vmem:[%s165 + $0x34] sm:$0x1]
      %v187 = vld [vmem:[%s165 + $0x38] sm:$0xf]
      %v188 = vld [vmem:[%s165 + $0x3c] sm:$0x1]
      %v189 = vld [vmem:[%s165 + $0x40] sm:$0xf]
      %v190 = vld [vmem:[%s165 + $0x44] sm:$0x1]
      %v191 = vld [vmem:[%s165 + $0x48] sm:$0xf]
      %v192 = vld [vmem:[%s165 + $0x4c] sm:$0x1]
      %v193 = vld [vmem:[%s1] sm:$0xf]
      %v194 = vld [vmem:[%s1 + $0x4] sm:$0xf]
      %v195 = vld [vmem:[%s1 + $0x8] sm:$0xf]
      %v196 = vld [vmem:[%s1 + $0xc] sm:$0xf]
      %vm197 = vsmask.f32 3328
      %vm198 = vsmask.f32 7440
      %vm199 = vmor %vm197, %vm198
      %v201 = vshrl.u32 %v173, 16
      %v203 = vrot.slane %v201, 4
      %v204 = vshll.u32 %v173, 16
      %v206 = vrot.slane %v204, 5
      %v207 = vor.u32 %v203, %v206
      %v208 = vrot.slane %v207, 4
      %v210 = vshll.u32 %v174, 16
      %v212 = vrot.slane %v210, 5
      %v213 = vsel %vm199, %v208, %v212
      %v215 = vshrl.u32 %v175, 16
      %v217 = vrot.slane %v215, 4
      %v218 = vshll.u32 %v175, 16
      %v220 = vrot.slane %v218, 5
      %v221 = vor.u32 %v217, %v220
      %v222 = vrot.slane %v221, 4
      %v224 = vshll.u32 %v176, 16
      %v226 = vrot.slane %v224, 5
      %v227 = vsel %vm199, %v222, %v226
      %v229 = vshrl.u32 %v177, 16
      %v231 = vrot.slane %v229, 4
      %v232 = vshll.u32 %v177, 16
      %v234 = vrot.slane %v232, 5
      %v235 = vor.u32 %v231, %v234
      %v236 = vrot.slane %v235, 4
      %v238 = vshll.u32 %v178, 16
      %v240 = vrot.slane %v238, 5
      %v241 = vsel %vm199, %v236, %v240
      %v243 = vshrl.u32 %v179, 16
      %v245 = vrot.slane %v243, 4
      %v246 = vshll.u32 %v179, 16
      %v248 = vrot.slane %v246, 5
      %v249 = vor.u32 %v245, %v248
      %v250 = vrot.slane %v249, 4
      %v252 = vshll.u32 %v180, 16
      %v254 = vrot.slane %v252, 5
      %v255 = vsel %vm199, %v250, %v254
      %v257 = vshrl.u32 %v181, 16
      %v259 = vrot.slane %v257, 4
      %v260 = vshll.u32 %v181, 16
      %v262 = vrot.slane %v260, 5
      %v263 = vor.u32 %v259, %v262
      %v264 = vrot.slane %v263, 4
      %v266 = vshll.u32 %v182, 16
      %v268 = vrot.slane %v266, 5
      %v269 = vsel %vm199, %v264, %v268
      %v271 = vshrl.u32 %v183, 16
      %v273 = vrot.slane %v271, 4
      %v274 = vshll.u32 %v183, 16
      %v276 = vrot.slane %v274, 5
      %v277 = vor.u32 %v273, %v276
      %v278 = vrot.slane %v277, 4
      %v280 = vshll.u32 %v184, 16
      %v282 = vrot.slane %v280, 5
      %v283 = vsel %vm199, %v278, %v282
      %v285 = vshrl.u32 %v185, 16
      %v287 = vrot.slane %v285, 4
      %v288 = vshll.u32 %v185, 16
      %v290 = vrot.slane %v288, 5
      %v291 = vor.u32 %v287, %v290
      %v292 = vrot.slane %v291, 4
      %v294 = vshll.u32 %v186, 16
      %v296 = vrot.slane %v294, 5
      %v297 = vsel %vm199, %v292, %v296
      %v299 = vshrl.u32 %v187, 16
      %v301 = vrot.slane %v299, 4
      %v302 = vshll.u32 %v187, 16
      %v304 = vrot.slane %v302, 5
      %v305 = vor.u32 %v301, %v304
      %v306 = vrot.slane %v305, 4
      %v308 = vshll.u32 %v188, 16
      %v310 = vrot.slane %v308, 5
      %v311 = vsel %vm199, %v306, %v310
      %s312 = scalar_lea.vmem %s1, 16
      %v313 = vld [vmem:[%s312] sm:$0xf]
      %v314 = vld [vmem:[%s312 + $0x4] sm:$0xf]
      %v315 = vld [vmem:[%s312 + $0x8] sm:$0xf]
      %v316 = vld [vmem:[%s312 + $0xc] sm:$0xf]
      %v317 = vunpack.c.l.b16 %v213
      %v318 = vunpack.c.l.b16 %v227
      %v319 = vunpack.c.l.b16 %v241
      %v320 = vunpack.c.l.b16 %v255
      %v321 = vunpack.c.l.b16 %v269
      %v322 = vunpack.c.l.b16 %v283
      %v323 = vunpack.c.l.b16 %v297
      %v324 = vunpack.c.l.b16 %v311
      %v325 = vpack.c.b16 %v318, %v317
      %v326 = vpack.c.b16 %v320, %v319
      %v327 = vpack.c.b16 %v322, %v321
      %v328 = vpack.c.b16 %v324, %v323
      %v333 = vunpack.c.l.b16 %v313
      %v334 = vunpack.c.l.b16 %v314
      %v335 = vunpack.c.l.b16 %v315
      %v336 = vunpack.c.l.b16 %v316
      %v337 = vpack.c.b16 %v334, %v333
      %v338 = vpack.c.b16 %v336, %v335
      %vm341 = vcmask 261120
      %v343 = vsel %vm341, %v325, 0
      %v346 = vsel %vm341, %v326, 0
      %v349 = vsel %vm341, %v327, 0
      %v352 = vsel %vm341, %v328, 0
      %354 = vmatprep.subr.bf16.mxu0 0
      %355 = vmatpush1.bf16.msra.mxu0 %v337
      %356 = vmatprep.subr.bf16.mxu0 0
      %357 = vmatpush1.bf16.msra.mxu0 %v338
      %358 = vmatprep.subr.bf16.mxu0 0
      %359 = vmatpush1.bf16.msra.mxu0 0
      %360 = vmatprep.subr.bf16.mxu0 0
      %361 = vmatpush1.bf16.msra.mxu0 0
      %362 = vmatprep.subr.bf16.mxu0 0
      %363 = vmatpush1.bf16.msra.mxu0 0
      %364 = vmatprep.subr.bf16.mxu0 0
      %365 = vmatpush1.bf16.msra.mxu0 0
      %366 = vmatprep.subr.bf16.mxu0 0
      %367 = vmatpush1.bf16.msra.mxu0 0
      %368 = vmatprep.subr.bf16.mxu0 0
      %369 = vmatpush1.bf16.msra.mxu0 0
      %370 = vmatprep.subr.bf16.mxu0 0
      %371 = vmatpush1.bf16.msra.mxu0 0
      %372 = vmatprep.subr.bf16.mxu0 0
      %373 = vmatpush1.bf16.msra.mxu0 0
      %374 = vmatprep.subr.bf16.mxu0 0
      %375 = vmatpush1.bf16.msra.mxu0 0
      %376 = vmatprep.subr.bf16.mxu0 0
      %377 = vmatpush1.bf16.msra.mxu0 0
      %378 = vmatprep.subr.bf16.mxu0 0
      %379 = vmatpush1.bf16.msra.mxu0 0
      %380 = vmatprep.subr.bf16.mxu0 0
      %381 = vmatpush1.bf16.msra.mxu0 0
      %382 = vmatprep.subr.bf16.mxu0 0
      %383 = vmatpush1.bf16.msra.mxu0 0
      %384 = vmatprep.subr.bf16.mxu0 0
      %385 = vmatpush1.bf16.msra.mxu0 0
      %386 = vmatprep.mubr.bf16.mxu0 0
      %387 = vmatmul.mubr.bf16.gmra.mrb[0].mxu0 %v343
      %v388 = vpop.f32.mrb[0].mxu0
      %v389 = vadd.f32 0.0, %v388
      %v390 = vpop.f32.mrb[0].mxu0
      %v391 = vpop.f32.mrb[0].mxu0
      %v392 = vadd.f32 0.0, %v391
      %v393 = vpop.f32.mrb[0].mxu0
      %394 = vmatprep.mubr.bf16.mxu0 0
      %395 = vmatmul.mubr.bf16.gmra.mrb[0].mxu0 %v346
      %v396 = vpop.f32.mrb[0].mxu0
      %v397 = vadd.f32 0.0, %v396
      %v398 = vpop.f32.mrb[0].mxu0
      %v399 = vpop.f32.mrb[0].mxu0
      %v400 = vadd.f32 0.0, %v399
      %v401 = vpop.f32.mrb[0].mxu0
      %402 = vmatprep.mubr.bf16.mxu0 0
      %403 = vmatmul.mubr.bf16.gmra.mrb[0].mxu0 %v349
      %v404 = vpop.f32.mrb[0].mxu0
      %v405 = vadd.f32 0.0, %v404
      %v406 = vpop.f32.mrb[0].mxu0
      %v407 = vpop.f32.mrb[0].mxu0
      %v408 = vadd.f32 0.0, %v407
      %v409 = vpop.f32.mrb[0].mxu0
      %410 = vmatprep.mubr.bf16.mxu0 0
      %411 = vmatmul.mubr.bf16.gmra.mrb[0].mxu0 %v352
      %v412 = vpop.f32.mrb[0].mxu0
      %v413 = vadd.f32 0.0, %v412
      %v414 = vpop.f32.mrb[0].mxu0
      %v415 = vpop.f32.mrb[0].mxu0
      %v416 = vadd.f32 0.0, %v415
      %v417 = vpop.f32.mrb[0].mxu0
      %418 = vdwg.mxu0
      %v427 = vunpack.c.l.b16 %v173
      %v428 = vunpack.c.l.b16 %v175
      %v429 = vunpack.c.l.b16 %v177
      %v430 = vunpack.c.l.b16 %v179
      %v431 = vunpack.c.l.b16 %v181
      %v432 = vunpack.c.l.b16 %v183
      %v433 = vunpack.c.l.b16 %v185
      %v434 = vunpack.c.l.b16 %v187
      %v435 = vpack.c.b16 %v428, %v427
      %v436 = vpack.c.b16 %v430, %v429
      %v437 = vpack.c.b16 %v432, %v431
      %v438 = vpack.c.b16 %v434, %v433
      %v443 = vunpack.c.l.b16 %v193
      %v444 = vunpack.c.l.b16 %v194
      %v445 = vunpack.c.l.b16 %v195
      %v446 = vunpack.c.l.b16 %v196
      %v447 = vpack.c.b16 %v444, %v443
      %v448 = vpack.c.b16 %v446, %v445
      %v452 = vsel %vm341, %v435, 0
      %v455 = vsel %vm341, %v436, 0
      %v458 = vsel %vm341, %v437, 0
      %v461 = vsel %vm341, %v438, 0
      %463 = vmatprep.subr.bf16.mxu0 0
      %464 = vmatpush1.bf16.msra.mxu0 %v447
      %465 = vmatprep.subr.bf16.mxu0 0
      %466 = vmatpush1.bf16.msra.mxu0 %v448
      %467 = vmatprep.subr.bf16.mxu0 0
      %468 = vmatpush1.bf16.msra.mxu0 0
      %469 = vmatprep.subr.bf16.mxu0 0
      %470 = vmatpush1.bf16.msra.mxu0 0
      %471 = vmatprep.subr.bf16.mxu0 0
      %472 = vmatpush1.bf16.msra.mxu0 0
      %473 = vmatprep.subr.bf16.mxu0 0
      %474 = vmatpush1.bf16.msra.mxu0 0
      %475 = vmatprep.subr.bf16.mxu0 0
      %476 = vmatpush1.bf16.msra.mxu0 0
      %477 = vmatprep.subr.bf16.mxu0 0
      %478 = vmatpush1.bf16.msra.mxu0 0
      %479 = vmatprep.subr.bf16.mxu0 0
      %480 = vmatpush1.bf16.msra.mxu0 0
      %481 = vmatprep.subr.bf16.mxu0 0
      %482 = vmatpush1.bf16.msra.mxu0 0
      %483 = vmatprep.subr.bf16.mxu0 0
      %484 = vmatpush1.bf16.msra.mxu0 0
      %485 = vmatprep.subr.bf16.mxu0 0
      %486 = vmatpush1.bf16.msra.mxu0 0
      %487 = vmatprep.subr.bf16.mxu0 0
      %488 = vmatpush1.bf16.msra.mxu0 0
      %489 = vmatprep.subr.bf16.mxu0 0
      %490 = vmatpush1.bf16.msra.mxu0 0
      %491 = vmatprep.subr.bf16.mxu0 0
      %492 = vmatpush1.bf16.msra.mxu0 0
      %493 = vmatprep.subr.bf16.mxu0 0
      %494 = vmatpush1.bf16.msra.mxu0 0
      %495 = vmatprep.mubr.bf16.mxu0 0
      %496 = vmatmul.mubr.bf16.gmra.mrb[0].mxu0 %v452
      %v497 = vpop.f32.mrb[0].mxu0
      %v498 = vadd.f32 %v389, %v497
      %v499 = vpop.f32.mrb[0].mxu0
      %v500 = vpop.f32.mrb[0].mxu0
      %v501 = vadd.f32 %v392, %v500
      %v502 = vpop.f32.mrb[0].mxu0
      %503 = vmatprep.mubr.bf16.mxu0 0
      %504 = vmatmul.mubr.bf16.gmra.mrb[0].mxu0 %v455
      %v505 = vpop.f32.mrb[0].mxu0
      %v506 = vadd.f32 %v397, %v505
      %v507 = vpop.f32.mrb[0].mxu0
      %v508 = vpop.f32.mrb[0].mxu0
      %v509 = vadd.f32 %v400, %v508
      %v510 = vpop.f32.mrb[0].mxu0
      %511 = vmatprep.mubr.bf16.mxu0 0
      %512 = vmatmul.mubr.bf16.gmra.mrb[0].mxu0 %v458
      %v513 = vpop.f32.mrb[0].mxu0
      %v514 = vadd.f32 %v405, %v513
      %v515 = vpop.f32.mrb[0].mxu0
      %v516 = vpop.f32.mrb[0].mxu0
      %v517 = vadd.f32 %v408, %v516
      %v518 = vpop.f32.mrb[0].mxu0
      %519 = vmatprep.mubr.bf16.mxu0 0
      %520 = vmatmul.mubr.bf16.gmra.mrb[0].mxu0 %v461
      %v521 = vpop.f32.mrb[0].mxu0
      %v522 = vadd.f32 %v413, %v521
      %v523 = vpop.f32.mrb[0].mxu0
      %v524 = vpop.f32.mrb[0].mxu0
      %v525 = vadd.f32 %v416, %v524
      %v526 = vpop.f32.mrb[0].mxu0
      %527 = vdwg.mxu0
      %vm536 = vcmask 1042432
      %vm537 = vcmask 1046532
      %vm538 = vmor %vm536, %vm537
      %v539 = vrot.slane %v173, 5
      %v540 = vrot.slane %v539, 4
      %v541 = vrot.slane %v174, 5
      %v542 = vsel %vm538, %v540, %v541
      %v543 = vrot.slane %v175, 5
      %v544 = vrot.slane %v543, 4
      %v545 = vrot.slane %v176, 5
      %v546 = vsel %vm538, %v544, %v545
      %v547 = vrot.slane %v177, 5
      %v548 = vrot.slane %v547, 4
      %v549 = vrot.slane %v178, 5
      %v550 = vsel %vm538, %v548, %v549
      %v551 = vrot.slane %v179, 5
      %v552 = vrot.slane %v551, 4
      %v553 = vrot.slane %v180, 5
      %v554 = vsel %vm538, %v552, %v553
      %v555 = vrot.slane %v181, 5
      %v556 = vrot.slane %v555, 4
      %v557 = vrot.slane %v182, 5
      %v558 = vsel %vm538, %v556, %v557
      %v559 = vrot.slane %v183, 5
      %v560 = vrot.slane %v559, 4
      %v561 = vrot.slane %v184, 5
      %v562 = vsel %vm538, %v560, %v561
      %v563 = vrot.slane %v185, 5
      %v564 = vrot.slane %v563, 4
      %v565 = vrot.slane %v186, 5
      %v566 = vsel %vm538, %v564, %v565
      %v567 = vrot.slane %v187, 5
      %v568 = vrot.slane %v567, 4
      %v569 = vrot.slane %v188, 5
      %v570 = vsel %vm538, %v568, %v569
      %s571 = scalar_lea.vmem %s1, 32
      %v572 = vld [vmem:[%s571] sm:$0xf]
      %v573 = vld [vmem:[%s571 + $0x4] sm:$0xf]
      %v574 = vld [vmem:[%s571 + $0x8] sm:$0xf]
      %v575 = vld [vmem:[%s571 + $0xc] sm:$0xf]
      %v576 = vunpack.c.l.b16 %v542
      %v577 = vunpack.c.l.b16 %v546
      %v578 = vunpack.c.l.b16 %v550
      %v579 = vunpack.c.l.b16 %v554
      %v580 = vunpack.c.l.b16 %v558
      %v581 = vunpack.c.l.b16 %v562
      %v582 = vunpack.c.l.b16 %v566
      %v583 = vunpack.c.l.b16 %v570
      %v584 = vpack.c.b16 %v577, %v576
      %v585 = vpack.c.b16 %v579, %v578
      %v586 = vpack.c.b16 %v581, %v580
      %v587 = vpack.c.b16 %v583, %v582
      %v592 = vunpack.c.l.b16 %v572
      %v593 = vunpack.c.l.b16 %v573
      %v594 = vunpack.c.l.b16 %v574
      %v595 = vunpack.c.l.b16 %v575
      %v596 = vpack.c.b16 %v593, %v592
      %v597 = vpack.c.b16 %v595, %v594
      %v601 = vsel %vm341, %v584, 0
      %v604 = vsel %vm341, %v585, 0
      %v607 = vsel %vm341, %v586, 0
      %v610 = vsel %vm341, %v587, 0
      %612 = vmatprep.subr.bf16.mxu0 0
      %613 = vmatpush1.bf16.msra.mxu0 %v596
      %614 = vmatprep.subr.bf16.mxu0 0
      %615 = vmatpush1.bf16.msra.mxu0 %v597
      %616 = vmatprep.subr.bf16.mxu0 0
      %617 = vmatpush1.bf16.msra.mxu0 0
      %618 = vmatprep.subr.bf16.mxu0 0
      %619 = vmatpush1.bf16.msra.mxu0 0
      %620 = vmatprep.subr.bf16.mxu0 0
      %621 = vmatpush1.bf16.msra.mxu0 0
      %622 = vmatprep.subr.bf16.mxu0 0
      %623 = vmatpush1.bf16.msra.mxu0 0
      %624 = vmatprep.subr.bf16.mxu0 0
      %625 = vmatpush1.bf16.msra.mxu0 0
      %626 = vmatprep.subr.bf16.mxu0 0
      %627 = vmatpush1.bf16.msra.mxu0 0
      %628 = vmatprep.subr.bf16.mxu0 0
      %629 = vmatpush1.bf16.msra.mxu0 0
      %630 = vmatprep.subr.bf16.mxu0 0
      %631 = vmatpush1.bf16.msra.mxu0 0
      %632 = vmatprep.subr.bf16.mxu0 0
      %633 = vmatpush1.bf16.msra.mxu0 0
      %634 = vmatprep.subr.bf16.mxu0 0
      %635 = vmatpush1.bf16.msra.mxu0 0
      %636 = vmatprep.subr.bf16.mxu0 0
      %637 = vmatpush1.bf16.msra.mxu0 0
      %638 = vmatprep.subr.bf16.mxu0 0
      %639 = vmatpush1.bf16.msra.mxu0 0
      %640 = vmatprep.subr.bf16.mxu0 0
      %641 = vmatpush1.bf16.msra.mxu0 0
      %642 = vmatprep.subr.bf16.mxu0 0
      %643 = vmatpush1.bf16.msra.mxu0 0
      %644 = vmatprep.mubr.bf16.mxu0 0
      %645 = vmatmul.mubr.bf16.gmra.mrb[0].mxu0 %v601
      %v646 = vpop.f32.mrb[0].mxu0
      %v647 = vadd.f32 0.0, %v646
      %v648 = vpop.f32.mrb[0].mxu0
      %v649 = vpop.f32.mrb[0].mxu0
      %v650 = vadd.f32 0.0, %v649
      %v651 = vpop.f32.mrb[0].mxu0
      %652 = vmatprep.mubr.bf16.mxu0 0
      %653 = vmatmul.mubr.bf16.gmra.mrb[0].mxu0 %v604
      %v654 = vpop.f32.mrb[0].mxu0
      %v655 = vadd.f32 0.0, %v654
      %v656 = vpop.f32.mrb[0].mxu0
      %v657 = vpop.f32.mrb[0].mxu0
      %v658 = vadd.f32 0.0, %v657
      %v659 = vpop.f32.mrb[0].mxu0
      %660 = vmatprep.mubr.bf16.mxu0 0
      %661 = vmatmul.mubr.bf16.gmra.mrb[0].mxu0 %v607
      %v662 = vpop.f32.mrb[0].mxu0
      %v663 = vadd.f32 0.0, %v662
      %v664 = vpop.f32.mrb[0].mxu0
      %v665 = vpop.f32.mrb[0].mxu0
      %v666 = vadd.f32 0.0, %v665
      %v667 = vpop.f32.mrb[0].mxu0
      %668 = vmatprep.mubr.bf16.mxu0 0
      %669 = vmatmul.mubr.bf16.gmra.mrb[0].mxu0 %v610
      %v670 = vpop.f32.mrb[0].mxu0
      %v671 = vadd.f32 0.0, %v670
      %v672 = vpop.f32.mrb[0].mxu0
      %v673 = vpop.f32.mrb[0].mxu0
      %v674 = vadd.f32 0.0, %v673
      %v675 = vpop.f32.mrb[0].mxu0
      %676 = vdwg.mxu0
      %v677 = vadd.f32 %v498, %v647
      %v678 = vadd.f32 %v501, %v650
      %v679 = vadd.f32 %v506, %v655
      %v680 = vadd.f32 %v509, %v658
      %v681 = vadd.f32 %v514, %v663
      %v682 = vadd.f32 %v517, %v666
      %v683 = vadd.f32 %v522, %v671
      %v684 = vadd.f32 %v525, %v674
      %s685 = scalar_lea.vmem %s1, 48
      %v686 = vld [vmem:[%s685] sm:$0xf]
      %v687 = vld [vmem:[%s685 + $0x4] sm:$0xf]
      %v688 = vld [vmem:[%s685 + $0x8] sm:$0xf]
      %v689 = vld [vmem:[%s685 + $0xc] sm:$0xf]
      %v691 = vunpack.c.l.b16 %v189
      %v692 = vpack.c.b16 %v429, %v428
      %v693 = vpack.c.b16 %v431, %v430
      %v694 = vpack.c.b16 %v433, %v432
      %v695 = vpack.c.b16 %v691, %v434
      %v700 = vunpack.c.l.b16 %v686
      %v701 = vunpack.c.l.b16 %v687
      %v702 = vunpack.c.l.b16 %v688
      %v703 = vunpack.c.l.b16 %v689
      %v704 = vpack.c.b16 %v701, %v700
      %v705 = vpack.c.b16 %v703, %v702
      %v709 = vsel %vm341, %v692, 0
      %v712 = vsel %vm341, %v693, 0
      %v715 = vsel %vm341, %v694, 0
      %v718 = vsel %vm341, %v695, 0
      %720 = vmatprep.subr.bf16.mxu0 0
      %721 = vmatpush1.bf16.msra.mxu0 %v704
      %722 = vmatprep.subr.bf16.mxu0 0
      %723 = vmatpush1.bf16.msra.mxu0 %v705
      %724 = vmatprep.subr.bf16.mxu0 0
      %725 = vmatpush1.bf16.msra.mxu0 0
      %726 = vmatprep.subr.bf16.mxu0 0
      %727 = vmatpush1.bf16.msra.mxu0 0
      %728 = vmatprep.subr.bf16.mxu0 0
      %729 = vmatpush1.bf16.msra.mxu0 0
      %730 = vmatprep.subr.bf16.mxu0 0
      %731 = vmatpush1.bf16.msra.mxu0 0
      %732 = vmatprep.subr.bf16.mxu0 0
      %733 = vmatpush1.bf16.msra.mxu0 0
      %734 = vmatprep.subr.bf16.mxu0 0
      %735 = vmatpush1.bf16.msra.mxu0 0
      %736 = vmatprep.subr.bf16.mxu0 0
      %737 = vmatpush1.bf16.msra.mxu0 0
      %738 = vmatprep.subr.bf16.mxu0 0
      %739 = vmatpush1.bf16.msra.mxu0 0
      %740 = vmatprep.subr.bf16.mxu0 0
      %741 = vmatpush1.bf16.msra.mxu0 0
      %742 = vmatprep.subr.bf16.mxu0 0
      %743 = vmatpush1.bf16.msra.mxu0 0
      %744 = vmatprep.subr.bf16.mxu0 0
      %745 = vmatpush1.bf16.msra.mxu0 0
      %746 = vmatprep.subr.bf16.mxu0 0
      %747 = vmatpush1.bf16.msra.mxu0 0
      %748 = vmatprep.subr.bf16.mxu0 0
      %749 = vmatpush1.bf16.msra.mxu0 0
      %750 = vmatprep.subr.bf16.mxu0 0
      %751 = vmatpush1.bf16.msra.mxu0 0
      %752 = vmatprep.mubr.bf16.mxu0 0
      %753 = vmatmul.mubr.bf16.gmra.mrb[0].mxu0 %v709
      %v754 = vpop.f32.mrb[0].mxu0
      %v755 = vadd.f32 0.0, %v754
      %v756 = vpop.f32.mrb[0].mxu0
      %v757 = vpop.f32.mrb[0].mxu0
      %v758 = vadd.f32 0.0, %v757
      %v759 = vpop.f32.mrb[0].mxu0
      %760 = vmatprep.mubr.bf16.mxu0 0
      %761 = vmatmul.mubr.bf16.gmra.mrb[0].mxu0 %v712
      %v762 = vpop.f32.mrb[0].mxu0
      %v763 = vadd.f32 0.0, %v762
      %v764 = vpop.f32.mrb[0].mxu0
      %v765 = vpop.f32.mrb[0].mxu0
      %v766 = vadd.f32 0.0, %v765
      %v767 = vpop.f32.mrb[0].mxu0
      %768 = vmatprep.mubr.bf16.mxu0 0
      %769 = vmatmul.mubr.bf16.gmra.mrb[0].mxu0 %v715
      %v770 = vpop.f32.mrb[0].mxu0
      %v771 = vadd.f32 0.0, %v770
      %v772 = vpop.f32.mrb[0].mxu0
      %v773 = vpop.f32.mrb[0].mxu0
      %v774 = vadd.f32 0.0, %v773
      %v775 = vpop.f32.mrb[0].mxu0
      %776 = vmatprep.mubr.bf16.mxu0 0
      %777 = vmatmul.mubr.bf16.gmra.mrb[0].mxu0 %v718
      %v778 = vpop.f32.mrb[0].mxu0
      %v779 = vadd.f32 0.0, %v778
      %v780 = vpop.f32.mrb[0].mxu0
      %v781 = vpop.f32.mrb[0].mxu0
      %v782 = vadd.f32 0.0, %v781
      %v783 = vpop.f32.mrb[0].mxu0
      %784 = vdwg.mxu0
      %v785 = vadd.f32 %v677, %v755
      %v786 = vadd.f32 %v678, %v758
      %v787 = vadd.f32 %v679, %v763
      %v788 = vadd.f32 %v680, %v766
      %v789 = vadd.f32 %v681, %v771
      %v790 = vadd.f32 %v682, %v774
      %v791 = vadd.f32 %v683, %v779
      %v792 = vadd.f32 %v684, %v782
      %v794 = vshrl.u32 %v189, 16
      %v796 = vrot.slane %v794, 4
      %v797 = vshll.u32 %v189, 16
      %v799 = vrot.slane %v797, 5
      %v800 = vor.u32 %v796, %v799
      %v801 = vrot.slane %v800, 4
      %v803 = vshll.u32 %v190, 16
      %v805 = vrot.slane %v803, 5
      %v806 = vsel %vm199, %v801, %v805
      %s807 = scalar_lea.vmem %s1, 64
      %v808 = vld [vmem:[%s807] sm:$0xf]
      %v809 = vld [vmem:[%s807 + $0x4] sm:$0xf]
      %v810 = vld [vmem:[%s807 + $0x8] sm:$0xf]
      %v811 = vld [vmem:[%s807 + $0xc] sm:$0xf]
      %v812 = vunpack.c.l.b16 %v806
      %v813 = vpack.c.b16 %v319, %v318
      %v814 = vpack.c.b16 %v321, %v320
      %v815 = vpack.c.b16 %v323, %v322
      %v816 = vpack.c.b16 %v812, %v324
      %v821 = vunpack.c.l.b16 %v808
      %v822 = vunpack.c.l.b16 %v809
      %v823 = vunpack.c.l.b16 %v810
      %v824 = vunpack.c.l.b16 %v811
      %v825 = vpack.c.b16 %v822, %v821
      %v826 = vpack.c.b16 %v824, %v823
      %v830 = vsel %vm341, %v813, 0
      %v833 = vsel %vm341, %v814, 0
      %v836 = vsel %vm341, %v815, 0
      %v839 = vsel %vm341, %v816, 0
      %841 = vmatprep.subr.bf16.mxu0 0
      %842 = vmatpush1.bf16.msra.mxu0 %v825
      %843 = vmatprep.subr.bf16.mxu0 0
      %844 = vmatpush1.bf16.msra.mxu0 %v826
      %845 = vmatprep.subr.bf16.mxu0 0
      %846 = vmatpush1.bf16.msra.mxu0 0
      %847 = vmatprep.subr.bf16.mxu0 0
      %848 = vmatpush1.bf16.msra.mxu0 0
      %849 = vmatprep.subr.bf16.mxu0 0
      %850 = vmatpush1.bf16.msra.mxu0 0
      %851 = vmatprep.subr.bf16.mxu0 0
      %852 = vmatpush1.bf16.msra.mxu0 0
      %853 = vmatprep.subr.bf16.mxu0 0
      %854 = vmatpush1.bf16.msra.mxu0 0
      %855 = vmatprep.subr.bf16.mxu0 0
      %856 = vmatpush1.bf16.msra.mxu0 0
      %857 = vmatprep.subr.bf16.mxu0 0
      %858 = vmatpush1.bf16.msra.mxu0 0
      %859 = vmatprep.subr.bf16.mxu0 0
      %860 = vmatpush1.bf16.msra.mxu0 0
      %861 = vmatprep.subr.bf16.mxu0 0
      %862 = vmatpush1.bf16.msra.mxu0 0
      %863 = vmatprep.subr.bf16.mxu0 0
      %864 = vmatpush1.bf16.msra.mxu0 0
      %865 = vmatprep.subr.bf16.mxu0 0
      %866 = vmatpush1.bf16.msra.mxu0 0
      %867 = vmatprep.subr.bf16.mxu0 0
      %868 = vmatpush1.bf16.msra.mxu0 0
      %869 = vmatprep.subr.bf16.mxu0 0
      %870 = vmatpush1.bf16.msra.mxu0 0
      %871 = vmatprep.subr.bf16.mxu0 0
      %872 = vmatpush1.bf16.msra.mxu0 0
      %873 = vmatprep.mubr.bf16.mxu0 0
      %874 = vmatmul.mubr.bf16.gmra.mrb[0].mxu0 %v830
      %v875 = vpop.f32.mrb[0].mxu0
      %v876 = vadd.f32 0.0, %v875
      %v877 = vpop.f32.mrb[0].mxu0
      %v878 = vpop.f32.mrb[0].mxu0
      %v879 = vadd.f32 0.0, %v878
      %v880 = vpop.f32.mrb[0].mxu0
      %881 = vmatprep.mubr.bf16.mxu0 0
      %882 = vmatmul.mubr.bf16.gmra.mrb[0].mxu0 %v833
      %v883 = vpop.f32.mrb[0].mxu0
      %v884 = vadd.f32 0.0, %v883
      %v885 = vpop.f32.mrb[0].mxu0
      %v886 = vpop.f32.mrb[0].mxu0
      %v887 = vadd.f32 0.0, %v886
      %v888 = vpop.f32.mrb[0].mxu0
      %889 = vmatprep.mubr.bf16.mxu0 0
      %890 = vmatmul.mubr.bf16.gmra.mrb[0].mxu0 %v836
      %v891 = vpop.f32.mrb[0].mxu0
      %v892 = vadd.f32 0.0, %v891
      %v893 = vpop.f32.mrb[0].mxu0
      %v894 = vpop.f32.mrb[0].mxu0
      %v895 = vadd.f32 0.0, %v894
      %v896 = vpop.f32.mrb[0].mxu0
      %897 = vmatprep.mubr.bf16.mxu0 0
      %898 = vmatmul.mubr.bf16.gmra.mrb[0].mxu0 %v839
      %v899 = vpop.f32.mrb[0].mxu0
      %v900 = vadd.f32 0.0, %v899
      %v901 = vpop.f32.mrb[0].mxu0
      %v902 = vpop.f32.mrb[0].mxu0
      %v903 = vadd.f32 0.0, %v902
      %v904 = vpop.f32.mrb[0].mxu0
      %905 = vdwg.mxu0
      %v906 = vadd.f32 %v785, %v876
      %v907 = vadd.f32 %v786, %v879
      %v908 = vadd.f32 %v787, %v884
      %v909 = vadd.f32 %v788, %v887
      %v910 = vadd.f32 %v789, %v892
      %v911 = vadd.f32 %v790, %v895
      %v912 = vadd.f32 %v791, %v900
      %v913 = vadd.f32 %v792, %v903
      %v915 = vrot.slane %v189, 5
      %v916 = vrot.slane %v915, 4
      %v917 = vrot.slane %v190, 5
      %v918 = vsel %vm538, %v916, %v917
      %s919 = scalar_lea.vmem %s1, 80
      %v920 = vld [vmem:[%s919] sm:$0xf]
      %v921 = vld [vmem:[%s919 + $0x4] sm:$0xf]
      %v922 = vld [vmem:[%s919 + $0x8] sm:$0xf]
      %v923 = vld [vmem:[%s919 + $0xc] sm:$0xf]
      %v924 = vunpack.c.l.b16 %v918
      %v925 = vpack.c.b16 %v578, %v577
      %v926 = vpack.c.b16 %v580, %v579
      %v927 = vpack.c.b16 %v582, %v581
      %v928 = vpack.c.b16 %v924, %v583
      %v933 = vunpack.c.l.b16 %v920
      %v934 = vunpack.c.l.b16 %v921
      %v935 = vunpack.c.l.b16 %v922
      %v936 = vunpack.c.l.b16 %v923
      %v937 = vpack.c.b16 %v934, %v933
      %v938 = vpack.c.b16 %v936, %v935
      %v942 = vsel %vm341, %v925, 0
      %v945 = vsel %vm341, %v926, 0
      %v948 = vsel %vm341, %v927, 0
      %v951 = vsel %vm341, %v928, 0
      %953 = vmatprep.subr.bf16.mxu0 0
      %954 = vmatpush1.bf16.msra.mxu0 %v937
      %955 = vmatprep.subr.bf16.mxu0 0
      %956 = vmatpush1.bf16.msra.mxu0 %v938
      %957 = vmatprep.subr.bf16.mxu0 0
      %958 = vmatpush1.bf16.msra.mxu0 0
      %959 = vmatprep.subr.bf16.mxu0 0
      %960 = vmatpush1.bf16.msra.mxu0 0
      %961 = vmatprep.subr.bf16.mxu0 0
      %962 = vmatpush1.bf16.msra.mxu0 0
      %963 = vmatprep.subr.bf16.mxu0 0
      %964 = vmatpush1.bf16.msra.mxu0 0
      %965 = vmatprep.subr.bf16.mxu0 0
      %966 = vmatpush1.bf16.msra.mxu0 0
      %967 = vmatprep.subr.bf16.mxu0 0
      %968 = vmatpush1.bf16.msra.mxu0 0
      %969 = vmatprep.subr.bf16.mxu0 0
      %970 = vmatpush1.bf16.msra.mxu0 0
      %971 = vmatprep.subr.bf16.mxu0 0
      %972 = vmatpush1.bf16.msra.mxu0 0
      %973 = vmatprep.subr.bf16.mxu0 0
      %974 = vmatpush1.bf16.msra.mxu0 0
      %975 = vmatprep.subr.bf16.mxu0 0
      %976 = vmatpush1.bf16.msra.mxu0 0
      %977 = vmatprep.subr.bf16.mxu0 0
      %978 = vmatpush1.bf16.msra.mxu0 0
      %979 = vmatprep.subr.bf16.mxu0 0
      %980 = vmatpush1.bf16.msra.mxu0 0
      %981 = vmatprep.subr.bf16.mxu0 0
      %982 = vmatpush1.bf16.msra.mxu0 0
      %983 = vmatprep.subr.bf16.mxu0 0
      %984 = vmatpush1.bf16.msra.mxu0 0
      %985 = vmatprep.mubr.bf16.mxu0 0
      %986 = vmatmul.mubr.bf16.gmra.mrb[0].mxu0 %v942
      %v987 = vpop.f32.mrb[0].mxu0
      %v988 = vadd.f32 0.0, %v987
      %v989 = vpop.f32.mrb[0].mxu0
      %v990 = vpop.f32.mrb[0].mxu0
      %v991 = vadd.f32 0.0, %v990
      %v992 = vpop.f32.mrb[0].mxu0
      %993 = vmatprep.mubr.bf16.mxu0 0
      %994 = vmatmul.mubr.bf16.gmra.mrb[0].mxu0 %v945
      %v995 = vpop.f32.mrb[0].mxu0
      %v996 = vadd.f32 0.0, %v995
      %v997 = vpop.f32.mrb[0].mxu0
      %v998 = vpop.f32.mrb[0].mxu0
      %v999 = vadd.f32 0.0, %v998
      %v1000 = vpop.f32.mrb[0].mxu0
      %1001 = vmatprep.mubr.bf16.mxu0 0
      %1002 = vmatmul.mubr.bf16.gmra.mrb[0].mxu0 %v948
      %v1003 = vpop.f32.mrb[0].mxu0
      %v1004 = vadd.f32 0.0, %v1003
      %v1005 = vpop.f32.mrb[0].mxu0
      %v1006 = vpop.f32.mrb[0].mxu0
      %v1007 = vadd.f32 0.0, %v1006
      %v1008 = vpop.f32.mrb[0].mxu0
      %1009 = vmatprep.mubr.bf16.mxu0 0
      %1010 = vmatmul.mubr.bf16.gmra.mrb[0].mxu0 %v951
      %v1011 = vpop.f32.mrb[0].mxu0
      %v1012 = vadd.f32 0.0, %v1011
      %v1013 = vpop.f32.mrb[0].mxu0
      %v1014 = vpop.f32.mrb[0].mxu0
      %v1015 = vadd.f32 0.0, %v1014
      %v1016 = vpop.f32.mrb[0].mxu0
      %1017 = vdwg.mxu0
      %v1018 = vadd.f32 %v906, %v988
      %v1019 = vadd.f32 %v907, %v991
      %v1020 = vadd.f32 %v908, %v996
      %v1021 = vadd.f32 %v909, %v999
      %v1022 = vadd.f32 %v910, %v1004
      %v1023 = vadd.f32 %v911, %v1007
      %v1024 = vadd.f32 %v912, %v1012
      %v1025 = vadd.f32 %v913, %v1015
      %s1026 = scalar_lea.vmem %s1, 96
      %v1027 = vld [vmem:[%s1026] sm:$0xf]
      %v1028 = vld [vmem:[%s1026 + $0x4] sm:$0xf]
      %v1029 = vld [vmem:[%s1026 + $0x8] sm:$0xf]
      %v1030 = vld [vmem:[%s1026 + $0xc] sm:$0xf]
      %v1032 = vunpack.c.l.b16 %v191
      %v1033 = vpack.c.b16 %v1032, %v691
      %v1038 = vunpack.c.l.b16 %v1027
      %v1039 = vunpack.c.l.b16 %v1028
      %v1040 = vunpack.c.l.b16 %v1029
      %v1041 = vunpack.c.l.b16 %v1030
      %v1042 = vpack.c.b16 %v1039, %v1038
      %v1043 = vpack.c.b16 %v1041, %v1040
      %v1047 = vsel %vm341, %v1033, 0
      %1049 = vmatprep.subr.bf16.mxu0 0
      %1050 = vmatpush1.bf16.msra.mxu0 %v1042
      %1051 = vmatprep.subr.bf16.mxu0 0
      %1052 = vmatpush1.bf16.msra.mxu0 %v1043
      %1053 = vmatprep.subr.bf16.mxu0 0
      %1054 = vmatpush1.bf16.msra.mxu0 0
      %1055 = vmatprep.subr.bf16.mxu0 0
      %1056 = vmatpush1.bf16.msra.mxu0 0
      %1057 = vmatprep.subr.bf16.mxu0 0
      %1058 = vmatpush1.bf16.msra.mxu0 0
      %1059 = vmatprep.subr.bf16.mxu0 0
      %1060 = vmatpush1.bf16.msra.mxu0 0
      %1061 = vmatprep.subr.bf16.mxu0 0
      %1062 = vmatpush1.bf16.msra.mxu0 0
      %1063 = vmatprep.subr.bf16.mxu0 0
      %1064 = vmatpush1.bf16.msra.mxu0 0
      %1065 = vmatprep.subr.bf16.mxu0 0
      %1066 = vmatpush1.bf16.msra.mxu0 0
      %1067 = vmatprep.subr.bf16.mxu0 0
      %1068 = vmatpush1.bf16.msra.mxu0 0
      %1069 = vmatprep.subr.bf16.mxu0 0
      %1070 = vmatpush1.bf16.msra.mxu0 0
      %1071 = vmatprep.subr.bf16.mxu0 0
      %1072 = vmatpush1.bf16.msra.mxu0 0
      %1073 = vmatprep.subr.bf16.mxu0 0
      %1074 = vmatpush1.bf16.msra.mxu0 0
      %1075 = vmatprep.subr.bf16.mxu0 0
      %1076 = vmatpush1.bf16.msra.mxu0 0
      %1077 = vmatprep.subr.bf16.mxu0 0
      %1078 = vmatpush1.bf16.msra.mxu0 0
      %1079 = vmatprep.subr.bf16.mxu0 0
      %1080 = vmatpush1.bf16.msra.mxu0 0
      %1081 = vmatprep.mubr.bf16.mxu0 0
      %1082 = vmatmul.mubr.bf16.gmra.mrb[0].mxu0 %v455
      %v1083 = vpop.f32.mrb[0].mxu0
      %v1084 = vadd.f32 0.0, %v1083
      %v1085 = vpop.f32.mrb[0].mxu0
      %v1086 = vpop.f32.mrb[0].mxu0
      %v1087 = vadd.f32 0.0, %v1086
      %v1088 = vpop.f32.mrb[0].mxu0
      %1089 = vmatprep.mubr.bf16.mxu0 0
      %1090 = vmatmul.mubr.bf16.gmra.mrb[0].mxu0 %v458
      %v1091 = vpop.f32.mrb[0].mxu0
      %v1092 = vadd.f32 0.0, %v1091
      %v1093 = vpop.f32.mrb[0].mxu0
      %v1094 = vpop.f32.mrb[0].mxu0
      %v1095 = vadd.f32 0.0, %v1094
      %v1096 = vpop.f32.mrb[0].mxu0
      %1097 = vmatprep.mubr.bf16.mxu0 0
      %1098 = vmatmul.mubr.bf16.gmra.mrb[0].mxu0 %v461
      %v1099 = vpop.f32.mrb[0].mxu0
      %v1100 = vadd.f32 0.0, %v1099
      %v1101 = vpop.f32.mrb[0].mxu0
      %v1102 = vpop.f32.mrb[0].mxu0
      %v1103 = vadd.f32 0.0, %v1102
      %v1104 = vpop.f32.mrb[0].mxu0
      %1105 = vmatprep.mubr.bf16.mxu0 0
      %1106 = vmatmul.mubr.bf16.gmra.mrb[0].mxu0 %v1047
      %v1107 = vpop.f32.mrb[0].mxu0
      %v1108 = vadd.f32 0.0, %v1107
      %v1109 = vpop.f32.mrb[0].mxu0
      %v1110 = vpop.f32.mrb[0].mxu0
      %v1111 = vadd.f32 0.0, %v1110
      %v1112 = vpop.f32.mrb[0].mxu0
      %1113 = vdwg.mxu0
      %v1114 = vadd.f32 %v1018, %v1084
      %v1115 = vadd.f32 %v1019, %v1087
      %v1116 = vadd.f32 %v1020, %v1092
      %v1117 = vadd.f32 %v1021, %v1095
      %v1118 = vadd.f32 %v1022, %v1100
      %v1119 = vadd.f32 %v1023, %v1103
      %v1120 = vadd.f32 %v1024, %v1108
      %v1121 = vadd.f32 %v1025, %v1111
      %v1123 = vshrl.u32 %v191, 16
      %v1125 = vrot.slane %v1123, 4
      %v1126 = vshll.u32 %v191, 16
      %v1128 = vrot.slane %v1126, 5
      %v1129 = vor.u32 %v1125, %v1128
      %v1130 = vrot.slane %v1129, 4
      %v1132 = vshll.u32 %v192, 16
      %v1134 = vrot.slane %v1132, 5
      %v1135 = vsel %vm199, %v1130, %v1134
      %s1136 = scalar_lea.vmem %s1, 112
      %v1137 = vld [vmem:[%s1136] sm:$0xf]
      %v1138 = vld [vmem:[%s1136 + $0x4] sm:$0xf]
      %v1139 = vld [vmem:[%s1136 + $0x8] sm:$0xf]
      %v1140 = vld [vmem:[%s1136 + $0xc] sm:$0xf]
      %v1141 = vunpack.c.l.b16 %v1135
      %v1142 = vpack.c.b16 %v1141, %v812
      %v1147 = vunpack.c.l.b16 %v1137
      %v1148 = vunpack.c.l.b16 %v1138
      %v1149 = vunpack.c.l.b16 %v1139
      %v1150 = vunpack.c.l.b16 %v1140
      %v1151 = vpack.c.b16 %v1148, %v1147
      %v1152 = vpack.c.b16 %v1150, %v1149
      %v1156 = vsel %vm341, %v1142, 0
      %1158 = vmatprep.subr.bf16.mxu0 0
      %1159 = vmatpush1.bf16.msra.mxu0 %v1151
      %1160 = vmatprep.subr.bf16.mxu0 0
      %1161 = vmatpush1.bf16.msra.mxu0 %v1152
      %1162 = vmatprep.subr.bf16.mxu0 0
      %1163 = vmatpush1.bf16.msra.mxu0 0
      %1164 = vmatprep.subr.bf16.mxu0 0
      %1165 = vmatpush1.bf16.msra.mxu0 0
      %1166 = vmatprep.subr.bf16.mxu0 0
      %1167 = vmatpush1.bf16.msra.mxu0 0
      %1168 = vmatprep.subr.bf16.mxu0 0
      %1169 = vmatpush1.bf16.msra.mxu0 0
      %1170 = vmatprep.subr.bf16.mxu0 0
      %1171 = vmatpush1.bf16.msra.mxu0 0
      %1172 = vmatprep.subr.bf16.mxu0 0
      %1173 = vmatpush1.bf16.msra.mxu0 0
      %1174 = vmatprep.subr.bf16.mxu0 0
      %1175 = vmatpush1.bf16.msra.mxu0 0
      %1176 = vmatprep.subr.bf16.mxu0 0
      %1177 = vmatpush1.bf16.msra.mxu0 0
      %1178 = vmatprep.subr.bf16.mxu0 0
      %1179 = vmatpush1.bf16.msra.mxu0 0
      %1180 = vmatprep.subr.bf16.mxu0 0
      %1181 = vmatpush1.bf16.msra.mxu0 0
      %1182 = vmatprep.subr.bf16.mxu0 0
      %1183 = vmatpush1.bf16.msra.mxu0 0
      %1184 = vmatprep.subr.bf16.mxu0 0
      %1185 = vmatpush1.bf16.msra.mxu0 0
      %1186 = vmatprep.subr.bf16.mxu0 0
      %1187 = vmatpush1.bf16.msra.mxu0 0
      %1188 = vmatprep.subr.bf16.mxu0 0
      %1189 = vmatpush1.bf16.msra.mxu0 0
      %1190 = vmatprep.mubr.bf16.mxu0 0
      %1191 = vmatmul.mubr.bf16.gmra.mrb[0].mxu0 %v346
      %v1192 = vpop.f32.mrb[0].mxu0
      %v1193 = vadd.f32 0.0, %v1192
      %v1194 = vpop.f32.mrb[0].mxu0
      %v1195 = vpop.f32.mrb[0].mxu0
      %v1196 = vadd.f32 0.0, %v1195
      %v1197 = vpop.f32.mrb[0].mxu0
      %1198 = vmatprep.mubr.bf16.mxu0 0
      %1199 = vmatmul.mubr.bf16.gmra.mrb[0].mxu0 %v349
      %v1200 = vpop.f32.mrb[0].mxu0
      %v1201 = vadd.f32 0.0, %v1200
      %v1202 = vpop.f32.mrb[0].mxu0
      %v1203 = vpop.f32.mrb[0].mxu0
      %v1204 = vadd.f32 0.0, %v1203
      %v1205 = vpop.f32.mrb[0].mxu0
      %1206 = vmatprep.mubr.bf16.mxu0 0
      %1207 = vmatmul.mubr.bf16.gmra.mrb[0].mxu0 %v352
      %v1208 = vpop.f32.mrb[0].mxu0
      %v1209 = vadd.f32 0.0, %v1208
      %v1210 = vpop.f32.mrb[0].mxu0
      %v1211 = vpop.f32.mrb[0].mxu0
      %v1212 = vadd.f32 0.0, %v1211
      %v1213 = vpop.f32.mrb[0].mxu0
      %1214 = vmatprep.mubr.bf16.mxu0 0
      %1215 = vmatmul.mubr.bf16.gmra.mrb[0].mxu0 %v1156
      %v1216 = vpop.f32.mrb[0].mxu0
      %v1217 = vadd.f32 0.0, %v1216
      %v1218 = vpop.f32.mrb[0].mxu0
      %v1219 = vpop.f32.mrb[0].mxu0
      %v1220 = vadd.f32 0.0, %v1219
      %v1221 = vpop.f32.mrb[0].mxu0
      %1222 = vdwg.mxu0
      %v1223 = vadd.f32 %v1114, %v1193
      %v1224 = vadd.f32 %v1115, %v1196
      %v1225 = vadd.f32 %v1116, %v1201
      %v1226 = vadd.f32 %v1117, %v1204
      %v1227 = vadd.f32 %v1118, %v1209
      %v1228 = vadd.f32 %v1119, %v1212
      %v1229 = vadd.f32 %v1120, %v1217
      %v1230 = vadd.f32 %v1121, %v1220
      %v1232 = vrot.slane %v191, 5
      %v1233 = vrot.slane %v1232, 4
      %v1234 = vrot.slane %v192, 5
      %v1235 = vsel %vm538, %v1233, %v1234
      %s1236 = scalar_lea.vmem %s1, 128
      %v1237 = vld [vmem:[%s1236] sm:$0xf]
      %v1238 = vld [vmem:[%s1236 + $0x4] sm:$0xf]
      %v1239 = vld [vmem:[%s1236 + $0x8] sm:$0xf]
      %v1240 = vld [vmem:[%s1236 + $0xc] sm:$0xf]
      %v1241 = vunpack.c.l.b16 %v1235
      %v1242 = vpack.c.b16 %v1241, %v924
      %v1247 = vunpack.c.l.b16 %v1237
      %v1248 = vunpack.c.l.b16 %v1238
      %v1249 = vunpack.c.l.b16 %v1239
      %v1250 = vunpack.c.l.b16 %v1240
      %v1251 = vpack.c.b16 %v1248, %v1247
      %v1252 = vpack.c.b16 %v1250, %v1249
      %v1256 = vsel %vm341, %v1242, 0
      %1258 = vmatprep.subr.bf16.mxu0 0
      %1259 = vmatpush1.bf16.msra.mxu0 %v1251
      %1260 = vmatprep.subr.bf16.mxu0 0
      %1261 = vmatpush1.bf16.msra.mxu0 %v1252
      %1262 = vmatprep.subr.bf16.mxu0 0
      %1263 = vmatpush1.bf16.msra.mxu0 0
      %1264 = vmatprep.subr.bf16.mxu0 0
      %1265 = vmatpush1.bf16.msra.mxu0 0
      %1266 = vmatprep.subr.bf16.mxu0 0
      %1267 = vmatpush1.bf16.msra.mxu0 0
      %1268 = vmatprep.subr.bf16.mxu0 0
      %1269 = vmatpush1.bf16.msra.mxu0 0
      %1270 = vmatprep.subr.bf16.mxu0 0
      %1271 = vmatpush1.bf16.msra.mxu0 0
      %1272 = vmatprep.subr.bf16.mxu0 0
      %1273 = vmatpush1.bf16.msra.mxu0 0
      %1274 = vmatprep.subr.bf16.mxu0 0
      %1275 = vmatpush1.bf16.msra.mxu0 0
      %1276 = vmatprep.subr.bf16.mxu0 0
      %1277 = vmatpush1.bf16.msra.mxu0 0
      %1278 = vmatprep.subr.bf16.mxu0 0
      %1279 = vmatpush1.bf16.msra.mxu0 0
      %1280 = vmatprep.subr.bf16.mxu0 0
      %1281 = vmatpush1.bf16.msra.mxu0 0
      %1282 = vmatprep.subr.bf16.mxu0 0
      %1283 = vmatpush1.bf16.msra.mxu0 0
      %1284 = vmatprep.subr.bf16.mxu0 0
      %1285 = vmatpush1.bf16.msra.mxu0 0
      %1286 = vmatprep.subr.bf16.mxu0 0
      %1287 = vmatpush1.bf16.msra.mxu0 0
      %1288 = vmatprep.subr.bf16.mxu0 0
      %1289 = vmatpush1.bf16.msra.mxu0 0
      %1290 = vmatprep.mubr.bf16.mxu0 0
      %1291 = vmatmul.mubr.bf16.gmra.mrb[0].mxu0 %v604
      %v1292 = vpop.f32.mrb[0].mxu0
      %v1293 = vadd.f32 0.0, %v1292
      %v1294 = vpop.f32.mrb[0].mxu0
      %v1295 = vpop.f32.mrb[0].mxu0
      %v1296 = vadd.f32 0.0, %v1295
      %v1297 = vpop.f32.mrb[0].mxu0
      %1298 = vmatprep.mubr.bf16.mxu0 0
      %1299 = vmatmul.mubr.bf16.gmra.mrb[0].mxu0 %v607
      %v1300 = vpop.f32.mrb[0].mxu0
      %v1301 = vadd.f32 0.0, %v1300
      %v1302 = vpop.f32.mrb[0].mxu0
      %v1303 = vpop.f32.mrb[0].mxu0
      %v1304 = vadd.f32 0.0, %v1303
      %v1305 = vpop.f32.mrb[0].mxu0
      %1306 = vmatprep.mubr.bf16.mxu0 0
      %1307 = vmatmul.mubr.bf16.gmra.mrb[0].mxu0 %v610
      %v1308 = vpop.f32.mrb[0].mxu0
      %v1309 = vadd.f32 0.0, %v1308
      %v1310 = vpop.f32.mrb[0].mxu0
      %v1311 = vpop.f32.mrb[0].mxu0
      %v1312 = vadd.f32 0.0, %v1311
      %v1313 = vpop.f32.mrb[0].mxu0
      %1314 = vmatprep.mubr.bf16.mxu0 0
      %1315 = vmatmul.mubr.bf16.gmra.mrb[0].mxu0 %v1256
      %v1316 = vpop.f32.mrb[0].mxu0
      %v1317 = vadd.f32 0.0, %v1316
      %v1318 = vpop.f32.mrb[0].mxu0
      %v1319 = vpop.f32.mrb[0].mxu0
      %v1320 = vadd.f32 0.0, %v1319
      %v1321 = vpop.f32.mrb[0].mxu0
      %1322 = vdwg.mxu0
      %v1323 = vadd.f32 %v1223, %v1293
      %v1324 = vadd.f32 %v1224, %v1296
      %v1325 = vadd.f32 %v1225, %v1301
      %v1326 = vadd.f32 %v1226, %v1304
      %v1327 = vadd.f32 %v1227, %v1309
      %v1328 = vadd.f32 %v1228, %v1312
      %v1329 = vadd.f32 %v1229, %v1317
      %v1330 = vadd.f32 %v1230, %v1320
      %v1331 = vld [vmem:[%s2] sm:$0x1]
      %v1333 = vlaneseq
      %v1334 = vshrl.u32 %v1333, 7
      %v1335 = vsub.s32 0, %v1334
      %v1336 = vrot.slane %v1331, %v1335
      %v1338 = vadd.f32 %v1323, %v1336
      %v1339 = vadd.f32 %v1324, %v1336
      %v1340 = vadd.f32 %v1325, %v1336
      %v1341 = vadd.f32 %v1326, %v1336
      %v1342 = vadd.f32 %v1327, %v1336
      %v1343 = vadd.f32 %v1328, %v1336
      %v1344 = vadd.f32 %v1329, %v1336
      %v1345 = vadd.f32 %v1330, %v1336
      %v1346 = vmax.f32 %v1338, 0.0
      %v1347 = vmax.f32 %v1339, 0.0
      %v1348 = vmax.f32 %v1340, 0.0
      %v1349 = vmax.f32 %v1341, 0.0
      %v1350 = vmax.f32 %v1342, 0.0
      %v1351 = vmax.f32 %v1343, 0.0
      %v1352 = vmax.f32 %v1344, 0.0
      %v1353 = vmax.f32 %v1345, 0.0
      %1354 = vst [vmem:[%s170] sm:$0xff] %v1346
      %1355 = vst [vmem:[%s170 + $0x8] sm:$0xff] %v1347
      %1356 = vst [vmem:[%s170 + $0x10] sm:$0xff] %v1348
      %1357 = vst [vmem:[%s170 + $0x18] sm:$0xff] %v1349
      %1358 = vst [vmem:[%s170 + $0x20] sm:$0xff] %v1350
      %1359 = vst [vmem:[%s170 + $0x28] sm:$0xff] %v1351
      %1360 = vst [vmem:[%s170 + $0x30] sm:$0xff] %v1352
      %1361 = vst [vmem:[%s170 + $0x38] sm:$0xff] %v1353
      %s1362 = smul.u32 8, %s14
      %p1363 = scmp.lt.s32.totalorder %s1362, 15
      %s1364 = scalar_select %p1363, %s1362, 15
      %s1365 = smul.addr %s1364, 8
      %s1366 = scalar_lea.vmem %s3, %s1365
      // Predicated region
      $region33: #{cvae_forward.8} parent=31 // pred_check
        %p1367 = pneg %p100
      $region34: #{cvae_forward.8} parent=31 // pred_check_branch
        %1369 = sbr.rel (%p1367) target = $region36
      $region35: #{cvae_forward.8} parent=31 // pred_region
        %s1370 = smul.u32 8, %s14
      $region36: #{cvae_forward.8} parent=31 // pred_fallthru
        _
    $region32: #{cvae_forward.8} parent=5 // pred_fallthru
      _
    %p1371 = scmp.le.s32.totalorder 2, %s9
    // Predicated region
    $region37: #{cvae_forward.8} parent=5 // pred_check
      %p1372 = pneg %p1371
    $region38: #{cvae_forward.8} parent=5 // pred_check_branch
      %1374 = sbr.rel (%p1372) target = $region40
    $region39: #{cvae_forward.8} parent=5 // pred_region
      %s1375 = ssub.s32 %s9, 2
      // Predicated region
      $region41: #{cvae_forward.8} parent=39 // pred_check
        %p1376 = pneg %p106
      $region42: #{cvae_forward.8} parent=39 // pred_check_branch
        %1378 = sbr.rel (%p1376) target = $region44
      $region43: #{cvae_forward.8} parent=39 // pred_region
        %s1379 = smul.u32 8, %s15
        %p1380 = scmp.lt.s32.totalorder %s1379, 15
        %s1381 = scalar_select %p1380, %s1379, 15
        %s1382 = smul.addr %s1381, 8
        %s1383 = scalar_lea.vmem %s3, %s1382
      $region44: #{cvae_forward.8} parent=39 // pred_fallthru
        _
    $region40: #{cvae_forward.8} parent=5 // pred_fallthru
      _
  $region6: #{cvae_forward.8} parent=0 // loop_footer
    %s13 = sadd.s32 1, %s9
  $region7: #{cvae_forward.8} parent=0 // loop_footer_branch
    %8 = sbr.rel target = $region3
  $region8: #{cvae_forward.8} parent=0 // loop_exit
    _

// kernel: cvae_forward.7
$region0: #{cvae_forward.7}
  #allocation0 [shape = 'u32[]', space=smem, size = 0x4, offset = 0x4, fixed_abs, tag = 'smem constant byte address 0x4 - core index']
  #allocation1 [shape = 'u32[144,128]{1,0:T(1,128)}', space=vmem, size = 0x12000, scoped, tag = 'internal scratch']
  %s0 = inlined_call_operand.vmem [shape: bf16[2,2048], index: 0, kind: input, shape index: {}]
  %s1 = inlined_call_operand.vmem [shape: bf16[2048,32], index: 1, kind: input, shape index: {}]
  %s2 = inlined_call_operand.vmem [shape: f32[1,32], index: 2, kind: input, shape index: {}]
  %s3 = inlined_call_operand.vmem [shape: f32[2,16], index: 3, kind: input, shape index: {}]
  %s4 = inlined_call_operand.vmem [shape: bf16[16,2048], index: 4, kind: input, shape index: {}]
  %s5 = inlined_call_operand.vmem [shape: f32[1,2048], index: 5, kind: input, shape index: {}]
  %s6 = inlined_call_operand.hbm [shape: f32[2,16], index: 6, kind: output, shape index: {0}]
  %s7 = inlined_call_operand.hbm [shape: f32[2,16], index: 7, kind: output, shape index: {1}]
  %s8 = inlined_call_operand.vmem [shape: f32[2,2048], index: 8, kind: output, shape index: {2}]
  %9 = xla_tuple %s6, %s7, %s8
  %s10 = sld [smem:[#allocation0]]
  $region50: #{cvae_forward.7} parent=0
    _
  %s12 = ssub.s32 1, %s10
  %s13 = scalar_select 0, %s12, %s10
  $region1: #{cvae_forward.7} parent=0
    #allocation2 [shape = 'u8[1024]{0}', space=vmem, size = 0x400, scoped, tag = 'output window, operand 0, single buffered']
    #allocation3 [shape = 's32[1]{0}', space=sflag, size = 0x4, scoped, tag = 'scoped memory for cvae_forward.7']
    #allocation4 [shape = 'u8[1024]{0}', space=vmem, size = 0x400, scoped, tag = 'output window, operand 1, single buffered']
    #allocation5 [shape = 's32[1]{0}', space=sflag, size = 0x4, scoped, tag = 'scoped memory for cvae_forward.7']
    %14 = vsyncpa [#allocation3], 0
    %15 = vsyncpa [#allocation5], 0
    // Predicated region
    $region2: #{cvae_forward.7} parent=1 // pred_check
      _
    $region3: #{cvae_forward.7} parent=1 // pred_check_branch
      %17 = sbr.rel (0) target = $region5
    $region4: #{cvae_forward.7} parent=1 // pred_region
      _
    $region5: #{cvae_forward.7} parent=1 // pred_fallthru
      _
    // Predicated region
    $region6: #{cvae_forward.7} parent=1 // pred_check
      _
    $region7: #{cvae_forward.7} parent=1 // pred_check_branch
      %19 = sbr.rel (0) target = $region9
    $region8: #{cvae_forward.7} parent=1 // pred_region
      _
    $region9: #{cvae_forward.7} parent=1 // pred_fallthru
      _
    // Predicated region
    $region10: #{cvae_forward.7} parent=1 // pred_check
      _
    $region11: #{cvae_forward.7} parent=1 // pred_check_branch
      %21 = sbr.rel (0) target = $region13
    $region12: #{cvae_forward.7} parent=1 // pred_region
      _
    $region13: #{cvae_forward.7} parent=1 // pred_fallthru
      _
    // Predicated region
    $region14: #{cvae_forward.7} parent=1 // pred_check
      _
    $region15: #{cvae_forward.7} parent=1 // pred_check_branch
      %23 = sbr.rel (0) target = $region17
    $region16: #{cvae_forward.7} parent=1 // pred_region
      _
    $region17: #{cvae_forward.7} parent=1 // pred_fallthru
      _
    // Predicated region
    $region18: #{cvae_forward.7} parent=1 // pred_check
      _
    $region19: #{cvae_forward.7} parent=1 // pred_check_branch
      %25 = sbr.rel (0) target = $region21
    $region20: #{cvae_forward.7} parent=1 // pred_region
      _
    $region21: #{cvae_forward.7} parent=1 // pred_fallthru
      _
    // Predicated region
    $region22: #{cvae_forward.7} parent=1 // pred_check
      _
    $region23: #{cvae_forward.7} parent=1 // pred_check_branch
      %27 = sbr.rel (0) target = $region25
    $region24: #{cvae_forward.7} parent=1 // pred_region
      _
    $region25: #{cvae_forward.7} parent=1 // pred_fallthru
      _
    %v29 = vld [vmem:[%s0] sm:$0xff]
    %v30 = vld [vmem:[%s0 + $0x8] sm:$0xff]
    %v31 = vld [vmem:[%s1] sm:$0xf]
    %v32 = vld [vmem:[%s1 + $0x4] sm:$0xf]
    %v33 = vld [vmem:[%s1 + $0x8] sm:$0xf]
    %v34 = vld [vmem:[%s1 + $0xc] sm:$0xf]
    %v35 = vld [vmem:[%s1 + $0x10] sm:$0xf]
    %v36 = vld [vmem:[%s1 + $0x14] sm:$0xf]
    %v37 = vld [vmem:[%s1 + $0x18] sm:$0xf]
    %v38 = vld [vmem:[%s1 + $0x1c] sm:$0xf]
    %v39 = vld [vmem:[%s1 + $0x20] sm:$0xf]
    %v40 = vld [vmem:[%s1 + $0x24] sm:$0xf]
    %v41 = vld [vmem:[%s1 + $0x28] sm:$0xf]
    %v42 = vld [vmem:[%s1 + $0x2c] sm:$0xf]
    %v43 = vld [vmem:[%s1 + $0x30] sm:$0xf]
    %v44 = vld [vmem:[%s1 + $0x34] sm:$0xf]
    %v45 = vld [vmem:[%s1 + $0x38] sm:$0xf]
    %v46 = vld [vmem:[%s1 + $0x3c] sm:$0xf]
    %v47 = vld [vmem:[%s1 + $0x40] sm:$0xf]
    %v48 = vld [vmem:[%s1 + $0x44] sm:$0xf]
    %v49 = vld [vmem:[%s1 + $0x48] sm:$0xf]
    %v50 = vld [vmem:[%s1 + $0x4c] sm:$0xf]
    %v51 = vld [vmem:[%s1 + $0x50] sm:$0xf]
    %v52 = vld [vmem:[%s1 + $0x54] sm:$0xf]
    %v53 = vld [vmem:[%s1 + $0x58] sm:$0xf]
    %v54 = vld [vmem:[%s1 + $0x5c] sm:$0xf]
    %v55 = vld [vmem:[%s1 + $0x60] sm:$0xf]
    %v56 = vld [vmem:[%s1 + $0x64] sm:$0xf]
    %v57 = vld [vmem:[%s1 + $0x68] sm:$0xf]
    %v58 = vld [vmem:[%s1 + $0x6c] sm:$0xf]
    %v59 = vld [vmem:[%s1 + $0x70] sm:$0xf]
    %v60 = vld [vmem:[%s1 + $0x74] sm:$0xf]
    %v61 = vld [vmem:[%s1 + $0x78] sm:$0xf]
    %v62 = vld [vmem:[%s1 + $0x7c] sm:$0xf]
    %v63 = vld [vmem:[%s1 + $0x80] sm:$0xf]
    %v64 = vld [vmem:[%s1 + $0x84] sm:$0xf]
    %v65 = vld [vmem:[%s1 + $0x88] sm:$0xf]
    %v66 = vld [vmem:[%s1 + $0x8c] sm:$0xf]
    %v67 = vld [vmem:[%s1 + $0x90] sm:$0xf]
    %v68 = vld [vmem:[%s1 + $0x94] sm:$0xf]
    %v69 = vld [vmem:[%s1 + $0x98] sm:$0xf]
    %v70 = vld [vmem:[%s1 + $0x9c] sm:$0xf]
    %v71 = vld [vmem:[%s1 + $0xa0] sm:$0xf]
    %v72 = vld [vmem:[%s1 + $0xa4] sm:$0xf]
    %v73 = vld [vmem:[%s1 + $0xa8] sm:$0xf]
    %v74 = vld [vmem:[%s1 + $0xac] sm:$0xf]
    %v75 = vld [vmem:[%s1 + $0xb0] sm:$0xf]
    %v76 = vld [vmem:[%s1 + $0xb4] sm:$0xf]
    %v77 = vld [vmem:[%s1 + $0xb8] sm:$0xf]
    %v78 = vld [vmem:[%s1 + $0xbc] sm:$0xf]
    %v79 = vld [vmem:[%s1 + $0xc0] sm:$0xf]
    %v80 = vld [vmem:[%s1 + $0xc4] sm:$0xf]
    %v81 = vld [vmem:[%s1 + $0xc8] sm:$0xf]
    %v82 = vld [vmem:[%s1 + $0xcc] sm:$0xf]
    %v83 = vld [vmem:[%s1 + $0xd0] sm:$0xf]
    %v84 = vld [vmem:[%s1 + $0xd4] sm:$0xf]
    %v85 = vld [vmem:[%s1 + $0xd8] sm:$0xf]
    %v86 = vld [vmem:[%s1 + $0xdc] sm:$0xf]
    %v87 = vld [vmem:[%s1 + $0xe0] sm:$0xf]
    %v88 = vld [vmem:[%s1 + $0xe4] sm:$0xf]
    %v89 = vld [vmem:[%s1 + $0xe8] sm:$0xf]
    %v90 = vld [vmem:[%s1 + $0xec] sm:$0xf]
    %v91 = vld [vmem:[%s1 + $0xf0] sm:$0xf]
    %v92 = vld [vmem:[%s1 + $0xf4] sm:$0xf]
    %v93 = vld [vmem:[%s1 + $0xf8] sm:$0xf]
    %v94 = vld [vmem:[%s1 + $0xfc] sm:$0xf]
    %v95 = vld [vmem:[%s1 + $0x100] sm:$0xf]
    %v96 = vld [vmem:[%s1 + $0x104] sm:$0xf]
    %v97 = vld [vmem:[%s1 + $0x108] sm:$0xf]
    %v98 = vld [vmem:[%s1 + $0x10c] sm:$0xf]
    %v99 = vld [vmem:[%s1 + $0x110] sm:$0xf]
    %v100 = vld [vmem:[%s1 + $0x114] sm:$0xf]
    %v101 = vld [vmem:[%s1 + $0x118] sm:$0xf]
    %v102 = vld [vmem:[%s1 + $0x11c] sm:$0xf]
    %v103 = vld [vmem:[%s1 + $0x120] sm:$0xf]
    %v104 = vld [vmem:[%s1 + $0x124] sm:$0xf]
    %v105 = vld [vmem:[%s1 + $0x128] sm:$0xf]
    %v106 = vld [vmem:[%s1 + $0x12c] sm:$0xf]
    %v107 = vld [vmem:[%s1 + $0x130] sm:$0xf]
    %v108 = vld [vmem:[%s1 + $0x134] sm:$0xf]
    %v109 = vld [vmem:[%s1 + $0x138] sm:$0xf]
    %v110 = vld [vmem:[%s1 + $0x13c] sm:$0xf]
    %v111 = vld [vmem:[%s1 + $0x140] sm:$0xf]
    %v112 = vld [vmem:[%s1 + $0x144] sm:$0xf]
    %v113 = vld [vmem:[%s1 + $0x148] sm:$0xf]
    %v114 = vld [vmem:[%s1 + $0x14c] sm:$0xf]
    %v115 = vld [vmem:[%s1 + $0x150] sm:$0xf]
    %v116 = vld [vmem:[%s1 + $0x154] sm:$0xf]
    %v117 = vld [vmem:[%s1 + $0x158] sm:$0xf]
    %v118 = vld [vmem:[%s1 + $0x15c] sm:$0xf]
    %v119 = vld [vmem:[%s1 + $0x160] sm:$0xf]
    %v120 = vld [vmem:[%s1 + $0x164] sm:$0xf]
    %v121 = vld [vmem:[%s1 + $0x168] sm:$0xf]
    %v122 = vld [vmem:[%s1 + $0x16c] sm:$0xf]
    %v123 = vld [vmem:[%s1 + $0x170] sm:$0xf]
    %v124 = vld [vmem:[%s1 + $0x174] sm:$0xf]
    %v125 = vld [vmem:[%s1 + $0x178] sm:$0xf]
    %v126 = vld [vmem:[%s1 + $0x17c] sm:$0xf]
    %v127 = vld [vmem:[%s1 + $0x180] sm:$0xf]
    %v128 = vld [vmem:[%s1 + $0x184] sm:$0xf]
    %v129 = vld [vmem:[%s1 + $0x188] sm:$0xf]
    %v130 = vld [vmem:[%s1 + $0x18c] sm:$0xf]
    %v131 = vld [vmem:[%s1 + $0x190] sm:$0xf]
    %v132 = vld [vmem:[%s1 + $0x194] sm:$0xf]
    %v133 = vld [vmem:[%s1 + $0x198] sm:$0xf]
    %v134 = vld [vmem:[%s1 + $0x19c] sm:$0xf]
    %v135 = vld [vmem:[%s1 + $0x1a0] sm:$0xf]
    %v136 = vld [vmem:[%s1 + $0x1a4] sm:$0xf]
    %v137 = vld [vmem:[%s1 + $0x1a8] sm:$0xf]
    %v138 = vld [vmem:[%s1 + $0x1ac] sm:$0xf]
    %v139 = vld [vmem:[%s1 + $0x1b0] sm:$0xf]
    %v140 = vld [vmem:[%s1 + $0x1b4] sm:$0xf]
    %v141 = vld [vmem:[%s1 + $0x1b8] sm:$0xf]
    %v142 = vld [vmem:[%s1 + $0x1bc] sm:$0xf]
    %v143 = vld [vmem:[%s1 + $0x1c0] sm:$0xf]
    %v144 = vld [vmem:[%s1 + $0x1c4] sm:$0xf]
    %v145 = vld [vmem:[%s1 + $0x1c8] sm:$0xf]
    %v146 = vld [vmem:[%s1 + $0x1cc] sm:$0xf]
    %v147 = vld [vmem:[%s1 + $0x1d0] sm:$0xf]
    %v148 = vld [vmem:[%s1 + $0x1d4] sm:$0xf]
    %v149 = vld [vmem:[%s1 + $0x1d8] sm:$0xf]
    %v150 = vld [vmem:[%s1 + $0x1dc] sm:$0xf]
    %v151 = vld [vmem:[%s1 + $0x1e0] sm:$0xf]
    %v152 = vld [vmem:[%s1 + $0x1e4] sm:$0xf]
    %v153 = vld [vmem:[%s1 + $0x1e8] sm:$0xf]
    %v154 = vld [vmem:[%s1 + $0x1ec] sm:$0xf]
    %v155 = vld [vmem:[%s1 + $0x1f0] sm:$0xf]
    %v156 = vld [vmem:[%s1 + $0x1f4] sm:$0xf]
    %v157 = vld [vmem:[%s1 + $0x1f8] sm:$0xf]
    %v158 = vld [vmem:[%s1 + $0x1fc] sm:$0xf]
    %v159 = vld [vmem:[%s1 + $0x200] sm:$0xf]
    %v160 = vld [vmem:[%s1 + $0x204] sm:$0xf]
    %v161 = vld [vmem:[%s1 + $0x208] sm:$0xf]
    %v162 = vld [vmem:[%s1 + $0x20c] sm:$0xf]
    %v163 = vld [vmem:[%s1 + $0x210] sm:$0xf]
    %v164 = vld [vmem:[%s1 + $0x214] sm:$0xf]
    %v165 = vld [vmem:[%s1 + $0x218] sm:$0xf]
    %v166 = vld [vmem:[%s1 + $0x21c] sm:$0xf]
    %v167 = vld [vmem:[%s1 + $0x220] sm:$0xf]
    %v168 = vld [vmem:[%s1 + $0x224] sm:$0xf]
    %v169 = vld [vmem:[%s1 + $0x228] sm:$0xf]
    %v170 = vld [vmem:[%s1 + $0x22c] sm:$0xf]
    %v171 = vld [vmem:[%s1 + $0x230] sm:$0xf]
    %v172 = vld [vmem:[%s1 + $0x234] sm:$0xf]
    %v173 = vld [vmem:[%s1 + $0x238] sm:$0xf]
    %v174 = vld [vmem:[%s1 + $0x23c] sm:$0xf]
    %v175 = vld [vmem:[%s1 + $0x240] sm:$0xf]
    %v176 = vld [vmem:[%s1 + $0x244] sm:$0xf]
    %v177 = vld [vmem:[%s1 + $0x248] sm:$0xf]
    %v178 = vld [vmem:[%s1 + $0x24c] sm:$0xf]
    %v179 = vld [vmem:[%s1 + $0x250] sm:$0xf]
    %v180 = vld [vmem:[%s1 + $0x254] sm:$0xf]
    %v181 = vld [vmem:[%s1 + $0x258] sm:$0xf]
    %v182 = vld [vmem:[%s1 + $0x25c] sm:$0xf]
    %v183 = vld [vmem:[%s1 + $0x260] sm:$0xf]
    %v184 = vld [vmem:[%s1 + $0x264] sm:$0xf]
    %v185 = vld [vmem:[%s1 + $0x268] sm:$0xf]
    %v186 = vld [vmem:[%s1 + $0x26c] sm:$0xf]
    %v187 = vld [vmem:[%s1 + $0x270] sm:$0xf]
    %v188 = vld [vmem:[%s1 + $0x274] sm:$0xf]
    %v189 = vld [vmem:[%s1 + $0x278] sm:$0xf]
    %v190 = vld [vmem:[%s1 + $0x27c] sm:$0xf]
    %v191 = vld [vmem:[%s1 + $0x280] sm:$0xf]
    %v192 = vld [vmem:[%s1 + $0x284] sm:$0xf]
    %v193 = vld [vmem:[%s1 + $0x288] sm:$0xf]
    %v194 = vld [vmem:[%s1 + $0x28c] sm:$0xf]
    %v195 = vld [vmem:[%s1 + $0x290] sm:$0xf]
    %v196 = vld [vmem:[%s1 + $0x294] sm:$0xf]
    %v197 = vld [vmem:[%s1 + $0x298] sm:$0xf]
    %v198 = vld [vmem:[%s1 + $0x29c] sm:$0xf]
    %v199 = vld [vmem:[%s1 + $0x2a0] sm:$0xf]
    %v200 = vld [vmem:[%s1 + $0x2a4] sm:$0xf]
    %v201 = vld [vmem:[%s1 + $0x2a8] sm:$0xf]
    %v202 = vld [vmem:[%s1 + $0x2ac] sm:$0xf]
    %v203 = vld [vmem:[%s1 + $0x2b0] sm:$0xf]
    %v204 = vld [vmem:[%s1 + $0x2b4] sm:$0xf]
    %v205 = vld [vmem:[%s1 + $0x2b8] sm:$0xf]
    %v206 = vld [vmem:[%s1 + $0x2bc] sm:$0xf]
    %v207 = vld [vmem:[%s1 + $0x2c0] sm:$0xf]
    %v208 = vld [vmem:[%s1 + $0x2c4] sm:$0xf]
    %v209 = vld [vmem:[%s1 + $0x2c8] sm:$0xf]
    %v210 = vld [vmem:[%s1 + $0x2cc] sm:$0xf]
    %v211 = vld [vmem:[%s1 + $0x2d0] sm:$0xf]
    %v212 = vld [vmem:[%s1 + $0x2d4] sm:$0xf]
    %v213 = vld [vmem:[%s1 + $0x2d8] sm:$0xf]
    %v214 = vld [vmem:[%s1 + $0x2dc] sm:$0xf]
    %v215 = vld [vmem:[%s1 + $0x2e0] sm:$0xf]
    %v216 = vld [vmem:[%s1 + $0x2e4] sm:$0xf]
    %v217 = vld [vmem:[%s1 + $0x2e8] sm:$0xf]
    %v218 = vld [vmem:[%s1 + $0x2ec] sm:$0xf]
    %v219 = vld [vmem:[%s1 + $0x2f0] sm:$0xf]
    %v220 = vld [vmem:[%s1 + $0x2f4] sm:$0xf]
    %v221 = vld [vmem:[%s1 + $0x2f8] sm:$0xf]
    %v222 = vld [vmem:[%s1 + $0x2fc] sm:$0xf]
    %v223 = vld [vmem:[%s1 + $0x300] sm:$0xf]
    %v224 = vld [vmem:[%s1 + $0x304] sm:$0xf]
    %v225 = vld [vmem:[%s1 + $0x308] sm:$0xf]
    %v226 = vld [vmem:[%s1 + $0x30c] sm:$0xf]
    %v227 = vld [vmem:[%s1 + $0x310] sm:$0xf]
    %v228 = vld [vmem:[%s1 + $0x314] sm:$0xf]
    %v229 = vld [vmem:[%s1 + $0x318] sm:$0xf]
    %v230 = vld [vmem:[%s1 + $0x31c] sm:$0xf]
    %v231 = vld [vmem:[%s1 + $0x320] sm:$0xf]
    %v232 = vld [vmem:[%s1 + $0x324] sm:$0xf]
    %v233 = vld [vmem:[%s1 + $0x328] sm:$0xf]
    %v234 = vld [vmem:[%s1 + $0x32c] sm:$0xf]
    %v235 = vld [vmem:[%s1 + $0x330] sm:$0xf]
    %v236 = vld [vmem:[%s1 + $0x334] sm:$0xf]
    %v237 = vld [vmem:[%s1 + $0x338] sm:$0xf]
    %v238 = vld [vmem:[%s1 + $0x33c] sm:$0xf]
    %v239 = vld [vmem:[%s1 + $0x340] sm:$0xf]
    %v240 = vld [vmem:[%s1 + $0x344] sm:$0xf]
    %v241 = vld [vmem:[%s1 + $0x348] sm:$0xf]
    %v242 = vld [vmem:[%s1 + $0x34c] sm:$0xf]
    %v243 = vld [vmem:[%s1 + $0x350] sm:$0xf]
    %v244 = vld [vmem:[%s1 + $0x354] sm:$0xf]
    %v245 = vld [vmem:[%s1 + $0x358] sm:$0xf]
    %v246 = vld [vmem:[%s1 + $0x35c] sm:$0xf]
    %v247 = vld [vmem:[%s1 + $0x360] sm:$0xf]
    %v248 = vld [vmem:[%s1 + $0x364] sm:$0xf]
    %v249 = vld [vmem:[%s1 + $0x368] sm:$0xf]
    %v250 = vld [vmem:[%s1 + $0x36c] sm:$0xf]
    %v251 = vld [vmem:[%s1 + $0x370] sm:$0xf]
    %v252 = vld [vmem:[%s1 + $0x374] sm:$0xf]
    %v253 = vld [vmem:[%s1 + $0x378] sm:$0xf]
    %v254 = vld [vmem:[%s1 + $0x37c] sm:$0xf]
    %v255 = vld [vmem:[%s1 + $0x380] sm:$0xf]
    %v256 = vld [vmem:[%s1 + $0x384] sm:$0xf]
    %v257 = vld [vmem:[%s1 + $0x388] sm:$0xf]
    %v258 = vld [vmem:[%s1 + $0x38c] sm:$0xf]
    %v259 = vld [vmem:[%s1 + $0x390] sm:$0xf]
    %v260 = vld [vmem:[%s1 + $0x394] sm:$0xf]
    %v261 = vld [vmem:[%s1 + $0x398] sm:$0xf]
    %v262 = vld [vmem:[%s1 + $0x39c] sm:$0xf]
    %v263 = vld [vmem:[%s1 + $0x3a0] sm:$0xf]
    %v264 = vld [vmem:[%s1 + $0x3a4] sm:$0xf]
    %v265 = vld [vmem:[%s1 + $0x3a8] sm:$0xf]
    %v266 = vld [vmem:[%s1 + $0x3ac] sm:$0xf]
    %v267 = vld [vmem:[%s1 + $0x3b0] sm:$0xf]
    %v268 = vld [vmem:[%s1 + $0x3b4] sm:$0xf]
    %v269 = vld [vmem:[%s1 + $0x3b8] sm:$0xf]
    %v270 = vld [vmem:[%s1 + $0x3bc] sm:$0xf]
    %v271 = vld [vmem:[%s1 + $0x3c0] sm:$0xf]
    %v272 = vld [vmem:[%s1 + $0x3c4] sm:$0xf]
    %v273 = vld [vmem:[%s1 + $0x3c8] sm:$0xf]
    %v274 = vld [vmem:[%s1 + $0x3cc] sm:$0xf]
    %v275 = vld [vmem:[%s1 + $0x3d0] sm:$0xf]
    %v276 = vld [vmem:[%s1 + $0x3d4] sm:$0xf]
    %v277 = vld [vmem:[%s1 + $0x3d8] sm:$0xf]
    %v278 = vld [vmem:[%s1 + $0x3dc] sm:$0xf]
    %v279 = vld [vmem:[%s1 + $0x3e0] sm:$0xf]
    %v280 = vld [vmem:[%s1 + $0x3e4] sm:$0xf]
    %v281 = vld [vmem:[%s1 + $0x3e8] sm:$0xf]
    %v282 = vld [vmem:[%s1 + $0x3ec] sm:$0xf]
    %v283 = vld [vmem:[%s1 + $0x3f0] sm:$0xf]
    %v284 = vld [vmem:[%s1 + $0x3f4] sm:$0xf]
    %v285 = vld [vmem:[%s1 + $0x3f8] sm:$0xf]
    %v286 = vld [vmem:[%s1 + $0x3fc] sm:$0xf]
    %v287 = vld [vmem:[%s2] sm:$0x1]
    %v289 = vlaneseq
    %v290 = vshrl.u32 %v289, 7
    %v291 = vsub.s32 0, %v290
    %v292 = vrot.slane %v287, %v291
    %v296 = vcombine.high %v29, %v29
    %v298 = vunpack.c.l.s4 1966171168
    %v299 = vunpack.c.0.s8 %v298
    %v300 = vlaneseq
    %v301 = vshrl.u32 %v300, 7
    %v302 = vsub.s32 %v299, %v301
    %v303 = vrot.slane %v29, %v302
    %v305 = vunpack.c.l.s4 1966171168
    %v306 = vunpack.c.0.s8 %v305
    %v307 = vlaneseq
    %v308 = vshrl.u32 %v307, 7
    %v309 = vsub.s32 %v306, %v308
    %v310 = vrot.slane %v296, %v309
    %v311 = vcombine.high %v303, %v303
    %v312 = vcombine.high %v310, %v310
    %v314 = vunpack.c.l.s4 1966171168
    %v315 = vunpack.c.0.s8 %v314
    %v316 = vlaneseq
    %v317 = vshrl.u32 %v316, 7
    %v318 = vsub.s32 %v315, %v317
    %v319 = vrot.slane %v303, %v318
    %v321 = vunpack.c.l.s4 1966171168
    %v322 = vunpack.c.0.s8 %v321
    %v323 = vlaneseq
    %v324 = vshrl.u32 %v323, 7
    %v325 = vsub.s32 %v322, %v324
    %v326 = vrot.slane %v310, %v325
    %v328 = vunpack.c.l.s4 1966171168
    %v329 = vunpack.c.0.s8 %v328
    %v330 = vlaneseq
    %v331 = vshrl.u32 %v330, 7
    %v332 = vsub.s32 %v329, %v331
    %v333 = vrot.slane %v311, %v332
    %v335 = vunpack.c.l.s4 1966171168
    %v336 = vunpack.c.0.s8 %v335
    %v337 = vlaneseq
    %v338 = vshrl.u32 %v337, 7
    %v339 = vsub.s32 %v336, %v338
    %v340 = vrot.slane %v312, %v339
    %v341 = vcombine.high %v319, %v319
    %v342 = vcombine.high %v326, %v326
    %v343 = vcombine.high %v333, %v333
    %v344 = vcombine.high %v340, %v340
    %v345 = vcombine.high %v30, %v30
    %v347 = vunpack.c.l.s4 1966171168
    %v348 = vunpack.c.0.s8 %v347
    %v349 = vlaneseq
    %v350 = vshrl.u32 %v349, 7
    %v351 = vsub.s32 %v348, %v350
    %v352 = vrot.slane %v30, %v351
    %v354 = vunpack.c.l.s4 1966171168
    %v355 = vunpack.c.0.s8 %v354
    %v356 = vlaneseq
    %v357 = vshrl.u32 %v356, 7
    %v358 = vsub.s32 %v355, %v357
    %v359 = vrot.slane %v345, %v358
    %v360 = vcombine.high %v352, %v352
    %v361 = vcombine.high %v359, %v359
    %v363 = vunpack.c.l.s4 1966171168
    %v364 = vunpack.c.0.s8 %v363
    %v365 = vlaneseq
    %v366 = vshrl.u32 %v365, 7
    %v367 = vsub.s32 %v364, %v366
    %v368 = vrot.slane %v352, %v367
    %v370 = vunpack.c.l.s4 1966171168
    %v371 = vunpack.c.0.s8 %v370
    %v372 = vlaneseq
    %v373 = vshrl.u32 %v372, 7
    %v374 = vsub.s32 %v371, %v373
    %v375 = vrot.slane %v359, %v374
    %v377 = vunpack.c.l.s4 1966171168
    %v378 = vunpack.c.0.s8 %v377
    %v379 = vlaneseq
    %v380 = vshrl.u32 %v379, 7
    %v381 = vsub.s32 %v378, %v380
    %v382 = vrot.slane %v360, %v381
    %v384 = vunpack.c.l.s4 1966171168
    %v385 = vunpack.c.0.s8 %v384
    %v386 = vlaneseq
    %v387 = vshrl.u32 %v386, 7
    %v388 = vsub.s32 %v385, %v387
    %v389 = vrot.slane %v361, %v388
    %v390 = vcombine.high %v368, %v368
    %v391 = vcombine.high %v375, %v375
    %v392 = vcombine.high %v382, %v382
    %v393 = vcombine.high %v389, %v389
    %v666 = vunpack.c.l.b16 %v31
    %v667 = vunpack.c.l.b16 %v32
    %v668 = vunpack.c.l.b16 %v33
    %v669 = vunpack.c.l.b16 %v34
    %v670 = vunpack.c.l.b16 %v35
    %v671 = vunpack.c.l.b16 %v36
    %v672 = vunpack.c.l.b16 %v37
    %v673 = vunpack.c.l.b16 %v38
    %v674 = vunpack.c.l.b16 %v39
    %v675 = vunpack.c.l.b16 %v40
    %v676 = vunpack.c.l.b16 %v41
    %v677 = vunpack.c.l.b16 %v42
    %v678 = vunpack.c.l.b16 %v43
    %v679 = vunpack.c.l.b16 %v44
    %v680 = vunpack.c.l.b16 %v45
    %v681 = vunpack.c.l.b16 %v46
    %v682 = vunpack.c.l.b16 %v47
    %v683 = vunpack.c.l.b16 %v48
    %v684 = vunpack.c.l.b16 %v49
    %v685 = vunpack.c.l.b16 %v50
    %v686 = vunpack.c.l.b16 %v51
    %v687 = vunpack.c.l.b16 %v52
    %v688 = vunpack.c.l.b16 %v53
    %v689 = vunpack.c.l.b16 %v54
    %v690 = vunpack.c.l.b16 %v55
    %v691 = vunpack.c.l.b16 %v56
    %v692 = vunpack.c.l.b16 %v57
    %v693 = vunpack.c.l.b16 %v58
    %v694 = vunpack.c.l.b16 %v59
    %v695 = vunpack.c.l.b16 %v60
    %v696 = vunpack.c.l.b16 %v61
    %v697 = vunpack.c.l.b16 %v62
    %v698 = vunpack.c.l.b16 %v63
    %v699 = vunpack.c.l.b16 %v64
    %v700 = vunpack.c.l.b16 %v65
    %v701 = vunpack.c.l.b16 %v66
    %v702 = vunpack.c.l.b16 %v67
    %v703 = vunpack.c.l.b16 %v68
    %v704 = vunpack.c.l.b16 %v69
    %v705 = vunpack.c.l.b16 %v70
    %v706 = vunpack.c.l.b16 %v71
    %v707 = vunpack.c.l.b16 %v72
    %v708 = vunpack.c.l.b16 %v73
    %v709 = vunpack.c.l.b16 %v74
    %v710 = vunpack.c.l.b16 %v75
    %v711 = vunpack.c.l.b16 %v76
    %v712 = vunpack.c.l.b16 %v77
    %v713 = vunpack.c.l.b16 %v78
    %v714 = vunpack.c.l.b16 %v79
    %v715 = vunpack.c.l.b16 %v80
    %v716 = vunpack.c.l.b16 %v81
    %v717 = vunpack.c.l.b16 %v82
    %v718 = vunpack.c.l.b16 %v83
    %v719 = vunpack.c.l.b16 %v84
    %v720 = vunpack.c.l.b16 %v85
    %v721 = vunpack.c.l.b16 %v86
    %v722 = vunpack.c.l.b16 %v87
    %v723 = vunpack.c.l.b16 %v88
    %v724 = vunpack.c.l.b16 %v89
    %v725 = vunpack.c.l.b16 %v90
    %v726 = vunpack.c.l.b16 %v91
    %v727 = vunpack.c.l.b16 %v92
    %v728 = vunpack.c.l.b16 %v93
    %v729 = vunpack.c.l.b16 %v94
    %v730 = vunpack.c.l.b16 %v95
    %v731 = vunpack.c.l.b16 %v96
    %v732 = vunpack.c.l.b16 %v97
    %v733 = vunpack.c.l.b16 %v98
    %v734 = vunpack.c.l.b16 %v99
    %v735 = vunpack.c.l.b16 %v100
    %v736 = vunpack.c.l.b16 %v101
    %v737 = vunpack.c.l.b16 %v102
    %v738 = vunpack.c.l.b16 %v103
    %v739 = vunpack.c.l.b16 %v104
    %v740 = vunpack.c.l.b16 %v105
    %v741 = vunpack.c.l.b16 %v106
    %v742 = vunpack.c.l.b16 %v107
    %v743 = vunpack.c.l.b16 %v108
    %v744 = vunpack.c.l.b16 %v109
    %v745 = vunpack.c.l.b16 %v110
    %v746 = vunpack.c.l.b16 %v111
    %v747 = vunpack.c.l.b16 %v112
    %v748 = vunpack.c.l.b16 %v113
    %v749 = vunpack.c.l.b16 %v114
    %v750 = vunpack.c.l.b16 %v115
    %v751 = vunpack.c.l.b16 %v116
    %v752 = vunpack.c.l.b16 %v117
    %v753 = vunpack.c.l.b16 %v118
    %v754 = vunpack.c.l.b16 %v119
    %v755 = vunpack.c.l.b16 %v120
    %v756 = vunpack.c.l.b16 %v121
    %v757 = vunpack.c.l.b16 %v122
    %v758 = vunpack.c.l.b16 %v123
    %v759 = vunpack.c.l.b16 %v124
    %v760 = vunpack.c.l.b16 %v125
    %v761 = vunpack.c.l.b16 %v126
    %v762 = vunpack.c.l.b16 %v127
    %v763 = vunpack.c.l.b16 %v128
    %v764 = vunpack.c.l.b16 %v129
    %v765 = vunpack.c.l.b16 %v130
    %v766 = vunpack.c.l.b16 %v131
    %v767 = vunpack.c.l.b16 %v132
    %v768 = vunpack.c.l.b16 %v133
    %v769 = vunpack.c.l.b16 %v134
    %v770 = vunpack.c.l.b16 %v135
    %v771 = vunpack.c.l.b16 %v136
    %v772 = vunpack.c.l.b16 %v137
    %v773 = vunpack.c.l.b16 %v138
    %v774 = vunpack.c.l.b16 %v139
    %v775 = vunpack.c.l.b16 %v140
    %v776 = vunpack.c.l.b16 %v141
    %v777 = vunpack.c.l.b16 %v142
    %v778 = vunpack.c.l.b16 %v143
    %v779 = vunpack.c.l.b16 %v144
    %v780 = vunpack.c.l.b16 %v145
    %v781 = vunpack.c.l.b16 %v146
    %v782 = vunpack.c.l.b16 %v147
    %v783 = vunpack.c.l.b16 %v148
    %v784 = vunpack.c.l.b16 %v149
    %v785 = vunpack.c.l.b16 %v150
    %v786 = vunpack.c.l.b16 %v151
    %v787 = vunpack.c.l.b16 %v152
    %v788 = vunpack.c.l.b16 %v153
    %v789 = vunpack.c.l.b16 %v154
    %v790 = vunpack.c.l.b16 %v155
    %v791 = vunpack.c.l.b16 %v156
    %v792 = vunpack.c.l.b16 %v157
    %v793 = vunpack.c.l.b16 %v158
    %v794 = vunpack.c.l.b16 %v159
    %v795 = vunpack.c.l.b16 %v160
    %v796 = vunpack.c.l.b16 %v161
    %v797 = vunpack.c.l.b16 %v162
    %v798 = vunpack.c.l.b16 %v163
    %v799 = vunpack.c.l.b16 %v164
    %v800 = vunpack.c.l.b16 %v165
    %v801 = vunpack.c.l.b16 %v166
    %v802 = vunpack.c.l.b16 %v167
    %v803 = vunpack.c.l.b16 %v168
    %v804 = vunpack.c.l.b16 %v169
    %v805 = vunpack.c.l.b16 %v170
    %v806 = vunpack.c.l.b16 %v171
    %v807 = vunpack.c.l.b16 %v172
    %v808 = vunpack.c.l.b16 %v173
    %v809 = vunpack.c.l.b16 %v174
    %v810 = vunpack.c.l.b16 %v175
    %v811 = vunpack.c.l.b16 %v176
    %v812 = vunpack.c.l.b16 %v177
    %v813 = vunpack.c.l.b16 %v178
    %v814 = vunpack.c.l.b16 %v179
    %v815 = vunpack.c.l.b16 %v180
    %v816 = vunpack.c.l.b16 %v181
    %v817 = vunpack.c.l.b16 %v182
    %v818 = vunpack.c.l.b16 %v183
    %v819 = vunpack.c.l.b16 %v184
    %v820 = vunpack.c.l.b16 %v185
    %v821 = vunpack.c.l.b16 %v186
    %v822 = vunpack.c.l.b16 %v187
    %v823 = vunpack.c.l.b16 %v188
    %v824 = vunpack.c.l.b16 %v189
    %v825 = vunpack.c.l.b16 %v190
    %v826 = vunpack.c.l.b16 %v191
    %v827 = vunpack.c.l.b16 %v192
    %v828 = vunpack.c.l.b16 %v193
    %v829 = vunpack.c.l.b16 %v194
    %v830 = vunpack.c.l.b16 %v195
    %v831 = vunpack.c.l.b16 %v196
    %v832 = vunpack.c.l.b16 %v197
    %v833 = vunpack.c.l.b16 %v198
    %v834 = vunpack.c.l.b16 %v199
    %v835 = vunpack.c.l.b16 %v200
    %v836 = vunpack.c.l.b16 %v201
    %v837 = vunpack.c.l.b16 %v202
    %v838 = vunpack.c.l.b16 %v203
    %v839 = vunpack.c.l.b16 %v204
    %v840 = vunpack.c.l.b16 %v205
    %v841 = vunpack.c.l.b16 %v206
    %v842 = vunpack.c.l.b16 %v207
    %v843 = vunpack.c.l.b16 %v208
    %v844 = vunpack.c.l.b16 %v209
    %v845 = vunpack.c.l.b16 %v210
    %v846 = vunpack.c.l.b16 %v211
    %v847 = vunpack.c.l.b16 %v212
    %v848 = vunpack.c.l.b16 %v213
    %v849 = vunpack.c.l.b16 %v214
    %v850 = vunpack.c.l.b16 %v215
    %v851 = vunpack.c.l.b16 %v216
    %v852 = vunpack.c.l.b16 %v217
    %v853 = vunpack.c.l.b16 %v218
    %v854 = vunpack.c.l.b16 %v219
    %v855 = vunpack.c.l.b16 %v220
    %v856 = vunpack.c.l.b16 %v221
    %v857 = vunpack.c.l.b16 %v222
    %v858 = vunpack.c.l.b16 %v223
    %v859 = vunpack.c.l.b16 %v224
    %v860 = vunpack.c.l.b16 %v225
    %v861 = vunpack.c.l.b16 %v226
    %v862 = vunpack.c.l.b16 %v227
    %v863 = vunpack.c.l.b16 %v228
    %v864 = vunpack.c.l.b16 %v229
    %v865 = vunpack.c.l.b16 %v230
    %v866 = vunpack.c.l.b16 %v231
    %v867 = vunpack.c.l.b16 %v232
    %v868 = vunpack.c.l.b16 %v233
    %v869 = vunpack.c.l.b16 %v234
    %v870 = vunpack.c.l.b16 %v235
    %v871 = vunpack.c.l.b16 %v236
    %v872 = vunpack.c.l.b16 %v237
    %v873 = vunpack.c.l.b16 %v238
    %v874 = vunpack.c.l.b16 %v239
    %v875 = vunpack.c.l.b16 %v240
    %v876 = vunpack.c.l.b16 %v241
    %v877 = vunpack.c.l.b16 %v242
    %v878 = vunpack.c.l.b16 %v243
    %v879 = vunpack.c.l.b16 %v244
    %v880 = vunpack.c.l.b16 %v245
    %v881 = vunpack.c.l.b16 %v246
    %v882 = vunpack.c.l.b16 %v247
    %v883 = vunpack.c.l.b16 %v248
    %v884 = vunpack.c.l.b16 %v249
    %v885 = vunpack.c.l.b16 %v250
    %v886 = vunpack.c.l.b16 %v251
    %v887 = vunpack.c.l.b16 %v252
    %v888 = vunpack.c.l.b16 %v253
    %v889 = vunpack.c.l.b16 %v254
    %v890 = vunpack.c.l.b16 %v255
    %v891 = vunpack.c.l.b16 %v256
    %v892 = vunpack.c.l.b16 %v257
    %v893 = vunpack.c.l.b16 %v258
    %v894 = vunpack.c.l.b16 %v259
    %v895 = vunpack.c.l.b16 %v260
    %v896 = vunpack.c.l.b16 %v261
    %v897 = vunpack.c.l.b16 %v262
    %v898 = vunpack.c.l.b16 %v263
    %v899 = vunpack.c.l.b16 %v264
    %v900 = vunpack.c.l.b16 %v265
    %v901 = vunpack.c.l.b16 %v266
    %v902 = vunpack.c.l.b16 %v267
    %v903 = vunpack.c.l.b16 %v268
    %v904 = vunpack.c.l.b16 %v269
    %v905 = vunpack.c.l.b16 %v270
    %v906 = vunpack.c.l.b16 %v271
    %v907 = vunpack.c.l.b16 %v272
    %v908 = vunpack.c.l.b16 %v273
    %v909 = vunpack.c.l.b16 %v274
    %v910 = vunpack.c.l.b16 %v275
    %v911 = vunpack.c.l.b16 %v276
    %v912 = vunpack.c.l.b16 %v277
    %v913 = vunpack.c.l.b16 %v278
    %v914 = vunpack.c.l.b16 %v279
    %v915 = vunpack.c.l.b16 %v280
    %v916 = vunpack.c.l.b16 %v281
    %v917 = vunpack.c.l.b16 %v282
    %v918 = vunpack.c.l.b16 %v283
    %v919 = vunpack.c.l.b16 %v284
    %v920 = vunpack.c.l.b16 %v285
    %v921 = vunpack.c.l.b16 %v286
    %v922 = vpack.c.b16 %v667, %v666
    %v923 = vpack.c.b16 %v669, %v668
    %v924 = vpack.c.b16 %v671, %v670
    %v925 = vpack.c.b16 %v673, %v672
    %v926 = vpack.c.b16 %v675, %v674
    %v927 = vpack.c.b16 %v677, %v676
    %v928 = vpack.c.b16 %v679, %v678
    %v929 = vpack.c.b16 %v681, %v680
    %v930 = vpack.c.b16 %v683, %v682
    %v931 = vpack.c.b16 %v685, %v684
    %v932 = vpack.c.b16 %v687, %v686
    %v933 = vpack.c.b16 %v689, %v688
    %v934 = vpack.c.b16 %v691, %v690
    %v935 = vpack.c.b16 %v693, %v692
    %v936 = vpack.c.b16 %v695, %v694
    %v937 = vpack.c.b16 %v697, %v696
    %v938 = vpack.c.b16 %v699, %v698
    %v939 = vpack.c.b16 %v701, %v700
    %v940 = vpack.c.b16 %v703, %v702
    %v941 = vpack.c.b16 %v705, %v704
    %v942 = vpack.c.b16 %v707, %v706
    %v943 = vpack.c.b16 %v709, %v708
    %v944 = vpack.c.b16 %v711, %v710
    %v945 = vpack.c.b16 %v713, %v712
    %v946 = vpack.c.b16 %v715, %v714
    %v947 = vpack.c.b16 %v717, %v716
    %v948 = vpack.c.b16 %v719, %v718
    %v949 = vpack.c.b16 %v721, %v720
    %v950 = vpack.c.b16 %v723, %v722
    %v951 = vpack.c.b16 %v725, %v724
    %v952 = vpack.c.b16 %v727, %v726
    %v953 = vpack.c.b16 %v729, %v728
    %v954 = vpack.c.b16 %v731, %v730
    %v955 = vpack.c.b16 %v733, %v732
    %v956 = vpack.c.b16 %v735, %v734
    %v957 = vpack.c.b16 %v737, %v736
    %v958 = vpack.c.b16 %v739, %v738
    %v959 = vpack.c.b16 %v741, %v740
    %v960 = vpack.c.b16 %v743, %v742
    %v961 = vpack.c.b16 %v745, %v744
    %v962 = vpack.c.b16 %v747, %v746
    %v963 = vpack.c.b16 %v749, %v748
    %v964 = vpack.c.b16 %v751, %v750
    %v965 = vpack.c.b16 %v753, %v752
    %v966 = vpack.c.b16 %v755, %v754
    %v967 = vpack.c.b16 %v757, %v756
    %v968 = vpack.c.b16 %v759, %v758
    %v969 = vpack.c.b16 %v761, %v760
    %v970 = vpack.c.b16 %v763, %v762
    %v971 = vpack.c.b16 %v765, %v764
    %v972 = vpack.c.b16 %v767, %v766
    %v973 = vpack.c.b16 %v769, %v768
    %v974 = vpack.c.b16 %v771, %v770
    %v975 = vpack.c.b16 %v773, %v772
    %v976 = vpack.c.b16 %v775, %v774
    %v977 = vpack.c.b16 %v777, %v776
    %v978 = vpack.c.b16 %v779, %v778
    %v979 = vpack.c.b16 %v781, %v780
    %v980 = vpack.c.b16 %v783, %v782
    %v981 = vpack.c.b16 %v785, %v784
    %v982 = vpack.c.b16 %v787, %v786
    %v983 = vpack.c.b16 %v789, %v788
    %v984 = vpack.c.b16 %v791, %v790
    %v985 = vpack.c.b16 %v793, %v792
    %v986 = vpack.c.b16 %v795, %v794
    %v987 = vpack.c.b16 %v797, %v796
    %v988 = vpack.c.b16 %v799, %v798
    %v989 = vpack.c.b16 %v801, %v800
    %v990 = vpack.c.b16 %v803, %v802
    %v991 = vpack.c.b16 %v805, %v804
    %v992 = vpack.c.b16 %v807, %v806
    %v993 = vpack.c.b16 %v809, %v808
    %v994 = vpack.c.b16 %v811, %v810
    %v995 = vpack.c.b16 %v813, %v812
    %v996 = vpack.c.b16 %v815, %v814
    %v997 = vpack.c.b16 %v817, %v816
    %v998 = vpack.c.b16 %v819, %v818
    %v999 = vpack.c.b16 %v821, %v820
    %v1000 = vpack.c.b16 %v823, %v822
    %v1001 = vpack.c.b16 %v825, %v824
    %v1002 = vpack.c.b16 %v827, %v826
    %v1003 = vpack.c.b16 %v829, %v828
    %v1004 = vpack.c.b16 %v831, %v830
    %v1005 = vpack.c.b16 %v833, %v832
    %v1006 = vpack.c.b16 %v835, %v834
    %v1007 = vpack.c.b16 %v837, %v836
    %v1008 = vpack.c.b16 %v839, %v838
    %v1009 = vpack.c.b16 %v841, %v840
    %v1010 = vpack.c.b16 %v843, %v842
    %v1011 = vpack.c.b16 %v845, %v844
    %v1012 = vpack.c.b16 %v847, %v846
    %v1013 = vpack.c.b16 %v849, %v848
    %v1014 = vpack.c.b16 %v851, %v850
    %v1015 = vpack.c.b16 %v853, %v852
    %v1016 = vpack.c.b16 %v855, %v854
    %v1017 = vpack.c.b16 %v857, %v856
    %v1018 = vpack.c.b16 %v859, %v858
    %v1019 = vpack.c.b16 %v861, %v860
    %v1020 = vpack.c.b16 %v863, %v862
    %v1021 = vpack.c.b16 %v865, %v864
    %v1022 = vpack.c.b16 %v867, %v866
    %v1023 = vpack.c.b16 %v869, %v868
    %v1024 = vpack.c.b16 %v871, %v870
    %v1025 = vpack.c.b16 %v873, %v872
    %v1026 = vpack.c.b16 %v875, %v874
    %v1027 = vpack.c.b16 %v877, %v876
    %v1028 = vpack.c.b16 %v879, %v878
    %v1029 = vpack.c.b16 %v881, %v880
    %v1030 = vpack.c.b16 %v883, %v882
    %v1031 = vpack.c.b16 %v885, %v884
    %v1032 = vpack.c.b16 %v887, %v886
    %v1033 = vpack.c.b16 %v889, %v888
    %v1034 = vpack.c.b16 %v891, %v890
    %v1035 = vpack.c.b16 %v893, %v892
    %v1036 = vpack.c.b16 %v895, %v894
    %v1037 = vpack.c.b16 %v897, %v896
    %v1038 = vpack.c.b16 %v899, %v898
    %v1039 = vpack.c.b16 %v901, %v900
    %v1040 = vpack.c.b16 %v903, %v902
    %v1041 = vpack.c.b16 %v905, %v904
    %v1042 = vpack.c.b16 %v907, %v906
    %v1043 = vpack.c.b16 %v909, %v908
    %v1044 = vpack.c.b16 %v911, %v910
    %v1045 = vpack.c.b16 %v913, %v912
    %v1046 = vpack.c.b16 %v915, %v914
    %v1047 = vpack.c.b16 %v917, %v916
    %v1048 = vpack.c.b16 %v919, %v918
    %v1049 = vpack.c.b16 %v921, %v920
    %1178 = vmatprep.subr.bf16.mxu0 0
    %1179 = vmatpush1.bf16.msra.mxu0 %v922
    %1180 = vmatprep.subr.bf16.mxu0 0
    %1181 = vmatpush1.bf16.msra.mxu0 %v923
    %1182 = vmatprep.subr.bf16.mxu0 0
    %1183 = vmatpush1.bf16.msra.mxu0 %v924
    %1184 = vmatprep.subr.bf16.mxu0 0
    %1185 = vmatpush1.bf16.msra.mxu0 %v925
    %1186 = vmatprep.subr.bf16.mxu0 0
    %1187 = vmatpush1.bf16.msra.mxu0 %v926
    %1188 = vmatprep.subr.bf16.mxu0 0
    %1189 = vmatpush1.bf16.msra.mxu0 %v927
    %1190 = vmatprep.subr.bf16.mxu0 0
    %1191 = vmatpush1.bf16.msra.mxu0 %v928
    %1192 = vmatprep.subr.bf16.mxu0 0
    %1193 = vmatpush1.bf16.msra.mxu0 %v929
    %1194 = vmatprep.subr.bf16.mxu0 0
    %1195 = vmatpush1.bf16.msra.mxu0 %v930
    %1196 = vmatprep.subr.bf16.mxu0 0
    %1197 = vmatpush1.bf16.msra.mxu0 %v931
    %1198 = vmatprep.subr.bf16.mxu0 0
    %1199 = vmatpush1.bf16.msra.mxu0 %v932
    %1200 = vmatprep.subr.bf16.mxu0 0
    %1201 = vmatpush1.bf16.msra.mxu0 %v933
    %1202 = vmatprep.subr.bf16.mxu0 0
    %1203 = vmatpush1.bf16.msra.mxu0 %v934
    %1204 = vmatprep.subr.bf16.mxu0 0
    %1205 = vmatpush1.bf16.msra.mxu0 %v935
    %1206 = vmatprep.subr.bf16.mxu0 0
    %1207 = vmatpush1.bf16.msra.mxu0 %v936
    %1208 = vmatprep.subr.bf16.mxu0 0
    %1209 = vmatpush1.bf16.msra.mxu0 %v937
    %1210 = vmatprep.mubr.bf16.mxu0 %v333
    %1211 = vmatmul.mubr.bf16.gmra.mrb[0].mxu0 %v319
    %v1212 = vpop.f32.mrb[0].mxu0
    %v1213 = vadd.f32 %v292, %v1212
    %v1214 = vpop.f32.mrb[0].mxu0
    %v1215 = vpop.f32.mrb[0].mxu0
    %v1216 = vpop.f32.mrb[0].mxu0
    %1217 = vdwg.mxu0
    %1218 = vmatprep.subr.bf16.mxu0 0
    %1219 = vmatpush1.bf16.msra.mxu0 %v938
    %1220 = vmatprep.subr.bf16.mxu0 0
    %1221 = vmatpush1.bf16.msra.mxu0 %v939
    %1222 = vmatprep.subr.bf16.mxu0 0
    %1223 = vmatpush1.bf16.msra.mxu0 %v940
    %1224 = vmatprep.subr.bf16.mxu0 0
    %1225 = vmatpush1.bf16.msra.mxu0 %v941
    %1226 = vmatprep.subr.bf16.mxu0 0
    %1227 = vmatpush1.bf16.msra.mxu0 %v942
    %1228 = vmatprep.subr.bf16.mxu0 0
    %1229 = vmatpush1.bf16.msra.mxu0 %v943
    %1230 = vmatprep.subr.bf16.mxu0 0
    %1231 = vmatpush1.bf16.msra.mxu0 %v944
    %1232 = vmatprep.subr.bf16.mxu0 0
    %1233 = vmatpush1.bf16.msra.mxu0 %v945
    %1234 = vmatprep.subr.bf16.mxu0 0
    %1235 = vmatpush1.bf16.msra.mxu0 %v946
    %1236 = vmatprep.subr.bf16.mxu0 0
    %1237 = vmatpush1.bf16.msra.mxu0 %v947
    %1238 = vmatprep.subr.bf16.mxu0 0
    %1239 = vmatpush1.bf16.msra.mxu0 %v948
    %1240 = vmatprep.subr.bf16.mxu0 0
    %1241 = vmatpush1.bf16.msra.mxu0 %v949
    %1242 = vmatprep.subr.bf16.mxu0 0
    %1243 = vmatpush1.bf16.msra.mxu0 %v950
    %1244 = vmatprep.subr.bf16.mxu0 0
    %1245 = vmatpush1.bf16.msra.mxu0 %v951
    %1246 = vmatprep.subr.bf16.mxu0 0
    %1247 = vmatpush1.bf16.msra.mxu0 %v952
    %1248 = vmatprep.subr.bf16.mxu0 0
    %1249 = vmatpush1.bf16.msra.mxu0 %v953
    %1250 = vmatprep.mubr.bf16.mxu0 %v343
    %1251 = vmatmul.mubr.bf16.gmra.mrb[0].mxu0 %v341
    %v1252 = vpop.f32.mrb[0].mxu0
    %v1253 = vadd.f32 %v1213, %v1252
    %v1254 = vpop.f32.mrb[0].mxu0
    %v1255 = vpop.f32.mrb[0].mxu0
    %v1256 = vpop.f32.mrb[0].mxu0
    %1257 = vdwg.mxu0
    %1258 = vmatprep.subr.bf16.mxu0 0
    %1259 = vmatpush1.bf16.msra.mxu0 %v954
    %1260 = vmatprep.subr.bf16.mxu0 0
    %1261 = vmatpush1.bf16.msra.mxu0 %v955
    %1262 = vmatprep.subr.bf16.mxu0 0
    %1263 = vmatpush1.bf16.msra.mxu0 %v956
    %1264 = vmatprep.subr.bf16.mxu0 0
    %1265 = vmatpush1.bf16.msra.mxu0 %v957
    %1266 = vmatprep.subr.bf16.mxu0 0
    %1267 = vmatpush1.bf16.msra.mxu0 %v958
    %1268 = vmatprep.subr.bf16.mxu0 0
    %1269 = vmatpush1.bf16.msra.mxu0 %v959
    %1270 = vmatprep.subr.bf16.mxu0 0
    %1271 = vmatpush1.bf16.msra.mxu0 %v960
    %1272 = vmatprep.subr.bf16.mxu0 0
    %1273 = vmatpush1.bf16.msra.mxu0 %v961
    %1274 = vmatprep.subr.bf16.mxu0 0
    %1275 = vmatpush1.bf16.msra.mxu0 %v962
    %1276 = vmatprep.subr.bf16.mxu0 0
    %1277 = vmatpush1.bf16.msra.mxu0 %v963
    %1278 = vmatprep.subr.bf16.mxu0 0
    %1279 = vmatpush1.bf16.msra.mxu0 %v964
    %1280 = vmatprep.subr.bf16.mxu0 0
    %1281 = vmatpush1.bf16.msra.mxu0 %v965
    %1282 = vmatprep.subr.bf16.mxu0 0
    %1283 = vmatpush1.bf16.msra.mxu0 %v966
    %1284 = vmatprep.subr.bf16.mxu0 0
    %1285 = vmatpush1.bf16.msra.mxu0 %v967
    %1286 = vmatprep.subr.bf16.mxu0 0
    %1287 = vmatpush1.bf16.msra.mxu0 %v968
    %1288 = vmatprep.subr.bf16.mxu0 0
    %1289 = vmatpush1.bf16.msra.mxu0 %v969
    %1290 = vmatprep.mubr.bf16.mxu0 %v340
    %1291 = vmatmul.mubr.bf16.gmra.mrb[0].mxu0 %v326
    %v1292 = vpop.f32.mrb[0].mxu0
    %v1293 = vadd.f32 %v1253, %v1292
    %v1294 = vpop.f32.mrb[0].mxu0
    %v1295 = vpop.f32.mrb[0].mxu0
    %v1296 = vpop.f32.mrb[0].mxu0
    %1297 = vdwg.mxu0
    %1298 = vmatprep.subr.bf16.mxu0 0
    %1299 = vmatpush1.bf16.msra.mxu0 %v970
    %1300 = vmatprep.subr.bf16.mxu0 0
    %1301 = vmatpush1.bf16.msra.mxu0 %v971
    %1302 = vmatprep.subr.bf16.mxu0 0
    %1303 = vmatpush1.bf16.msra.mxu0 %v972
    %1304 = vmatprep.subr.bf16.mxu0 0
    %1305 = vmatpush1.bf16.msra.mxu0 %v973
    %1306 = vmatprep.subr.bf16.mxu0 0
    %1307 = vmatpush1.bf16.msra.mxu0 %v974
    %1308 = vmatprep.subr.bf16.mxu0 0
    %1309 = vmatpush1.bf16.msra.mxu0 %v975
    %1310 = vmatprep.subr.bf16.mxu0 0
    %1311 = vmatpush1.bf16.msra.mxu0 %v976
    %1312 = vmatprep.subr.bf16.mxu0 0
    %1313 = vmatpush1.bf16.msra.mxu0 %v977
    %1314 = vmatprep.subr.bf16.mxu0 0
    %1315 = vmatpush1.bf16.msra.mxu0 %v978
    %1316 = vmatprep.subr.bf16.mxu0 0
    %1317 = vmatpush1.bf16.msra.mxu0 %v979
    %1318 = vmatprep.subr.bf16.mxu0 0
    %1319 = vmatpush1.bf16.msra.mxu0 %v980
    %1320 = vmatprep.subr.bf16.mxu0 0
    %1321 = vmatpush1.bf16.msra.mxu0 %v981
    %1322 = vmatprep.subr.bf16.mxu0 0
    %1323 = vmatpush1.bf16.msra.mxu0 %v982
    %1324 = vmatprep.subr.bf16.mxu0 0
    %1325 = vmatpush1.bf16.msra.mxu0 %v983
    %1326 = vmatprep.subr.bf16.mxu0 0
    %1327 = vmatpush1.bf16.msra.mxu0 %v984
    %1328 = vmatprep.subr.bf16.mxu0 0
    %1329 = vmatpush1.bf16.msra.mxu0 %v985
    %1330 = vmatprep.mubr.bf16.mxu0 %v344
    %1331 = vmatmul.mubr.bf16.gmra.mrb[0].mxu0 %v342
    %v1332 = vpop.f32.mrb[0].mxu0
    %v1333 = vadd.f32 %v1293, %v1332
    %v1334 = vpop.f32.mrb[0].mxu0
    %v1335 = vpop.f32.mrb[0].mxu0
    %v1336 = vpop.f32.mrb[0].mxu0
    %1337 = vdwg.mxu0
    %1338 = vmatprep.subr.bf16.mxu0 0
    %1339 = vmatpush1.bf16.msra.mxu0 %v986
    %1340 = vmatprep.subr.bf16.mxu0 0
    %1341 = vmatpush1.bf16.msra.mxu0 %v987
    %1342 = vmatprep.subr.bf16.mxu0 0
    %1343 = vmatpush1.bf16.msra.mxu0 %v988
    %1344 = vmatprep.subr.bf16.mxu0 0
    %1345 = vmatpush1.bf16.msra.mxu0 %v989
    %1346 = vmatprep.subr.bf16.mxu0 0
    %1347 = vmatpush1.bf16.msra.mxu0 %v990
    %1348 = vmatprep.subr.bf16.mxu0 0
    %1349 = vmatpush1.bf16.msra.mxu0 %v991
    %1350 = vmatprep.subr.bf16.mxu0 0
    %1351 = vmatpush1.bf16.msra.mxu0 %v992
    %1352 = vmatprep.subr.bf16.mxu0 0
    %1353 = vmatpush1.bf16.msra.mxu0 %v993
    %1354 = vmatprep.subr.bf16.mxu0 0
    %1355 = vmatpush1.bf16.msra.mxu0 %v994
    %1356 = vmatprep.subr.bf16.mxu0 0
    %1357 = vmatpush1.bf16.msra.mxu0 %v995
    %1358 = vmatprep.subr.bf16.mxu0 0
    %1359 = vmatpush1.bf16.msra.mxu0 %v996
    %1360 = vmatprep.subr.bf16.mxu0 0
    %1361 = vmatpush1.bf16.msra.mxu0 %v997
    %1362 = vmatprep.subr.bf16.mxu0 0
    %1363 = vmatpush1.bf16.msra.mxu0 %v998
    %1364 = vmatprep.subr.bf16.mxu0 0
    %1365 = vmatpush1.bf16.msra.mxu0 %v999
    %1366 = vmatprep.subr.bf16.mxu0 0
    %1367 = vmatpush1.bf16.msra.mxu0 %v1000
    %1368 = vmatprep.subr.bf16.mxu0 0
    %1369 = vmatpush1.bf16.msra.mxu0 %v1001
    %1370 = vmatprep.mubr.bf16.mxu0 %v382
    %1371 = vmatmul.mubr.bf16.gmra.mrb[0].mxu0 %v368
    %v1372 = vpop.f32.mrb[0].mxu0
    %v1373 = vadd.f32 %v1333, %v1372
    %v1374 = vpop.f32.mrb[0].mxu0
    %v1375 = vpop.f32.mrb[0].mxu0
    %v1376 = vpop.f32.mrb[0].mxu0
    %1377 = vdwg.mxu0
    %1378 = vmatprep.subr.bf16.mxu0 0
    %1379 = vmatpush1.bf16.msra.mxu0 %v1002
    %1380 = vmatprep.subr.bf16.mxu0 0
    %1381 = vmatpush1.bf16.msra.mxu0 %v1003
    %1382 = vmatprep.subr.bf16.mxu0 0
    %1383 = vmatpush1.bf16.msra.mxu0 %v1004
    %1384 = vmatprep.subr.bf16.mxu0 0
    %1385 = vmatpush1.bf16.msra.mxu0 %v1005
    %1386 = vmatprep.subr.bf16.mxu0 0
    %1387 = vmatpush1.bf16.msra.mxu0 %v1006
    %1388 = vmatprep.subr.bf16.mxu0 0
    %1389 = vmatpush1.bf16.msra.mxu0 %v1007
    %1390 = vmatprep.subr.bf16.mxu0 0
    %1391 = vmatpush1.bf16.msra.mxu0 %v1008
    %1392 = vmatprep.subr.bf16.mxu0 0
    %1393 = vmatpush1.bf16.msra.mxu0 %v1009
    %1394 = vmatprep.subr.bf16.mxu0 0
    %1395 = vmatpush1.bf16.msra.mxu0 %v1010
    %1396 = vmatprep.subr.bf16.mxu0 0
    %1397 = vmatpush1.bf16.msra.mxu0 %v1011
    %1398 = vmatprep.subr.bf16.mxu0 0
    %1399 = vmatpush1.bf16.msra.mxu0 %v1012
    %1400 = vmatprep.subr.bf16.mxu0 0
    %1401 = vmatpush1.bf16.msra.mxu0 %v1013
    %1402 = vmatprep.subr.bf16.mxu0 0
    %1403 = vmatpush1.bf16.msra.mxu0 %v1014
    %1404 = vmatprep.subr.bf16.mxu0 0
    %1405 = vmatpush1.bf16.msra.mxu0 %v1015
    %1406 = vmatprep.subr.bf16.mxu0 0
    %1407 = vmatpush1.bf16.msra.mxu0 %v1016
    %1408 = vmatprep.subr.bf16.mxu0 0
    %1409 = vmatpush1.bf16.msra.mxu0 %v1017
    %1410 = vmatprep.mubr.bf16.mxu0 %v392
    %1411 = vmatmul.mubr.bf16.gmra.mrb[0].mxu0 %v390
    %v1412 = vpop.f32.mrb[0].mxu0
    %v1413 = vadd.f32 %v1373, %v1412
    %v1414 = vpop.f32.mrb[0].mxu0
    %v1415 = vpop.f32.mrb[0].mxu0
    %v1416 = vpop.f32.mrb[0].mxu0
    %1417 = vdwg.mxu0
    %1418 = vmatprep.subr.bf16.mxu0 0
    %1419 = vmatpush1.bf16.msra.mxu0 %v1018
    %1420 = vmatprep.subr.bf16.mxu0 0
    %1421 = vmatpush1.bf16.msra.mxu0 %v1019
    %1422 = vmatprep.subr.bf16.mxu0 0
    %1423 = vmatpush1.bf16.msra.mxu0 %v1020
    %1424 = vmatprep.subr.bf16.mxu0 0
    %1425 = vmatpush1.bf16.msra.mxu0 %v1021
    %1426 = vmatprep.subr.bf16.mxu0 0
    %1427 = vmatpush1.bf16.msra.mxu0 %v1022
    %1428 = vmatprep.subr.bf16.mxu0 0
    %1429 = vmatpush1.bf16.msra.mxu0 %v1023
    %1430 = vmatprep.subr.bf16.mxu0 0
    %1431 = vmatpush1.bf16.msra.mxu0 %v1024
    %1432 = vmatprep.subr.bf16.mxu0 0
    %1433 = vmatpush1.bf16.msra.mxu0 %v1025
    %1434 = vmatprep.subr.bf16.mxu0 0
    %1435 = vmatpush1.bf16.msra.mxu0 %v1026
    %1436 = vmatprep.subr.bf16.mxu0 0
    %1437 = vmatpush1.bf16.msra.mxu0 %v1027
    %1438 = vmatprep.subr.bf16.mxu0 0
    %1439 = vmatpush1.bf16.msra.mxu0 %v1028
    %1440 = vmatprep.subr.bf16.mxu0 0
    %1441 = vmatpush1.bf16.msra.mxu0 %v1029
    %1442 = vmatprep.subr.bf16.mxu0 0
    %1443 = vmatpush1.bf16.msra.mxu0 %v1030
    %1444 = vmatprep.subr.bf16.mxu0 0
    %1445 = vmatpush1.bf16.msra.mxu0 %v1031
    %1446 = vmatprep.subr.bf16.mxu0 0
    %1447 = vmatpush1.bf16.msra.mxu0 %v1032
    %1448 = vmatprep.subr.bf16.mxu0 0
    %1449 = vmatpush1.bf16.msra.mxu0 %v1033
    %1450 = vmatprep.mubr.bf16.mxu0 %v389
    %1451 = vmatmul.mubr.bf16.gmra.mrb[0].mxu0 %v375
    %v1452 = vpop.f32.mrb[0].mxu0
    %v1453 = vadd.f32 %v1413, %v1452
    %v1454 = vpop.f32.mrb[0].mxu0
    %v1455 = vpop.f32.mrb[0].mxu0
    %v1456 = vpop.f32.mrb[0].mxu0
    %1457 = vdwg.mxu0
    %1458 = vmatprep.subr.bf16.mxu0 0
    %1459 = vmatpush1.bf16.msra.mxu0 %v1034
    %1460 = vmatprep.subr.bf16.mxu0 0
    %1461 = vmatpush1.bf16.msra.mxu0 %v1035
    %1462 = vmatprep.subr.bf16.mxu0 0
    %1463 = vmatpush1.bf16.msra.mxu0 %v1036
    %1464 = vmatprep.subr.bf16.mxu0 0
    %1465 = vmatpush1.bf16.msra.mxu0 %v1037
    %1466 = vmatprep.subr.bf16.mxu0 0
    %1467 = vmatpush1.bf16.msra.mxu0 %v1038
    %1468 = vmatprep.subr.bf16.mxu0 0
    %1469 = vmatpush1.bf16.msra.mxu0 %v1039
    %1470 = vmatprep.subr.bf16.mxu0 0
    %1471 = vmatpush1.bf16.msra.mxu0 %v1040
    %1472 = vmatprep.subr.bf16.mxu0 0
    %1473 = vmatpush1.bf16.msra.mxu0 %v1041
    %1474 = vmatprep.subr.bf16.mxu0 0
    %1475 = vmatpush1.bf16.msra.mxu0 %v1042
    %1476 = vmatprep.subr.bf16.mxu0 0
    %1477 = vmatpush1.bf16.msra.mxu0 %v1043
    %1478 = vmatprep.subr.bf16.mxu0 0
    %1479 = vmatpush1.bf16.msra.mxu0 %v1044
    %1480 = vmatprep.subr.bf16.mxu0 0
    %1481 = vmatpush1.bf16.msra.mxu0 %v1045
    %1482 = vmatprep.subr.bf16.mxu0 0
    %1483 = vmatpush1.bf16.msra.mxu0 %v1046
    %1484 = vmatprep.subr.bf16.mxu0 0
    %1485 = vmatpush1.bf16.msra.mxu0 %v1047
    %1486 = vmatprep.subr.bf16.mxu0 0
    %1487 = vmatpush1.bf16.msra.mxu0 %v1048
    %1488 = vmatprep.subr.bf16.mxu0 0
    %1489 = vmatpush1.bf16.msra.mxu0 %v1049
    %1490 = vmatprep.mubr.bf16.mxu0 %v393
    %1491 = vmatmul.mubr.bf16.gmra.mrb[0].mxu0 %v391
    %v1492 = vpop.f32.mrb[0].mxu0
    %v1493 = vadd.f32 %v1453, %v1492
    %v1494 = vpop.f32.mrb[0].mxu0
    %v1495 = vpop.f32.mrb[0].mxu0
    %v1496 = vpop.f32.mrb[0].mxu0
    %1497 = vdwg.mxu0
    %v1498 = vld [vmem:[%s3] sm:$0x3]
    %v1499 = vmul.f32 %v1493, 0.5
    %v1500 = vmul.f32 %v1499, 1.442695
    %v1501 = vpow.pop %v1500
    %1503 = vrot.lane.b32.xlu0 %v1501, 112
    %v1504 = vpop.permute.xlu0 %1503
    %v1506 = vmul.f32 %v1498, %v1504
    %v1507 = vadd.f32 %v1493, %v1506
    %v1508 = vpack.c.bf16 %v1507, %v1507
    %v1509 = vld [vmem:[%s4] sm:$0xff]
    %v1510 = vld [vmem:[%s4 + $0x8] sm:$0xff]
    %v1511 = vld [vmem:[%s4 + $0x10] sm:$0xff]
    %v1512 = vld [vmem:[%s4 + $0x18] sm:$0xff]
    %v1513 = vld [vmem:[%s4 + $0x20] sm:$0xff]
    %v1514 = vld [vmem:[%s4 + $0x28] sm:$0xff]
    %v1515 = vld [vmem:[%s4 + $0x30] sm:$0xff]
    %v1516 = vld [vmem:[%s4 + $0x38] sm:$0xff]
    %v1517 = vld [vmem:[%s4 + $0x40] sm:$0xff]
    %v1518 = vld [vmem:[%s4 + $0x48] sm:$0xff]
    %v1519 = vld [vmem:[%s4 + $0x50] sm:$0xff]
    %v1520 = vld [vmem:[%s4 + $0x58] sm:$0xff]
    %v1521 = vld [vmem:[%s4 + $0x60] sm:$0xff]
    %v1522 = vld [vmem:[%s4 + $0x68] sm:$0xff]
    %v1523 = vld [vmem:[%s4 + $0x70] sm:$0xff]
    %v1524 = vld [vmem:[%s4 + $0x78] sm:$0xff]
    %v1525 = vld [vmem:[%s5] sm:$0xff]
    %v1526 = vld [vmem:[%s5 + $0x8] sm:$0xff]
    %v1529 = vlaneseq
    %v1530 = vshrl.u32 %v1529, 7
    %v1531 = vsub.s32 0, %v1530
    %v1532 = vrot.slane %v1525, %v1531
    %v1533 = vlaneseq
    %v1534 = vshrl.u32 %v1533, 7
    %v1535 = vsub.s32 1, %v1534
    %v1536 = vrot.slane %v1525, %v1535
    %v1537 = vlaneseq
    %v1538 = vshrl.u32 %v1537, 7
    %v1539 = vsub.s32 2, %v1538
    %v1540 = vrot.slane %v1525, %v1539
    %v1541 = vlaneseq
    %v1542 = vshrl.u32 %v1541, 7
    %v1543 = vsub.s32 3, %v1542
    %v1544 = vrot.slane %v1525, %v1543
    %v1545 = vlaneseq
    %v1546 = vshrl.u32 %v1545, 7
    %v1547 = vsub.s32 4, %v1546
    %v1548 = vrot.slane %v1525, %v1547
    %v1549 = vlaneseq
    %v1550 = vshrl.u32 %v1549, 7
    %v1551 = vsub.s32 5, %v1550
    %v1552 = vrot.slane %v1525, %v1551
    %v1553 = vlaneseq
    %v1554 = vshrl.u32 %v1553, 7
    %v1555 = vsub.s32 6, %v1554
    %v1556 = vrot.slane %v1525, %v1555
    %v1557 = vlaneseq
    %v1558 = vshrl.u32 %v1557, 7
    %v1559 = vsub.s32 7, %v1558
    %v1560 = vrot.slane %v1525, %v1559
    %v1561 = vlaneseq
    %v1562 = vshrl.u32 %v1561, 7
    %v1563 = vsub.s32 0, %v1562
    %v1564 = vrot.slane %v1526, %v1563
    %v1565 = vlaneseq
    %v1566 = vshrl.u32 %v1565, 7
    %v1567 = vsub.s32 1, %v1566
    %v1568 = vrot.slane %v1526, %v1567
    %v1569 = vlaneseq
    %v1570 = vshrl.u32 %v1569, 7
    %v1571 = vsub.s32 2, %v1570
    %v1572 = vrot.slane %v1526, %v1571
    %v1573 = vlaneseq
    %v1574 = vshrl.u32 %v1573, 7
    %v1575 = vsub.s32 3, %v1574
    %v1576 = vrot.slane %v1526, %v1575
    %v1577 = vlaneseq
    %v1578 = vshrl.u32 %v1577, 7
    %v1579 = vsub.s32 4, %v1578
    %v1580 = vrot.slane %v1526, %v1579
    %v1581 = vlaneseq
    %v1582 = vshrl.u32 %v1581, 7
    %v1583 = vsub.s32 5, %v1582
    %v1584 = vrot.slane %v1526, %v1583
    %v1585 = vlaneseq
    %v1586 = vshrl.u32 %v1585, 7
    %v1587 = vsub.s32 6, %v1586
    %v1588 = vrot.slane %v1526, %v1587
    %v1589 = vlaneseq
    %v1590 = vshrl.u32 %v1589, 7
    %v1591 = vsub.s32 7, %v1590
    %v1592 = vrot.slane %v1526, %v1591
    %v1625 = vunpack.c.l.b16 %v1509
    %v1626 = vunpack.c.h.b16 %v1509
    %v1627 = vunpack.c.l.b16 %v1510
    %v1628 = vunpack.c.h.b16 %v1510
    %v1629 = vunpack.c.l.b16 %v1511
    %v1630 = vunpack.c.h.b16 %v1511
    %v1631 = vunpack.c.l.b16 %v1512
    %v1632 = vunpack.c.h.b16 %v1512
    %v1633 = vunpack.c.l.b16 %v1513
    %v1634 = vunpack.c.h.b16 %v1513
    %v1635 = vunpack.c.l.b16 %v1514
    %v1636 = vunpack.c.h.b16 %v1514
    %v1637 = vunpack.c.l.b16 %v1515
    %v1638 = vunpack.c.h.b16 %v1515
    %v1639 = vunpack.c.l.b16 %v1516
    %v1640 = vunpack.c.h.b16 %v1516
    %v1641 = vunpack.c.l.b16 %v1517
    %v1642 = vunpack.c.h.b16 %v1517
    %v1643 = vunpack.c.l.b16 %v1518
    %v1644 = vunpack.c.h.b16 %v1518
    %v1645 = vunpack.c.l.b16 %v1519
    %v1646 = vunpack.c.h.b16 %v1519
    %v1647 = vunpack.c.l.b16 %v1520
    %v1648 = vunpack.c.h.b16 %v1520
    %v1649 = vunpack.c.l.b16 %v1521
    %v1650 = vunpack.c.h.b16 %v1521
    %v1651 = vunpack.c.l.b16 %v1522
    %v1652 = vunpack.c.h.b16 %v1522
    %v1653 = vunpack.c.l.b16 %v1523
    %v1654 = vunpack.c.h.b16 %v1523
    %v1655 = vunpack.c.l.b16 %v1524
    %v1656 = vunpack.c.h.b16 %v1524
    %v1657 = vpack.c.b16 %v1641, %v1625
    %v1658 = vpack.c.b16 %v1642, %v1626
    %v1659 = vpack.c.b16 %v1643, %v1627
    %v1660 = vpack.c.b16 %v1644, %v1628
    %v1661 = vpack.c.b16 %v1645, %v1629
    %v1662 = vpack.c.b16 %v1646, %v1630
    %v1663 = vpack.c.b16 %v1647, %v1631
    %v1664 = vpack.c.b16 %v1648, %v1632
    %v1665 = vpack.c.b16 %v1649, %v1633
    %v1666 = vpack.c.b16 %v1650, %v1634
    %v1667 = vpack.c.b16 %v1651, %v1635
    %v1668 = vpack.c.b16 %v1652, %v1636
    %v1669 = vpack.c.b16 %v1653, %v1637
    %v1670 = vpack.c.b16 %v1654, %v1638
    %v1671 = vpack.c.b16 %v1655, %v1639
    %v1672 = vpack.c.b16 %v1656, %v1640
    %vm1689 = vcmask 130048
    %v1691 = vsel %vm1689, %v1508, 0
    %1693 = vmatprep.subr.bf16.mxu0 %v1658
    %1694 = vmatpush1.bf16.msra.mxu0 %v1657
    %1695 = vmatprep.subr.bf16.mxu0 0
    %1696 = vmatpush1.bf16.msra.mxu0 0
    %1697 = vmatprep.subr.bf16.mxu0 0
    %1698 = vmatpush1.bf16.msra.mxu0 0
    %1699 = vmatprep.subr.bf16.mxu0 0
    %1700 = vmatpush1.bf16.msra.mxu0 0
    %1701 = vmatprep.subr.bf16.mxu0 0
    %1702 = vmatpush1.bf16.msra.mxu0 0
    %1703 = vmatprep.subr.bf16.mxu0 0
    %1704 = vmatpush1.bf16.msra.mxu0 0
    %1705 = vmatprep.subr.bf16.mxu0 0
    %1706 = vmatpush1.bf16.msra.mxu0 0
    %1707 = vmatprep.subr.bf16.mxu0 0
    %1708 = vmatpush1.bf16.msra.mxu0 0
    %1709 = vmatprep.subr.bf16.mxu0 0
    %1710 = vmatpush1.bf16.msra.mxu0 0
    %1711 = vmatprep.subr.bf16.mxu0 0
    %1712 = vmatpush1.bf16.msra.mxu0 0
    %1713 = vmatprep.subr.bf16.mxu0 0
    %1714 = vmatpush1.bf16.msra.mxu0 0
    %1715 = vmatprep.subr.bf16.mxu0 0
    %1716 = vmatpush1.bf16.msra.mxu0 0
    %1717 = vmatprep.subr.bf16.mxu0 0
    %1718 = vmatpush1.bf16.msra.mxu0 0
    %1719 = vmatprep.subr.bf16.mxu0 0
    %1720 = vmatpush1.bf16.msra.mxu0 0
    %1721 = vmatprep.subr.bf16.mxu0 0
    %1722 = vmatpush1.bf16.msra.mxu0 0
    %1723 = vmatprep.subr.bf16.mxu0 0
    %1724 = vmatpush1.bf16.msra.mxu0 0
    %1725 = vmatprep.mubr.bf16.mxu0 0
    %1726 = vmatmul.mubr.bf16.gmra.mrb[0].mxu0 %v1691
    %v1727 = vpop.f32.mrb[0].mxu0
    %v1728 = vadd.f32 %v1532, %v1727
    %v1729 = vpop.f32.mrb[0].mxu0
    %v1730 = vadd.f32 %v1536, %v1729
    %v1731 = vpop.f32.mrb[0].mxu0
    %v1732 = vpop.f32.mrb[0].mxu0
    %1733 = vdwg.mxu0
    %1734 = vmatprep.subr.bf16.mxu0 %v1660
    %1735 = vmatpush1.bf16.msra.mxu0 %v1659
    %1736 = vmatprep.subr.bf16.mxu0 0
    %1737 = vmatpush1.bf16.msra.mxu0 0
    %1738 = vmatprep.subr.bf16.mxu0 0
    %1739 = vmatpush1.bf16.msra.mxu0 0
    %1740 = vmatprep.subr.bf16.mxu0 0
    %1741 = vmatpush1.bf16.msra.mxu0 0
    %1742 = vmatprep.subr.bf16.mxu0 0
    %1743 = vmatpush1.bf16.msra.mxu0 0
    %1744 = vmatprep.subr.bf16.mxu0 0
    %1745 = vmatpush1.bf16.msra.mxu0 0
    %1746 = vmatprep.subr.bf16.mxu0 0
    %1747 = vmatpush1.bf16.msra.mxu0 0
    %1748 = vmatprep.subr.bf16.mxu0 0
    %1749 = vmatpush1.bf16.msra.mxu0 0
    %1750 = vmatprep.subr.bf16.mxu0 0
    %1751 = vmatpush1.bf16.msra.mxu0 0
    %1752 = vmatprep.subr.bf16.mxu0 0
    %1753 = vmatpush1.bf16.msra.mxu0 0
    %1754 = vmatprep.subr.bf16.mxu0 0
    %1755 = vmatpush1.bf16.msra.mxu0 0
    %1756 = vmatprep.subr.bf16.mxu0 0
    %1757 = vmatpush1.bf16.msra.mxu0 0
    %1758 = vmatprep.subr.bf16.mxu0 0
    %1759 = vmatpush1.bf16.msra.mxu0 0
    %1760 = vmatprep.subr.bf16.mxu0 0
    %1761 = vmatpush1.bf16.msra.mxu0 0
    %1762 = vmatprep.subr.bf16.mxu0 0
    %1763 = vmatpush1.bf16.msra.mxu0 0
    %1764 = vmatprep.subr.bf16.mxu0 0
    %1765 = vmatpush1.bf16.msra.mxu0 0
    %1766 = vmatprep.mubr.bf16.mxu0 0
    %1767 = vmatmul.mubr.bf16.gmra.mrb[0].mxu0 %v1691
    %v1768 = vpop.f32.mrb[0].mxu0
    %v1769 = vadd.f32 %v1540, %v1768
    %v1770 = vpop.f32.mrb[0].mxu0
    %v1771 = vadd.f32 %v1544, %v1770
    %v1772 = vpop.f32.mrb[0].mxu0
    %v1773 = vpop.f32.mrb[0].mxu0
    %1774 = vdwg.mxu0
    %1775 = vmatprep.subr.bf16.mxu0 %v1662
    %1776 = vmatpush1.bf16.msra.mxu0 %v1661
    %1777 = vmatprep.subr.bf16.mxu0 0
    %1778 = vmatpush1.bf16.msra.mxu0 0
    %1779 = vmatprep.subr.bf16.mxu0 0
    %1780 = vmatpush1.bf16.msra.mxu0 0
    %1781 = vmatprep.subr.bf16.mxu0 0
    %1782 = vmatpush1.bf16.msra.mxu0 0
    %1783 = vmatprep.subr.bf16.mxu0 0
    %1784 = vmatpush1.bf16.msra.mxu0 0
    %1785 = vmatprep.subr.bf16.mxu0 0
    %1786 = vmatpush1.bf16.msra.mxu0 0
    %1787 = vmatprep.subr.bf16.mxu0 0
    %1788 = vmatpush1.bf16.msra.mxu0 0
    %1789 = vmatprep.subr.bf16.mxu0 0
    %1790 = vmatpush1.bf16.msra.mxu0 0
    %1791 = vmatprep.subr.bf16.mxu0 0
    %1792 = vmatpush1.bf16.msra.mxu0 0
    %1793 = vmatprep.subr.bf16.mxu0 0
    %1794 = vmatpush1.bf16.msra.mxu0 0
    %1795 = vmatprep.subr.bf16.mxu0 0
    %1796 = vmatpush1.bf16.msra.mxu0 0
    %1797 = vmatprep.subr.bf16.mxu0 0
    %1798 = vmatpush1.bf16.msra.mxu0 0
    %1799 = vmatprep.subr.bf16.mxu0 0
    %1800 = vmatpush1.bf16.msra.mxu0 0
    %1801 = vmatprep.subr.bf16.mxu0 0
    %1802 = vmatpush1.bf16.msra.mxu0 0
    %1803 = vmatprep.subr.bf16.mxu0 0
    %1804 = vmatpush1.bf16.msra.mxu0 0
    %1805 = vmatprep.subr.bf16.mxu0 0
    %1806 = vmatpush1.bf16.msra.mxu0 0
    %1807 = vmatprep.mubr.bf16.mxu0 0
    %1808 = vmatmul.mubr.bf16.gmra.mrb[0].mxu0 %v1691
    %v1809 = vpop.f32.mrb[0].mxu0
    %v1810 = vadd.f32 %v1548, %v1809
    %v1811 = vpop.f32.mrb[0].mxu0
    %v1812 = vadd.f32 %v1552, %v1811
    %v1813 = vpop.f32.mrb[0].mxu0
    %v1814 = vpop.f32.mrb[0].mxu0
    %1815 = vdwg.mxu0
    %1816 = vmatprep.subr.bf16.mxu0 %v1664
    %1817 = vmatpush1.bf16.msra.mxu0 %v1663
    %1818 = vmatprep.subr.bf16.mxu0 0
    %1819 = vmatpush1.bf16.msra.mxu0 0
    %1820 = vmatprep.subr.bf16.mxu0 0
    %1821 = vmatpush1.bf16.msra.mxu0 0
    %1822 = vmatprep.subr.bf16.mxu0 0
    %1823 = vmatpush1.bf16.msra.mxu0 0
    %1824 = vmatprep.subr.bf16.mxu0 0
    %1825 = vmatpush1.bf16.msra.mxu0 0
    %1826 = vmatprep.subr.bf16.mxu0 0
    %1827 = vmatpush1.bf16.msra.mxu0 0
    %1828 = vmatprep.subr.bf16.mxu0 0
    %1829 = vmatpush1.bf16.msra.mxu0 0
    %1830 = vmatprep.subr.bf16.mxu0 0
    %1831 = vmatpush1.bf16.msra.mxu0 0
    %1832 = vmatprep.subr.bf16.mxu0 0
    %1833 = vmatpush1.bf16.msra.mxu0 0
    %1834 = vmatprep.subr.bf16.mxu0 0
    %1835 = vmatpush1.bf16.msra.mxu0 0
    %1836 = vmatprep.subr.bf16.mxu0 0
    %1837 = vmatpush1.bf16.msra.mxu0 0
    %1838 = vmatprep.subr.bf16.mxu0 0
    %1839 = vmatpush1.bf16.msra.mxu0 0
    %1840 = vmatprep.subr.bf16.mxu0 0
    %1841 = vmatpush1.bf16.msra.mxu0 0
    %1842 = vmatprep.subr.bf16.mxu0 0
    %1843 = vmatpush1.bf16.msra.mxu0 0
    %1844 = vmatprep.subr.bf16.mxu0 0
    %1845 = vmatpush1.bf16.msra.mxu0 0
    %1846 = vmatprep.subr.bf16.mxu0 0
    %1847 = vmatpush1.bf16.msra.mxu0 0
    %1848 = vmatprep.mubr.bf16.mxu0 0
    %1849 = vmatmul.mubr.bf16.gmra.mrb[0].mxu0 %v1691
    %v1850 = vpop.f32.mrb[0].mxu0
    %v1851 = vadd.f32 %v1556, %v1850
    %v1852 = vpop.f32.mrb[0].mxu0
    %v1853 = vadd.f32 %v1560, %v1852
    %v1854 = vpop.f32.mrb[0].mxu0
    %v1855 = vpop.f32.mrb[0].mxu0
    %1856 = vdwg.mxu0
    %1857 = vmatprep.subr.bf16.mxu0 %v1666
    %1858 = vmatpush1.bf16.msra.mxu0 %v1665
    %1859 = vmatprep.subr.bf16.mxu0 0
    %1860 = vmatpush1.bf16.msra.mxu0 0
    %1861 = vmatprep.subr.bf16.mxu0 0
    %1862 = vmatpush1.bf16.msra.mxu0 0
    %1863 = vmatprep.subr.bf16.mxu0 0
    %1864 = vmatpush1.bf16.msra.mxu0 0
    %1865 = vmatprep.subr.bf16.mxu0 0
    %1866 = vmatpush1.bf16.msra.mxu0 0
    %1867 = vmatprep.subr.bf16.mxu0 0
    %1868 = vmatpush1.bf16.msra.mxu0 0
    %1869 = vmatprep.subr.bf16.mxu0 0
    %1870 = vmatpush1.bf16.msra.mxu0 0
    %1871 = vmatprep.subr.bf16.mxu0 0
    %1872 = vmatpush1.bf16.msra.mxu0 0
    %1873 = vmatprep.subr.bf16.mxu0 0
    %1874 = vmatpush1.bf16.msra.mxu0 0
    %1875 = vmatprep.subr.bf16.mxu0 0
    %1876 = vmatpush1.bf16.msra.mxu0 0
    %1877 = vmatprep.subr.bf16.mxu0 0
    %1878 = vmatpush1.bf16.msra.mxu0 0
    %1879 = vmatprep.subr.bf16.mxu0 0
    %1880 = vmatpush1.bf16.msra.mxu0 0
    %1881 = vmatprep.subr.bf16.mxu0 0
    %1882 = vmatpush1.bf16.msra.mxu0 0
    %1883 = vmatprep.subr.bf16.mxu0 0
    %1884 = vmatpush1.bf16.msra.mxu0 0
    %1885 = vmatprep.subr.bf16.mxu0 0
    %1886 = vmatpush1.bf16.msra.mxu0 0
    %1887 = vmatprep.subr.bf16.mxu0 0
    %1888 = vmatpush1.bf16.msra.mxu0 0
    %1889 = vmatprep.mubr.bf16.mxu0 0
    %1890 = vmatmul.mubr.bf16.gmra.mrb[0].mxu0 %v1691
    %v1891 = vpop.f32.mrb[0].mxu0
    %v1892 = vadd.f32 %v1564, %v1891
    %v1893 = vpop.f32.mrb[0].mxu0
    %v1894 = vadd.f32 %v1568, %v1893
    %v1895 = vpop.f32.mrb[0].mxu0
    %v1896 = vpop.f32.mrb[0].mxu0
    %1897 = vdwg.mxu0
    %1898 = vmatprep.subr.bf16.mxu0 %v1668
    %1899 = vmatpush1.bf16.msra.mxu0 %v1667
    %1900 = vmatprep.subr.bf16.mxu0 0
    %1901 = vmatpush1.bf16.msra.mxu0 0
    %1902 = vmatprep.subr.bf16.mxu0 0
    %1903 = vmatpush1.bf16.msra.mxu0 0
    %1904 = vmatprep.subr.bf16.mxu0 0
    %1905 = vmatpush1.bf16.msra.mxu0 0
    %1906 = vmatprep.subr.bf16.mxu0 0
    %1907 = vmatpush1.bf16.msra.mxu0 0
    %1908 = vmatprep.subr.bf16.mxu0 0
    %1909 = vmatpush1.bf16.msra.mxu0 0
    %1910 = vmatprep.subr.bf16.mxu0 0
    %1911 = vmatpush1.bf16.msra.mxu0 0
    %1912 = vmatprep.subr.bf16.mxu0 0
    %1913 = vmatpush1.bf16.msra.mxu0 0
    %1914 = vmatprep.subr.bf16.mxu0 0
    %1915 = vmatpush1.bf16.msra.mxu0 0
    %1916 = vmatprep.subr.bf16.mxu0 0
    %1917 = vmatpush1.bf16.msra.mxu0 0
    %1918 = vmatprep.subr.bf16.mxu0 0
    %1919 = vmatpush1.bf16.msra.mxu0 0
    %1920 = vmatprep.subr.bf16.mxu0 0
    %1921 = vmatpush1.bf16.msra.mxu0 0
    %1922 = vmatprep.subr.bf16.mxu0 0
    %1923 = vmatpush1.bf16.msra.mxu0 0
    %1924 = vmatprep.subr.bf16.mxu0 0
    %1925 = vmatpush1.bf16.msra.mxu0 0
    %1926 = vmatprep.subr.bf16.mxu0 0
    %1927 = vmatpush1.bf16.msra.mxu0 0
    %1928 = vmatprep.subr.bf16.mxu0 0
    %1929 = vmatpush1.bf16.msra.mxu0 0
    %1930 = vmatprep.mubr.bf16.mxu0 0
    %1931 = vmatmul.mubr.bf16.gmra.mrb[0].mxu0 %v1691
    %v1932 = vpop.f32.mrb[0].mxu0
    %v1933 = vadd.f32 %v1572, %v1932
    %v1934 = vpop.f32.mrb[0].mxu0
    %v1935 = vadd.f32 %v1576, %v1934
    %v1936 = vpop.f32.mrb[0].mxu0
    %v1937 = vpop.f32.mrb[0].mxu0
    %1938 = vdwg.mxu0
    %1939 = vmatprep.subr.bf16.mxu0 %v1670
    %1940 = vmatpush1.bf16.msra.mxu0 %v1669
    %1941 = vmatprep.subr.bf16.mxu0 0
    %1942 = vmatpush1.bf16.msra.mxu0 0
    %1943 = vmatprep.subr.bf16.mxu0 0
    %1944 = vmatpush1.bf16.msra.mxu0 0
    %1945 = vmatprep.subr.bf16.mxu0 0
    %1946 = vmatpush1.bf16.msra.mxu0 0
    %1947 = vmatprep.subr.bf16.mxu0 0
    %1948 = vmatpush1.bf16.msra.mxu0 0
    %1949 = vmatprep.subr.bf16.mxu0 0
    %1950 = vmatpush1.bf16.msra.mxu0 0
    %1951 = vmatprep.subr.bf16.mxu0 0
    %1952 = vmatpush1.bf16.msra.mxu0 0
    %1953 = vmatprep.subr.bf16.mxu0 0
    %1954 = vmatpush1.bf16.msra.mxu0 0
    %1955 = vmatprep.subr.bf16.mxu0 0
    %1956 = vmatpush1.bf16.msra.mxu0 0
    %1957 = vmatprep.subr.bf16.mxu0 0
    %1958 = vmatpush1.bf16.msra.mxu0 0
    %1959 = vmatprep.subr.bf16.mxu0 0
    %1960 = vmatpush1.bf16.msra.mxu0 0
    %1961 = vmatprep.subr.bf16.mxu0 0
    %1962 = vmatpush1.bf16.msra.mxu0 0
    %1963 = vmatprep.subr.bf16.mxu0 0
    %1964 = vmatpush1.bf16.msra.mxu0 0
    %1965 = vmatprep.subr.bf16.mxu0 0
    %1966 = vmatpush1.bf16.msra.mxu0 0
    %1967 = vmatprep.subr.bf16.mxu0 0
    %1968 = vmatpush1.bf16.msra.mxu0 0
    %1969 = vmatprep.subr.bf16.mxu0 0
    %1970 = vmatpush1.bf16.msra.mxu0 0
    %1971 = vmatprep.mubr.bf16.mxu0 0
    %1972 = vmatmul.mubr.bf16.gmra.mrb[0].mxu0 %v1691
    %v1973 = vpop.f32.mrb[0].mxu0
    %v1974 = vadd.f32 %v1580, %v1973
    %v1975 = vpop.f32.mrb[0].mxu0
    %v1976 = vadd.f32 %v1584, %v1975
    %v1977 = vpop.f32.mrb[0].mxu0
    %v1978 = vpop.f32.mrb[0].mxu0
    %1979 = vdwg.mxu0
    %1980 = vmatprep.subr.bf16.mxu0 %v1672
    %1981 = vmatpush1.bf16.msra.mxu0 %v1671
    %1982 = vmatprep.subr.bf16.mxu0 0
    %1983 = vmatpush1.bf16.msra.mxu0 0
    %1984 = vmatprep.subr.bf16.mxu0 0
    %1985 = vmatpush1.bf16.msra.mxu0 0
    %1986 = vmatprep.subr.bf16.mxu0 0
    %1987 = vmatpush1.bf16.msra.mxu0 0
    %1988 = vmatprep.subr.bf16.mxu0 0
    %1989 = vmatpush1.bf16.msra.mxu0 0
    %1990 = vmatprep.subr.bf16.mxu0 0
    %1991 = vmatpush1.bf16.msra.mxu0 0
    %1992 = vmatprep.subr.bf16.mxu0 0
    %1993 = vmatpush1.bf16.msra.mxu0 0
    %1994 = vmatprep.subr.bf16.mxu0 0
    %1995 = vmatpush1.bf16.msra.mxu0 0
    %1996 = vmatprep.subr.bf16.mxu0 0
    %1997 = vmatpush1.bf16.msra.mxu0 0
    %1998 = vmatprep.subr.bf16.mxu0 0
    %1999 = vmatpush1.bf16.msra.mxu0 0
    %2000 = vmatprep.subr.bf16.mxu0 0
    %2001 = vmatpush1.bf16.msra.mxu0 0
    %2002 = vmatprep.subr.bf16.mxu0 0
    %2003 = vmatpush1.bf16.msra.mxu0 0
    %2004 = vmatprep.subr.bf16.mxu0 0
    %2005 = vmatpush1.bf16.msra.mxu0 0
    %2006 = vmatprep.subr.bf16.mxu0 0
    %2007 = vmatpush1.bf16.msra.mxu0 0
    %2008 = vmatprep.subr.bf16.mxu0 0
    %2009 = vmatpush1.bf16.msra.mxu0 0
    %2010 = vmatprep.subr.bf16.mxu0 0
    %2011 = vmatpush1.bf16.msra.mxu0 0
    %2012 = vmatprep.mubr.bf16.mxu0 0
    %2013 = vmatmul.mubr.bf16.gmra.mrb[0].mxu0 %v1691
    %v2014 = vpop.f32.mrb[0].mxu0
    %v2015 = vadd.f32 %v1588, %v2014
    %v2016 = vpop.f32.mrb[0].mxu0
    %v2017 = vadd.f32 %v1592, %v2016
    %v2018 = vpop.f32.mrb[0].mxu0
    %v2019 = vpop.f32.mrb[0].mxu0
    %2020 = vdwg.mxu0
    %vm2021 = vcmask 123904
    %2022 = vst.msk [vmem:[#allocation2] sm:$0x3] %vm2021, %v1493
    %2024 = vrot.lane.b32.xlu0 %v1493, 112
    %v2025 = vpop.permute.xlu0 %2024
    %2027 = vst.msk [vmem:[#allocation4] sm:$0x3] %vm2021, %v2025
    %v2028 = vmax.f32 %v1728, 0.0
    %v2029 = vmax.f32 %v1730, 0.0
    %v2030 = vmax.f32 %v1769, 0.0
    %v2031 = vmax.f32 %v1771, 0.0
    %v2032 = vmax.f32 %v1810, 0.0
    %v2033 = vmax.f32 %v1812, 0.0
    %v2034 = vmax.f32 %v1851, 0.0
    %v2035 = vmax.f32 %v1853, 0.0
    %v2036 = vmax.f32 %v1892, 0.0
    %v2037 = vmax.f32 %v1894, 0.0
    %v2038 = vmax.f32 %v1933, 0.0
    %v2039 = vmax.f32 %v1935, 0.0
    %v2040 = vmax.f32 %v1974, 0.0
    %v2041 = vmax.f32 %v1976, 0.0
    %v2042 = vmax.f32 %v2015, 0.0
    %v2043 = vmax.f32 %v2017, 0.0
    %v2060 = vcombine.low %v2028, %v2029
    %v2061 = vcombine.low %v2030, %v2031
    %v2063 = vunpack.c.l.s4 1983009808
    %v2064 = vunpack.c.0.s8 %v2063
    %v2065 = vlaneseq
    %v2066 = vshrl.u32 %v2065, 7
    %v2067 = vsub.s32 %v2064, %v2066
    %v2068 = vrot.slane %v2060, %v2067
    %v2070 = vunpack.c.l.s4 1983009808
    %v2071 = vunpack.c.0.s8 %v2070
    %v2072 = vlaneseq
    %v2073 = vshrl.u32 %v2072, 7
    %v2074 = vsub.s32 %v2071, %v2073
    %v2075 = vrot.slane %v2061, %v2074
    %v2076 = vcombine.low %v2068, %v2075
    %v2077 = vcombine.low %v2032, %v2033
    %v2078 = vcombine.low %v2034, %v2035
    %v2080 = vunpack.c.l.s4 1983009808
    %v2081 = vunpack.c.0.s8 %v2080
    %v2082 = vlaneseq
    %v2083 = vshrl.u32 %v2082, 7
    %v2084 = vsub.s32 %v2081, %v2083
    %v2085 = vrot.slane %v2077, %v2084
    %v2087 = vunpack.c.l.s4 1983009808
    %v2088 = vunpack.c.0.s8 %v2087
    %v2089 = vlaneseq
    %v2090 = vshrl.u32 %v2089, 7
    %v2091 = vsub.s32 %v2088, %v2090
    %v2092 = vrot.slane %v2078, %v2091
    %v2093 = vcombine.low %v2085, %v2092
    %v2094 = vcombine.low %v2036, %v2037
    %v2095 = vcombine.low %v2038, %v2039
    %v2097 = vunpack.c.l.s4 1983009808
    %v2098 = vunpack.c.0.s8 %v2097
    %v2099 = vlaneseq
    %v2100 = vshrl.u32 %v2099, 7
    %v2101 = vsub.s32 %v2098, %v2100
    %v2102 = vrot.slane %v2094, %v2101
    %v2104 = vunpack.c.l.s4 1983009808
    %v2105 = vunpack.c.0.s8 %v2104
    %v2106 = vlaneseq
    %v2107 = vshrl.u32 %v2106, 7
    %v2108 = vsub.s32 %v2105, %v2107
    %v2109 = vrot.slane %v2095, %v2108
    %v2110 = vcombine.low %v2102, %v2109
    %v2111 = vcombine.low %v2040, %v2041
    %v2112 = vcombine.low %v2042, %v2043
    %v2114 = vunpack.c.l.s4 1983009808
    %v2115 = vunpack.c.0.s8 %v2114
    %v2116 = vlaneseq
    %v2117 = vshrl.u32 %v2116, 7
    %v2118 = vsub.s32 %v2115, %v2117
    %v2119 = vrot.slane %v2111, %v2118
    %v2121 = vunpack.c.l.s4 1983009808
    %v2122 = vunpack.c.0.s8 %v2121
    %v2123 = vlaneseq
    %v2124 = vshrl.u32 %v2123, 7
    %v2125 = vsub.s32 %v2122, %v2124
    %v2126 = vrot.slane %v2112, %v2125
    %v2127 = vcombine.low %v2119, %v2126
    %2132 = vst [vmem:[%s8] sm:$0xff] %v2076
    %2133 = vst [vmem:[%s8 + $0x8] sm:$0xff] %v2093
    %2134 = vst [vmem:[%s8 + $0x10] sm:$0xff] %v2110
    %2135 = vst [vmem:[%s8 + $0x18] sm:$0xff] %v2127
    // Predicated region
    $region26: #{cvae_forward.7} parent=1 // pred_check
      _
    $region27: #{cvae_forward.7} parent=1 // pred_check_branch
      %2137 = sbr.rel (0) target = $region29
    $region28: #{cvae_forward.7} parent=1 // pred_region
      %s2139 = ssub.s32 32, 32
      %2140 = vsyncadd [#allocation3], %s2139
      %s2142 = sshll.u32 [#allocation2], 4
      %s2143 = int_to_ptr.vmem [resolvable:$true] %s2142
      %2145 = dma.vmem_to_hbm [thread:$0]  %s2143, 32, %s6, [#allocation3]
    $region29: #{cvae_forward.7} parent=1 // pred_fallthru
      _
    // Predicated region
    $region30: #{cvae_forward.7} parent=1 // pred_check
      _
    $region31: #{cvae_forward.7} parent=1 // pred_check_branch
      %2147 = sbr.rel (0) target = $region33
    $region32: #{cvae_forward.7} parent=1 // pred_region
      %s2149 = ssub.s32 32, 32
      %2150 = vsyncadd [#allocation5], %s2149
      %s2152 = sshll.u32 [#allocation4], 4
      %s2153 = int_to_ptr.vmem [resolvable:$true] %s2152
      %2155 = dma.vmem_to_hbm [thread:$0]  %s2153, 32, %s7, [#allocation5]
    $region33: #{cvae_forward.7} parent=1 // pred_fallthru
      _
    // Predicated region
    $region34: #{cvae_forward.7} parent=1 // pred_check
      _
    $region35: #{cvae_forward.7} parent=1 // pred_check_branch
      %2157 = sbr.rel (0) target = $region37
    $region36: #{cvae_forward.7} parent=1 // pred_region
      _
    $region37: #{cvae_forward.7} parent=1 // pred_fallthru
      _
    // Predicated region
    $region38: #{cvae_forward.7} parent=1 // pred_check
      _
    $region39: #{cvae_forward.7} parent=1 // pred_check_branch
      %2159 = sbr.rel (0) target = $region41
    $region40: #{cvae_forward.7} parent=1 // pred_region
      %2160 = dma.done [#allocation3], 32
    $region41: #{cvae_forward.7} parent=1 // pred_fallthru
      _
    // Predicated region
    $region42: #{cvae_forward.7} parent=1 // pred_check
      _
    $region43: #{cvae_forward.7} parent=1 // pred_check_branch
      %2162 = sbr.rel (0) target = $region45
    $region44: #{cvae_forward.7} parent=1 // pred_region
      %2163 = dma.done [#allocation5], 32
    $region45: #{cvae_forward.7} parent=1 // pred_fallthru
      _
    // Predicated region
    $region46: #{cvae_forward.7} parent=1 // pred_check
      _
    $region47: #{cvae_forward.7} parent=1 // pred_check_branch
      %2165 = sbr.rel (0) target = $region49
    $region48: #{cvae_forward.7} parent=1 // pred_region
      _
    $region49: #{cvae_forward.7} parent=1 // pred_fallthru
      _
    %2166 = vsyncpa [#allocation3], 1
    %2167 = vsyncpa [#allocation5], 1

// kernel: tile.18
$region0: #{tile.18}
  #allocation0 [shape = 's32[1]{0}', space=sflag, size = 0x4, scoped, tag = 'scoped memory for tile.18']
  %s0 = inlined_call_operand.vmem [shape: f32[3], index: 0, kind: input, shape index: {}]
  %s1 = inlined_call_operand.vmem [shape: f32[4,3], index: 1, kind: output, shape index: {}]
  // Predicated region
  $region2: #{tile.18} parent=0 // pred_check
    _
  $region3: #{tile.18} parent=0 // pred_check_branch
    %3 = sbr.rel (0) target = $region5
  $region4: #{tile.18} parent=0 // pred_region
    _
  $region5: #{tile.18} parent=0 // pred_fallthru
    _
  %v4 = vld [vmem:[%s0] ss:$0 sm:$0xff]
  %5 = vst [vmem:[%s1] sm:$0xf] %v4

// kernel: tile.19
$region0: #{tile.19}
  %s0 = inlined_call_operand.vmem [shape: f32[4,3], index: 0, kind: input, shape index: {}]
  %s1 = inlined_call_operand.vmem [shape: f32[12], index: 1, kind: output, shape index: {}]
  $region1: #{tile.19} parent=0
    #allocation0 [shape = 'u8[4096]{0}', space=vmem, size = 0x1000, scoped, tag = 'scoped mem for output reshape']
    #allocation1 [shape = 'u8[4096]{0}', space=vmem, size = 0x1000, scoped, tag = 'scoped mem for input reshape']
    %s3 = sshllo.u32 0, 4
    %v4 = vld [vmem:[%s0] sm:%s3]
    %5 = vst [vmem:[#allocation1] sm:%s3] %v4
    %v6 = vld [vmem:[#allocation1] sm:$0x1]
    %vm7 = vcmask 23552
    %8 = vst.msk [vmem:[#allocation0] sm:$0x1] %vm7, %v6
    %s9 = scalar_lea.vmem [#allocation1], 3
    %v10 = vld [vmem:[%s9] sm:$0x1]
    %11 = vrot.lane.b32.xlu0 %v10, 9
    %v12 = vpop.permute.xlu0 %11
    %vm13 = vcmask 97352
    %14 = vst.msk [vmem:[#allocation0] sm:$0x1] %vm13, %v12
    %s15 = scalar_lea.vmem [#allocation1], 2
    %v16 = vld [vmem:[%s15] sm:$0x1]
    %17 = vrot.lane.b32.xlu0 %v16, 6
    %v18 = vpop.permute.xlu0 %17
    %vm19 = vcmask 72752
    %20 = vst.msk [vmem:[#allocation0] sm:$0x1] %vm19, %v18
    %s21 = scalar_lea.vmem [#allocation1], 1
    %v22 = vld [vmem:[%s21] sm:$0x1]
    %23 = vrot.lane.b32.xlu0 %v22, 3
    %v24 = vpop.permute.xlu0 %23
    %vm25 = vcmask 48152
    %26 = vst.msk [vmem:[#allocation0] sm:$0x1] %vm25, %v24
    %s28 = sshllo.u32 0, 1
    %v30 = vld [vmem:[#allocation0] sm:%s28]
    %s31 = sshllo.u32 0, 1
    %32 = vst [vmem:[%s1] sm:%s31] %v30

// kernel: cvae_forward.9
$region0: #{cvae_forward.9}
  #allocation0 [shape = 'u32[]', space=smem, size = 0x4, offset = 0x4, fixed_abs, tag = 'smem constant byte address 0x4 - core index']
  #allocation1 [shape = 'u32[144,128]{1,0:T(1,128)}', space=vmem, size = 0x12000, scoped, tag = 'internal scratch']
  %s0 = inlined_call_operand.vmem [shape: bf16[2,18,18,16], index: 0, kind: input, shape index: {}]
  %s1 = inlined_call_operand.vmem [shape: bf16[9,16,128], index: 1, kind: input, shape index: {}]
  %s2 = inlined_call_operand.vmem [shape: f32[1,128], index: 2, kind: input, shape index: {}]
  %s3 = inlined_call_operand.vmem [shape: f32[512,128], index: 3, kind: output, shape index: {}]
  %s4 = sld [smem:[#allocation0]]
  $region45: #{cvae_forward.9} parent=0
    _
  %s6 = ssub.s32 1, %s4
  %s7 = scalar_select 0, %s6, %s4
  loop: start=0, step=1, limit=4
  $region2: #{cvae_forward.9} parent=0 // loop_pre_header
    _
  $region3: #{cvae_forward.9} parent=0 // loop_header
    %s9 = sphi 0, %s13
    %p10 = scmp.ge.s32.totalorder %s9, 4
    %s19 = sphi 0, %s21
    %s22 = sphi 0, %s19
    %s23 = sphi 0, %s22
    %s39 = sphi 0, %s23
    %s43 = sphi 0, %s43
    %s45 = sphi 0, %s43
    %s46 = sphi 0, %s45
    %s60 = sphi 0, %s46
    %s64 = sphi 0, %s64
    %s66 = sphi 0, %s64
    %s67 = sphi 0, %s66
    %s81 = sphi 0, %s67
    %s87 = sphi 0, %s89
    %s90 = sphi 0, %s87
    %s91 = sphi 0, %s90
    %s107 = sphi 0, %s91
  $region4: #{cvae_forward.9} parent=0 // loop_header_branch
    %12 = sbr.rel (%p10) target = $region8
  $region5: #{cvae_forward.9} parent=0 // loop_body
    %s14 = ssub.s32 %s9, 1
    %s15 = ssub.s32 %s9, 2
    %s16 = sadd.s32 %s9, 1
    %s17 = ssub.s32 %s9, %s16
    %p18 = scmp.eq.s32.totalorder %s17, 0
    %s20 = sadd.s32 %s19, 1
    %s21 = scalar_select %p18, %s19, %s20
    %p24 = pneg %p18
    %p25 = scmp.eq.s32.totalorder %s9, 1
    %p26 = por %p24, %p25
    %p27 = scmp.ne.s32.totalorder %s19, %s22
    %p28 = scmp.eq.s32.totalorder %s9, 0
    %p29 = por %p27, %p28
    %p30 = scmp.ne.s32.totalorder %s19, %s22
    %p31 = scmp.eq.s32.totalorder %s14, 1
    %p32 = por %p30, %p31
    %p33 = scmp.ne.s32.totalorder %s22, %s23
    %p34 = scmp.eq.s32.totalorder %s14, 0
    %p35 = por %p33, %p34
    %p36 = scmp.ne.s32.totalorder %s22, %s23
    %p37 = scmp.eq.s32.totalorder %s15, 1
    %p38 = por %p36, %p37
    %p40 = scmp.ne.s32.totalorder %s23, %s39
    %p41 = scmp.eq.s32.totalorder %s15, 0
    %p42 = por %p40, %p41
    %s44 = sadd.s32 %s43, 1
    %p47 = scmp.eq.s32.totalorder %s9, 1
    %p48 = scmp.ne.s32.totalorder %s43, %s45
    %p49 = scmp.eq.s32.totalorder %s9, 0
    %p50 = por %p48, %p49
    %p51 = scmp.ne.s32.totalorder %s43, %s45
    %p52 = scmp.eq.s32.totalorder %s14, 1
    %p53 = por %p51, %p52
    %p54 = scmp.ne.s32.totalorder %s45, %s46
    %p55 = scmp.eq.s32.totalorder %s14, 0
    %p56 = por %p54, %p55
    %p57 = scmp.ne.s32.totalorder %s45, %s46
    %p58 = scmp.eq.s32.totalorder %s15, 1
    %p59 = por %p57, %p58
    %p61 = scmp.ne.s32.totalorder %s46, %s60
    %p62 = scmp.eq.s32.totalorder %s15, 0
    %p63 = por %p61, %p62
    %s65 = sadd.s32 %s64, 1
    %p68 = scmp.eq.s32.totalorder %s9, 1
    %p69 = scmp.ne.s32.totalorder %s64, %s66
    %p70 = scmp.eq.s32.totalorder %s9, 0
    %p71 = por %p69, %p70
    %p72 = scmp.ne.s32.totalorder %s64, %s66
    %p73 = scmp.eq.s32.totalorder %s14, 1
    %p74 = por %p72, %p73
    %p75 = scmp.ne.s32.totalorder %s66, %s67
    %p76 = scmp.eq.s32.totalorder %s14, 0
    %p77 = por %p75, %p76
    %p78 = scmp.ne.s32.totalorder %s66, %s67
    %p79 = scmp.eq.s32.totalorder %s15, 1
    %p80 = por %p78, %p79
    %p82 = scmp.ne.s32.totalorder %s67, %s81
    %p83 = scmp.eq.s32.totalorder %s15, 0
    %p84 = por %p82, %p83
    %s85 = ssub.s32 %s9, %s16
    %p86 = scmp.eq.s32.totalorder %s85, 0
    %s88 = sadd.s32 %s87, 1
    %s89 = scalar_select %p86, %s87, %s88
    %p92 = pneg %p86
    %p93 = scmp.eq.s32.totalorder %s9, 1
    %p94 = por %p92, %p93
    %p95 = scmp.ne.s32.totalorder %s87, %s90
    %p96 = scmp.eq.s32.totalorder %s9, 0
    %p97 = por %p95, %p96
    %p98 = scmp.ne.s32.totalorder %s87, %s90
    %p99 = scmp.eq.s32.totalorder %s14, 1
    %p100 = por %p98, %p99
    %p101 = scmp.ne.s32.totalorder %s90, %s91
    %p102 = scmp.eq.s32.totalorder %s14, 0
    %p103 = por %p101, %p102
    %p104 = scmp.ne.s32.totalorder %s90, %s91
    %p105 = scmp.eq.s32.totalorder %s15, 1
    %p106 = por %p104, %p105
    %p108 = scmp.ne.s32.totalorder %s91, %s107
    %p109 = scmp.eq.s32.totalorder %s15, 0
    %p110 = por %p108, %p109
    %p111 = scmp.le.s32.totalorder 1, %s9
    %p112 = scmp.lt.s32.totalorder %s9, 3
    %p113 = pnand %p111, %p112
    %p114 = pneg %p113
    // Predicated region
    $region9: #{cvae_forward.9} parent=5 // pred_check
      _
    $region10: #{cvae_forward.9} parent=5 // pred_check_branch
      %116 = sbr.rel (%p113) target = $region12
    $region11: #{cvae_forward.9} parent=5 // pred_region
      %s117 = ssub.s32 %s9, 1
      // Predicated region
      $region13: #{cvae_forward.9} parent=11 // pred_check
        %p118 = pneg %p56
      $region14: #{cvae_forward.9} parent=11 // pred_check_branch
        %120 = sbr.rel (%p118) target = $region16
      $region15: #{cvae_forward.9} parent=11 // pred_region
        _
      $region16: #{cvae_forward.9} parent=11 // pred_fallthru
        _
      // Predicated region
      $region17: #{cvae_forward.9} parent=11 // pred_check
        %p121 = pneg %p77
      $region18: #{cvae_forward.9} parent=11 // pred_check_branch
        %123 = sbr.rel (%p121) target = $region20
      $region19: #{cvae_forward.9} parent=11 // pred_region
        _
      $region20: #{cvae_forward.9} parent=11 // pred_fallthru
        _
    $region12: #{cvae_forward.9} parent=5 // pred_fallthru
      _
    %p124 = scmp.lt.s32.totalorder %s9, 2
    // Predicated region
    $region21: #{cvae_forward.9} parent=5 // pred_check
      %p125 = pneg %p124
    $region22: #{cvae_forward.9} parent=5 // pred_check_branch
      %127 = sbr.rel (%p125) target = $region24
    $region23: #{cvae_forward.9} parent=5 // pred_region
      // Predicated region
      $region25: #{cvae_forward.9} parent=23 // pred_check
        %p128 = pneg %p29
      $region26: #{cvae_forward.9} parent=23 // pred_check_branch
        %130 = sbr.rel (%p128) target = $region28
      $region27: #{cvae_forward.9} parent=23 // pred_region
        %p131 = scmp.lt.s32.totalorder %s9, 1
        %s132 = scalar_select %p131, %s9, 1
        %s133 = smul.addr %s132, 54
        %s134 = smul.addr %s133, 4
        %s135 = scalar_lea.vmem %s0, %s134
      $region28: #{cvae_forward.9} parent=23 // pred_fallthru
        _
    $region24: #{cvae_forward.9} parent=5 // pred_fallthru
      _
    %p136 = scmp.le.s32.totalorder 1, %s9
    %p137 = scmp.lt.s32.totalorder %s9, 3
    %p138 = pnand %p136, %p137
    %p139 = pneg %p138
    // Predicated region
    $region29: #{cvae_forward.9} parent=5 // pred_check
      _
    $region30: #{cvae_forward.9} parent=5 // pred_check_branch
      %141 = sbr.rel (%p138) target = $region32
    $region31: #{cvae_forward.9} parent=5 // pred_region
      %s142 = ssub.s32 %s9, 1
      %p143 = scmp.lt.s32.totalorder %s14, 1
      %s144 = scalar_select %p143, %s14, 1
      %s145 = smul.addr %s144, 54
      %s146 = smul.addr %s145, 4
      %s147 = scalar_lea.vmem %s0, %s146
      %p148 = pneg %p35
      %p149 = pneg %p32
      %p150 = pneg %p56
      %p151 = pneg %p53
      %p152 = pneg %p77
      %p153 = pneg %p74
      %p154 = pneg %p103
      %p155 = pneg %p100
      %s156 = smul.u32 32, %s14
      %p157 = scmp.lt.s32.totalorder %s156, 63
      %s158 = scalar_select %p157, %s156, 63
      %s159 = smul.addr %s158, 8
      %s160 = scalar_lea.vmem %s3, %s159
      %p161 = scmp.lt.s32.totalorder %s14, 1
      %s162 = scalar_select %p161, %s14, 1
      %s163 = smul.addr %s162, 54
      %s164 = smul.addr %s163, 4
      %s165 = scalar_lea.vmem %s0, %s164
      %s166 = smul.u32 32, %s14
      %p167 = scmp.lt.s32.totalorder %s166, 63
      %s168 = scalar_select %p167, %s166, 63
      %s169 = smul.addr %s168, 8
      %s170 = scalar_lea.vmem %s3, %s169
      %s171 = smul.u32 32, %s14
      %v173 = vld [vmem:[%s165] sm:$0xf]
      %v174 = vld [vmem:[%s165 + $0x4] sm:$0xf]
      %v175 = vld [vmem:[%s165 + $0x8] sm:$0x1]
      %v176 = vld [vmem:[%s165 + $0xc] sm:$0xf]
      %v177 = vld [vmem:[%s165 + $0x10] sm:$0xf]
      %v178 = vld [vmem:[%s165 + $0x14] sm:$0x1]
      %v179 = vld [vmem:[%s165 + $0x18] sm:$0xf]
      %v180 = vld [vmem:[%s165 + $0x1c] sm:$0xf]
      %v181 = vld [vmem:[%s165 + $0x20] sm:$0x1]
      %v182 = vld [vmem:[%s165 + $0x24] sm:$0xf]
      %v183 = vld [vmem:[%s165 + $0x28] sm:$0xf]
      %v184 = vld [vmem:[%s165 + $0x2c] sm:$0x1]
      %v185 = vld [vmem:[%s165 + $0x30] sm:$0xf]
      %v186 = vld [vmem:[%s165 + $0x34] sm:$0xf]
      %v187 = vld [vmem:[%s165 + $0x38] sm:$0x1]
      %v188 = vld [vmem:[%s165 + $0x3c] sm:$0xf]
      %v189 = vld [vmem:[%s165 + $0x40] sm:$0xf]
      %v190 = vld [vmem:[%s165 + $0x44] sm:$0x1]
      %v191 = vld [vmem:[%s165 + $0x48] sm:$0xf]
      %v192 = vld [vmem:[%s165 + $0x4c] sm:$0xf]
      %v193 = vld [vmem:[%s165 + $0x50] sm:$0x1]
      %v194 = vld [vmem:[%s165 + $0x54] sm:$0xf]
      %v195 = vld [vmem:[%s165 + $0x58] sm:$0xf]
      %v196 = vld [vmem:[%s165 + $0x5c] sm:$0x1]
      %v197 = vld [vmem:[%s165 + $0x60] sm:$0xf]
      %v198 = vld [vmem:[%s165 + $0x64] sm:$0xf]
      %v199 = vld [vmem:[%s165 + $0x68] sm:$0x1]
      %v200 = vld [vmem:[%s165 + $0x6c] sm:$0xf]
      %v201 = vld [vmem:[%s165 + $0x70] sm:$0xf]
      %v202 = vld [vmem:[%s165 + $0x74] sm:$0x1]
      %v203 = vld [vmem:[%s165 + $0x78] sm:$0xf]
      %v204 = vld [vmem:[%s165 + $0x7c] sm:$0xf]
      %v205 = vld [vmem:[%s165 + $0x80] sm:$0x1]
      %v206 = vld [vmem:[%s165 + $0x84] sm:$0xf]
      %v207 = vld [vmem:[%s165 + $0x88] sm:$0xf]
      %v208 = vld [vmem:[%s165 + $0x8c] sm:$0x1]
      %v209 = vld [vmem:[%s165 + $0x90] sm:$0xf]
      %v210 = vld [vmem:[%s165 + $0x94] sm:$0xf]
      %v211 = vld [vmem:[%s165 + $0x98] sm:$0x1]
      %v212 = vld [vmem:[%s165 + $0x9c] sm:$0xf]
      %v213 = vld [vmem:[%s165 + $0xa0] sm:$0xf]
      %v214 = vld [vmem:[%s165 + $0xa4] sm:$0x1]
      %v215 = vld [vmem:[%s165 + $0xa8] sm:$0xf]
      %v216 = vld [vmem:[%s165 + $0xac] sm:$0xf]
      %v217 = vld [vmem:[%s165 + $0xb0] sm:$0x1]
      %v218 = vld [vmem:[%s165 + $0xb4] sm:$0xf]
      %v219 = vld [vmem:[%s165 + $0xb8] sm:$0xf]
      %v220 = vld [vmem:[%s165 + $0xbc] sm:$0x1]
      %v221 = vld [vmem:[%s165 + $0xc0] sm:$0xf]
      %v222 = vld [vmem:[%s165 + $0xc4] sm:$0xf]
      %v223 = vld [vmem:[%s165 + $0xc8] sm:$0x1]
      %v224 = vld [vmem:[%s165 + $0xcc] sm:$0xf]
      %v225 = vld [vmem:[%s165 + $0xd0] sm:$0xf]
      %v226 = vld [vmem:[%s165 + $0xd4] sm:$0x1]
      %v227 = vld [vmem:[%s1] sm:$0xf]
      %v228 = vld [vmem:[%s1 + $0x4] sm:$0xf]
      %vm229 = vsmask.f32 3328
      %vm230 = vsmask.f32 7440
      %vm231 = vmor %vm229, %vm230
      %v233 = vshrl.u32 %v173, 16
      %v235 = vrot.slane %v233, 4
      %v236 = vshll.u32 %v173, 16
      %v238 = vrot.slane %v236, 5
      %v239 = vor.u32 %v235, %v238
      %v240 = vrot.slane %v239, 4
      %v242 = vshll.u32 %v174, 16
      %v244 = vrot.slane %v242, 5
      %v245 = vsel %vm231, %v240, %v244
      %v246 = vshrl.u32 %v174, 16
      %v248 = vrot.slane %v246, 4
      %v249 = vor.u32 %v248, %v244
      %v250 = vrot.slane %v249, 4
      %v252 = vshll.u32 %v175, 16
      %v254 = vrot.slane %v252, 5
      %v255 = vsel %vm231, %v250, %v254
      %v257 = vshrl.u32 %v176, 16
      %v259 = vrot.slane %v257, 4
      %v260 = vshll.u32 %v176, 16
      %v262 = vrot.slane %v260, 5
      %v263 = vor.u32 %v259, %v262
      %v264 = vrot.slane %v263, 4
      %v266 = vshll.u32 %v177, 16
      %v268 = vrot.slane %v266, 5
      %v269 = vsel %vm231, %v264, %v268
      %v270 = vshrl.u32 %v177, 16
      %v272 = vrot.slane %v270, 4
      %v273 = vor.u32 %v272, %v268
      %v274 = vrot.slane %v273, 4
      %v276 = vshll.u32 %v178, 16
      %v278 = vrot.slane %v276, 5
      %v279 = vsel %vm231, %v274, %v278
      %v281 = vshrl.u32 %v179, 16
      %v283 = vrot.slane %v281, 4
      %v284 = vshll.u32 %v179, 16
      %v286 = vrot.slane %v284, 5
      %v287 = vor.u32 %v283, %v286
      %v288 = vrot.slane %v287, 4
      %v290 = vshll.u32 %v180, 16
      %v292 = vrot.slane %v290, 5
      %v293 = vsel %vm231, %v288, %v292
      %v294 = vshrl.u32 %v180, 16
      %v296 = vrot.slane %v294, 4
      %v297 = vor.u32 %v296, %v292
      %v298 = vrot.slane %v297, 4
      %v300 = vshll.u32 %v181, 16
      %v302 = vrot.slane %v300, 5
      %v303 = vsel %vm231, %v298, %v302
      %v305 = vshrl.u32 %v182, 16
      %v307 = vrot.slane %v305, 4
      %v308 = vshll.u32 %v182, 16
      %v310 = vrot.slane %v308, 5
      %v311 = vor.u32 %v307, %v310
      %v312 = vrot.slane %v311, 4
      %v314 = vshll.u32 %v183, 16
      %v316 = vrot.slane %v314, 5
      %v317 = vsel %vm231, %v312, %v316
      %v318 = vshrl.u32 %v183, 16
      %v320 = vrot.slane %v318, 4
      %v321 = vor.u32 %v320, %v316
      %v322 = vrot.slane %v321, 4
      %v324 = vshll.u32 %v184, 16
      %v326 = vrot.slane %v324, 5
      %v327 = vsel %vm231, %v322, %v326
      %v329 = vshrl.u32 %v185, 16
      %v331 = vrot.slane %v329, 4
      %v332 = vshll.u32 %v185, 16
      %v334 = vrot.slane %v332, 5
      %v335 = vor.u32 %v331, %v334
      %v336 = vrot.slane %v335, 4
      %v338 = vshll.u32 %v186, 16
      %v340 = vrot.slane %v338, 5
      %v341 = vsel %vm231, %v336, %v340
      %v342 = vshrl.u32 %v186, 16
      %v344 = vrot.slane %v342, 4
      %v345 = vor.u32 %v344, %v340
      %v346 = vrot.slane %v345, 4
      %v348 = vshll.u32 %v187, 16
      %v350 = vrot.slane %v348, 5
      %v351 = vsel %vm231, %v346, %v350
      %v353 = vshrl.u32 %v188, 16
      %v355 = vrot.slane %v353, 4
      %v356 = vshll.u32 %v188, 16
      %v358 = vrot.slane %v356, 5
      %v359 = vor.u32 %v355, %v358
      %v360 = vrot.slane %v359, 4
      %v362 = vshll.u32 %v189, 16
      %v364 = vrot.slane %v362, 5
      %v365 = vsel %vm231, %v360, %v364
      %v366 = vshrl.u32 %v189, 16
      %v368 = vrot.slane %v366, 4
      %v369 = vor.u32 %v368, %v364
      %v370 = vrot.slane %v369, 4
      %v372 = vshll.u32 %v190, 16
      %v374 = vrot.slane %v372, 5
      %v375 = vsel %vm231, %v370, %v374
      %v377 = vshrl.u32 %v191, 16
      %v379 = vrot.slane %v377, 4
      %v380 = vshll.u32 %v191, 16
      %v382 = vrot.slane %v380, 5
      %v383 = vor.u32 %v379, %v382
      %v384 = vrot.slane %v383, 4
      %v386 = vshll.u32 %v192, 16
      %v388 = vrot.slane %v386, 5
      %v389 = vsel %vm231, %v384, %v388
      %v390 = vshrl.u32 %v192, 16
      %v392 = vrot.slane %v390, 4
      %v393 = vor.u32 %v392, %v388
      %v394 = vrot.slane %v393, 4
      %v396 = vshll.u32 %v193, 16
      %v398 = vrot.slane %v396, 5
      %v399 = vsel %vm231, %v394, %v398
      %v401 = vshrl.u32 %v194, 16
      %v403 = vrot.slane %v401, 4
      %v404 = vshll.u32 %v194, 16
      %v406 = vrot.slane %v404, 5
      %v407 = vor.u32 %v403, %v406
      %v408 = vrot.slane %v407, 4
      %v410 = vshll.u32 %v195, 16
      %v412 = vrot.slane %v410, 5
      %v413 = vsel %vm231, %v408, %v412
      %v414 = vshrl.u32 %v195, 16
      %v416 = vrot.slane %v414, 4
      %v417 = vor.u32 %v416, %v412
      %v418 = vrot.slane %v417, 4
      %v420 = vshll.u32 %v196, 16
      %v422 = vrot.slane %v420, 5
      %v423 = vsel %vm231, %v418, %v422
      %v425 = vshrl.u32 %v197, 16
      %v427 = vrot.slane %v425, 4
      %v428 = vshll.u32 %v197, 16
      %v430 = vrot.slane %v428, 5
      %v431 = vor.u32 %v427, %v430
      %v432 = vrot.slane %v431, 4
      %v434 = vshll.u32 %v198, 16
      %v436 = vrot.slane %v434, 5
      %v437 = vsel %vm231, %v432, %v436
      %v438 = vshrl.u32 %v198, 16
      %v440 = vrot.slane %v438, 4
      %v441 = vor.u32 %v440, %v436
      %v442 = vrot.slane %v441, 4
      %v444 = vshll.u32 %v199, 16
      %v446 = vrot.slane %v444, 5
      %v447 = vsel %vm231, %v442, %v446
      %v449 = vshrl.u32 %v200, 16
      %v451 = vrot.slane %v449, 4
      %v452 = vshll.u32 %v200, 16
      %v454 = vrot.slane %v452, 5
      %v455 = vor.u32 %v451, %v454
      %v456 = vrot.slane %v455, 4
      %v458 = vshll.u32 %v201, 16
      %v460 = vrot.slane %v458, 5
      %v461 = vsel %vm231, %v456, %v460
      %v462 = vshrl.u32 %v201, 16
      %v464 = vrot.slane %v462, 4
      %v465 = vor.u32 %v464, %v460
      %v466 = vrot.slane %v465, 4
      %v468 = vshll.u32 %v202, 16
      %v470 = vrot.slane %v468, 5
      %v471 = vsel %vm231, %v466, %v470
      %v473 = vshrl.u32 %v203, 16
      %v475 = vrot.slane %v473, 4
      %v476 = vshll.u32 %v203, 16
      %v478 = vrot.slane %v476, 5
      %v479 = vor.u32 %v475, %v478
      %v480 = vrot.slane %v479, 4
      %v482 = vshll.u32 %v204, 16
      %v484 = vrot.slane %v482, 5
      %v485 = vsel %vm231, %v480, %v484
      %v486 = vshrl.u32 %v204, 16
      %v488 = vrot.slane %v486, 4
      %v489 = vor.u32 %v488, %v484
      %v490 = vrot.slane %v489, 4
      %v492 = vshll.u32 %v205, 16
      %v494 = vrot.slane %v492, 5
      %v495 = vsel %vm231, %v490, %v494
      %v497 = vshrl.u32 %v206, 16
      %v499 = vrot.slane %v497, 4
      %v500 = vshll.u32 %v206, 16
      %v502 = vrot.slane %v500, 5
      %v503 = vor.u32 %v499, %v502
      %v504 = vrot.slane %v503, 4
      %v506 = vshll.u32 %v207, 16
      %v508 = vrot.slane %v506, 5
      %v509 = vsel %vm231, %v504, %v508
      %v510 = vshrl.u32 %v207, 16
      %v512 = vrot.slane %v510, 4
      %v513 = vor.u32 %v512, %v508
      %v514 = vrot.slane %v513, 4
      %v516 = vshll.u32 %v208, 16
      %v518 = vrot.slane %v516, 5
      %v519 = vsel %vm231, %v514, %v518
      %v521 = vshrl.u32 %v209, 16
      %v523 = vrot.slane %v521, 4
      %v524 = vshll.u32 %v209, 16
      %v526 = vrot.slane %v524, 5
      %v527 = vor.u32 %v523, %v526
      %v528 = vrot.slane %v527, 4
      %v530 = vshll.u32 %v210, 16
      %v532 = vrot.slane %v530, 5
      %v533 = vsel %vm231, %v528, %v532
      %v534 = vshrl.u32 %v210, 16
      %v536 = vrot.slane %v534, 4
      %v537 = vor.u32 %v536, %v532
      %v538 = vrot.slane %v537, 4
      %v540 = vshll.u32 %v211, 16
      %v542 = vrot.slane %v540, 5
      %v543 = vsel %vm231, %v538, %v542
      %v545 = vshrl.u32 %v212, 16
      %v547 = vrot.slane %v545, 4
      %v548 = vshll.u32 %v212, 16
      %v550 = vrot.slane %v548, 5
      %v551 = vor.u32 %v547, %v550
      %v552 = vrot.slane %v551, 4
      %v554 = vshll.u32 %v213, 16
      %v556 = vrot.slane %v554, 5
      %v557 = vsel %vm231, %v552, %v556
      %v558 = vshrl.u32 %v213, 16
      %v560 = vrot.slane %v558, 4
      %v561 = vor.u32 %v560, %v556
      %v562 = vrot.slane %v561, 4
      %v564 = vshll.u32 %v214, 16
      %v566 = vrot.slane %v564, 5
      %v567 = vsel %vm231, %v562, %v566
      %v569 = vshrl.u32 %v215, 16
      %v571 = vrot.slane %v569, 4
      %v572 = vshll.u32 %v215, 16
      %v574 = vrot.slane %v572, 5
      %v575 = vor.u32 %v571, %v574
      %v576 = vrot.slane %v575, 4
      %v578 = vshll.u32 %v216, 16
      %v580 = vrot.slane %v578, 5
      %v581 = vsel %vm231, %v576, %v580
      %v582 = vshrl.u32 %v216, 16
      %v584 = vrot.slane %v582, 4
      %v585 = vor.u32 %v584, %v580
      %v586 = vrot.slane %v585, 4
      %v588 = vshll.u32 %v217, 16
      %v590 = vrot.slane %v588, 5
      %v591 = vsel %vm231, %v586, %v590
      %v593 = vshrl.u32 %v218, 16
      %v595 = vrot.slane %v593, 4
      %v596 = vshll.u32 %v218, 16
      %v598 = vrot.slane %v596, 5
      %v599 = vor.u32 %v595, %v598
      %v600 = vrot.slane %v599, 4
      %v602 = vshll.u32 %v219, 16
      %v604 = vrot.slane %v602, 5
      %v605 = vsel %vm231, %v600, %v604
      %v606 = vshrl.u32 %v219, 16
      %v608 = vrot.slane %v606, 4
      %v609 = vor.u32 %v608, %v604
      %v610 = vrot.slane %v609, 4
      %v612 = vshll.u32 %v220, 16
      %v614 = vrot.slane %v612, 5
      %v615 = vsel %vm231, %v610, %v614
      %s616 = scalar_lea.vmem %s1, 8
      %v617 = vld [vmem:[%s616] sm:$0xf]
      %v618 = vld [vmem:[%s616 + $0x4] sm:$0xf]
      %v619 = vunpack.c.l.b16 %v245
      %v620 = vunpack.c.l.b16 %v255
      %v621 = vunpack.c.l.b16 %v269
      %v622 = vunpack.c.l.b16 %v279
      %v623 = vunpack.c.l.b16 %v293
      %v624 = vunpack.c.l.b16 %v303
      %v625 = vunpack.c.l.b16 %v317
      %v626 = vunpack.c.l.b16 %v327
      %v627 = vunpack.c.l.b16 %v341
      %v628 = vunpack.c.l.b16 %v351
      %v629 = vunpack.c.l.b16 %v365
      %v630 = vunpack.c.l.b16 %v375
      %v631 = vunpack.c.l.b16 %v389
      %v632 = vunpack.c.l.b16 %v399
      %v633 = vunpack.c.l.b16 %v413
      %v634 = vunpack.c.l.b16 %v423
      %v635 = vunpack.c.l.b16 %v437
      %v636 = vunpack.c.l.b16 %v447
      %v637 = vunpack.c.l.b16 %v461
      %v638 = vunpack.c.l.b16 %v471
      %v639 = vunpack.c.l.b16 %v485
      %v640 = vunpack.c.l.b16 %v495
      %v641 = vunpack.c.l.b16 %v509
      %v642 = vunpack.c.l.b16 %v519
      %v643 = vunpack.c.l.b16 %v533
      %v644 = vunpack.c.l.b16 %v543
      %v645 = vunpack.c.l.b16 %v557
      %v646 = vunpack.c.l.b16 %v567
      %v647 = vunpack.c.l.b16 %v581
      %v648 = vunpack.c.l.b16 %v591
      %v649 = vunpack.c.l.b16 %v605
      %v650 = vunpack.c.l.b16 %v615
      %v651 = vpack.c.b16 %v620, %v619
      %v652 = vpack.c.b16 %v622, %v621
      %v653 = vpack.c.b16 %v624, %v623
      %v654 = vpack.c.b16 %v626, %v625
      %v655 = vpack.c.b16 %v628, %v627
      %v656 = vpack.c.b16 %v630, %v629
      %v657 = vpack.c.b16 %v632, %v631
      %v658 = vpack.c.b16 %v634, %v633
      %v659 = vpack.c.b16 %v636, %v635
      %v660 = vpack.c.b16 %v638, %v637
      %v661 = vpack.c.b16 %v640, %v639
      %v662 = vpack.c.b16 %v642, %v641
      %v663 = vpack.c.b16 %v644, %v643
      %v664 = vpack.c.b16 %v646, %v645
      %v665 = vpack.c.b16 %v648, %v647
      %v666 = vpack.c.b16 %v650, %v649
      %v669 = vunpack.c.l.b16 %v617
      %v670 = vunpack.c.l.b16 %v618
      %v671 = vpack.c.b16 %v670, %v669
      %vm673 = vcmask 130048
      %v675 = vsel %vm673, %v651, 0
      %v678 = vsel %vm673, %v652, 0
      %v681 = vsel %vm673, %v653, 0
      %v684 = vsel %vm673, %v654, 0
      %v687 = vsel %vm673, %v655, 0
      %v690 = vsel %vm673, %v656, 0
      %v693 = vsel %vm673, %v657, 0
      %v696 = vsel %vm673, %v658, 0
      %v699 = vsel %vm673, %v659, 0
      %v702 = vsel %vm673, %v660, 0
      %v705 = vsel %vm673, %v661, 0
      %v708 = vsel %vm673, %v662, 0
      %v711 = vsel %vm673, %v663, 0
      %v714 = vsel %vm673, %v664, 0
      %v717 = vsel %vm673, %v665, 0
      %v720 = vsel %vm673, %v666, 0
      %722 = vmatprep.subr.bf16.mxu0 0
      %723 = vmatpush1.bf16.msra.mxu0 %v671
      %724 = vmatprep.subr.bf16.mxu0 0
      %725 = vmatpush1.bf16.msra.mxu0 0
      %726 = vmatprep.subr.bf16.mxu0 0
      %727 = vmatpush1.bf16.msra.mxu0 0
      %728 = vmatprep.subr.bf16.mxu0 0
      %729 = vmatpush1.bf16.msra.mxu0 0
      %730 = vmatprep.subr.bf16.mxu0 0
      %731 = vmatpush1.bf16.msra.mxu0 0
      %732 = vmatprep.subr.bf16.mxu0 0
      %733 = vmatpush1.bf16.msra.mxu0 0
      %734 = vmatprep.subr.bf16.mxu0 0
      %735 = vmatpush1.bf16.msra.mxu0 0
      %736 = vmatprep.subr.bf16.mxu0 0
      %737 = vmatpush1.bf16.msra.mxu0 0
      %738 = vmatprep.subr.bf16.mxu0 0
      %739 = vmatpush1.bf16.msra.mxu0 0
      %740 = vmatprep.subr.bf16.mxu0 0
      %741 = vmatpush1.bf16.msra.mxu0 0
      %742 = vmatprep.subr.bf16.mxu0 0
      %743 = vmatpush1.bf16.msra.mxu0 0
      %744 = vmatprep.subr.bf16.mxu0 0
      %745 = vmatpush1.bf16.msra.mxu0 0
      %746 = vmatprep.subr.bf16.mxu0 0
      %747 = vmatpush1.bf16.msra.mxu0 0
      %748 = vmatprep.subr.bf16.mxu0 0
      %749 = vmatpush1.bf16.msra.mxu0 0
      %750 = vmatprep.subr.bf16.mxu0 0
      %751 = vmatpush1.bf16.msra.mxu0 0
      %752 = vmatprep.subr.bf16.mxu0 0
      %753 = vmatpush1.bf16.msra.mxu0 0
      %754 = vmatprep.mubr.bf16.mxu0 0
      %755 = vmatmul.mubr.bf16.gmra.mrb[0].mxu0 %v675
      %v756 = vpop.f32.mrb[0].mxu0
      %v757 = vadd.f32 0.0, %v756
      %v758 = vpop.f32.mrb[0].mxu0
      %v759 = vpop.f32.mrb[0].mxu0
      %v760 = vadd.f32 0.0, %v759
      %v761 = vpop.f32.mrb[0].mxu0
      %762 = vmatprep.mubr.bf16.mxu0 0
      %763 = vmatmul.mubr.bf16.gmra.mrb[0].mxu0 %v678
      %v764 = vpop.f32.mrb[0].mxu0
      %v765 = vadd.f32 0.0, %v764
      %v766 = vpop.f32.mrb[0].mxu0
      %v767 = vpop.f32.mrb[0].mxu0
      %v768 = vadd.f32 0.0, %v767
      %v769 = vpop.f32.mrb[0].mxu0
      %770 = vmatprep.mubr.bf16.mxu0 0
      %771 = vmatmul.mubr.bf16.gmra.mrb[0].mxu0 %v681
      %v772 = vpop.f32.mrb[0].mxu0
      %v773 = vadd.f32 0.0, %v772
      %v774 = vpop.f32.mrb[0].mxu0
      %v775 = vpop.f32.mrb[0].mxu0
      %v776 = vadd.f32 0.0, %v775
      %v777 = vpop.f32.mrb[0].mxu0
      %778 = vmatprep.mubr.bf16.mxu0 0
      %779 = vmatmul.mubr.bf16.gmra.mrb[0].mxu0 %v684
      %v780 = vpop.f32.mrb[0].mxu0
      %v781 = vadd.f32 0.0, %v780
      %v782 = vpop.f32.mrb[0].mxu0
      %v783 = vpop.f32.mrb[0].mxu0
      %v784 = vadd.f32 0.0, %v783
      %v785 = vpop.f32.mrb[0].mxu0
      %786 = vmatprep.mubr.bf16.mxu0 0
      %787 = vmatmul.mubr.bf16.gmra.mrb[0].mxu0 %v687
      %v788 = vpop.f32.mrb[0].mxu0
      %v789 = vadd.f32 0.0, %v788
      %v790 = vpop.f32.mrb[0].mxu0
      %v791 = vpop.f32.mrb[0].mxu0
      %v792 = vadd.f32 0.0, %v791
      %v793 = vpop.f32.mrb[0].mxu0
      %794 = vmatprep.mubr.bf16.mxu0 0
      %795 = vmatmul.mubr.bf16.gmra.mrb[0].mxu0 %v690
      %v796 = vpop.f32.mrb[0].mxu0
      %v797 = vadd.f32 0.0, %v796
      %v798 = vpop.f32.mrb[0].mxu0
      %v799 = vpop.f32.mrb[0].mxu0
      %v800 = vadd.f32 0.0, %v799
      %v801 = vpop.f32.mrb[0].mxu0
      %802 = vmatprep.mubr.bf16.mxu0 0
      %803 = vmatmul.mubr.bf16.gmra.mrb[0].mxu0 %v693
      %v804 = vpop.f32.mrb[0].mxu0
      %v805 = vadd.f32 0.0, %v804
      %v806 = vpop.f32.mrb[0].mxu0
      %v807 = vpop.f32.mrb[0].mxu0
      %v808 = vadd.f32 0.0, %v807
      %v809 = vpop.f32.mrb[0].mxu0
      %810 = vmatprep.mubr.bf16.mxu0 0
      %811 = vmatmul.mubr.bf16.gmra.mrb[0].mxu0 %v696
      %v812 = vpop.f32.mrb[0].mxu0
      %v813 = vadd.f32 0.0, %v812
      %v814 = vpop.f32.mrb[0].mxu0
      %v815 = vpop.f32.mrb[0].mxu0
      %v816 = vadd.f32 0.0, %v815
      %v817 = vpop.f32.mrb[0].mxu0
      %818 = vmatprep.mubr.bf16.mxu0 0
      %819 = vmatmul.mubr.bf16.gmra.mrb[0].mxu0 %v699
      %v820 = vpop.f32.mrb[0].mxu0
      %v821 = vadd.f32 0.0, %v820
      %v822 = vpop.f32.mrb[0].mxu0
      %v823 = vpop.f32.mrb[0].mxu0
      %v824 = vadd.f32 0.0, %v823
      %v825 = vpop.f32.mrb[0].mxu0
      %826 = vmatprep.mubr.bf16.mxu0 0
      %827 = vmatmul.mubr.bf16.gmra.mrb[0].mxu0 %v702
      %v828 = vpop.f32.mrb[0].mxu0
      %v829 = vadd.f32 0.0, %v828
      %v830 = vpop.f32.mrb[0].mxu0
      %v831 = vpop.f32.mrb[0].mxu0
      %v832 = vadd.f32 0.0, %v831
      %v833 = vpop.f32.mrb[0].mxu0
      %834 = vmatprep.mubr.bf16.mxu0 0
      %835 = vmatmul.mubr.bf16.gmra.mrb[0].mxu0 %v705
      %v836 = vpop.f32.mrb[0].mxu0
      %v837 = vadd.f32 0.0, %v836
      %v838 = vpop.f32.mrb[0].mxu0
      %v839 = vpop.f32.mrb[0].mxu0
      %v840 = vadd.f32 0.0, %v839
      %v841 = vpop.f32.mrb[0].mxu0
      %842 = vmatprep.mubr.bf16.mxu0 0
      %843 = vmatmul.mubr.bf16.gmra.mrb[0].mxu0 %v708
      %v844 = vpop.f32.mrb[0].mxu0
      %v845 = vadd.f32 0.0, %v844
      %v846 = vpop.f32.mrb[0].mxu0
      %v847 = vpop.f32.mrb[0].mxu0
      %v848 = vadd.f32 0.0, %v847
      %v849 = vpop.f32.mrb[0].mxu0
      %850 = vmatprep.mubr.bf16.mxu0 0
      %851 = vmatmul.mubr.bf16.gmra.mrb[0].mxu0 %v711
      %v852 = vpop.f32.mrb[0].mxu0
      %v853 = vadd.f32 0.0, %v852
      %v854 = vpop.f32.mrb[0].mxu0
      %v855 = vpop.f32.mrb[0].mxu0
      %v856 = vadd.f32 0.0, %v855
      %v857 = vpop.f32.mrb[0].mxu0
      %858 = vmatprep.mubr.bf16.mxu0 0
      %859 = vmatmul.mubr.bf16.gmra.mrb[0].mxu0 %v714
      %v860 = vpop.f32.mrb[0].mxu0
      %v861 = vadd.f32 0.0, %v860
      %v862 = vpop.f32.mrb[0].mxu0
      %v863 = vpop.f32.mrb[0].mxu0
      %v864 = vadd.f32 0.0, %v863
      %v865 = vpop.f32.mrb[0].mxu0
      %866 = vmatprep.mubr.bf16.mxu0 0
      %867 = vmatmul.mubr.bf16.gmra.mrb[0].mxu0 %v717
      %v868 = vpop.f32.mrb[0].mxu0
      %v869 = vadd.f32 0.0, %v868
      %v870 = vpop.f32.mrb[0].mxu0
      %v871 = vpop.f32.mrb[0].mxu0
      %v872 = vadd.f32 0.0, %v871
      %v873 = vpop.f32.mrb[0].mxu0
      %874 = vmatprep.mubr.bf16.mxu0 0
      %875 = vmatmul.mubr.bf16.gmra.mrb[0].mxu0 %v720
      %v876 = vpop.f32.mrb[0].mxu0
      %v877 = vadd.f32 0.0, %v876
      %v878 = vpop.f32.mrb[0].mxu0
      %v879 = vpop.f32.mrb[0].mxu0
      %v880 = vadd.f32 0.0, %v879
      %v881 = vpop.f32.mrb[0].mxu0
      %882 = vdwg.mxu0
      %v915 = vunpack.c.l.b16 %v173
      %v916 = vunpack.c.l.b16 %v174
      %v917 = vunpack.c.l.b16 %v176
      %v918 = vunpack.c.l.b16 %v177
      %v919 = vunpack.c.l.b16 %v179
      %v920 = vunpack.c.l.b16 %v180
      %v921 = vunpack.c.l.b16 %v182
      %v922 = vunpack.c.l.b16 %v183
      %v923 = vunpack.c.l.b16 %v185
      %v924 = vunpack.c.l.b16 %v186
      %v925 = vunpack.c.l.b16 %v188
      %v926 = vunpack.c.l.b16 %v189
      %v927 = vunpack.c.l.b16 %v191
      %v928 = vunpack.c.l.b16 %v192
      %v929 = vunpack.c.l.b16 %v194
      %v930 = vunpack.c.l.b16 %v195
      %v931 = vunpack.c.l.b16 %v197
      %v932 = vunpack.c.l.b16 %v198
      %v933 = vunpack.c.l.b16 %v200
      %v934 = vunpack.c.l.b16 %v201
      %v935 = vunpack.c.l.b16 %v203
      %v936 = vunpack.c.l.b16 %v204
      %v937 = vunpack.c.l.b16 %v206
      %v938 = vunpack.c.l.b16 %v207
      %v939 = vunpack.c.l.b16 %v209
      %v940 = vunpack.c.l.b16 %v210
      %v941 = vunpack.c.l.b16 %v212
      %v942 = vunpack.c.l.b16 %v213
      %v943 = vunpack.c.l.b16 %v215
      %v944 = vunpack.c.l.b16 %v216
      %v945 = vunpack.c.l.b16 %v218
      %v946 = vunpack.c.l.b16 %v219
      %v947 = vpack.c.b16 %v916, %v915
      %v948 = vpack.c.b16 %v918, %v917
      %v949 = vpack.c.b16 %v920, %v919
      %v950 = vpack.c.b16 %v922, %v921
      %v951 = vpack.c.b16 %v924, %v923
      %v952 = vpack.c.b16 %v926, %v925
      %v953 = vpack.c.b16 %v928, %v927
      %v954 = vpack.c.b16 %v930, %v929
      %v955 = vpack.c.b16 %v932, %v931
      %v956 = vpack.c.b16 %v934, %v933
      %v957 = vpack.c.b16 %v936, %v935
      %v958 = vpack.c.b16 %v938, %v937
      %v959 = vpack.c.b16 %v940, %v939
      %v960 = vpack.c.b16 %v942, %v941
      %v961 = vpack.c.b16 %v944, %v943
      %v962 = vpack.c.b16 %v946, %v945
      %v965 = vunpack.c.l.b16 %v227
      %v966 = vunpack.c.l.b16 %v228
      %v967 = vpack.c.b16 %v966, %v965
      %v970 = vsel %vm673, %v947, 0
      %v973 = vsel %vm673, %v948, 0
      %v976 = vsel %vm673, %v949, 0
      %v979 = vsel %vm673, %v950, 0
      %v982 = vsel %vm673, %v951, 0
      %v985 = vsel %vm673, %v952, 0
      %v988 = vsel %vm673, %v953, 0
      %v991 = vsel %vm673, %v954, 0
      %v994 = vsel %vm673, %v955, 0
      %v997 = vsel %vm673, %v956, 0
      %v1000 = vsel %vm673, %v957, 0
      %v1003 = vsel %vm673, %v958, 0
      %v1006 = vsel %vm673, %v959, 0
      %v1009 = vsel %vm673, %v960, 0
      %v1012 = vsel %vm673, %v961, 0
      %v1015 = vsel %vm673, %v962, 0
      %1017 = vmatprep.subr.bf16.mxu0 0
      %1018 = vmatpush1.bf16.msra.mxu0 %v967
      %1019 = vmatprep.subr.bf16.mxu0 0
      %1020 = vmatpush1.bf16.msra.mxu0 0
      %1021 = vmatprep.subr.bf16.mxu0 0
      %1022 = vmatpush1.bf16.msra.mxu0 0
      %1023 = vmatprep.subr.bf16.mxu0 0
      %1024 = vmatpush1.bf16.msra.mxu0 0
      %1025 = vmatprep.subr.bf16.mxu0 0
      %1026 = vmatpush1.bf16.msra.mxu0 0
      %1027 = vmatprep.subr.bf16.mxu0 0
      %1028 = vmatpush1.bf16.msra.mxu0 0
      %1029 = vmatprep.subr.bf16.mxu0 0
      %1030 = vmatpush1.bf16.msra.mxu0 0
      %1031 = vmatprep.subr.bf16.mxu0 0
      %1032 = vmatpush1.bf16.msra.mxu0 0
      %1033 = vmatprep.subr.bf16.mxu0 0
      %1034 = vmatpush1.bf16.msra.mxu0 0
      %1035 = vmatprep.subr.bf16.mxu0 0
      %1036 = vmatpush1.bf16.msra.mxu0 0
      %1037 = vmatprep.subr.bf16.mxu0 0
      %1038 = vmatpush1.bf16.msra.mxu0 0
      %1039 = vmatprep.subr.bf16.mxu0 0
      %1040 = vmatpush1.bf16.msra.mxu0 0
      %1041 = vmatprep.subr.bf16.mxu0 0
      %1042 = vmatpush1.bf16.msra.mxu0 0
      %1043 = vmatprep.subr.bf16.mxu0 0
      %1044 = vmatpush1.bf16.msra.mxu0 0
      %1045 = vmatprep.subr.bf16.mxu0 0
      %1046 = vmatpush1.bf16.msra.mxu0 0
      %1047 = vmatprep.subr.bf16.mxu0 0
      %1048 = vmatpush1.bf16.msra.mxu0 0
      %1049 = vmatprep.mubr.bf16.mxu0 0
      %1050 = vmatmul.mubr.bf16.gmra.mrb[0].mxu0 %v970
      %v1051 = vpop.f32.mrb[0].mxu0
      %v1052 = vadd.f32 %v757, %v1051
      %v1053 = vpop.f32.mrb[0].mxu0
      %v1054 = vpop.f32.mrb[0].mxu0
      %v1055 = vadd.f32 %v760, %v1054
      %v1056 = vpop.f32.mrb[0].mxu0
      %1057 = vmatprep.mubr.bf16.mxu0 0
      %1058 = vmatmul.mubr.bf16.gmra.mrb[0].mxu0 %v973
      %v1059 = vpop.f32.mrb[0].mxu0
      %v1060 = vadd.f32 %v765, %v1059
      %v1061 = vpop.f32.mrb[0].mxu0
      %v1062 = vpop.f32.mrb[0].mxu0
      %v1063 = vadd.f32 %v768, %v1062
      %v1064 = vpop.f32.mrb[0].mxu0
      %1065 = vmatprep.mubr.bf16.mxu0 0
      %1066 = vmatmul.mubr.bf16.gmra.mrb[0].mxu0 %v976
      %v1067 = vpop.f32.mrb[0].mxu0
      %v1068 = vadd.f32 %v773, %v1067
      %v1069 = vpop.f32.mrb[0].mxu0
      %v1070 = vpop.f32.mrb[0].mxu0
      %v1071 = vadd.f32 %v776, %v1070
      %v1072 = vpop.f32.mrb[0].mxu0
      %1073 = vmatprep.mubr.bf16.mxu0 0
      %1074 = vmatmul.mubr.bf16.gmra.mrb[0].mxu0 %v979
      %v1075 = vpop.f32.mrb[0].mxu0
      %v1076 = vadd.f32 %v781, %v1075
      %v1077 = vpop.f32.mrb[0].mxu0
      %v1078 = vpop.f32.mrb[0].mxu0
      %v1079 = vadd.f32 %v784, %v1078
      %v1080 = vpop.f32.mrb[0].mxu0
      %1081 = vmatprep.mubr.bf16.mxu0 0
      %1082 = vmatmul.mubr.bf16.gmra.mrb[0].mxu0 %v982
      %v1083 = vpop.f32.mrb[0].mxu0
      %v1084 = vadd.f32 %v789, %v1083
      %v1085 = vpop.f32.mrb[0].mxu0
      %v1086 = vpop.f32.mrb[0].mxu0
      %v1087 = vadd.f32 %v792, %v1086
      %v1088 = vpop.f32.mrb[0].mxu0
      %1089 = vmatprep.mubr.bf16.mxu0 0
      %1090 = vmatmul.mubr.bf16.gmra.mrb[0].mxu0 %v985
      %v1091 = vpop.f32.mrb[0].mxu0
      %v1092 = vadd.f32 %v797, %v1091
      %v1093 = vpop.f32.mrb[0].mxu0
      %v1094 = vpop.f32.mrb[0].mxu0
      %v1095 = vadd.f32 %v800, %v1094
      %v1096 = vpop.f32.mrb[0].mxu0
      %1097 = vmatprep.mubr.bf16.mxu0 0
      %1098 = vmatmul.mubr.bf16.gmra.mrb[0].mxu0 %v988
      %v1099 = vpop.f32.mrb[0].mxu0
      %v1100 = vadd.f32 %v805, %v1099
      %v1101 = vpop.f32.mrb[0].mxu0
      %v1102 = vpop.f32.mrb[0].mxu0
      %v1103 = vadd.f32 %v808, %v1102
      %v1104 = vpop.f32.mrb[0].mxu0
      %1105 = vmatprep.mubr.bf16.mxu0 0
      %1106 = vmatmul.mubr.bf16.gmra.mrb[0].mxu0 %v991
      %v1107 = vpop.f32.mrb[0].mxu0
      %v1108 = vadd.f32 %v813, %v1107
      %v1109 = vpop.f32.mrb[0].mxu0
      %v1110 = vpop.f32.mrb[0].mxu0
      %v1111 = vadd.f32 %v816, %v1110
      %v1112 = vpop.f32.mrb[0].mxu0
      %1113 = vmatprep.mubr.bf16.mxu0 0
      %1114 = vmatmul.mubr.bf16.gmra.mrb[0].mxu0 %v994
      %v1115 = vpop.f32.mrb[0].mxu0
      %v1116 = vadd.f32 %v821, %v1115
      %v1117 = vpop.f32.mrb[0].mxu0
      %v1118 = vpop.f32.mrb[0].mxu0
      %v1119 = vadd.f32 %v824, %v1118
      %v1120 = vpop.f32.mrb[0].mxu0
      %1121 = vmatprep.mubr.bf16.mxu0 0
      %1122 = vmatmul.mubr.bf16.gmra.mrb[0].mxu0 %v997
      %v1123 = vpop.f32.mrb[0].mxu0
      %v1124 = vadd.f32 %v829, %v1123
      %v1125 = vpop.f32.mrb[0].mxu0
      %v1126 = vpop.f32.mrb[0].mxu0
      %v1127 = vadd.f32 %v832, %v1126
      %v1128 = vpop.f32.mrb[0].mxu0
      %1129 = vmatprep.mubr.bf16.mxu0 0
      %1130 = vmatmul.mubr.bf16.gmra.mrb[0].mxu0 %v1000
      %v1131 = vpop.f32.mrb[0].mxu0
      %v1132 = vadd.f32 %v837, %v1131
      %v1133 = vpop.f32.mrb[0].mxu0
      %v1134 = vpop.f32.mrb[0].mxu0
      %v1135 = vadd.f32 %v840, %v1134
      %v1136 = vpop.f32.mrb[0].mxu0
      %1137 = vmatprep.mubr.bf16.mxu0 0
      %1138 = vmatmul.mubr.bf16.gmra.mrb[0].mxu0 %v1003
      %v1139 = vpop.f32.mrb[0].mxu0
      %v1140 = vadd.f32 %v845, %v1139
      %v1141 = vpop.f32.mrb[0].mxu0
      %v1142 = vpop.f32.mrb[0].mxu0
      %v1143 = vadd.f32 %v848, %v1142
      %v1144 = vpop.f32.mrb[0].mxu0
      %1145 = vmatprep.mubr.bf16.mxu0 0
      %1146 = vmatmul.mubr.bf16.gmra.mrb[0].mxu0 %v1006
      %v1147 = vpop.f32.mrb[0].mxu0
      %v1148 = vadd.f32 %v853, %v1147
      %v1149 = vpop.f32.mrb[0].mxu0
      %v1150 = vpop.f32.mrb[0].mxu0
      %v1151 = vadd.f32 %v856, %v1150
      %v1152 = vpop.f32.mrb[0].mxu0
      %1153 = vmatprep.mubr.bf16.mxu0 0
      %1154 = vmatmul.mubr.bf16.gmra.mrb[0].mxu0 %v1009
      %v1155 = vpop.f32.mrb[0].mxu0
      %v1156 = vadd.f32 %v861, %v1155
      %v1157 = vpop.f32.mrb[0].mxu0
      %v1158 = vpop.f32.mrb[0].mxu0
      %v1159 = vadd.f32 %v864, %v1158
      %v1160 = vpop.f32.mrb[0].mxu0
      %1161 = vmatprep.mubr.bf16.mxu0 0
      %1162 = vmatmul.mubr.bf16.gmra.mrb[0].mxu0 %v1012
      %v1163 = vpop.f32.mrb[0].mxu0
      %v1164 = vadd.f32 %v869, %v1163
      %v1165 = vpop.f32.mrb[0].mxu0
      %v1166 = vpop.f32.mrb[0].mxu0
      %v1167 = vadd.f32 %v872, %v1166
      %v1168 = vpop.f32.mrb[0].mxu0
      %1169 = vmatprep.mubr.bf16.mxu0 0
      %1170 = vmatmul.mubr.bf16.gmra.mrb[0].mxu0 %v1015
      %v1171 = vpop.f32.mrb[0].mxu0
      %v1172 = vadd.f32 %v877, %v1171
      %v1173 = vpop.f32.mrb[0].mxu0
      %v1174 = vpop.f32.mrb[0].mxu0
      %v1175 = vadd.f32 %v880, %v1174
      %v1176 = vpop.f32.mrb[0].mxu0
      %1177 = vdwg.mxu0
      %vm1194 = vcmask 1042432
      %vm1195 = vcmask 1046532
      %vm1196 = vmor %vm1194, %vm1195
      %v1197 = vrot.slane %v173, 5
      %v1198 = vrot.slane %v1197, 4
      %v1199 = vrot.slane %v174, 5
      %v1200 = vsel %vm1196, %v1198, %v1199
      %v1201 = vrot.slane %v1199, 4
      %v1202 = vrot.slane %v175, 5
      %v1203 = vsel %vm1196, %v1201, %v1202
      %v1204 = vrot.slane %v176, 5
      %v1205 = vrot.slane %v1204, 4
      %v1206 = vrot.slane %v177, 5
      %v1207 = vsel %vm1196, %v1205, %v1206
      %v1208 = vrot.slane %v1206, 4
      %v1209 = vrot.slane %v178, 5
      %v1210 = vsel %vm1196, %v1208, %v1209
      %v1211 = vrot.slane %v179, 5
      %v1212 = vrot.slane %v1211, 4
      %v1213 = vrot.slane %v180, 5
      %v1214 = vsel %vm1196, %v1212, %v1213
      %v1215 = vrot.slane %v1213, 4
      %v1216 = vrot.slane %v181, 5
      %v1217 = vsel %vm1196, %v1215, %v1216
      %v1218 = vrot.slane %v182, 5
      %v1219 = vrot.slane %v1218, 4
      %v1220 = vrot.slane %v183, 5
      %v1221 = vsel %vm1196, %v1219, %v1220
      %v1222 = vrot.slane %v1220, 4
      %v1223 = vrot.slane %v184, 5
      %v1224 = vsel %vm1196, %v1222, %v1223
      %v1225 = vrot.slane %v185, 5
      %v1226 = vrot.slane %v1225, 4
      %v1227 = vrot.slane %v186, 5
      %v1228 = vsel %vm1196, %v1226, %v1227
      %v1229 = vrot.slane %v1227, 4
      %v1230 = vrot.slane %v187, 5
      %v1231 = vsel %vm1196, %v1229, %v1230
      %v1232 = vrot.slane %v188, 5
      %v1233 = vrot.slane %v1232, 4
      %v1234 = vrot.slane %v189, 5
      %v1235 = vsel %vm1196, %v1233, %v1234
      %v1236 = vrot.slane %v1234, 4
      %v1237 = vrot.slane %v190, 5
      %v1238 = vsel %vm1196, %v1236, %v1237
      %v1239 = vrot.slane %v191, 5
      %v1240 = vrot.slane %v1239, 4
      %v1241 = vrot.slane %v192, 5
      %v1242 = vsel %vm1196, %v1240, %v1241
      %v1243 = vrot.slane %v1241, 4
      %v1244 = vrot.slane %v193, 5
      %v1245 = vsel %vm1196, %v1243, %v1244
      %v1246 = vrot.slane %v194, 5
      %v1247 = vrot.slane %v1246, 4
      %v1248 = vrot.slane %v195, 5
      %v1249 = vsel %vm1196, %v1247, %v1248
      %v1250 = vrot.slane %v1248, 4
      %v1251 = vrot.slane %v196, 5
      %v1252 = vsel %vm1196, %v1250, %v1251
      %v1253 = vrot.slane %v197, 5
      %v1254 = vrot.slane %v1253, 4
      %v1255 = vrot.slane %v198, 5
      %v1256 = vsel %vm1196, %v1254, %v1255
      %v1257 = vrot.slane %v1255, 4
      %v1258 = vrot.slane %v199, 5
      %v1259 = vsel %vm1196, %v1257, %v1258
      %v1260 = vrot.slane %v200, 5
      %v1261 = vrot.slane %v1260, 4
      %v1262 = vrot.slane %v201, 5
      %v1263 = vsel %vm1196, %v1261, %v1262
      %v1264 = vrot.slane %v1262, 4
      %v1265 = vrot.slane %v202, 5
      %v1266 = vsel %vm1196, %v1264, %v1265
      %v1267 = vrot.slane %v203, 5
      %v1268 = vrot.slane %v1267, 4
      %v1269 = vrot.slane %v204, 5
      %v1270 = vsel %vm1196, %v1268, %v1269
      %v1271 = vrot.slane %v1269, 4
      %v1272 = vrot.slane %v205, 5
      %v1273 = vsel %vm1196, %v1271, %v1272
      %v1274 = vrot.slane %v206, 5
      %v1275 = vrot.slane %v1274, 4
      %v1276 = vrot.slane %v207, 5
      %v1277 = vsel %vm1196, %v1275, %v1276
      %v1278 = vrot.slane %v1276, 4
      %v1279 = vrot.slane %v208, 5
      %v1280 = vsel %vm1196, %v1278, %v1279
      %v1281 = vrot.slane %v209, 5
      %v1282 = vrot.slane %v1281, 4
      %v1283 = vrot.slane %v210, 5
      %v1284 = vsel %vm1196, %v1282, %v1283
      %v1285 = vrot.slane %v1283, 4
      %v1286 = vrot.slane %v211, 5
      %v1287 = vsel %vm1196, %v1285, %v1286
      %v1288 = vrot.slane %v212, 5
      %v1289 = vrot.slane %v1288, 4
      %v1290 = vrot.slane %v213, 5
      %v1291 = vsel %vm1196, %v1289, %v1290
      %v1292 = vrot.slane %v1290, 4
      %v1293 = vrot.slane %v214, 5
      %v1294 = vsel %vm1196, %v1292, %v1293
      %v1295 = vrot.slane %v215, 5
      %v1296 = vrot.slane %v1295, 4
      %v1297 = vrot.slane %v216, 5
      %v1298 = vsel %vm1196, %v1296, %v1297
      %v1299 = vrot.slane %v1297, 4
      %v1300 = vrot.slane %v217, 5
      %v1301 = vsel %vm1196, %v1299, %v1300
      %v1302 = vrot.slane %v218, 5
      %v1303 = vrot.slane %v1302, 4
      %v1304 = vrot.slane %v219, 5
      %v1305 = vsel %vm1196, %v1303, %v1304
      %v1306 = vrot.slane %v1304, 4
      %v1307 = vrot.slane %v220, 5
      %v1308 = vsel %vm1196, %v1306, %v1307
      %s1309 = scalar_lea.vmem %s1, 16
      %v1310 = vld [vmem:[%s1309] sm:$0xf]
      %v1311 = vld [vmem:[%s1309 + $0x4] sm:$0xf]
      %v1312 = vunpack.c.l.b16 %v1200
      %v1313 = vunpack.c.l.b16 %v1203
      %v1314 = vunpack.c.l.b16 %v1207
      %v1315 = vunpack.c.l.b16 %v1210
      %v1316 = vunpack.c.l.b16 %v1214
      %v1317 = vunpack.c.l.b16 %v1217
      %v1318 = vunpack.c.l.b16 %v1221
      %v1319 = vunpack.c.l.b16 %v1224
      %v1320 = vunpack.c.l.b16 %v1228
      %v1321 = vunpack.c.l.b16 %v1231
      %v1322 = vunpack.c.l.b16 %v1235
      %v1323 = vunpack.c.l.b16 %v1238
      %v1324 = vunpack.c.l.b16 %v1242
      %v1325 = vunpack.c.l.b16 %v1245
      %v1326 = vunpack.c.l.b16 %v1249
      %v1327 = vunpack.c.l.b16 %v1252
      %v1328 = vunpack.c.l.b16 %v1256
      %v1329 = vunpack.c.l.b16 %v1259
      %v1330 = vunpack.c.l.b16 %v1263
      %v1331 = vunpack.c.l.b16 %v1266
      %v1332 = vunpack.c.l.b16 %v1270
      %v1333 = vunpack.c.l.b16 %v1273
      %v1334 = vunpack.c.l.b16 %v1277
      %v1335 = vunpack.c.l.b16 %v1280
      %v1336 = vunpack.c.l.b16 %v1284
      %v1337 = vunpack.c.l.b16 %v1287
      %v1338 = vunpack.c.l.b16 %v1291
      %v1339 = vunpack.c.l.b16 %v1294
      %v1340 = vunpack.c.l.b16 %v1298
      %v1341 = vunpack.c.l.b16 %v1301
      %v1342 = vunpack.c.l.b16 %v1305
      %v1343 = vunpack.c.l.b16 %v1308
      %v1344 = vpack.c.b16 %v1313, %v1312
      %v1345 = vpack.c.b16 %v1315, %v1314
      %v1346 = vpack.c.b16 %v1317, %v1316
      %v1347 = vpack.c.b16 %v1319, %v1318
      %v1348 = vpack.c.b16 %v1321, %v1320
      %v1349 = vpack.c.b16 %v1323, %v1322
      %v1350 = vpack.c.b16 %v1325, %v1324
      %v1351 = vpack.c.b16 %v1327, %v1326
      %v1352 = vpack.c.b16 %v1329, %v1328
      %v1353 = vpack.c.b16 %v1331, %v1330
      %v1354 = vpack.c.b16 %v1333, %v1332
      %v1355 = vpack.c.b16 %v1335, %v1334
      %v1356 = vpack.c.b16 %v1337, %v1336
      %v1357 = vpack.c.b16 %v1339, %v1338
      %v1358 = vpack.c.b16 %v1341, %v1340
      %v1359 = vpack.c.b16 %v1343, %v1342
      %v1362 = vunpack.c.l.b16 %v1310
      %v1363 = vunpack.c.l.b16 %v1311
      %v1364 = vpack.c.b16 %v1363, %v1362
      %v1367 = vsel %vm673, %v1344, 0
      %v1370 = vsel %vm673, %v1345, 0
      %v1373 = vsel %vm673, %v1346, 0
      %v1376 = vsel %vm673, %v1347, 0
      %v1379 = vsel %vm673, %v1348, 0
      %v1382 = vsel %vm673, %v1349, 0
      %v1385 = vsel %vm673, %v1350, 0
      %v1388 = vsel %vm673, %v1351, 0
      %v1391 = vsel %vm673, %v1352, 0
      %v1394 = vsel %vm673, %v1353, 0
      %v1397 = vsel %vm673, %v1354, 0
      %v1400 = vsel %vm673, %v1355, 0
      %v1403 = vsel %vm673, %v1356, 0
      %v1406 = vsel %vm673, %v1357, 0
      %v1409 = vsel %vm673, %v1358, 0
      %v1412 = vsel %vm673, %v1359, 0
      %1414 = vmatprep.subr.bf16.mxu0 0
      %1415 = vmatpush1.bf16.msra.mxu0 %v1364
      %1416 = vmatprep.subr.bf16.mxu0 0
      %1417 = vmatpush1.bf16.msra.mxu0 0
      %1418 = vmatprep.subr.bf16.mxu0 0
      %1419 = vmatpush1.bf16.msra.mxu0 0
      %1420 = vmatprep.subr.bf16.mxu0 0
      %1421 = vmatpush1.bf16.msra.mxu0 0
      %1422 = vmatprep.subr.bf16.mxu0 0
      %1423 = vmatpush1.bf16.msra.mxu0 0
      %1424 = vmatprep.subr.bf16.mxu0 0
      %1425 = vmatpush1.bf16.msra.mxu0 0
      %1426 = vmatprep.subr.bf16.mxu0 0
      %1427 = vmatpush1.bf16.msra.mxu0 0
      %1428 = vmatprep.subr.bf16.mxu0 0
      %1429 = vmatpush1.bf16.msra.mxu0 0
      %1430 = vmatprep.subr.bf16.mxu0 0
      %1431 = vmatpush1.bf16.msra.mxu0 0
      %1432 = vmatprep.subr.bf16.mxu0 0
      %1433 = vmatpush1.bf16.msra.mxu0 0
      %1434 = vmatprep.subr.bf16.mxu0 0
      %1435 = vmatpush1.bf16.msra.mxu0 0
      %1436 = vmatprep.subr.bf16.mxu0 0
      %1437 = vmatpush1.bf16.msra.mxu0 0
      %1438 = vmatprep.subr.bf16.mxu0 0
      %1439 = vmatpush1.bf16.msra.mxu0 0
      %1440 = vmatprep.subr.bf16.mxu0 0
      %1441 = vmatpush1.bf16.msra.mxu0 0
      %1442 = vmatprep.subr.bf16.mxu0 0
      %1443 = vmatpush1.bf16.msra.mxu0 0
      %1444 = vmatprep.subr.bf16.mxu0 0
      %1445 = vmatpush1.bf16.msra.mxu0 0
      %1446 = vmatprep.mubr.bf16.mxu0 0
      %1447 = vmatmul.mubr.bf16.gmra.mrb[0].mxu0 %v1367
      %v1448 = vpop.f32.mrb[0].mxu0
      %v1449 = vadd.f32 0.0, %v1448
      %v1450 = vpop.f32.mrb[0].mxu0
      %v1451 = vpop.f32.mrb[0].mxu0
      %v1452 = vadd.f32 0.0, %v1451
      %v1453 = vpop.f32.mrb[0].mxu0
      %1454 = vmatprep.mubr.bf16.mxu0 0
      %1455 = vmatmul.mubr.bf16.gmra.mrb[0].mxu0 %v1370
      %v1456 = vpop.f32.mrb[0].mxu0
      %v1457 = vadd.f32 0.0, %v1456
      %v1458 = vpop.f32.mrb[0].mxu0
      %v1459 = vpop.f32.mrb[0].mxu0
      %v1460 = vadd.f32 0.0, %v1459
      %v1461 = vpop.f32.mrb[0].mxu0
      %1462 = vmatprep.mubr.bf16.mxu0 0
      %1463 = vmatmul.mubr.bf16.gmra.mrb[0].mxu0 %v1373
      %v1464 = vpop.f32.mrb[0].mxu0
      %v1465 = vadd.f32 0.0, %v1464
      %v1466 = vpop.f32.mrb[0].mxu0
      %v1467 = vpop.f32.mrb[0].mxu0
      %v1468 = vadd.f32 0.0, %v1467
      %v1469 = vpop.f32.mrb[0].mxu0
      %1470 = vmatprep.mubr.bf16.mxu0 0
      %1471 = vmatmul.mubr.bf16.gmra.mrb[0].mxu0 %v1376
      %v1472 = vpop.f32.mrb[0].mxu0
      %v1473 = vadd.f32 0.0, %v1472
      %v1474 = vpop.f32.mrb[0].mxu0
      %v1475 = vpop.f32.mrb[0].mxu0
      %v1476 = vadd.f32 0.0, %v1475
      %v1477 = vpop.f32.mrb[0].mxu0
      %1478 = vmatprep.mubr.bf16.mxu0 0
      %1479 = vmatmul.mubr.bf16.gmra.mrb[0].mxu0 %v1379
      %v1480 = vpop.f32.mrb[0].mxu0
      %v1481 = vadd.f32 0.0, %v1480
      %v1482 = vpop.f32.mrb[0].mxu0
      %v1483 = vpop.f32.mrb[0].mxu0
      %v1484 = vadd.f32 0.0, %v1483
      %v1485 = vpop.f32.mrb[0].mxu0
      %1486 = vmatprep.mubr.bf16.mxu0 0
      %1487 = vmatmul.mubr.bf16.gmra.mrb[0].mxu0 %v1382
      %v1488 = vpop.f32.mrb[0].mxu0
      %v1489 = vadd.f32 0.0, %v1488
      %v1490 = vpop.f32.mrb[0].mxu0
      %v1491 = vpop.f32.mrb[0].mxu0
      %v1492 = vadd.f32 0.0, %v1491
      %v1493 = vpop.f32.mrb[0].mxu0
      %1494 = vmatprep.mubr.bf16.mxu0 0
      %1495 = vmatmul.mubr.bf16.gmra.mrb[0].mxu0 %v1385
      %v1496 = vpop.f32.mrb[0].mxu0
      %v1497 = vadd.f32 0.0, %v1496
      %v1498 = vpop.f32.mrb[0].mxu0
      %v1499 = vpop.f32.mrb[0].mxu0
      %v1500 = vadd.f32 0.0, %v1499
      %v1501 = vpop.f32.mrb[0].mxu0
      %1502 = vmatprep.mubr.bf16.mxu0 0
      %1503 = vmatmul.mubr.bf16.gmra.mrb[0].mxu0 %v1388
      %v1504 = vpop.f32.mrb[0].mxu0
      %v1505 = vadd.f32 0.0, %v1504
      %v1506 = vpop.f32.mrb[0].mxu0
      %v1507 = vpop.f32.mrb[0].mxu0
      %v1508 = vadd.f32 0.0, %v1507
      %v1509 = vpop.f32.mrb[0].mxu0
      %1510 = vmatprep.mubr.bf16.mxu0 0
      %1511 = vmatmul.mubr.bf16.gmra.mrb[0].mxu0 %v1391
      %v1512 = vpop.f32.mrb[0].mxu0
      %v1513 = vadd.f32 0.0, %v1512
      %v1514 = vpop.f32.mrb[0].mxu0
      %v1515 = vpop.f32.mrb[0].mxu0
      %v1516 = vadd.f32 0.0, %v1515
      %v1517 = vpop.f32.mrb[0].mxu0
      %1518 = vmatprep.mubr.bf16.mxu0 0
      %1519 = vmatmul.mubr.bf16.gmra.mrb[0].mxu0 %v1394
      %v1520 = vpop.f32.mrb[0].mxu0
      %v1521 = vadd.f32 0.0, %v1520
      %v1522 = vpop.f32.mrb[0].mxu0
      %v1523 = vpop.f32.mrb[0].mxu0
      %v1524 = vadd.f32 0.0, %v1523
      %v1525 = vpop.f32.mrb[0].mxu0
      %1526 = vmatprep.mubr.bf16.mxu0 0
      %1527 = vmatmul.mubr.bf16.gmra.mrb[0].mxu0 %v1397
      %v1528 = vpop.f32.mrb[0].mxu0
      %v1529 = vadd.f32 0.0, %v1528
      %v1530 = vpop.f32.mrb[0].mxu0
      %v1531 = vpop.f32.mrb[0].mxu0
      %v1532 = vadd.f32 0.0, %v1531
      %v1533 = vpop.f32.mrb[0].mxu0
      %1534 = vmatprep.mubr.bf16.mxu0 0
      %1535 = vmatmul.mubr.bf16.gmra.mrb[0].mxu0 %v1400
      %v1536 = vpop.f32.mrb[0].mxu0
      %v1537 = vadd.f32 0.0, %v1536
      %v1538 = vpop.f32.mrb[0].mxu0
      %v1539 = vpop.f32.mrb[0].mxu0
      %v1540 = vadd.f32 0.0, %v1539
      %v1541 = vpop.f32.mrb[0].mxu0
      %1542 = vmatprep.mubr.bf16.mxu0 0
      %1543 = vmatmul.mubr.bf16.gmra.mrb[0].mxu0 %v1403
      %v1544 = vpop.f32.mrb[0].mxu0
      %v1545 = vadd.f32 0.0, %v1544
      %v1546 = vpop.f32.mrb[0].mxu0
      %v1547 = vpop.f32.mrb[0].mxu0
      %v1548 = vadd.f32 0.0, %v1547
      %v1549 = vpop.f32.mrb[0].mxu0
      %1550 = vmatprep.mubr.bf16.mxu0 0
      %1551 = vmatmul.mubr.bf16.gmra.mrb[0].mxu0 %v1406
      %v1552 = vpop.f32.mrb[0].mxu0
      %v1553 = vadd.f32 0.0, %v1552
      %v1554 = vpop.f32.mrb[0].mxu0
      %v1555 = vpop.f32.mrb[0].mxu0
      %v1556 = vadd.f32 0.0, %v1555
      %v1557 = vpop.f32.mrb[0].mxu0
      %1558 = vmatprep.mubr.bf16.mxu0 0
      %1559 = vmatmul.mubr.bf16.gmra.mrb[0].mxu0 %v1409
      %v1560 = vpop.f32.mrb[0].mxu0
      %v1561 = vadd.f32 0.0, %v1560
      %v1562 = vpop.f32.mrb[0].mxu0
      %v1563 = vpop.f32.mrb[0].mxu0
      %v1564 = vadd.f32 0.0, %v1563
      %v1565 = vpop.f32.mrb[0].mxu0
      %1566 = vmatprep.mubr.bf16.mxu0 0
      %1567 = vmatmul.mubr.bf16.gmra.mrb[0].mxu0 %v1412
      %v1568 = vpop.f32.mrb[0].mxu0
      %v1569 = vadd.f32 0.0, %v1568
      %v1570 = vpop.f32.mrb[0].mxu0
      %v1571 = vpop.f32.mrb[0].mxu0
      %v1572 = vadd.f32 0.0, %v1571
      %v1573 = vpop.f32.mrb[0].mxu0
      %1574 = vdwg.mxu0
      %v1575 = vadd.f32 %v1052, %v1449
      %v1576 = vadd.f32 %v1055, %v1452
      %v1577 = vadd.f32 %v1060, %v1457
      %v1578 = vadd.f32 %v1063, %v1460
      %v1579 = vadd.f32 %v1068, %v1465
      %v1580 = vadd.f32 %v1071, %v1468
      %v1581 = vadd.f32 %v1076, %v1473
      %v1582 = vadd.f32 %v1079, %v1476
      %v1583 = vadd.f32 %v1084, %v1481
      %v1584 = vadd.f32 %v1087, %v1484
      %v1585 = vadd.f32 %v1092, %v1489
      %v1586 = vadd.f32 %v1095, %v1492
      %v1587 = vadd.f32 %v1100, %v1497
      %v1588 = vadd.f32 %v1103, %v1500
      %v1589 = vadd.f32 %v1108, %v1505
      %v1590 = vadd.f32 %v1111, %v1508
      %v1591 = vadd.f32 %v1116, %v1513
      %v1592 = vadd.f32 %v1119, %v1516
      %v1593 = vadd.f32 %v1124, %v1521
      %v1594 = vadd.f32 %v1127, %v1524
      %v1595 = vadd.f32 %v1132, %v1529
      %v1596 = vadd.f32 %v1135, %v1532
      %v1597 = vadd.f32 %v1140, %v1537
      %v1598 = vadd.f32 %v1143, %v1540
      %v1599 = vadd.f32 %v1148, %v1545
      %v1600 = vadd.f32 %v1151, %v1548
      %v1601 = vadd.f32 %v1156, %v1553
      %v1602 = vadd.f32 %v1159, %v1556
      %v1603 = vadd.f32 %v1164, %v1561
      %v1604 = vadd.f32 %v1167, %v1564
      %v1605 = vadd.f32 %v1172, %v1569
      %v1606 = vadd.f32 %v1175, %v1572
      %s1607 = scalar_lea.vmem %s1, 24
      %v1608 = vld [vmem:[%s1607] sm:$0xf]
      %v1609 = vld [vmem:[%s1607 + $0x4] sm:$0xf]
      %v1612 = vunpack.c.l.b16 %v221
      %v1613 = vunpack.c.l.b16 %v222
      %v1614 = vpack.c.b16 %v1613, %v1612
      %v1617 = vunpack.c.l.b16 %v1608
      %v1618 = vunpack.c.l.b16 %v1609
      %v1619 = vpack.c.b16 %v1618, %v1617
      %v1622 = vsel %vm673, %v1614, 0
      %1624 = vmatprep.subr.bf16.mxu0 0
      %1625 = vmatpush1.bf16.msra.mxu0 %v1619
      %1626 = vmatprep.subr.bf16.mxu0 0
      %1627 = vmatpush1.bf16.msra.mxu0 0
      %1628 = vmatprep.subr.bf16.mxu0 0
      %1629 = vmatpush1.bf16.msra.mxu0 0
      %1630 = vmatprep.subr.bf16.mxu0 0
      %1631 = vmatpush1.bf16.msra.mxu0 0
      %1632 = vmatprep.subr.bf16.mxu0 0
      %1633 = vmatpush1.bf16.msra.mxu0 0
      %1634 = vmatprep.subr.bf16.mxu0 0
      %1635 = vmatpush1.bf16.msra.mxu0 0
      %1636 = vmatprep.subr.bf16.mxu0 0
      %1637 = vmatpush1.bf16.msra.mxu0 0
      %1638 = vmatprep.subr.bf16.mxu0 0
      %1639 = vmatpush1.bf16.msra.mxu0 0
      %1640 = vmatprep.subr.bf16.mxu0 0
      %1641 = vmatpush1.bf16.msra.mxu0 0
      %1642 = vmatprep.subr.bf16.mxu0 0
      %1643 = vmatpush1.bf16.msra.mxu0 0
      %1644 = vmatprep.subr.bf16.mxu0 0
      %1645 = vmatpush1.bf16.msra.mxu0 0
      %1646 = vmatprep.subr.bf16.mxu0 0
      %1647 = vmatpush1.bf16.msra.mxu0 0
      %1648 = vmatprep.subr.bf16.mxu0 0
      %1649 = vmatpush1.bf16.msra.mxu0 0
      %1650 = vmatprep.subr.bf16.mxu0 0
      %1651 = vmatpush1.bf16.msra.mxu0 0
      %1652 = vmatprep.subr.bf16.mxu0 0
      %1653 = vmatpush1.bf16.msra.mxu0 0
      %1654 = vmatprep.subr.bf16.mxu0 0
      %1655 = vmatpush1.bf16.msra.mxu0 0
      %1656 = vmatprep.mubr.bf16.mxu0 0
      %1657 = vmatmul.mubr.bf16.gmra.mrb[0].mxu0 %v973
      %v1658 = vpop.f32.mrb[0].mxu0
      %v1659 = vadd.f32 0.0, %v1658
      %v1660 = vpop.f32.mrb[0].mxu0
      %v1661 = vpop.f32.mrb[0].mxu0
      %v1662 = vadd.f32 0.0, %v1661
      %v1663 = vpop.f32.mrb[0].mxu0
      %1664 = vmatprep.mubr.bf16.mxu0 0
      %1665 = vmatmul.mubr.bf16.gmra.mrb[0].mxu0 %v976
      %v1666 = vpop.f32.mrb[0].mxu0
      %v1667 = vadd.f32 0.0, %v1666
      %v1668 = vpop.f32.mrb[0].mxu0
      %v1669 = vpop.f32.mrb[0].mxu0
      %v1670 = vadd.f32 0.0, %v1669
      %v1671 = vpop.f32.mrb[0].mxu0
      %1672 = vmatprep.mubr.bf16.mxu0 0
      %1673 = vmatmul.mubr.bf16.gmra.mrb[0].mxu0 %v979
      %v1674 = vpop.f32.mrb[0].mxu0
      %v1675 = vadd.f32 0.0, %v1674
      %v1676 = vpop.f32.mrb[0].mxu0
      %v1677 = vpop.f32.mrb[0].mxu0
      %v1678 = vadd.f32 0.0, %v1677
      %v1679 = vpop.f32.mrb[0].mxu0
      %1680 = vmatprep.mubr.bf16.mxu0 0
      %1681 = vmatmul.mubr.bf16.gmra.mrb[0].mxu0 %v982
      %v1682 = vpop.f32.mrb[0].mxu0
      %v1683 = vadd.f32 0.0, %v1682
      %v1684 = vpop.f32.mrb[0].mxu0
      %v1685 = vpop.f32.mrb[0].mxu0
      %v1686 = vadd.f32 0.0, %v1685
      %v1687 = vpop.f32.mrb[0].mxu0
      %1688 = vmatprep.mubr.bf16.mxu0 0
      %1689 = vmatmul.mubr.bf16.gmra.mrb[0].mxu0 %v985
      %v1690 = vpop.f32.mrb[0].mxu0
      %v1691 = vadd.f32 0.0, %v1690
      %v1692 = vpop.f32.mrb[0].mxu0
      %v1693 = vpop.f32.mrb[0].mxu0
      %v1694 = vadd.f32 0.0, %v1693
      %v1695 = vpop.f32.mrb[0].mxu0
      %1696 = vmatprep.mubr.bf16.mxu0 0
      %1697 = vmatmul.mubr.bf16.gmra.mrb[0].mxu0 %v988
      %v1698 = vpop.f32.mrb[0].mxu0
      %v1699 = vadd.f32 0.0, %v1698
      %v1700 = vpop.f32.mrb[0].mxu0
      %v1701 = vpop.f32.mrb[0].mxu0
      %v1702 = vadd.f32 0.0, %v1701
      %v1703 = vpop.f32.mrb[0].mxu0
      %1704 = vmatprep.mubr.bf16.mxu0 0
      %1705 = vmatmul.mubr.bf16.gmra.mrb[0].mxu0 %v991
      %v1706 = vpop.f32.mrb[0].mxu0
      %v1707 = vadd.f32 0.0, %v1706
      %v1708 = vpop.f32.mrb[0].mxu0
      %v1709 = vpop.f32.mrb[0].mxu0
      %v1710 = vadd.f32 0.0, %v1709
      %v1711 = vpop.f32.mrb[0].mxu0
      %1712 = vmatprep.mubr.bf16.mxu0 0
      %1713 = vmatmul.mubr.bf16.gmra.mrb[0].mxu0 %v994
      %v1714 = vpop.f32.mrb[0].mxu0
      %v1715 = vadd.f32 0.0, %v1714
      %v1716 = vpop.f32.mrb[0].mxu0
      %v1717 = vpop.f32.mrb[0].mxu0
      %v1718 = vadd.f32 0.0, %v1717
      %v1719 = vpop.f32.mrb[0].mxu0
      %1720 = vmatprep.mubr.bf16.mxu0 0
      %1721 = vmatmul.mubr.bf16.gmra.mrb[0].mxu0 %v997
      %v1722 = vpop.f32.mrb[0].mxu0
      %v1723 = vadd.f32 0.0, %v1722
      %v1724 = vpop.f32.mrb[0].mxu0
      %v1725 = vpop.f32.mrb[0].mxu0
      %v1726 = vadd.f32 0.0, %v1725
      %v1727 = vpop.f32.mrb[0].mxu0
      %1728 = vmatprep.mubr.bf16.mxu0 0
      %1729 = vmatmul.mubr.bf16.gmra.mrb[0].mxu0 %v1000
      %v1730 = vpop.f32.mrb[0].mxu0
      %v1731 = vadd.f32 0.0, %v1730
      %v1732 = vpop.f32.mrb[0].mxu0
      %v1733 = vpop.f32.mrb[0].mxu0
      %v1734 = vadd.f32 0.0, %v1733
      %v1735 = vpop.f32.mrb[0].mxu0
      %1736 = vmatprep.mubr.bf16.mxu0 0
      %1737 = vmatmul.mubr.bf16.gmra.mrb[0].mxu0 %v1003
      %v1738 = vpop.f32.mrb[0].mxu0
      %v1739 = vadd.f32 0.0, %v1738
      %v1740 = vpop.f32.mrb[0].mxu0
      %v1741 = vpop.f32.mrb[0].mxu0
      %v1742 = vadd.f32 0.0, %v1741
      %v1743 = vpop.f32.mrb[0].mxu0
      %1744 = vmatprep.mubr.bf16.mxu0 0
      %1745 = vmatmul.mubr.bf16.gmra.mrb[0].mxu0 %v1006
      %v1746 = vpop.f32.mrb[0].mxu0
      %v1747 = vadd.f32 0.0, %v1746
      %v1748 = vpop.f32.mrb[0].mxu0
      %v1749 = vpop.f32.mrb[0].mxu0
      %v1750 = vadd.f32 0.0, %v1749
      %v1751 = vpop.f32.mrb[0].mxu0
      %1752 = vmatprep.mubr.bf16.mxu0 0
      %1753 = vmatmul.mubr.bf16.gmra.mrb[0].mxu0 %v1009
      %v1754 = vpop.f32.mrb[0].mxu0
      %v1755 = vadd.f32 0.0, %v1754
      %v1756 = vpop.f32.mrb[0].mxu0
      %v1757 = vpop.f32.mrb[0].mxu0
      %v1758 = vadd.f32 0.0, %v1757
      %v1759 = vpop.f32.mrb[0].mxu0
      %1760 = vmatprep.mubr.bf16.mxu0 0
      %1761 = vmatmul.mubr.bf16.gmra.mrb[0].mxu0 %v1012
      %v1762 = vpop.f32.mrb[0].mxu0
      %v1763 = vadd.f32 0.0, %v1762
      %v1764 = vpop.f32.mrb[0].mxu0
      %v1765 = vpop.f32.mrb[0].mxu0
      %v1766 = vadd.f32 0.0, %v1765
      %v1767 = vpop.f32.mrb[0].mxu0
      %1768 = vmatprep.mubr.bf16.mxu0 0
      %1769 = vmatmul.mubr.bf16.gmra.mrb[0].mxu0 %v1015
      %v1770 = vpop.f32.mrb[0].mxu0
      %v1771 = vadd.f32 0.0, %v1770
      %v1772 = vpop.f32.mrb[0].mxu0
      %v1773 = vpop.f32.mrb[0].mxu0
      %v1774 = vadd.f32 0.0, %v1773
      %v1775 = vpop.f32.mrb[0].mxu0
      %1776 = vmatprep.mubr.bf16.mxu0 0
      %1777 = vmatmul.mubr.bf16.gmra.mrb[0].mxu0 %v1622
      %v1778 = vpop.f32.mrb[0].mxu0
      %v1779 = vadd.f32 0.0, %v1778
      %v1780 = vpop.f32.mrb[0].mxu0
      %v1781 = vpop.f32.mrb[0].mxu0
      %v1782 = vadd.f32 0.0, %v1781
      %v1783 = vpop.f32.mrb[0].mxu0
      %1784 = vdwg.mxu0
      %v1785 = vadd.f32 %v1575, %v1659
      %v1786 = vadd.f32 %v1576, %v1662
      %v1787 = vadd.f32 %v1577, %v1667
      %v1788 = vadd.f32 %v1578, %v1670
      %v1789 = vadd.f32 %v1579, %v1675
      %v1790 = vadd.f32 %v1580, %v1678
      %v1791 = vadd.f32 %v1581, %v1683
      %v1792 = vadd.f32 %v1582, %v1686
      %v1793 = vadd.f32 %v1583, %v1691
      %v1794 = vadd.f32 %v1584, %v1694
      %v1795 = vadd.f32 %v1585, %v1699
      %v1796 = vadd.f32 %v1586, %v1702
      %v1797 = vadd.f32 %v1587, %v1707
      %v1798 = vadd.f32 %v1588, %v1710
      %v1799 = vadd.f32 %v1589, %v1715
      %v1800 = vadd.f32 %v1590, %v1718
      %v1801 = vadd.f32 %v1591, %v1723
      %v1802 = vadd.f32 %v1592, %v1726
      %v1803 = vadd.f32 %v1593, %v1731
      %v1804 = vadd.f32 %v1594, %v1734
      %v1805 = vadd.f32 %v1595, %v1739
      %v1806 = vadd.f32 %v1596, %v1742
      %v1807 = vadd.f32 %v1597, %v1747
      %v1808 = vadd.f32 %v1598, %v1750
      %v1809 = vadd.f32 %v1599, %v1755
      %v1810 = vadd.f32 %v1600, %v1758
      %v1811 = vadd.f32 %v1601, %v1763
      %v1812 = vadd.f32 %v1602, %v1766
      %v1813 = vadd.f32 %v1603, %v1771
      %v1814 = vadd.f32 %v1604, %v1774
      %v1815 = vadd.f32 %v1605, %v1779
      %v1816 = vadd.f32 %v1606, %v1782
      %v1818 = vshrl.u32 %v221, 16
      %v1820 = vrot.slane %v1818, 4
      %v1821 = vshll.u32 %v221, 16
      %v1823 = vrot.slane %v1821, 5
      %v1824 = vor.u32 %v1820, %v1823
      %v1825 = vrot.slane %v1824, 4
      %v1827 = vshll.u32 %v222, 16
      %v1829 = vrot.slane %v1827, 5
      %v1830 = vsel %vm231, %v1825, %v1829
      %v1831 = vshrl.u32 %v222, 16
      %v1833 = vrot.slane %v1831, 4
      %v1834 = vor.u32 %v1833, %v1829
      %v1835 = vrot.slane %v1834, 4
      %v1837 = vshll.u32 %v223, 16
      %v1839 = vrot.slane %v1837, 5
      %v1840 = vsel %vm231, %v1835, %v1839
      %s1841 = scalar_lea.vmem %s1, 32
      %v1842 = vld [vmem:[%s1841] sm:$0xf]
      %v1843 = vld [vmem:[%s1841 + $0x4] sm:$0xf]
      %v1844 = vunpack.c.l.b16 %v1830
      %v1845 = vunpack.c.l.b16 %v1840
      %v1846 = vpack.c.b16 %v1845, %v1844
      %v1849 = vunpack.c.l.b16 %v1842
      %v1850 = vunpack.c.l.b16 %v1843
      %v1851 = vpack.c.b16 %v1850, %v1849
      %v1854 = vsel %vm673, %v1846, 0
      %1856 = vmatprep.subr.bf16.mxu0 0
      %1857 = vmatpush1.bf16.msra.mxu0 %v1851
      %1858 = vmatprep.subr.bf16.mxu0 0
      %1859 = vmatpush1.bf16.msra.mxu0 0
      %1860 = vmatprep.subr.bf16.mxu0 0
      %1861 = vmatpush1.bf16.msra.mxu0 0
      %1862 = vmatprep.subr.bf16.mxu0 0
      %1863 = vmatpush1.bf16.msra.mxu0 0
      %1864 = vmatprep.subr.bf16.mxu0 0
      %1865 = vmatpush1.bf16.msra.mxu0 0
      %1866 = vmatprep.subr.bf16.mxu0 0
      %1867 = vmatpush1.bf16.msra.mxu0 0
      %1868 = vmatprep.subr.bf16.mxu0 0
      %1869 = vmatpush1.bf16.msra.mxu0 0
      %1870 = vmatprep.subr.bf16.mxu0 0
      %1871 = vmatpush1.bf16.msra.mxu0 0
      %1872 = vmatprep.subr.bf16.mxu0 0
      %1873 = vmatpush1.bf16.msra.mxu0 0
      %1874 = vmatprep.subr.bf16.mxu0 0
      %1875 = vmatpush1.bf16.msra.mxu0 0
      %1876 = vmatprep.subr.bf16.mxu0 0
      %1877 = vmatpush1.bf16.msra.mxu0 0
      %1878 = vmatprep.subr.bf16.mxu0 0
      %1879 = vmatpush1.bf16.msra.mxu0 0
      %1880 = vmatprep.subr.bf16.mxu0 0
      %1881 = vmatpush1.bf16.msra.mxu0 0
      %1882 = vmatprep.subr.bf16.mxu0 0
      %1883 = vmatpush1.bf16.msra.mxu0 0
      %1884 = vmatprep.subr.bf16.mxu0 0
      %1885 = vmatpush1.bf16.msra.mxu0 0
      %1886 = vmatprep.subr.bf16.mxu0 0
      %1887 = vmatpush1.bf16.msra.mxu0 0
      %1888 = vmatprep.mubr.bf16.mxu0 0
      %1889 = vmatmul.mubr.bf16.gmra.mrb[0].mxu0 %v678
      %v1890 = vpop.f32.mrb[0].mxu0
      %v1891 = vadd.f32 0.0, %v1890
      %v1892 = vpop.f32.mrb[0].mxu0
      %v1893 = vpop.f32.mrb[0].mxu0
      %v1894 = vadd.f32 0.0, %v1893
      %v1895 = vpop.f32.mrb[0].mxu0
      %1896 = vmatprep.mubr.bf16.mxu0 0
      %1897 = vmatmul.mubr.bf16.gmra.mrb[0].mxu0 %v681
      %v1898 = vpop.f32.mrb[0].mxu0
      %v1899 = vadd.f32 0.0, %v1898
      %v1900 = vpop.f32.mrb[0].mxu0
      %v1901 = vpop.f32.mrb[0].mxu0
      %v1902 = vadd.f32 0.0, %v1901
      %v1903 = vpop.f32.mrb[0].mxu0
      %1904 = vmatprep.mubr.bf16.mxu0 0
      %1905 = vmatmul.mubr.bf16.gmra.mrb[0].mxu0 %v684
      %v1906 = vpop.f32.mrb[0].mxu0
      %v1907 = vadd.f32 0.0, %v1906
      %v1908 = vpop.f32.mrb[0].mxu0
      %v1909 = vpop.f32.mrb[0].mxu0
      %v1910 = vadd.f32 0.0, %v1909
      %v1911 = vpop.f32.mrb[0].mxu0
      %1912 = vmatprep.mubr.bf16.mxu0 0
      %1913 = vmatmul.mubr.bf16.gmra.mrb[0].mxu0 %v687
      %v1914 = vpop.f32.mrb[0].mxu0
      %v1915 = vadd.f32 0.0, %v1914
      %v1916 = vpop.f32.mrb[0].mxu0
      %v1917 = vpop.f32.mrb[0].mxu0
      %v1918 = vadd.f32 0.0, %v1917
      %v1919 = vpop.f32.mrb[0].mxu0
      %1920 = vmatprep.mubr.bf16.mxu0 0
      %1921 = vmatmul.mubr.bf16.gmra.mrb[0].mxu0 %v690
      %v1922 = vpop.f32.mrb[0].mxu0
      %v1923 = vadd.f32 0.0, %v1922
      %v1924 = vpop.f32.mrb[0].mxu0
      %v1925 = vpop.f32.mrb[0].mxu0
      %v1926 = vadd.f32 0.0, %v1925
      %v1927 = vpop.f32.mrb[0].mxu0
      %1928 = vmatprep.mubr.bf16.mxu0 0
      %1929 = vmatmul.mubr.bf16.gmra.mrb[0].mxu0 %v693
      %v1930 = vpop.f32.mrb[0].mxu0
      %v1931 = vadd.f32 0.0, %v1930
      %v1932 = vpop.f32.mrb[0].mxu0
      %v1933 = vpop.f32.mrb[0].mxu0
      %v1934 = vadd.f32 0.0, %v1933
      %v1935 = vpop.f32.mrb[0].mxu0
      %1936 = vmatprep.mubr.bf16.mxu0 0
      %1937 = vmatmul.mubr.bf16.gmra.mrb[0].mxu0 %v696
      %v1938 = vpop.f32.mrb[0].mxu0
      %v1939 = vadd.f32 0.0, %v1938
      %v1940 = vpop.f32.mrb[0].mxu0
      %v1941 = vpop.f32.mrb[0].mxu0
      %v1942 = vadd.f32 0.0, %v1941
      %v1943 = vpop.f32.mrb[0].mxu0
      %1944 = vmatprep.mubr.bf16.mxu0 0
      %1945 = vmatmul.mubr.bf16.gmra.mrb[0].mxu0 %v699
      %v1946 = vpop.f32.mrb[0].mxu0
      %v1947 = vadd.f32 0.0, %v1946
      %v1948 = vpop.f32.mrb[0].mxu0
      %v1949 = vpop.f32.mrb[0].mxu0
      %v1950 = vadd.f32 0.0, %v1949
      %v1951 = vpop.f32.mrb[0].mxu0
      %1952 = vmatprep.mubr.bf16.mxu0 0
      %1953 = vmatmul.mubr.bf16.gmra.mrb[0].mxu0 %v702
      %v1954 = vpop.f32.mrb[0].mxu0
      %v1955 = vadd.f32 0.0, %v1954
      %v1956 = vpop.f32.mrb[0].mxu0
      %v1957 = vpop.f32.mrb[0].mxu0
      %v1958 = vadd.f32 0.0, %v1957
      %v1959 = vpop.f32.mrb[0].mxu0
      %1960 = vmatprep.mubr.bf16.mxu0 0
      %1961 = vmatmul.mubr.bf16.gmra.mrb[0].mxu0 %v705
      %v1962 = vpop.f32.mrb[0].mxu0
      %v1963 = vadd.f32 0.0, %v1962
      %v1964 = vpop.f32.mrb[0].mxu0
      %v1965 = vpop.f32.mrb[0].mxu0
      %v1966 = vadd.f32 0.0, %v1965
      %v1967 = vpop.f32.mrb[0].mxu0
      %1968 = vmatprep.mubr.bf16.mxu0 0
      %1969 = vmatmul.mubr.bf16.gmra.mrb[0].mxu0 %v708
      %v1970 = vpop.f32.mrb[0].mxu0
      %v1971 = vadd.f32 0.0, %v1970
      %v1972 = vpop.f32.mrb[0].mxu0
      %v1973 = vpop.f32.mrb[0].mxu0
      %v1974 = vadd.f32 0.0, %v1973
      %v1975 = vpop.f32.mrb[0].mxu0
      %1976 = vmatprep.mubr.bf16.mxu0 0
      %1977 = vmatmul.mubr.bf16.gmra.mrb[0].mxu0 %v711
      %v1978 = vpop.f32.mrb[0].mxu0
      %v1979 = vadd.f32 0.0, %v1978
      %v1980 = vpop.f32.mrb[0].mxu0
      %v1981 = vpop.f32.mrb[0].mxu0
      %v1982 = vadd.f32 0.0, %v1981
      %v1983 = vpop.f32.mrb[0].mxu0
      %1984 = vmatprep.mubr.bf16.mxu0 0
      %1985 = vmatmul.mubr.bf16.gmra.mrb[0].mxu0 %v714
      %v1986 = vpop.f32.mrb[0].mxu0
      %v1987 = vadd.f32 0.0, %v1986
      %v1988 = vpop.f32.mrb[0].mxu0
      %v1989 = vpop.f32.mrb[0].mxu0
      %v1990 = vadd.f32 0.0, %v1989
      %v1991 = vpop.f32.mrb[0].mxu0
      %1992 = vmatprep.mubr.bf16.mxu0 0
      %1993 = vmatmul.mubr.bf16.gmra.mrb[0].mxu0 %v717
      %v1994 = vpop.f32.mrb[0].mxu0
      %v1995 = vadd.f32 0.0, %v1994
      %v1996 = vpop.f32.mrb[0].mxu0
      %v1997 = vpop.f32.mrb[0].mxu0
      %v1998 = vadd.f32 0.0, %v1997
      %v1999 = vpop.f32.mrb[0].mxu0
      %2000 = vmatprep.mubr.bf16.mxu0 0
      %2001 = vmatmul.mubr.bf16.gmra.mrb[0].mxu0 %v720
      %v2002 = vpop.f32.mrb[0].mxu0
      %v2003 = vadd.f32 0.0, %v2002
      %v2004 = vpop.f32.mrb[0].mxu0
      %v2005 = vpop.f32.mrb[0].mxu0
      %v2006 = vadd.f32 0.0, %v2005
      %v2007 = vpop.f32.mrb[0].mxu0
      %2008 = vmatprep.mubr.bf16.mxu0 0
      %2009 = vmatmul.mubr.bf16.gmra.mrb[0].mxu0 %v1854
      %v2010 = vpop.f32.mrb[0].mxu0
      %v2011 = vadd.f32 0.0, %v2010
      %v2012 = vpop.f32.mrb[0].mxu0
      %v2013 = vpop.f32.mrb[0].mxu0
      %v2014 = vadd.f32 0.0, %v2013
      %v2015 = vpop.f32.mrb[0].mxu0
      %2016 = vdwg.mxu0
      %v2017 = vadd.f32 %v1785, %v1891
      %v2018 = vadd.f32 %v1786, %v1894
      %v2019 = vadd.f32 %v1787, %v1899
      %v2020 = vadd.f32 %v1788, %v1902
      %v2021 = vadd.f32 %v1789, %v1907
      %v2022 = vadd.f32 %v1790, %v1910
      %v2023 = vadd.f32 %v1791, %v1915
      %v2024 = vadd.f32 %v1792, %v1918
      %v2025 = vadd.f32 %v1793, %v1923
      %v2026 = vadd.f32 %v1794, %v1926
      %v2027 = vadd.f32 %v1795, %v1931
      %v2028 = vadd.f32 %v1796, %v1934
      %v2029 = vadd.f32 %v1797, %v1939
      %v2030 = vadd.f32 %v1798, %v1942
      %v2031 = vadd.f32 %v1799, %v1947
      %v2032 = vadd.f32 %v1800, %v1950
      %v2033 = vadd.f32 %v1801, %v1955
      %v2034 = vadd.f32 %v1802, %v1958
      %v2035 = vadd.f32 %v1803, %v1963
      %v2036 = vadd.f32 %v1804, %v1966
      %v2037 = vadd.f32 %v1805, %v1971
      %v2038 = vadd.f32 %v1806, %v1974
      %v2039 = vadd.f32 %v1807, %v1979
      %v2040 = vadd.f32 %v1808, %v1982
      %v2041 = vadd.f32 %v1809, %v1987
      %v2042 = vadd.f32 %v1810, %v1990
      %v2043 = vadd.f32 %v1811, %v1995
      %v2044 = vadd.f32 %v1812, %v1998
      %v2045 = vadd.f32 %v1813, %v2003
      %v2046 = vadd.f32 %v1814, %v2006
      %v2047 = vadd.f32 %v1815, %v2011
      %v2048 = vadd.f32 %v1816, %v2014
      %v2050 = vrot.slane %v221, 5
      %v2051 = vrot.slane %v2050, 4
      %v2052 = vrot.slane %v222, 5
      %v2053 = vsel %vm1196, %v2051, %v2052
      %v2054 = vrot.slane %v2052, 4
      %v2055 = vrot.slane %v223, 5
      %v2056 = vsel %vm1196, %v2054, %v2055
      %s2057 = scalar_lea.vmem %s1, 40
      %v2058 = vld [vmem:[%s2057] sm:$0xf]
      %v2059 = vld [vmem:[%s2057 + $0x4] sm:$0xf]
      %v2060 = vunpack.c.l.b16 %v2053
      %v2061 = vunpack.c.l.b16 %v2056
      %v2062 = vpack.c.b16 %v2061, %v2060
      %v2065 = vunpack.c.l.b16 %v2058
      %v2066 = vunpack.c.l.b16 %v2059
      %v2067 = vpack.c.b16 %v2066, %v2065
      %v2070 = vsel %vm673, %v2062, 0
      %2072 = vmatprep.subr.bf16.mxu0 0
      %2073 = vmatpush1.bf16.msra.mxu0 %v2067
      %2074 = vmatprep.subr.bf16.mxu0 0
      %2075 = vmatpush1.bf16.msra.mxu0 0
      %2076 = vmatprep.subr.bf16.mxu0 0
      %2077 = vmatpush1.bf16.msra.mxu0 0
      %2078 = vmatprep.subr.bf16.mxu0 0
      %2079 = vmatpush1.bf16.msra.mxu0 0
      %2080 = vmatprep.subr.bf16.mxu0 0
      %2081 = vmatpush1.bf16.msra.mxu0 0
      %2082 = vmatprep.subr.bf16.mxu0 0
      %2083 = vmatpush1.bf16.msra.mxu0 0
      %2084 = vmatprep.subr.bf16.mxu0 0
      %2085 = vmatpush1.bf16.msra.mxu0 0
      %2086 = vmatprep.subr.bf16.mxu0 0
      %2087 = vmatpush1.bf16.msra.mxu0 0
      %2088 = vmatprep.subr.bf16.mxu0 0
      %2089 = vmatpush1.bf16.msra.mxu0 0
      %2090 = vmatprep.subr.bf16.mxu0 0
      %2091 = vmatpush1.bf16.msra.mxu0 0
      %2092 = vmatprep.subr.bf16.mxu0 0
      %2093 = vmatpush1.bf16.msra.mxu0 0
      %2094 = vmatprep.subr.bf16.mxu0 0
      %2095 = vmatpush1.bf16.msra.mxu0 0
      %2096 = vmatprep.subr.bf16.mxu0 0
      %2097 = vmatpush1.bf16.msra.mxu0 0
      %2098 = vmatprep.subr.bf16.mxu0 0
      %2099 = vmatpush1.bf16.msra.mxu0 0
      %2100 = vmatprep.subr.bf16.mxu0 0
      %2101 = vmatpush1.bf16.msra.mxu0 0
      %2102 = vmatprep.subr.bf16.mxu0 0
      %2103 = vmatpush1.bf16.msra.mxu0 0
      %2104 = vmatprep.mubr.bf16.mxu0 0
      %2105 = vmatmul.mubr.bf16.gmra.mrb[0].mxu0 %v1370
      %v2106 = vpop.f32.mrb[0].mxu0
      %v2107 = vadd.f32 0.0, %v2106
      %v2108 = vpop.f32.mrb[0].mxu0
      %v2109 = vpop.f32.mrb[0].mxu0
      %v2110 = vadd.f32 0.0, %v2109
      %v2111 = vpop.f32.mrb[0].mxu0
      %2112 = vmatprep.mubr.bf16.mxu0 0
      %2113 = vmatmul.mubr.bf16.gmra.mrb[0].mxu0 %v1373
      %v2114 = vpop.f32.mrb[0].mxu0
      %v2115 = vadd.f32 0.0, %v2114
      %v2116 = vpop.f32.mrb[0].mxu0
      %v2117 = vpop.f32.mrb[0].mxu0
      %v2118 = vadd.f32 0.0, %v2117
      %v2119 = vpop.f32.mrb[0].mxu0
      %2120 = vmatprep.mubr.bf16.mxu0 0
      %2121 = vmatmul.mubr.bf16.gmra.mrb[0].mxu0 %v1376
      %v2122 = vpop.f32.mrb[0].mxu0
      %v2123 = vadd.f32 0.0, %v2122
      %v2124 = vpop.f32.mrb[0].mxu0
      %v2125 = vpop.f32.mrb[0].mxu0
      %v2126 = vadd.f32 0.0, %v2125
      %v2127 = vpop.f32.mrb[0].mxu0
      %2128 = vmatprep.mubr.bf16.mxu0 0
      %2129 = vmatmul.mubr.bf16.gmra.mrb[0].mxu0 %v1379
      %v2130 = vpop.f32.mrb[0].mxu0
      %v2131 = vadd.f32 0.0, %v2130
      %v2132 = vpop.f32.mrb[0].mxu0
      %v2133 = vpop.f32.mrb[0].mxu0
      %v2134 = vadd.f32 0.0, %v2133
      %v2135 = vpop.f32.mrb[0].mxu0
      %2136 = vmatprep.mubr.bf16.mxu0 0
      %2137 = vmatmul.mubr.bf16.gmra.mrb[0].mxu0 %v1382
      %v2138 = vpop.f32.mrb[0].mxu0
      %v2139 = vadd.f32 0.0, %v2138
      %v2140 = vpop.f32.mrb[0].mxu0
      %v2141 = vpop.f32.mrb[0].mxu0
      %v2142 = vadd.f32 0.0, %v2141
      %v2143 = vpop.f32.mrb[0].mxu0
      %2144 = vmatprep.mubr.bf16.mxu0 0
      %2145 = vmatmul.mubr.bf16.gmra.mrb[0].mxu0 %v1385
      %v2146 = vpop.f32.mrb[0].mxu0
      %v2147 = vadd.f32 0.0, %v2146
      %v2148 = vpop.f32.mrb[0].mxu0
      %v2149 = vpop.f32.mrb[0].mxu0
      %v2150 = vadd.f32 0.0, %v2149
      %v2151 = vpop.f32.mrb[0].mxu0
      %2152 = vmatprep.mubr.bf16.mxu0 0
      %2153 = vmatmul.mubr.bf16.gmra.mrb[0].mxu0 %v1388
      %v2154 = vpop.f32.mrb[0].mxu0
      %v2155 = vadd.f32 0.0, %v2154
      %v2156 = vpop.f32.mrb[0].mxu0
      %v2157 = vpop.f32.mrb[0].mxu0
      %v2158 = vadd.f32 0.0, %v2157
      %v2159 = vpop.f32.mrb[0].mxu0
      %2160 = vmatprep.mubr.bf16.mxu0 0
      %2161 = vmatmul.mubr.bf16.gmra.mrb[0].mxu0 %v1391
      %v2162 = vpop.f32.mrb[0].mxu0
      %v2163 = vadd.f32 0.0, %v2162
      %v2164 = vpop.f32.mrb[0].mxu0
      %v2165 = vpop.f32.mrb[0].mxu0
      %v2166 = vadd.f32 0.0, %v2165
      %v2167 = vpop.f32.mrb[0].mxu0
      %2168 = vmatprep.mubr.bf16.mxu0 0
      %2169 = vmatmul.mubr.bf16.gmra.mrb[0].mxu0 %v1394
      %v2170 = vpop.f32.mrb[0].mxu0
      %v2171 = vadd.f32 0.0, %v2170
      %v2172 = vpop.f32.mrb[0].mxu0
      %v2173 = vpop.f32.mrb[0].mxu0
      %v2174 = vadd.f32 0.0, %v2173
      %v2175 = vpop.f32.mrb[0].mxu0
      %2176 = vmatprep.mubr.bf16.mxu0 0
      %2177 = vmatmul.mubr.bf16.gmra.mrb[0].mxu0 %v1397
      %v2178 = vpop.f32.mrb[0].mxu0
      %v2179 = vadd.f32 0.0, %v2178
      %v2180 = vpop.f32.mrb[0].mxu0
      %v2181 = vpop.f32.mrb[0].mxu0
      %v2182 = vadd.f32 0.0, %v2181
      %v2183 = vpop.f32.mrb[0].mxu0
      %2184 = vmatprep.mubr.bf16.mxu0 0
      %2185 = vmatmul.mubr.bf16.gmra.mrb[0].mxu0 %v1400
      %v2186 = vpop.f32.mrb[0].mxu0
      %v2187 = vadd.f32 0.0, %v2186
      %v2188 = vpop.f32.mrb[0].mxu0
      %v2189 = vpop.f32.mrb[0].mxu0
      %v2190 = vadd.f32 0.0, %v2189
      %v2191 = vpop.f32.mrb[0].mxu0
      %2192 = vmatprep.mubr.bf16.mxu0 0
      %2193 = vmatmul.mubr.bf16.gmra.mrb[0].mxu0 %v1403
      %v2194 = vpop.f32.mrb[0].mxu0
      %v2195 = vadd.f32 0.0, %v2194
      %v2196 = vpop.f32.mrb[0].mxu0
      %v2197 = vpop.f32.mrb[0].mxu0
      %v2198 = vadd.f32 0.0, %v2197
      %v2199 = vpop.f32.mrb[0].mxu0
      %2200 = vmatprep.mubr.bf16.mxu0 0
      %2201 = vmatmul.mubr.bf16.gmra.mrb[0].mxu0 %v1406
      %v2202 = vpop.f32.mrb[0].mxu0
      %v2203 = vadd.f32 0.0, %v2202
      %v2204 = vpop.f32.mrb[0].mxu0
      %v2205 = vpop.f32.mrb[0].mxu0
      %v2206 = vadd.f32 0.0, %v2205
      %v2207 = vpop.f32.mrb[0].mxu0
      %2208 = vmatprep.mubr.bf16.mxu0 0
      %2209 = vmatmul.mubr.bf16.gmra.mrb[0].mxu0 %v1409
      %v2210 = vpop.f32.mrb[0].mxu0
      %v2211 = vadd.f32 0.0, %v2210
      %v2212 = vpop.f32.mrb[0].mxu0
      %v2213 = vpop.f32.mrb[0].mxu0
      %v2214 = vadd.f32 0.0, %v2213
      %v2215 = vpop.f32.mrb[0].mxu0
      %2216 = vmatprep.mubr.bf16.mxu0 0
      %2217 = vmatmul.mubr.bf16.gmra.mrb[0].mxu0 %v1412
      %v2218 = vpop.f32.mrb[0].mxu0
      %v2219 = vadd.f32 0.0, %v2218
      %v2220 = vpop.f32.mrb[0].mxu0
      %v2221 = vpop.f32.mrb[0].mxu0
      %v2222 = vadd.f32 0.0, %v2221
      %v2223 = vpop.f32.mrb[0].mxu0
      %2224 = vmatprep.mubr.bf16.mxu0 0
      %2225 = vmatmul.mubr.bf16.gmra.mrb[0].mxu0 %v2070
      %v2226 = vpop.f32.mrb[0].mxu0
      %v2227 = vadd.f32 0.0, %v2226
      %v2228 = vpop.f32.mrb[0].mxu0
      %v2229 = vpop.f32.mrb[0].mxu0
      %v2230 = vadd.f32 0.0, %v2229
      %v2231 = vpop.f32.mrb[0].mxu0
      %2232 = vdwg.mxu0
      %v2233 = vadd.f32 %v2017, %v2107
      %v2234 = vadd.f32 %v2018, %v2110
      %v2235 = vadd.f32 %v2019, %v2115
      %v2236 = vadd.f32 %v2020, %v2118
      %v2237 = vadd.f32 %v2021, %v2123
      %v2238 = vadd.f32 %v2022, %v2126
      %v2239 = vadd.f32 %v2023, %v2131
      %v2240 = vadd.f32 %v2024, %v2134
      %v2241 = vadd.f32 %v2025, %v2139
      %v2242 = vadd.f32 %v2026, %v2142
      %v2243 = vadd.f32 %v2027, %v2147
      %v2244 = vadd.f32 %v2028, %v2150
      %v2245 = vadd.f32 %v2029, %v2155
      %v2246 = vadd.f32 %v2030, %v2158
      %v2247 = vadd.f32 %v2031, %v2163
      %v2248 = vadd.f32 %v2032, %v2166
      %v2249 = vadd.f32 %v2033, %v2171
      %v2250 = vadd.f32 %v2034, %v2174
      %v2251 = vadd.f32 %v2035, %v2179
      %v2252 = vadd.f32 %v2036, %v2182
      %v2253 = vadd.f32 %v2037, %v2187
      %v2254 = vadd.f32 %v2038, %v2190
      %v2255 = vadd.f32 %v2039, %v2195
      %v2256 = vadd.f32 %v2040, %v2198
      %v2257 = vadd.f32 %v2041, %v2203
      %v2258 = vadd.f32 %v2042, %v2206
      %v2259 = vadd.f32 %v2043, %v2211
      %v2260 = vadd.f32 %v2044, %v2214
      %v2261 = vadd.f32 %v2045, %v2219
      %v2262 = vadd.f32 %v2046, %v2222
      %v2263 = vadd.f32 %v2047, %v2227
      %v2264 = vadd.f32 %v2048, %v2230
      %s2265 = scalar_lea.vmem %s1, 48
      %v2266 = vld [vmem:[%s2265] sm:$0xf]
      %v2267 = vld [vmem:[%s2265 + $0x4] sm:$0xf]
      %v2270 = vunpack.c.l.b16 %v224
      %v2271 = vunpack.c.l.b16 %v225
      %v2272 = vpack.c.b16 %v2271, %v2270
      %v2275 = vunpack.c.l.b16 %v2266
      %v2276 = vunpack.c.l.b16 %v2267
      %v2277 = vpack.c.b16 %v2276, %v2275
      %v2280 = vsel %vm673, %v2272, 0
      %2282 = vmatprep.subr.bf16.mxu0 0
      %2283 = vmatpush1.bf16.msra.mxu0 %v2277
      %2284 = vmatprep.subr.bf16.mxu0 0
      %2285 = vmatpush1.bf16.msra.mxu0 0
      %2286 = vmatprep.subr.bf16.mxu0 0
      %2287 = vmatpush1.bf16.msra.mxu0 0
      %2288 = vmatprep.subr.bf16.mxu0 0
      %2289 = vmatpush1.bf16.msra.mxu0 0
      %2290 = vmatprep.subr.bf16.mxu0 0
      %2291 = vmatpush1.bf16.msra.mxu0 0
      %2292 = vmatprep.subr.bf16.mxu0 0
      %2293 = vmatpush1.bf16.msra.mxu0 0
      %2294 = vmatprep.subr.bf16.mxu0 0
      %2295 = vmatpush1.bf16.msra.mxu0 0
      %2296 = vmatprep.subr.bf16.mxu0 0
      %2297 = vmatpush1.bf16.msra.mxu0 0
      %2298 = vmatprep.subr.bf16.mxu0 0
      %2299 = vmatpush1.bf16.msra.mxu0 0
      %2300 = vmatprep.subr.bf16.mxu0 0
      %2301 = vmatpush1.bf16.msra.mxu0 0
      %2302 = vmatprep.subr.bf16.mxu0 0
      %2303 = vmatpush1.bf16.msra.mxu0 0
      %2304 = vmatprep.subr.bf16.mxu0 0
      %2305 = vmatpush1.bf16.msra.mxu0 0
      %2306 = vmatprep.subr.bf16.mxu0 0
      %2307 = vmatpush1.bf16.msra.mxu0 0
      %2308 = vmatprep.subr.bf16.mxu0 0
      %2309 = vmatpush1.bf16.msra.mxu0 0
      %2310 = vmatprep.subr.bf16.mxu0 0
      %2311 = vmatpush1.bf16.msra.mxu0 0
      %2312 = vmatprep.subr.bf16.mxu0 0
      %2313 = vmatpush1.bf16.msra.mxu0 0
      %2314 = vmatprep.mubr.bf16.mxu0 0
      %2315 = vmatmul.mubr.bf16.gmra.mrb[0].mxu0 %v976
      %v2316 = vpop.f32.mrb[0].mxu0
      %v2317 = vadd.f32 0.0, %v2316
      %v2318 = vpop.f32.mrb[0].mxu0
      %v2319 = vpop.f32.mrb[0].mxu0
      %v2320 = vadd.f32 0.0, %v2319
      %v2321 = vpop.f32.mrb[0].mxu0
      %2322 = vmatprep.mubr.bf16.mxu0 0
      %2323 = vmatmul.mubr.bf16.gmra.mrb[0].mxu0 %v979
      %v2324 = vpop.f32.mrb[0].mxu0
      %v2325 = vadd.f32 0.0, %v2324
      %v2326 = vpop.f32.mrb[0].mxu0
      %v2327 = vpop.f32.mrb[0].mxu0
      %v2328 = vadd.f32 0.0, %v2327
      %v2329 = vpop.f32.mrb[0].mxu0
      %2330 = vmatprep.mubr.bf16.mxu0 0
      %2331 = vmatmul.mubr.bf16.gmra.mrb[0].mxu0 %v982
      %v2332 = vpop.f32.mrb[0].mxu0
      %v2333 = vadd.f32 0.0, %v2332
      %v2334 = vpop.f32.mrb[0].mxu0
      %v2335 = vpop.f32.mrb[0].mxu0
      %v2336 = vadd.f32 0.0, %v2335
      %v2337 = vpop.f32.mrb[0].mxu0
      %2338 = vmatprep.mubr.bf16.mxu0 0
      %2339 = vmatmul.mubr.bf16.gmra.mrb[0].mxu0 %v985
      %v2340 = vpop.f32.mrb[0].mxu0
      %v2341 = vadd.f32 0.0, %v2340
      %v2342 = vpop.f32.mrb[0].mxu0
      %v2343 = vpop.f32.mrb[0].mxu0
      %v2344 = vadd.f32 0.0, %v2343
      %v2345 = vpop.f32.mrb[0].mxu0
      %2346 = vmatprep.mubr.bf16.mxu0 0
      %2347 = vmatmul.mubr.bf16.gmra.mrb[0].mxu0 %v988
      %v2348 = vpop.f32.mrb[0].mxu0
      %v2349 = vadd.f32 0.0, %v2348
      %v2350 = vpop.f32.mrb[0].mxu0
      %v2351 = vpop.f32.mrb[0].mxu0
      %v2352 = vadd.f32 0.0, %v2351
      %v2353 = vpop.f32.mrb[0].mxu0
      %2354 = vmatprep.mubr.bf16.mxu0 0
      %2355 = vmatmul.mubr.bf16.gmra.mrb[0].mxu0 %v991
      %v2356 = vpop.f32.mrb[0].mxu0
      %v2357 = vadd.f32 0.0, %v2356
      %v2358 = vpop.f32.mrb[0].mxu0
      %v2359 = vpop.f32.mrb[0].mxu0
      %v2360 = vadd.f32 0.0, %v2359
      %v2361 = vpop.f32.mrb[0].mxu0
      %2362 = vmatprep.mubr.bf16.mxu0 0
      %2363 = vmatmul.mubr.bf16.gmra.mrb[0].mxu0 %v994
      %v2364 = vpop.f32.mrb[0].mxu0
      %v2365 = vadd.f32 0.0, %v2364
      %v2366 = vpop.f32.mrb[0].mxu0
      %v2367 = vpop.f32.mrb[0].mxu0
      %v2368 = vadd.f32 0.0, %v2367
      %v2369 = vpop.f32.mrb[0].mxu0
      %2370 = vmatprep.mubr.bf16.mxu0 0
      %2371 = vmatmul.mubr.bf16.gmra.mrb[0].mxu0 %v997
      %v2372 = vpop.f32.mrb[0].mxu0
      %v2373 = vadd.f32 0.0, %v2372
      %v2374 = vpop.f32.mrb[0].mxu0
      %v2375 = vpop.f32.mrb[0].mxu0
      %v2376 = vadd.f32 0.0, %v2375
      %v2377 = vpop.f32.mrb[0].mxu0
      %2378 = vmatprep.mubr.bf16.mxu0 0
      %2379 = vmatmul.mubr.bf16.gmra.mrb[0].mxu0 %v1000
      %v2380 = vpop.f32.mrb[0].mxu0
      %v2381 = vadd.f32 0.0, %v2380
      %v2382 = vpop.f32.mrb[0].mxu0
      %v2383 = vpop.f32.mrb[0].mxu0
      %v2384 = vadd.f32 0.0, %v2383
      %v2385 = vpop.f32.mrb[0].mxu0
      %2386 = vmatprep.mubr.bf16.mxu0 0
      %2387 = vmatmul.mubr.bf16.gmra.mrb[0].mxu0 %v1003
      %v2388 = vpop.f32.mrb[0].mxu0
      %v2389 = vadd.f32 0.0, %v2388
      %v2390 = vpop.f32.mrb[0].mxu0
      %v2391 = vpop.f32.mrb[0].mxu0
      %v2392 = vadd.f32 0.0, %v2391
      %v2393 = vpop.f32.mrb[0].mxu0
      %2394 = vmatprep.mubr.bf16.mxu0 0
      %2395 = vmatmul.mubr.bf16.gmra.mrb[0].mxu0 %v1006
      %v2396 = vpop.f32.mrb[0].mxu0
      %v2397 = vadd.f32 0.0, %v2396
      %v2398 = vpop.f32.mrb[0].mxu0
      %v2399 = vpop.f32.mrb[0].mxu0
      %v2400 = vadd.f32 0.0, %v2399
      %v2401 = vpop.f32.mrb[0].mxu0
      %2402 = vmatprep.mubr.bf16.mxu0 0
      %2403 = vmatmul.mubr.bf16.gmra.mrb[0].mxu0 %v1009
      %v2404 = vpop.f32.mrb[0].mxu0
      %v2405 = vadd.f32 0.0, %v2404
      %v2406 = vpop.f32.mrb[0].mxu0
      %v2407 = vpop.f32.mrb[0].mxu0
      %v2408 = vadd.f32 0.0, %v2407
      %v2409 = vpop.f32.mrb[0].mxu0
      %2410 = vmatprep.mubr.bf16.mxu0 0
      %2411 = vmatmul.mubr.bf16.gmra.mrb[0].mxu0 %v1012
      %v2412 = vpop.f32.mrb[0].mxu0
      %v2413 = vadd.f32 0.0, %v2412
      %v2414 = vpop.f32.mrb[0].mxu0
      %v2415 = vpop.f32.mrb[0].mxu0
      %v2416 = vadd.f32 0.0, %v2415
      %v2417 = vpop.f32.mrb[0].mxu0
      %2418 = vmatprep.mubr.bf16.mxu0 0
      %2419 = vmatmul.mubr.bf16.gmra.mrb[0].mxu0 %v1015
      %v2420 = vpop.f32.mrb[0].mxu0
      %v2421 = vadd.f32 0.0, %v2420
      %v2422 = vpop.f32.mrb[0].mxu0
      %v2423 = vpop.f32.mrb[0].mxu0
      %v2424 = vadd.f32 0.0, %v2423
      %v2425 = vpop.f32.mrb[0].mxu0
      %2426 = vmatprep.mubr.bf16.mxu0 0
      %2427 = vmatmul.mubr.bf16.gmra.mrb[0].mxu0 %v1622
      %v2428 = vpop.f32.mrb[0].mxu0
      %v2429 = vadd.f32 0.0, %v2428
      %v2430 = vpop.f32.mrb[0].mxu0
      %v2431 = vpop.f32.mrb[0].mxu0
      %v2432 = vadd.f32 0.0, %v2431
      %v2433 = vpop.f32.mrb[0].mxu0
      %2434 = vmatprep.mubr.bf16.mxu0 0
      %2435 = vmatmul.mubr.bf16.gmra.mrb[0].mxu0 %v2280
      %v2436 = vpop.f32.mrb[0].mxu0
      %v2437 = vadd.f32 0.0, %v2436
      %v2438 = vpop.f32.mrb[0].mxu0
      %v2439 = vpop.f32.mrb[0].mxu0
      %v2440 = vadd.f32 0.0, %v2439
      %v2441 = vpop.f32.mrb[0].mxu0
      %2442 = vdwg.mxu0
      %v2443 = vadd.f32 %v2233, %v2317
      %v2444 = vadd.f32 %v2234, %v2320
      %v2445 = vadd.f32 %v2235, %v2325
      %v2446 = vadd.f32 %v2236, %v2328
      %v2447 = vadd.f32 %v2237, %v2333
      %v2448 = vadd.f32 %v2238, %v2336
      %v2449 = vadd.f32 %v2239, %v2341
      %v2450 = vadd.f32 %v2240, %v2344
      %v2451 = vadd.f32 %v2241, %v2349
      %v2452 = vadd.f32 %v2242, %v2352
      %v2453 = vadd.f32 %v2243, %v2357
      %v2454 = vadd.f32 %v2244, %v2360
      %v2455 = vadd.f32 %v2245, %v2365
      %v2456 = vadd.f32 %v2246, %v2368
      %v2457 = vadd.f32 %v2247, %v2373
      %v2458 = vadd.f32 %v2248, %v2376
      %v2459 = vadd.f32 %v2249, %v2381
      %v2460 = vadd.f32 %v2250, %v2384
      %v2461 = vadd.f32 %v2251, %v2389
      %v2462 = vadd.f32 %v2252, %v2392
      %v2463 = vadd.f32 %v2253, %v2397
      %v2464 = vadd.f32 %v2254, %v2400
      %v2465 = vadd.f32 %v2255, %v2405
      %v2466 = vadd.f32 %v2256, %v2408
      %v2467 = vadd.f32 %v2257, %v2413
      %v2468 = vadd.f32 %v2258, %v2416
      %v2469 = vadd.f32 %v2259, %v2421
      %v2470 = vadd.f32 %v2260, %v2424
      %v2471 = vadd.f32 %v2261, %v2429
      %v2472 = vadd.f32 %v2262, %v2432
      %v2473 = vadd.f32 %v2263, %v2437
      %v2474 = vadd.f32 %v2264, %v2440
      %v2476 = vshrl.u32 %v224, 16
      %v2478 = vrot.slane %v2476, 4
      %v2479 = vshll.u32 %v224, 16
      %v2481 = vrot.slane %v2479, 5
      %v2482 = vor.u32 %v2478, %v2481
      %v2483 = vrot.slane %v2482, 4
      %v2485 = vshll.u32 %v225, 16
      %v2487 = vrot.slane %v2485, 5
      %v2488 = vsel %vm231, %v2483, %v2487
      %v2489 = vshrl.u32 %v225, 16
      %v2491 = vrot.slane %v2489, 4
      %v2492 = vor.u32 %v2491, %v2487
      %v2493 = vrot.slane %v2492, 4
      %v2495 = vshll.u32 %v226, 16
      %v2497 = vrot.slane %v2495, 5
      %v2498 = vsel %vm231, %v2493, %v2497
      %s2499 = scalar_lea.vmem %s1, 56
      %v2500 = vld [vmem:[%s2499] sm:$0xf]
      %v2501 = vld [vmem:[%s2499 + $0x4] sm:$0xf]
      %v2502 = vunpack.c.l.b16 %v2488
      %v2503 = vunpack.c.l.b16 %v2498
      %v2504 = vpack.c.b16 %v2503, %v2502
      %v2507 = vunpack.c.l.b16 %v2500
      %v2508 = vunpack.c.l.b16 %v2501
      %v2509 = vpack.c.b16 %v2508, %v2507
      %v2512 = vsel %vm673, %v2504, 0
      %2514 = vmatprep.subr.bf16.mxu0 0
      %2515 = vmatpush1.bf16.msra.mxu0 %v2509
      %2516 = vmatprep.subr.bf16.mxu0 0
      %2517 = vmatpush1.bf16.msra.mxu0 0
      %2518 = vmatprep.subr.bf16.mxu0 0
      %2519 = vmatpush1.bf16.msra.mxu0 0
      %2520 = vmatprep.subr.bf16.mxu0 0
      %2521 = vmatpush1.bf16.msra.mxu0 0
      %2522 = vmatprep.subr.bf16.mxu0 0
      %2523 = vmatpush1.bf16.msra.mxu0 0
      %2524 = vmatprep.subr.bf16.mxu0 0
      %2525 = vmatpush1.bf16.msra.mxu0 0
      %2526 = vmatprep.subr.bf16.mxu0 0
      %2527 = vmatpush1.bf16.msra.mxu0 0
      %2528 = vmatprep.subr.bf16.mxu0 0
      %2529 = vmatpush1.bf16.msra.mxu0 0
      %2530 = vmatprep.subr.bf16.mxu0 0
      %2531 = vmatpush1.bf16.msra.mxu0 0
      %2532 = vmatprep.subr.bf16.mxu0 0
      %2533 = vmatpush1.bf16.msra.mxu0 0
      %2534 = vmatprep.subr.bf16.mxu0 0
      %2535 = vmatpush1.bf16.msra.mxu0 0
      %2536 = vmatprep.subr.bf16.mxu0 0
      %2537 = vmatpush1.bf16.msra.mxu0 0
      %2538 = vmatprep.subr.bf16.mxu0 0
      %2539 = vmatpush1.bf16.msra.mxu0 0
      %2540 = vmatprep.subr.bf16.mxu0 0
      %2541 = vmatpush1.bf16.msra.mxu0 0
      %2542 = vmatprep.subr.bf16.mxu0 0
      %2543 = vmatpush1.bf16.msra.mxu0 0
      %2544 = vmatprep.subr.bf16.mxu0 0
      %2545 = vmatpush1.bf16.msra.mxu0 0
      %2546 = vmatprep.mubr.bf16.mxu0 0
      %2547 = vmatmul.mubr.bf16.gmra.mrb[0].mxu0 %v681
      %v2548 = vpop.f32.mrb[0].mxu0
      %v2549 = vadd.f32 0.0, %v2548
      %v2550 = vpop.f32.mrb[0].mxu0
      %v2551 = vpop.f32.mrb[0].mxu0
      %v2552 = vadd.f32 0.0, %v2551
      %v2553 = vpop.f32.mrb[0].mxu0
      %2554 = vmatprep.mubr.bf16.mxu0 0
      %2555 = vmatmul.mubr.bf16.gmra.mrb[0].mxu0 %v684
      %v2556 = vpop.f32.mrb[0].mxu0
      %v2557 = vadd.f32 0.0, %v2556
      %v2558 = vpop.f32.mrb[0].mxu0
      %v2559 = vpop.f32.mrb[0].mxu0
      %v2560 = vadd.f32 0.0, %v2559
      %v2561 = vpop.f32.mrb[0].mxu0
      %2562 = vmatprep.mubr.bf16.mxu0 0
      %2563 = vmatmul.mubr.bf16.gmra.mrb[0].mxu0 %v687
      %v2564 = vpop.f32.mrb[0].mxu0
      %v2565 = vadd.f32 0.0, %v2564
      %v2566 = vpop.f32.mrb[0].mxu0
      %v2567 = vpop.f32.mrb[0].mxu0
      %v2568 = vadd.f32 0.0, %v2567
      %v2569 = vpop.f32.mrb[0].mxu0
      %2570 = vmatprep.mubr.bf16.mxu0 0
      %2571 = vmatmul.mubr.bf16.gmra.mrb[0].mxu0 %v690
      %v2572 = vpop.f32.mrb[0].mxu0
      %v2573 = vadd.f32 0.0, %v2572
      %v2574 = vpop.f32.mrb[0].mxu0
      %v2575 = vpop.f32.mrb[0].mxu0
      %v2576 = vadd.f32 0.0, %v2575
      %v2577 = vpop.f32.mrb[0].mxu0
      %2578 = vmatprep.mubr.bf16.mxu0 0
      %2579 = vmatmul.mubr.bf16.gmra.mrb[0].mxu0 %v693
      %v2580 = vpop.f32.mrb[0].mxu0
      %v2581 = vadd.f32 0.0, %v2580
      %v2582 = vpop.f32.mrb[0].mxu0
      %v2583 = vpop.f32.mrb[0].mxu0
      %v2584 = vadd.f32 0.0, %v2583
      %v2585 = vpop.f32.mrb[0].mxu0
      %2586 = vmatprep.mubr.bf16.mxu0 0
      %2587 = vmatmul.mubr.bf16.gmra.mrb[0].mxu0 %v696
      %v2588 = vpop.f32.mrb[0].mxu0
      %v2589 = vadd.f32 0.0, %v2588
      %v2590 = vpop.f32.mrb[0].mxu0
      %v2591 = vpop.f32.mrb[0].mxu0
      %v2592 = vadd.f32 0.0, %v2591
      %v2593 = vpop.f32.mrb[0].mxu0
      %2594 = vmatprep.mubr.bf16.mxu0 0
      %2595 = vmatmul.mubr.bf16.gmra.mrb[0].mxu0 %v699
      %v2596 = vpop.f32.mrb[0].mxu0
      %v2597 = vadd.f32 0.0, %v2596
      %v2598 = vpop.f32.mrb[0].mxu0
      %v2599 = vpop.f32.mrb[0].mxu0
      %v2600 = vadd.f32 0.0, %v2599
      %v2601 = vpop.f32.mrb[0].mxu0
      %2602 = vmatprep.mubr.bf16.mxu0 0
      %2603 = vmatmul.mubr.bf16.gmra.mrb[0].mxu0 %v702
      %v2604 = vpop.f32.mrb[0].mxu0
      %v2605 = vadd.f32 0.0, %v2604
      %v2606 = vpop.f32.mrb[0].mxu0
      %v2607 = vpop.f32.mrb[0].mxu0
      %v2608 = vadd.f32 0.0, %v2607
      %v2609 = vpop.f32.mrb[0].mxu0
      %2610 = vmatprep.mubr.bf16.mxu0 0
      %2611 = vmatmul.mubr.bf16.gmra.mrb[0].mxu0 %v705
      %v2612 = vpop.f32.mrb[0].mxu0
      %v2613 = vadd.f32 0.0, %v2612
      %v2614 = vpop.f32.mrb[0].mxu0
      %v2615 = vpop.f32.mrb[0].mxu0
      %v2616 = vadd.f32 0.0, %v2615
      %v2617 = vpop.f32.mrb[0].mxu0
      %2618 = vmatprep.mubr.bf16.mxu0 0
      %2619 = vmatmul.mubr.bf16.gmra.mrb[0].mxu0 %v708
      %v2620 = vpop.f32.mrb[0].mxu0
      %v2621 = vadd.f32 0.0, %v2620
      %v2622 = vpop.f32.mrb[0].mxu0
      %v2623 = vpop.f32.mrb[0].mxu0
      %v2624 = vadd.f32 0.0, %v2623
      %v2625 = vpop.f32.mrb[0].mxu0
      %2626 = vmatprep.mubr.bf16.mxu0 0
      %2627 = vmatmul.mubr.bf16.gmra.mrb[0].mxu0 %v711
      %v2628 = vpop.f32.mrb[0].mxu0
      %v2629 = vadd.f32 0.0, %v2628
      %v2630 = vpop.f32.mrb[0].mxu0
      %v2631 = vpop.f32.mrb[0].mxu0
      %v2632 = vadd.f32 0.0, %v2631
      %v2633 = vpop.f32.mrb[0].mxu0
      %2634 = vmatprep.mubr.bf16.mxu0 0
      %2635 = vmatmul.mubr.bf16.gmra.mrb[0].mxu0 %v714
      %v2636 = vpop.f32.mrb[0].mxu0
      %v2637 = vadd.f32 0.0, %v2636
      %v2638 = vpop.f32.mrb[0].mxu0
      %v2639 = vpop.f32.mrb[0].mxu0
      %v2640 = vadd.f32 0.0, %v2639
      %v2641 = vpop.f32.mrb[0].mxu0
      %2642 = vmatprep.mubr.bf16.mxu0 0
      %2643 = vmatmul.mubr.bf16.gmra.mrb[0].mxu0 %v717
      %v2644 = vpop.f32.mrb[0].mxu0
      %v2645 = vadd.f32 0.0, %v2644
      %v2646 = vpop.f32.mrb[0].mxu0
      %v2647 = vpop.f32.mrb[0].mxu0
      %v2648 = vadd.f32 0.0, %v2647
      %v2649 = vpop.f32.mrb[0].mxu0
      %2650 = vmatprep.mubr.bf16.mxu0 0
      %2651 = vmatmul.mubr.bf16.gmra.mrb[0].mxu0 %v720
      %v2652 = vpop.f32.mrb[0].mxu0
      %v2653 = vadd.f32 0.0, %v2652
      %v2654 = vpop.f32.mrb[0].mxu0
      %v2655 = vpop.f32.mrb[0].mxu0
      %v2656 = vadd.f32 0.0, %v2655
      %v2657 = vpop.f32.mrb[0].mxu0
      %2658 = vmatprep.mubr.bf16.mxu0 0
      %2659 = vmatmul.mubr.bf16.gmra.mrb[0].mxu0 %v1854
      %v2660 = vpop.f32.mrb[0].mxu0
      %v2661 = vadd.f32 0.0, %v2660
      %v2662 = vpop.f32.mrb[0].mxu0
      %v2663 = vpop.f32.mrb[0].mxu0
      %v2664 = vadd.f32 0.0, %v2663
      %v2665 = vpop.f32.mrb[0].mxu0
      %2666 = vmatprep.mubr.bf16.mxu0 0
      %2667 = vmatmul.mubr.bf16.gmra.mrb[0].mxu0 %v2512
      %v2668 = vpop.f32.mrb[0].mxu0
      %v2669 = vadd.f32 0.0, %v2668
      %v2670 = vpop.f32.mrb[0].mxu0
      %v2671 = vpop.f32.mrb[0].mxu0
      %v2672 = vadd.f32 0.0, %v2671
      %v2673 = vpop.f32.mrb[0].mxu0
      %2674 = vdwg.mxu0
      %v2675 = vadd.f32 %v2443, %v2549
      %v2676 = vadd.f32 %v2444, %v2552
      %v2677 = vadd.f32 %v2445, %v2557
      %v2678 = vadd.f32 %v2446, %v2560
      %v2679 = vadd.f32 %v2447, %v2565
      %v2680 = vadd.f32 %v2448, %v2568
      %v2681 = vadd.f32 %v2449, %v2573
      %v2682 = vadd.f32 %v2450, %v2576
      %v2683 = vadd.f32 %v2451, %v2581
      %v2684 = vadd.f32 %v2452, %v2584
      %v2685 = vadd.f32 %v2453, %v2589
      %v2686 = vadd.f32 %v2454, %v2592
      %v2687 = vadd.f32 %v2455, %v2597
      %v2688 = vadd.f32 %v2456, %v2600
      %v2689 = vadd.f32 %v2457, %v2605
      %v2690 = vadd.f32 %v2458, %v2608
      %v2691 = vadd.f32 %v2459, %v2613
      %v2692 = vadd.f32 %v2460, %v2616
      %v2693 = vadd.f32 %v2461, %v2621
      %v2694 = vadd.f32 %v2462, %v2624
      %v2695 = vadd.f32 %v2463, %v2629
      %v2696 = vadd.f32 %v2464, %v2632
      %v2697 = vadd.f32 %v2465, %v2637
      %v2698 = vadd.f32 %v2466, %v2640
      %v2699 = vadd.f32 %v2467, %v2645
      %v2700 = vadd.f32 %v2468, %v2648
      %v2701 = vadd.f32 %v2469, %v2653
      %v2702 = vadd.f32 %v2470, %v2656
      %v2703 = vadd.f32 %v2471, %v2661
      %v2704 = vadd.f32 %v2472, %v2664
      %v2705 = vadd.f32 %v2473, %v2669
      %v2706 = vadd.f32 %v2474, %v2672
      %v2708 = vrot.slane %v224, 5
      %v2709 = vrot.slane %v2708, 4
      %v2710 = vrot.slane %v225, 5
      %v2711 = vsel %vm1196, %v2709, %v2710
      %v2712 = vrot.slane %v2710, 4
      %v2713 = vrot.slane %v226, 5
      %v2714 = vsel %vm1196, %v2712, %v2713
      %s2715 = scalar_lea.vmem %s1, 64
      %v2716 = vld [vmem:[%s2715] sm:$0xf]
      %v2717 = vld [vmem:[%s2715 + $0x4] sm:$0xf]
      %v2718 = vunpack.c.l.b16 %v2711
      %v2719 = vunpack.c.l.b16 %v2714
      %v2720 = vpack.c.b16 %v2719, %v2718
      %v2723 = vunpack.c.l.b16 %v2716
      %v2724 = vunpack.c.l.b16 %v2717
      %v2725 = vpack.c.b16 %v2724, %v2723
      %v2728 = vsel %vm673, %v2720, 0
      %2730 = vmatprep.subr.bf16.mxu0 0
      %2731 = vmatpush1.bf16.msra.mxu0 %v2725
      %2732 = vmatprep.subr.bf16.mxu0 0
      %2733 = vmatpush1.bf16.msra.mxu0 0
      %2734 = vmatprep.subr.bf16.mxu0 0
      %2735 = vmatpush1.bf16.msra.mxu0 0
      %2736 = vmatprep.subr.bf16.mxu0 0
      %2737 = vmatpush1.bf16.msra.mxu0 0
      %2738 = vmatprep.subr.bf16.mxu0 0
      %2739 = vmatpush1.bf16.msra.mxu0 0
      %2740 = vmatprep.subr.bf16.mxu0 0
      %2741 = vmatpush1.bf16.msra.mxu0 0
      %2742 = vmatprep.subr.bf16.mxu0 0
      %2743 = vmatpush1.bf16.msra.mxu0 0
      %2744 = vmatprep.subr.bf16.mxu0 0
      %2745 = vmatpush1.bf16.msra.mxu0 0
      %2746 = vmatprep.subr.bf16.mxu0 0
      %2747 = vmatpush1.bf16.msra.mxu0 0
      %2748 = vmatprep.subr.bf16.mxu0 0
      %2749 = vmatpush1.bf16.msra.mxu0 0
      %2750 = vmatprep.subr.bf16.mxu0 0
      %2751 = vmatpush1.bf16.msra.mxu0 0
      %2752 = vmatprep.subr.bf16.mxu0 0
      %2753 = vmatpush1.bf16.msra.mxu0 0
      %2754 = vmatprep.subr.bf16.mxu0 0
      %2755 = vmatpush1.bf16.msra.mxu0 0
      %2756 = vmatprep.subr.bf16.mxu0 0
      %2757 = vmatpush1.bf16.msra.mxu0 0
      %2758 = vmatprep.subr.bf16.mxu0 0
      %2759 = vmatpush1.bf16.msra.mxu0 0
      %2760 = vmatprep.subr.bf16.mxu0 0
      %2761 = vmatpush1.bf16.msra.mxu0 0
      %2762 = vmatprep.mubr.bf16.mxu0 0
      %2763 = vmatmul.mubr.bf16.gmra.mrb[0].mxu0 %v1373
      %v2764 = vpop.f32.mrb[0].mxu0
      %v2765 = vadd.f32 0.0, %v2764
      %v2766 = vpop.f32.mrb[0].mxu0
      %v2767 = vpop.f32.mrb[0].mxu0
      %v2768 = vadd.f32 0.0, %v2767
      %v2769 = vpop.f32.mrb[0].mxu0
      %2770 = vmatprep.mubr.bf16.mxu0 0
      %2771 = vmatmul.mubr.bf16.gmra.mrb[0].mxu0 %v1376
      %v2772 = vpop.f32.mrb[0].mxu0
      %v2773 = vadd.f32 0.0, %v2772
      %v2774 = vpop.f32.mrb[0].mxu0
      %v2775 = vpop.f32.mrb[0].mxu0
      %v2776 = vadd.f32 0.0, %v2775
      %v2777 = vpop.f32.mrb[0].mxu0
      %2778 = vmatprep.mubr.bf16.mxu0 0
      %2779 = vmatmul.mubr.bf16.gmra.mrb[0].mxu0 %v1379
      %v2780 = vpop.f32.mrb[0].mxu0
      %v2781 = vadd.f32 0.0, %v2780
      %v2782 = vpop.f32.mrb[0].mxu0
      %v2783 = vpop.f32.mrb[0].mxu0
      %v2784 = vadd.f32 0.0, %v2783
      %v2785 = vpop.f32.mrb[0].mxu0
      %2786 = vmatprep.mubr.bf16.mxu0 0
      %2787 = vmatmul.mubr.bf16.gmra.mrb[0].mxu0 %v1382
      %v2788 = vpop.f32.mrb[0].mxu0
      %v2789 = vadd.f32 0.0, %v2788
      %v2790 = vpop.f32.mrb[0].mxu0
      %v2791 = vpop.f32.mrb[0].mxu0
      %v2792 = vadd.f32 0.0, %v2791
      %v2793 = vpop.f32.mrb[0].mxu0
      %2794 = vmatprep.mubr.bf16.mxu0 0
      %2795 = vmatmul.mubr.bf16.gmra.mrb[0].mxu0 %v1385
      %v2796 = vpop.f32.mrb[0].mxu0
      %v2797 = vadd.f32 0.0, %v2796
      %v2798 = vpop.f32.mrb[0].mxu0
      %v2799 = vpop.f32.mrb[0].mxu0
      %v2800 = vadd.f32 0.0, %v2799
      %v2801 = vpop.f32.mrb[0].mxu0
      %2802 = vmatprep.mubr.bf16.mxu0 0
      %2803 = vmatmul.mubr.bf16.gmra.mrb[0].mxu0 %v1388
      %v2804 = vpop.f32.mrb[0].mxu0
      %v2805 = vadd.f32 0.0, %v2804
      %v2806 = vpop.f32.mrb[0].mxu0
      %v2807 = vpop.f32.mrb[0].mxu0
      %v2808 = vadd.f32 0.0, %v2807
      %v2809 = vpop.f32.mrb[0].mxu0
      %2810 = vmatprep.mubr.bf16.mxu0 0
      %2811 = vmatmul.mubr.bf16.gmra.mrb[0].mxu0 %v1391
      %v2812 = vpop.f32.mrb[0].mxu0
      %v2813 = vadd.f32 0.0, %v2812
      %v2814 = vpop.f32.mrb[0].mxu0
      %v2815 = vpop.f32.mrb[0].mxu0
      %v2816 = vadd.f32 0.0, %v2815
      %v2817 = vpop.f32.mrb[0].mxu0
      %2818 = vmatprep.mubr.bf16.mxu0 0
      %2819 = vmatmul.mubr.bf16.gmra.mrb[0].mxu0 %v1394
      %v2820 = vpop.f32.mrb[0].mxu0
      %v2821 = vadd.f32 0.0, %v2820
      %v2822 = vpop.f32.mrb[0].mxu0
      %v2823 = vpop.f32.mrb[0].mxu0
      %v2824 = vadd.f32 0.0, %v2823
      %v2825 = vpop.f32.mrb[0].mxu0
      %2826 = vmatprep.mubr.bf16.mxu0 0
      %2827 = vmatmul.mubr.bf16.gmra.mrb[0].mxu0 %v1397
      %v2828 = vpop.f32.mrb[0].mxu0
      %v2829 = vadd.f32 0.0, %v2828
      %v2830 = vpop.f32.mrb[0].mxu0
      %v2831 = vpop.f32.mrb[0].mxu0
      %v2832 = vadd.f32 0.0, %v2831
      %v2833 = vpop.f32.mrb[0].mxu0
      %2834 = vmatprep.mubr.bf16.mxu0 0
      %2835 = vmatmul.mubr.bf16.gmra.mrb[0].mxu0 %v1400
      %v2836 = vpop.f32.mrb[0].mxu0
      %v2837 = vadd.f32 0.0, %v2836
      %v2838 = vpop.f32.mrb[0].mxu0
      %v2839 = vpop.f32.mrb[0].mxu0
      %v2840 = vadd.f32 0.0, %v2839
      %v2841 = vpop.f32.mrb[0].mxu0
      %2842 = vmatprep.mubr.bf16.mxu0 0
      %2843 = vmatmul.mubr.bf16.gmra.mrb[0].mxu0 %v1403
      %v2844 = vpop.f32.mrb[0].mxu0
      %v2845 = vadd.f32 0.0, %v2844
      %v2846 = vpop.f32.mrb[0].mxu0
      %v2847 = vpop.f32.mrb[0].mxu0
      %v2848 = vadd.f32 0.0, %v2847
      %v2849 = vpop.f32.mrb[0].mxu0
      %2850 = vmatprep.mubr.bf16.mxu0 0
      %2851 = vmatmul.mubr.bf16.gmra.mrb[0].mxu0 %v1406
      %v2852 = vpop.f32.mrb[0].mxu0
      %v2853 = vadd.f32 0.0, %v2852
      %v2854 = vpop.f32.mrb[0].mxu0
      %v2855 = vpop.f32.mrb[0].mxu0
      %v2856 = vadd.f32 0.0, %v2855
      %v2857 = vpop.f32.mrb[0].mxu0
      %2858 = vmatprep.mubr.bf16.mxu0 0
      %2859 = vmatmul.mubr.bf16.gmra.mrb[0].mxu0 %v1409
      %v2860 = vpop.f32.mrb[0].mxu0
      %v2861 = vadd.f32 0.0, %v2860
      %v2862 = vpop.f32.mrb[0].mxu0
      %v2863 = vpop.f32.mrb[0].mxu0
      %v2864 = vadd.f32 0.0, %v2863
      %v2865 = vpop.f32.mrb[0].mxu0
      %2866 = vmatprep.mubr.bf16.mxu0 0
      %2867 = vmatmul.mubr.bf16.gmra.mrb[0].mxu0 %v1412
      %v2868 = vpop.f32.mrb[0].mxu0
      %v2869 = vadd.f32 0.0, %v2868
      %v2870 = vpop.f32.mrb[0].mxu0
      %v2871 = vpop.f32.mrb[0].mxu0
      %v2872 = vadd.f32 0.0, %v2871
      %v2873 = vpop.f32.mrb[0].mxu0
      %2874 = vmatprep.mubr.bf16.mxu0 0
      %2875 = vmatmul.mubr.bf16.gmra.mrb[0].mxu0 %v2070
      %v2876 = vpop.f32.mrb[0].mxu0
      %v2877 = vadd.f32 0.0, %v2876
      %v2878 = vpop.f32.mrb[0].mxu0
      %v2879 = vpop.f32.mrb[0].mxu0
      %v2880 = vadd.f32 0.0, %v2879
      %v2881 = vpop.f32.mrb[0].mxu0
      %2882 = vmatprep.mubr.bf16.mxu0 0
      %2883 = vmatmul.mubr.bf16.gmra.mrb[0].mxu0 %v2728
      %v2884 = vpop.f32.mrb[0].mxu0
      %v2885 = vadd.f32 0.0, %v2884
      %v2886 = vpop.f32.mrb[0].mxu0
      %v2887 = vpop.f32.mrb[0].mxu0
      %v2888 = vadd.f32 0.0, %v2887
      %v2889 = vpop.f32.mrb[0].mxu0
      %2890 = vdwg.mxu0
      %v2891 = vadd.f32 %v2675, %v2765
      %v2892 = vadd.f32 %v2676, %v2768
      %v2893 = vadd.f32 %v2677, %v2773
      %v2894 = vadd.f32 %v2678, %v2776
      %v2895 = vadd.f32 %v2679, %v2781
      %v2896 = vadd.f32 %v2680, %v2784
      %v2897 = vadd.f32 %v2681, %v2789
      %v2898 = vadd.f32 %v2682, %v2792
      %v2899 = vadd.f32 %v2683, %v2797
      %v2900 = vadd.f32 %v2684, %v2800
      %v2901 = vadd.f32 %v2685, %v2805
      %v2902 = vadd.f32 %v2686, %v2808
      %v2903 = vadd.f32 %v2687, %v2813
      %v2904 = vadd.f32 %v2688, %v2816
      %v2905 = vadd.f32 %v2689, %v2821
      %v2906 = vadd.f32 %v2690, %v2824
      %v2907 = vadd.f32 %v2691, %v2829
      %v2908 = vadd.f32 %v2692, %v2832
      %v2909 = vadd.f32 %v2693, %v2837
      %v2910 = vadd.f32 %v2694, %v2840
      %v2911 = vadd.f32 %v2695, %v2845
      %v2912 = vadd.f32 %v2696, %v2848
      %v2913 = vadd.f32 %v2697, %v2853
      %v2914 = vadd.f32 %v2698, %v2856
      %v2915 = vadd.f32 %v2699, %v2861
      %v2916 = vadd.f32 %v2700, %v2864
      %v2917 = vadd.f32 %v2701, %v2869
      %v2918 = vadd.f32 %v2702, %v2872
      %v2919 = vadd.f32 %v2703, %v2877
      %v2920 = vadd.f32 %v2704, %v2880
      %v2921 = vadd.f32 %v2705, %v2885
      %v2922 = vadd.f32 %v2706, %v2888
      %v2923 = vld [vmem:[%s2] sm:$0x1]
      %v2925 = vlaneseq
      %v2926 = vshrl.u32 %v2925, 7
      %v2927 = vsub.s32 0, %v2926
      %v2928 = vrot.slane %v2923, %v2927
      %v2930 = vadd.f32 %v2891, %v2928
      %v2931 = vadd.f32 %v2892, %v2928
      %v2932 = vadd.f32 %v2893, %v2928
      %v2933 = vadd.f32 %v2894, %v2928
      %v2934 = vadd.f32 %v2895, %v2928
      %v2935 = vadd.f32 %v2896, %v2928
      %v2936 = vadd.f32 %v2897, %v2928
      %v2937 = vadd.f32 %v2898, %v2928
      %v2938 = vadd.f32 %v2899, %v2928
      %v2939 = vadd.f32 %v2900, %v2928
      %v2940 = vadd.f32 %v2901, %v2928
      %v2941 = vadd.f32 %v2902, %v2928
      %v2942 = vadd.f32 %v2903, %v2928
      %v2943 = vadd.f32 %v2904, %v2928
      %v2944 = vadd.f32 %v2905, %v2928
      %v2945 = vadd.f32 %v2906, %v2928
      %v2946 = vadd.f32 %v2907, %v2928
      %v2947 = vadd.f32 %v2908, %v2928
      %v2948 = vadd.f32 %v2909, %v2928
      %v2949 = vadd.f32 %v2910, %v2928
      %v2950 = vadd.f32 %v2911, %v2928
      %v2951 = vadd.f32 %v2912, %v2928
      %v2952 = vadd.f32 %v2913, %v2928
      %v2953 = vadd.f32 %v2914, %v2928
      %v2954 = vadd.f32 %v2915, %v2928
      %v2955 = vadd.f32 %v2916, %v2928
      %v2956 = vadd.f32 %v2917, %v2928
      %v2957 = vadd.f32 %v2918, %v2928
      %v2958 = vadd.f32 %v2919, %v2928
      %v2959 = vadd.f32 %v2920, %v2928
      %v2960 = vadd.f32 %v2921, %v2928
      %v2961 = vadd.f32 %v2922, %v2928
      %v2962 = vxor.u32 %v2930, 2147483648
      %v2963 = vxor.u32 %v2931, 2147483648
      %v2964 = vxor.u32 %v2932, 2147483648
      %v2965 = vxor.u32 %v2933, 2147483648
      %v2966 = vxor.u32 %v2934, 2147483648
      %v2967 = vxor.u32 %v2935, 2147483648
      %v2968 = vxor.u32 %v2936, 2147483648
      %v2969 = vxor.u32 %v2937, 2147483648
      %v2970 = vxor.u32 %v2938, 2147483648
      %v2971 = vxor.u32 %v2939, 2147483648
      %v2972 = vxor.u32 %v2940, 2147483648
      %v2973 = vxor.u32 %v2941, 2147483648
      %v2974 = vxor.u32 %v2942, 2147483648
      %v2975 = vxor.u32 %v2943, 2147483648
      %v2976 = vxor.u32 %v2944, 2147483648
      %v2977 = vxor.u32 %v2945, 2147483648
      %v2978 = vxor.u32 %v2946, 2147483648
      %v2979 = vxor.u32 %v2947, 2147483648
      %v2980 = vxor.u32 %v2948, 2147483648
      %v2981 = vxor.u32 %v2949, 2147483648
      %v2982 = vxor.u32 %v2950, 2147483648
      %v2983 = vxor.u32 %v2951, 2147483648
      %v2984 = vxor.u32 %v2952, 2147483648
      %v2985 = vxor.u32 %v2953, 2147483648
      %v2986 = vxor.u32 %v2954, 2147483648
      %v2987 = vxor.u32 %v2955, 2147483648
      %v2988 = vxor.u32 %v2956, 2147483648
      %v2989 = vxor.u32 %v2957, 2147483648
      %v2990 = vxor.u32 %v2958, 2147483648
      %v2991 = vxor.u32 %v2959, 2147483648
      %v2992 = vxor.u32 %v2960, 2147483648
      %v2993 = vxor.u32 %v2961, 2147483648
      %v2994 = vmul.f32 %v2962, 1.442695
      %v2995 = vpow.pop %v2994
      %v2996 = vmul.f32 %v2963, 1.442695
      %v2997 = vpow.pop %v2996
      %v2998 = vmul.f32 %v2964, 1.442695
      %v2999 = vpow.pop %v2998
      %v3000 = vmul.f32 %v2965, 1.442695
      %v3001 = vpow.pop %v3000
      %v3002 = vmul.f32 %v2966, 1.442695
      %v3003 = vpow.pop %v3002
      %v3004 = vmul.f32 %v2967, 1.442695
      %v3005 = vpow.pop %v3004
      %v3006 = vmul.f32 %v2968, 1.442695
      %v3007 = vpow.pop %v3006
      %v3008 = vmul.f32 %v2969, 1.442695
      %v3009 = vpow.pop %v3008
      %v3010 = vmul.f32 %v2970, 1.442695
      %v3011 = vpow.pop %v3010
      %v3012 = vmul.f32 %v2971, 1.442695
      %v3013 = vpow.pop %v3012
      %v3014 = vmul.f32 %v2972, 1.442695
      %v3015 = vpow.pop %v3014
      %v3016 = vmul.f32 %v2973, 1.442695
      %v3017 = vpow.pop %v3016
      %v3018 = vmul.f32 %v2974, 1.442695
      %v3019 = vpow.pop %v3018
      %v3020 = vmul.f32 %v2975, 1.442695
      %v3021 = vpow.pop %v3020
      %v3022 = vmul.f32 %v2976, 1.442695
      %v3023 = vpow.pop %v3022
      %v3024 = vmul.f32 %v2977, 1.442695
      %v3025 = vpow.pop %v3024
      %v3026 = vmul.f32 %v2978, 1.442695
      %v3027 = vpow.pop %v3026
      %v3028 = vmul.f32 %v2979, 1.442695
      %v3029 = vpow.pop %v3028
      %v3030 = vmul.f32 %v2980, 1.442695
      %v3031 = vpow.pop %v3030
      %v3032 = vmul.f32 %v2981, 1.442695
      %v3033 = vpow.pop %v3032
      %v3034 = vmul.f32 %v2982, 1.442695
      %v3035 = vpow.pop %v3034
      %v3036 = vmul.f32 %v2983, 1.442695
      %v3037 = vpow.pop %v3036
      %v3038 = vmul.f32 %v2984, 1.442695
      %v3039 = vpow.pop %v3038
      %v3040 = vmul.f32 %v2985, 1.442695
      %v3041 = vpow.pop %v3040
      %v3042 = vmul.f32 %v2986, 1.442695
      %v3043 = vpow.pop %v3042
      %v3044 = vmul.f32 %v2987, 1.442695
      %v3045 = vpow.pop %v3044
      %v3046 = vmul.f32 %v2988, 1.442695
      %v3047 = vpow.pop %v3046
      %v3048 = vmul.f32 %v2989, 1.442695
      %v3049 = vpow.pop %v3048
      %v3050 = vmul.f32 %v2990, 1.442695
      %v3051 = vpow.pop %v3050
      %v3052 = vmul.f32 %v2991, 1.442695
      %v3053 = vpow.pop %v3052
      %v3054 = vmul.f32 %v2992, 1.442695
      %v3055 = vpow.pop %v3054
      %v3056 = vmul.f32 %v2993, 1.442695
      %v3057 = vpow.pop %v3056
      %v3058 = vadd.f32 %v2995, 1.0
      %v3059 = vadd.f32 %v2997, 1.0
      %v3060 = vadd.f32 %v2999, 1.0
      %v3061 = vadd.f32 %v3001, 1.0
      %v3062 = vadd.f32 %v3003, 1.0
      %v3063 = vadd.f32 %v3005, 1.0
      %v3064 = vadd.f32 %v3007, 1.0
      %v3065 = vadd.f32 %v3009, 1.0
      %v3066 = vadd.f32 %v3011, 1.0
      %v3067 = vadd.f32 %v3013, 1.0
      %v3068 = vadd.f32 %v3015, 1.0
      %v3069 = vadd.f32 %v3017, 1.0
      %v3070 = vadd.f32 %v3019, 1.0
      %v3071 = vadd.f32 %v3021, 1.0
      %v3072 = vadd.f32 %v3023, 1.0
      %v3073 = vadd.f32 %v3025, 1.0
      %v3074 = vadd.f32 %v3027, 1.0
      %v3075 = vadd.f32 %v3029, 1.0
      %v3076 = vadd.f32 %v3031, 1.0
      %v3077 = vadd.f32 %v3033, 1.0
      %v3078 = vadd.f32 %v3035, 1.0
      %v3079 = vadd.f32 %v3037, 1.0
      %v3080 = vadd.f32 %v3039, 1.0
      %v3081 = vadd.f32 %v3041, 1.0
      %v3082 = vadd.f32 %v3043, 1.0
      %v3083 = vadd.f32 %v3045, 1.0
      %v3084 = vadd.f32 %v3047, 1.0
      %v3085 = vadd.f32 %v3049, 1.0
      %v3086 = vadd.f32 %v3051, 1.0
      %v3087 = vadd.f32 %v3053, 1.0
      %v3088 = vadd.f32 %v3055, 1.0
      %v3089 = vadd.f32 %v3057, 1.0
      %v3090 = vrcp.pop %v3058
      %v3091 = vmul.f32 1.0, %v3090
      %v3092 = vrcp.pop %v3059
      %v3093 = vmul.f32 1.0, %v3092
      %v3094 = vrcp.pop %v3060
      %v3095 = vmul.f32 1.0, %v3094
      %v3096 = vrcp.pop %v3061
      %v3097 = vmul.f32 1.0, %v3096
      %v3098 = vrcp.pop %v3062
      %v3099 = vmul.f32 1.0, %v3098
      %v3100 = vrcp.pop %v3063
      %v3101 = vmul.f32 1.0, %v3100
      %v3102 = vrcp.pop %v3064
      %v3103 = vmul.f32 1.0, %v3102
      %v3104 = vrcp.pop %v3065
      %v3105 = vmul.f32 1.0, %v3104
      %v3106 = vrcp.pop %v3066
      %v3107 = vmul.f32 1.0, %v3106
      %v3108 = vrcp.pop %v3067
      %v3109 = vmul.f32 1.0, %v3108
      %v3110 = vrcp.pop %v3068
      %v3111 = vmul.f32 1.0, %v3110
      %v3112 = vrcp.pop %v3069
      %v3113 = vmul.f32 1.0, %v3112
      %v3114 = vrcp.pop %v3070
      %v3115 = vmul.f32 1.0, %v3114
      %v3116 = vrcp.pop %v3071
      %v3117 = vmul.f32 1.0, %v3116
      %v3118 = vrcp.pop %v3072
      %v3119 = vmul.f32 1.0, %v3118
      %v3120 = vrcp.pop %v3073
      %v3121 = vmul.f32 1.0, %v3120
      %v3122 = vrcp.pop %v3074
      %v3123 = vmul.f32 1.0, %v3122
      %v3124 = vrcp.pop %v3075
      %v3125 = vmul.f32 1.0, %v3124
      %v3126 = vrcp.pop %v3076
      %v3127 = vmul.f32 1.0, %v3126
      %v3128 = vrcp.pop %v3077
      %v3129 = vmul.f32 1.0, %v3128
      %v3130 = vrcp.pop %v3078
      %v3131 = vmul.f32 1.0, %v3130
      %v3132 = vrcp.pop %v3079
      %v3133 = vmul.f32 1.0, %v3132
      %v3134 = vrcp.pop %v3080
      %v3135 = vmul.f32 1.0, %v3134
      %v3136 = vrcp.pop %v3081
      %v3137 = vmul.f32 1.0, %v3136
      %v3138 = vrcp.pop %v3082
      %v3139 = vmul.f32 1.0, %v3138
      %v3140 = vrcp.pop %v3083
      %v3141 = vmul.f32 1.0, %v3140
      %v3142 = vrcp.pop %v3084
      %v3143 = vmul.f32 1.0, %v3142
      %v3144 = vrcp.pop %v3085
      %v3145 = vmul.f32 1.0, %v3144
      %v3146 = vrcp.pop %v3086
      %v3147 = vmul.f32 1.0, %v3146
      %v3148 = vrcp.pop %v3087
      %v3149 = vmul.f32 1.0, %v3148
      %v3150 = vrcp.pop %v3088
      %v3151 = vmul.f32 1.0, %v3150
      %v3152 = vrcp.pop %v3089
      %v3153 = vmul.f32 1.0, %v3152
      %3154 = vst [vmem:[%s170] sm:$0xff] %v3091
      %3155 = vst [vmem:[%s170 + $0x8] sm:$0xff] %v3093
      %3156 = vst [vmem:[%s170 + $0x10] sm:$0xff] %v3095
      %3157 = vst [vmem:[%s170 + $0x18] sm:$0xff] %v3097
      %3158 = vst [vmem:[%s170 + $0x20] sm:$0xff] %v3099
      %3159 = vst [vmem:[%s170 + $0x28] sm:$0xff] %v3101
      %3160 = vst [vmem:[%s170 + $0x30] sm:$0xff] %v3103
      %3161 = vst [vmem:[%s170 + $0x38] sm:$0xff] %v3105
      %3162 = vst [vmem:[%s170 + $0x40] sm:$0xff] %v3107
      %3163 = vst [vmem:[%s170 + $0x48] sm:$0xff] %v3109
      %3164 = vst [vmem:[%s170 + $0x50] sm:$0xff] %v3111
      %3165 = vst [vmem:[%s170 + $0x58] sm:$0xff] %v3113
      %3166 = vst [vmem:[%s170 + $0x60] sm:$0xff] %v3115
      %3167 = vst [vmem:[%s170 + $0x68] sm:$0xff] %v3117
      %3168 = vst [vmem:[%s170 + $0x70] sm:$0xff] %v3119
      %3169 = vst [vmem:[%s170 + $0x78] sm:$0xff] %v3121
      %3170 = vst [vmem:[%s170 + $0x80] sm:$0xff] %v3123
      %3171 = vst [vmem:[%s170 + $0x88] sm:$0xff] %v3125
      %3172 = vst [vmem:[%s170 + $0x90] sm:$0xff] %v3127
      %3173 = vst [vmem:[%s170 + $0x98] sm:$0xff] %v3129
      %3174 = vst [vmem:[%s170 + $0xa0] sm:$0xff] %v3131
      %3175 = vst [vmem:[%s170 + $0xa8] sm:$0xff] %v3133
      %3176 = vst [vmem:[%s170 + $0xb0] sm:$0xff] %v3135
      %3177 = vst [vmem:[%s170 + $0xb8] sm:$0xff] %v3137
      %3178 = vst [vmem:[%s170 + $0xc0] sm:$0xff] %v3139
      %3179 = vst [vmem:[%s170 + $0xc8] sm:$0xff] %v3141
      %3180 = vst [vmem:[%s170 + $0xd0] sm:$0xff] %v3143
      %3181 = vst [vmem:[%s170 + $0xd8] sm:$0xff] %v3145
      %3182 = vst [vmem:[%s170 + $0xe0] sm:$0xff] %v3147
      %3183 = vst [vmem:[%s170 + $0xe8] sm:$0xff] %v3149
      %3184 = vst [vmem:[%s170 + $0xf0] sm:$0xff] %v3151
      %3185 = vst [vmem:[%s170 + $0xf8] sm:$0xff] %v3153
      %s3186 = smul.u32 32, %s14
      %p3187 = scmp.lt.s32.totalorder %s3186, 63
      %s3188 = scalar_select %p3187, %s3186, 63
      %s3189 = smul.addr %s3188, 8
      %s3190 = scalar_lea.vmem %s3, %s3189
      // Predicated region
      $region33: #{cvae_forward.9} parent=31 // pred_check
        %p3191 = pneg %p100
      $region34: #{cvae_forward.9} parent=31 // pred_check_branch
        %3193 = sbr.rel (%p3191) target = $region36
      $region35: #{cvae_forward.9} parent=31 // pred_region
        %s3194 = smul.u32 32, %s14
      $region36: #{cvae_forward.9} parent=31 // pred_fallthru
        _
    $region32: #{cvae_forward.9} parent=5 // pred_fallthru
      _
    %p3195 = scmp.le.s32.totalorder 2, %s9
    // Predicated region
    $region37: #{cvae_forward.9} parent=5 // pred_check
      %p3196 = pneg %p3195
    $region38: #{cvae_forward.9} parent=5 // pred_check_branch
      %3198 = sbr.rel (%p3196) target = $region40
    $region39: #{cvae_forward.9} parent=5 // pred_region
      %s3199 = ssub.s32 %s9, 2
      // Predicated region
      $region41: #{cvae_forward.9} parent=39 // pred_check
        %p3200 = pneg %p106
      $region42: #{cvae_forward.9} parent=39 // pred_check_branch
        %3202 = sbr.rel (%p3200) target = $region44
      $region43: #{cvae_forward.9} parent=39 // pred_region
        %s3203 = smul.u32 32, %s15
        %p3204 = scmp.lt.s32.totalorder %s3203, 63
        %s3205 = scalar_select %p3204, %s3203, 63
        %s3206 = smul.addr %s3205, 8
        %s3207 = scalar_lea.vmem %s3, %s3206
      $region44: #{cvae_forward.9} parent=39 // pred_fallthru
        _
    $region40: #{cvae_forward.9} parent=5 // pred_fallthru
      _
  $region6: #{cvae_forward.9} parent=0 // loop_footer
    %s13 = sadd.s32 1, %s9
  $region7: #{cvae_forward.9} parent=0 // loop_footer_branch
    %8 = sbr.rel target = $region3
  $region8: #{cvae_forward.9} parent=0 // loop_exit
    _

</llo_original>
